<compile_context>
chip_gen: v6e
topology: v6e:2x2x1
jax: 0.10.0
libtpu: 0.0.40
codegen_flags: <defaults>
</compile_context>

<pallas_src>
import numpy as np

import jax
import jax.numpy as jnp
from jax import lax
from jax.experimental import pallas as pl
from jax.experimental.pallas import tpu as pltpu

C_PAD = 8              # output-channel rows padded to 8 sublanes


def _pad128(p):
    return max(128, ((p + 127) // 128) * 128)


def _conv_offsets(W, HW, s):
    return [s * (kd * HW + kh * W + kw)
            for kd in (-1, 0, 1) for kh in (-1, 0, 1) for kw in (-1, 0, 1)]


def _child_offsets(W, HW, s):
    # slot k = 4*kd + 2*kh + kw  (same convention as the reference argmax)
    return [s * (kd * HW + kh * W + kw)
            for kd in (0, 1) for kh in (0, 1) for kw in (0, 1)]


# ----------------------------------------------------------------------------
# Fused kernel (whole forward for one batch element, everything in VMEM)
# ----------------------------------------------------------------------------
def _build_kernel(D, H, W, P1A):
    HW = H * W
    offs0 = _conv_offsets(W, HW, 1)     # full-resolution conv taps
    offs1 = _conv_offsets(W, HW, 2)     # half-resolution conv taps (anchor grid)
    ch0 = _child_offsets(W, HW, 1)      # unpool -> level 0
    ch1 = _child_offsets(W, HW, 2)      # unpool -> level 1

    def _shift(v, off):
        """result[l] = v[l + off] (cyclic; masks guarantee no wrapped reads)."""
        if off == 0:
            return v
        return pltpu.roll(v, (-off) % P1A, 1)

    def _conv(src, cp, kpad, w_ref, b_ref, m_ref, pat_ref, offs):
        """'same' 3x3x3 conv + bias + ReLU via im2col pat + one K=kpad GEMM.

        src:   (cp, P1A) real input-channel rows (channels on sublanes,
               flat spatial on lanes; pooled levels are anchor-strided).
        m_ref: (27, P1A) precomputed 0/1 validity masks (per tap, per lane).
        """
        for t, off in enumerate(offs):
            pat_ref[t * cp:(t + 1) * cp, :] = _shift(src, off) * m_ref[t:t + 1, :]
        y = jnp.dot(w_ref[...], pat_ref[0:kpad, :],
                    preferred_element_type=jnp.float32)
        y = jnp.maximum(y + b_ref[...], 0.0)
        # zero non-voxel / non-anchor lanes (center-tap mask == validity)
        return y * m_ref[13:14, :]

    def _maxpool(h, s):
        """2x2x2/stride-2 max pool as a 3-stage roll tree.

        Input valid at stride-s anchor lanes; output (value, slot idx) valid
        at stride-2s anchor lanes.  Ties resolve to the lowest slot index
        (matches jnp.argmax / first-max-wins)."""
        sw, sh, sd = s, s * W, s * HW
        xs = _shift(h, sw)                      # kw = 1 sibling
        bw = (xs > h).astype(jnp.float32)
        m = jnp.maximum(h, xs)
        ms, bws = _shift(m, sh), _shift(bw, sh)  # kh = 1 branch winner
        t = ms > m
        bh = t.astype(jnp.float32)
        bw = jnp.where(t, bws, bw)
        m = jnp.maximum(m, ms)
        ms, bws, bhs = _shift(m, sd), _shift(bw, sd), _shift(bh, sd)
        t = ms > m                               # kd = 1 branch winner
        bd = t.astype(jnp.float32)
        bw = jnp.where(t, bws, bw)
        bh = jnp.where(t, bhs, bh)
        m = jnp.maximum(m, ms)
        return m, 4.0 * bd + 2.0 * bh + bw

    def _maxunpool(v, idx, kq_ref, offs):
        """Scatter each pooled value to its argmax child lane.

        kq_ref: (1, P1A) constant slot code of every child lane (-1 at
        invalid/padding lanes)."""
        kq = kq_ref[...]
        out = jnp.zeros_like(v)
        for k, off in enumerate(offs):
            sel = (kq == float(k)) & (_shift(idx, -off) == float(k))
            out = out + jnp.where(sel, _shift(v, -off), 0.0)
        return out

    def kernel(x_ref, w1, b1, w2, b2, wd1, bd1, wd2, bd2,
               m0, m1, kq0, kq1, o_ref, pat):
        # Zero the K-padding rows of the shared pat scratch once per step so
        # uninitialized VMEM can never contribute NaN*0 to the GEMMs.
        pat[27:32, :] = jnp.zeros((5, P1A), jnp.float32)
        pat[108:112, :] = jnp.zeros((4, P1A), jnp.float32)

        # ---------------- encoder ----------------
        h = _conv(x_ref[...], 1, 32, w1, b1, m0, pat, offs0)        # 1 -> 4
        h, i1 = _maxpool(h, 1)                                      # pool1
        h = _conv(h[0:4, :], 4, 112, w2, b2, m1, pat, offs1)        # 4 -> 8
        h, i2 = _maxpool(h, 2)                                      # pool2
        # ---------------- decoder ----------------
        h = _maxunpool(h, i2, kq1, ch1)                             # unpool2
        h = _conv(h, 8, 216, wd1, bd1, m1, pat, offs1)              # 8 -> 4
        h = _maxunpool(h, i1, kq0, ch0)                             # unpool1
        h = _conv(h[0:4, :], 4, 112, wd2, bd2, m0, pat, offs0)      # 4 -> 1
        o_ref[...] = h[0:1, :]

    return kernel


# ----------------------------------------------------------------------------
# Host-side constant / parameter preparation (tiny, trace-time only)
# ----------------------------------------------------------------------------
def _level_masks_np(D, H, W, s, P1A):
    """(27, P1A) 0/1 masks: tap t valid at lane L iff L is a level anchor and
    the (kd,kh,kw) neighbour is inside the level grid."""
    HW = H * W
    Dl, Hl, Wl = D // s, H // s, W // s
    x, y, z = np.meshgrid(np.arange(Dl), np.arange(Hl), np.arange(Wl),
                          indexing="ij")
    lanes = (s * (x * HW + y * W + z)).ravel()
    masks = np.zeros((27, P1A), np.float32)
    t = 0
    for kd in (-1, 0, 1):
        for kh in (-1, 0, 1):
            for kw in (-1, 0, 1):
                ok = ((0 <= x + kd) & (x + kd < Dl) &
                      (0 <= y + kh) & (y + kh < Hl) &
                      (0 <= z + kw) & (z + kw < Wl)).ravel()
                masks[t, lanes] = ok.astype(np.float32)
                t += 1
    return masks


def _kq_np(D, H, W, s, P1A):
    """(1, P1A) pool-window slot code (4*(x%2)+2*(y%2)+(z%2)) of each child
    lane at this level; -1 at invalid / padding lanes."""
    HW = H * W
    Dl, Hl, Wl = D // s, H // s, W // s
    x, y, z = np.meshgrid(np.arange(Dl), np.arange(Hl), np.arange(Wl),
                          indexing="ij")
    lanes = (s * (x * HW + y * W + z)).ravel()
    kq = np.full((1, P1A), -1.0, np.float32)
    kq[0, lanes] = (4 * (x % 2) + 2 * (y % 2) + (z % 2)).ravel().astype(np.float32)
    return kq


def _conv_w_to_mat(w, cp, kpad):
    """Conv3d weight (Cout, Cin, 3,3,3) -> (8, kpad) GEMM matrix; contraction
    index = tap*cp + cin."""
    Cout, Cin = w.shape[0], w.shape[1]
    wk = jnp.transpose(w, (2, 3, 4, 1, 0)).reshape(27, Cin, Cout)
    wk = jnp.pad(wk, ((0, 0), (0, cp - Cin), (0, C_PAD - Cout)))
    mat = jnp.transpose(wk, (2, 0, 1)).reshape(C_PAD, 27 * cp)
    return jnp.pad(mat, ((0, 0), (0, kpad - 27 * cp)))


def _deconv_w_to_mat(wt, cp, kpad):
    """ConvTranspose3d weight (Cin, Cout, 3,3,3), stride 1 / pad 1 ->
    equivalent 'same' correlation matrix (flip taps, swap channel axes)."""
    wf = wt[:, :, ::-1, ::-1, ::-1]
    return _conv_w_to_mat(jnp.transpose(wf, (1, 0, 2, 3, 4)), cp, kpad)


def _bias_to_col(b):
    return jnp.pad(b, (0, C_PAD - b.shape[0])).reshape(C_PAD, 1)


def _rep_spec(shape):
    return pl.BlockSpec(shape, lambda n, _s=shape: (0,) * len(_s))


@jax.jit
def cae3d_forward(x_ncdhw, params):
    """Full CAE_3D_with_pooling forward. Input/output NCDHW (PyTorch)."""
    N, Cin, D, H, W = x_ncdhw.shape
    assert Cin == 1 and D % 4 == 0 and H % 4 == 0 and W % 4 == 0
    P1 = D * H * W
    P1A = _pad128(P1)

    # input -> (N, 1, P1A): single real channel, flat spatial on lanes
    x = x_ncdhw.reshape(N, 1, P1)
    x = jnp.pad(x, ((0, 0), (0, 0), (0, P1A - P1)))

    w1 = _conv_w_to_mat(params["w1"], 1, 32)
    b1 = _bias_to_col(params["b1"])
    w2 = _conv_w_to_mat(params["w2"], 4, 112)
    b2 = _bias_to_col(params["b2"])
    wd1 = _deconv_w_to_mat(params["wt1"], 8, 216)
    bd1 = _bias_to_col(params["bt1"])
    wd2 = _deconv_w_to_mat(params["wt2"], 4, 112)
    bd2 = _bias_to_col(params["bt2"])

    m0 = jnp.asarray(_level_masks_np(D, H, W, 1, P1A))
    m1 = jnp.asarray(_level_masks_np(D, H, W, 2, P1A))
    kq0 = jnp.asarray(_kq_np(D, H, W, 1, P1A))
    kq1 = jnp.asarray(_kq_np(D, H, W, 2, P1A))

    out = pl.pallas_call(
        _build_kernel(D, H, W, P1A),
        out_shape=jax.ShapeDtypeStruct((N, 1, P1A), jnp.float32),
        grid=(N,),
        in_specs=[
            pl.BlockSpec((None, 1, P1A), lambda n: (n, 0, 0)),
            _rep_spec((C_PAD, 32)), _rep_spec((C_PAD, 1)),
            _rep_spec((C_PAD, 112)), _rep_spec((C_PAD, 1)),
            _rep_spec((C_PAD, 216)), _rep_spec((C_PAD, 1)),
            _rep_spec((C_PAD, 112)), _rep_spec((C_PAD, 1)),
            _rep_spec((27, P1A)), _rep_spec((27, P1A)),
            _rep_spec((1, P1A)), _rep_spec((1, P1A)),
        ],
        out_specs=pl.BlockSpec((None, 1, P1A), lambda n: (n, 0, 0)),
        scratch_shapes=[pltpu.VMEM((216, P1A), jnp.float32)],
        compiler_params=pltpu.CompilerParams(
            dimension_semantics=("parallel",),
            vmem_limit_bytes=48 * 1024 * 1024),
    )(x, w1, b1, w2, b2, wd1, bd1, wd2, bd2, m0, m1, kq0, kq1)

    return out[:, :, :P1].reshape(N, 1, D, H, W)


# ----------------------------------------------------------------------------
# Pure-JAX reference (correctness check only)
# ----------------------------------------------------------------------------
def ref_forward(x, p):
    def conv(x, w, b):
        y = lax.conv_general_dilated(x, w, (1, 1, 1), [(1, 1)] * 3,
                                     dimension_numbers=("NCDHW", "OIDHW", "NCDHW"))
        return jax.nn.relu(y + b.reshape(1, -1, 1, 1, 1))

    def deconv(x, wt, b):
        y = lax.conv_general_dilated(x, wt[:, :, ::-1, ::-1, ::-1], (1, 1, 1),
                                     [(1, 1)] * 3,
                                     dimension_numbers=("NCDHW", "IODHW", "NCDHW"))
        return jax.nn.relu(y + b.reshape(1, -1, 1, 1, 1))

    def pool(x):
        N, C, D, H, W = x.shape
        xw = x.reshape(N, C, D // 2, 2, H // 2, 2, W // 2, 2)
        xw = xw.transpose(0, 1, 3, 5, 7, 2, 4, 6).reshape(
            N, C, 8, D // 2, H // 2, W // 2)
        return jnp.max(xw, axis=2), jnp.argmax(xw, axis=2)

    def unpool(v, idx):
        N, C, Do, Ho, Wo = v.shape
        oh = jax.nn.one_hot(idx, 8, axis=2, dtype=v.dtype)
        xw = oh * v[:, :, None]
        xw = xw.reshape(N, C, 2, 2, 2, Do, Ho, Wo)
        xw = xw.transpose(0, 1, 5, 2, 6, 3, 7, 4)
        return xw.reshape(N, C, 2 * Do, 2 * Ho, 2 * Wo)

    h = conv(x, p["w1"], p["b1"]); h, i1 = pool(h)
    h = conv(h, p["w2"], p["b2"]); h, i2 = pool(h)
    h = unpool(h, i2); h = deconv(h, p["wt1"], p["bt1"])
    h = unpool(h, i1); h = deconv(h, p["wt2"], p["bt2"])
    return h


# ----------------------------------------------------------------------------
if __name__ == "__main__":
    key = jax.random.PRNGKey(0)
    ks = jax.random.split(key, 9)

    # conv_channels = [[4], [8]] -> formatted [[[1,4]], [[4,8]]]
    params = {
        "w1": 0.2 * jax.random.normal(ks[0], (4, 1, 3, 3, 3), jnp.float32),
        "b1": 0.1 * jax.random.normal(ks[1], (4,), jnp.float32),
        "w2": 0.2 * jax.random.normal(ks[2], (8, 4, 3, 3, 3), jnp.float32),
        "b2": 0.1 * jax.random.normal(ks[3], (8,), jnp.float32),
        # decoder (nested-reversed channels): ConvTranspose3d 8->4, then 4->1
        "wt1": 0.2 * jax.random.normal(ks[4], (8, 4, 3, 3, 3), jnp.float32),
        "bt1": 0.1 * jax.random.normal(ks[5], (4,), jnp.float32),
        "wt2": 0.2 * jax.random.normal(ks[6], (4, 1, 3, 3, 3), jnp.float32),
        "bt2": 0.1 * jax.random.normal(ks[7], (1,), jnp.float32),
    }

    # NCDHW input: batch=2, 1 channel, 8^3 volume
    x = jax.random.normal(ks[8], (2, 1, 8, 8, 8), jnp.float32)

    out = jax.block_until_ready(cae3d_forward(x, params))
    assert out.shape == (2, 1, 8, 8, 8), out.shape

    ref = jax.block_until_ready(ref_forward(x, params))
    assert jnp.allclose(out, ref, atol=2e-4, rtol=2e-4), (
        float(jnp.max(jnp.abs(out - ref))))

    print("KERNEL_OK")
</pallas_src>

<mosaic_0001>
module attributes {stable_mosaic.version = 11 : i64} {
  func.func @kernel(%arg0: i32, %arg1: memref<1x1x512xf32, #tpu.memory_space<vmem>>, %arg2: memref<8x32xf32, #tpu.memory_space<vmem>>, %arg3: memref<8x1xf32, #tpu.memory_space<vmem>>, %arg4: memref<8x112xf32, #tpu.memory_space<vmem>>, %arg5: memref<8x1xf32, #tpu.memory_space<vmem>>, %arg6: memref<8x216xf32, #tpu.memory_space<vmem>>, %arg7: memref<8x1xf32, #tpu.memory_space<vmem>>, %arg8: memref<8x112xf32, #tpu.memory_space<vmem>>, %arg9: memref<8x1xf32, #tpu.memory_space<vmem>>, %arg10: memref<27x512xf32, #tpu.memory_space<vmem>>, %arg11: memref<27x512xf32, #tpu.memory_space<vmem>>, %arg12: memref<1x512xf32, #tpu.memory_space<vmem>>, %arg13: memref<1x512xf32, #tpu.memory_space<vmem>>, %arg14: memref<1x1x512xf32, #tpu.memory_space<vmem>>, %arg15: memref<216x512xf32, #tpu.memory_space<vmem>>) attributes {dimension_semantics = [#tpu.dimension_semantics<parallel>], iteration_bounds = array<i64: 2>, scalar_prefetch = 0 : i64, scratch_operands = 1 : i64, tpu.core_type = #tpu.core_type<tc>, window_params = [{transform_indices = @transform_0, window_bounds = array<i64: 1, 1, 512>}, {pipeline_mode = #tpu.pipeline_mode<synchronous>, transform_indices = @transform_1, window_bounds = array<i64: 8, 32>}, {pipeline_mode = #tpu.pipeline_mode<synchronous>, transform_indices = @transform_2, window_bounds = array<i64: 8, 1>}, {pipeline_mode = #tpu.pipeline_mode<synchronous>, transform_indices = @transform_3, window_bounds = array<i64: 8, 112>}, {pipeline_mode = #tpu.pipeline_mode<synchronous>, transform_indices = @transform_4, window_bounds = array<i64: 8, 1>}, {pipeline_mode = #tpu.pipeline_mode<synchronous>, transform_indices = @transform_5, window_bounds = array<i64: 8, 216>}, {pipeline_mode = #tpu.pipeline_mode<synchronous>, transform_indices = @transform_6, window_bounds = array<i64: 8, 1>}, {pipeline_mode = #tpu.pipeline_mode<synchronous>, transform_indices = @transform_7, window_bounds = array<i64: 8, 112>}, {pipeline_mode = #tpu.pipeline_mode<synchronous>, transform_indices = @transform_8, window_bounds = array<i64: 8, 1>}, {pipeline_mode = #tpu.pipeline_mode<synchronous>, transform_indices = @transform_9, window_bounds = array<i64: 27, 512>}, {pipeline_mode = #tpu.pipeline_mode<synchronous>, transform_indices = @transform_10, window_bounds = array<i64: 27, 512>}, {pipeline_mode = #tpu.pipeline_mode<synchronous>, transform_indices = @transform_11, window_bounds = array<i64: 1, 512>}, {pipeline_mode = #tpu.pipeline_mode<synchronous>, transform_indices = @transform_12, window_bounds = array<i64: 1, 512>}, {transform_indices = @transform_13, window_bounds = array<i64: 1, 1, 512>}]} {
    %cst = arith.constant 0.000000e+00 : f32
    %0 = vector.broadcast %cst : f32 to vector<5x512xf32>
    %c27 = arith.constant 27 : index
    %c0 = arith.constant 0 : index
    %1 = vector.load %arg15[%c27, %c0] : memref<216x512xf32, #tpu.memory_space<vmem>>, vector<5x512xf32>
    tpu.vector_store %arg15[%c27, %c0], %0 {strides = array<i32>} : memref<216x512xf32, #tpu.memory_space<vmem>>, vector<5x512xf32>,
    %cst_0 = arith.constant 0.000000e+00 : f32
    %2 = vector.broadcast %cst_0 : f32 to vector<4x512xf32>
    %c108 = arith.constant 108 : index
    %c0_1 = arith.constant 0 : index
    %3 = vector.load %arg15[%c108, %c0_1] : memref<216x512xf32, #tpu.memory_space<vmem>>, vector<4x512xf32>
    tpu.vector_store %arg15[%c108, %c0_1], %2 {strides = array<i32>} : memref<216x512xf32, #tpu.memory_space<vmem>>, vector<4x512xf32>,
    %c0_2 = arith.constant 0 : index
    %c0_3 = arith.constant 0 : index
    %c0_4 = arith.constant 0 : index
    %4 = vector.load %arg1[%c0_2, %c0_3, %c0_4] : memref<1x1x512xf32, #tpu.memory_space<vmem>>, vector<1x1x512xf32>
    %5 = vector.shape_cast %4 : vector<1x1x512xf32> to vector<1x512xf32>
    %c73_i32 = arith.constant 73 : i32
    %6 = tpu.dynamic_rotate %5 by %c73_i32 dim 1 : vector<1x512xf32>, i32 -> vector<1x512xf32>
    %c0_5 = arith.constant 0 : index
    %c0_6 = arith.constant 0 : index
    %7 = vector.load %arg10[%c0_5, %c0_6] : memref<27x512xf32, #tpu.memory_space<vmem>>, vector<1x512xf32>
    %8 = arith.mulf %6, %7 : vector<1x512xf32>
    %c0_7 = arith.constant 0 : index
    %c0_8 = arith.constant 0 : index
    %9 = vector.load %arg15[%c0_7, %c0_8] : memref<216x512xf32, #tpu.memory_space<vmem>>, vector<1x512xf32>
    tpu.vector_store %arg15[%c0_7, %c0_8], %8 {strides = array<i32>} : memref<216x512xf32, #tpu.memory_space<vmem>>, vector<1x512xf32>,
    %c72_i32 = arith.constant 72 : i32
    %10 = tpu.dynamic_rotate %5 by %c72_i32 dim 1 : vector<1x512xf32>, i32 -> vector<1x512xf32>
    %c1 = arith.constant 1 : index
    %c0_9 = arith.constant 0 : index
    %11 = vector.load %arg10[%c1, %c0_9] : memref<27x512xf32, #tpu.memory_space<vmem>>, vector<1x512xf32>
    %12 = arith.mulf %10, %11 : vector<1x512xf32>
    %c1_10 = arith.constant 1 : index
    %c0_11 = arith.constant 0 : index
    %13 = vector.load %arg15[%c1_10, %c0_11] : memref<216x512xf32, #tpu.memory_space<vmem>>, vector<1x512xf32>
    tpu.vector_store %arg15[%c1_10, %c0_11], %12 {strides = array<i32>} : memref<216x512xf32, #tpu.memory_space<vmem>>, vector<1x512xf32>,
    %c71_i32 = arith.constant 71 : i32
    %14 = tpu.dynamic_rotate %5 by %c71_i32 dim 1 : vector<1x512xf32>, i32 -> vector<1x512xf32>
    %c2 = arith.constant 2 : index
    %c0_12 = arith.constant 0 : index
    %15 = vector.load %arg10[%c2, %c0_12] : memref<27x512xf32, #tpu.memory_space<vmem>>, vector<1x512xf32>
    %16 = arith.mulf %14, %15 : vector<1x512xf32>
    %c2_13 = arith.constant 2 : index
    %c0_14 = arith.constant 0 : index
    %17 = vector.load %arg15[%c2_13, %c0_14] : memref<216x512xf32, #tpu.memory_space<vmem>>, vector<1x512xf32>
    tpu.vector_store %arg15[%c2_13, %c0_14], %16 {strides = array<i32>} : memref<216x512xf32, #tpu.memory_space<vmem>>, vector<1x512xf32>,
    %c65_i32 = arith.constant 65 : i32
    %18 = tpu.dynamic_rotate %5 by %c65_i32 dim 1 : vector<1x512xf32>, i32 -> vector<1x512xf32>
    %c3 = arith.constant 3 : index
    %c0_15 = arith.constant 0 : index
    %19 = vector.load %arg10[%c3, %c0_15] : memref<27x512xf32, #tpu.memory_space<vmem>>, vector<1x512xf32>
    %20 = arith.mulf %18, %19 : vector<1x512xf32>
    %c3_16 = arith.constant 3 : index
    %c0_17 = arith.constant 0 : index
    %21 = vector.load %arg15[%c3_16, %c0_17] : memref<216x512xf32, #tpu.memory_space<vmem>>, vector<1x512xf32>
    tpu.vector_store %arg15[%c3_16, %c0_17], %20 {strides = array<i32>} : memref<216x512xf32, #tpu.memory_space<vmem>>, vector<1x512xf32>,
    %c64_i32 = arith.constant 64 : i32
    %22 = tpu.dynamic_rotate %5 by %c64_i32 dim 1 : vector<1x512xf32>, i32 -> vector<1x512xf32>
    %c4 = arith.constant 4 : index
    %c0_18 = arith.constant 0 : index
    %23 = vector.load %arg10[%c4, %c0_18] : memref<27x512xf32, #tpu.memory_space<vmem>>, vector<1x512xf32>
    %24 = arith.mulf %22, %23 : vector<1x512xf32>
    %c4_19 = arith.constant 4 : index
    %c0_20 = arith.constant 0 : index
    %25 = vector.load %arg15[%c4_19, %c0_20] : memref<216x512xf32, #tpu.memory_space<vmem>>, vector<1x512xf32>
    tpu.vector_store %arg15[%c4_19, %c0_20], %24 {strides = array<i32>} : memref<216x512xf32, #tpu.memory_space<vmem>>, vector<1x512xf32>,
    %c63_i32 = arith.constant 63 : i32
    %26 = tpu.dynamic_rotate %5 by %c63_i32 dim 1 : vector<1x512xf32>, i32 -> vector<1x512xf32>
    %c5 = arith.constant 5 : index
    %c0_21 = arith.constant 0 : index
    %27 = vector.load %arg10[%c5, %c0_21] : memref<27x512xf32, #tpu.memory_space<vmem>>, vector<1x512xf32>
    %28 = arith.mulf %26, %27 : vector<1x512xf32>
    %c5_22 = arith.constant 5 : index
    %c0_23 = arith.constant 0 : index
    %29 = vector.load %arg15[%c5_22, %c0_23] : memref<216x512xf32, #tpu.memory_space<vmem>>, vector<1x512xf32>
    tpu.vector_store %arg15[%c5_22, %c0_23], %28 {strides = array<i32>} : memref<216x512xf32, #tpu.memory_space<vmem>>, vector<1x512xf32>,
    %c57_i32 = arith.constant 57 : i32
    %30 = tpu.dynamic_rotate %5 by %c57_i32 dim 1 : vector<1x512xf32>, i32 -> vector<1x512xf32>
    %c6 = arith.constant 6 : index
    %c0_24 = arith.constant 0 : index
    %31 = vector.load %arg10[%c6, %c0_24] : memref<27x512xf32, #tpu.memory_space<vmem>>, vector<1x512xf32>
    %32 = arith.mulf %30, %31 : vector<1x512xf32>
    %c6_25 = arith.constant 6 : index
    %c0_26 = arith.constant 0 : index
    %33 = vector.load %arg15[%c6_25, %c0_26] : memref<216x512xf32, #tpu.memory_space<vmem>>, vector<1x512xf32>
    tpu.vector_store %arg15[%c6_25, %c0_26], %32 {strides = array<i32>} : memref<216x512xf32, #tpu.memory_space<vmem>>, vector<1x512xf32>,
    %c56_i32 = arith.constant 56 : i32
    %34 = tpu.dynamic_rotate %5 by %c56_i32 dim 1 : vector<1x512xf32>, i32 -> vector<1x512xf32>
    %c7 = arith.constant 7 : index
    %c0_27 = arith.constant 0 : index
    %35 = vector.load %arg10[%c7, %c0_27] : memref<27x512xf32, #tpu.memory_space<vmem>>, vector<1x512xf32>
    %36 = arith.mulf %34, %35 : vector<1x512xf32>
    %c7_28 = arith.constant 7 : index
    %c0_29 = arith.constant 0 : index
    %37 = vector.load %arg15[%c7_28, %c0_29] : memref<216x512xf32, #tpu.memory_space<vmem>>, vector<1x512xf32>
    tpu.vector_store %arg15[%c7_28, %c0_29], %36 {strides = array<i32>} : memref<216x512xf32, #tpu.memory_space<vmem>>, vector<1x512xf32>,
    %c55_i32 = arith.constant 55 : i32
    %38 = tpu.dynamic_rotate %5 by %c55_i32 dim 1 : vector<1x512xf32>, i32 -> vector<1x512xf32>
    %c8 = arith.constant 8 : index
    %c0_30 = arith.constant 0 : index
    %39 = vector.load %arg10[%c8, %c0_30] : memref<27x512xf32, #tpu.memory_space<vmem>>, vector<1x512xf32>
    %40 = arith.mulf %38, %39 : vector<1x512xf32>
    %c8_31 = arith.constant 8 : index
    %c0_32 = arith.constant 0 : index
    %41 = vector.load %arg15[%c8_31, %c0_32] : memref<216x512xf32, #tpu.memory_space<vmem>>, vector<1x512xf32>
    tpu.vector_store %arg15[%c8_31, %c0_32], %40 {strides = array<i32>} : memref<216x512xf32, #tpu.memory_space<vmem>>, vector<1x512xf32>,
    %c9_i32 = arith.constant 9 : i32
    %42 = tpu.dynamic_rotate %5 by %c9_i32 dim 1 : vector<1x512xf32>, i32 -> vector<1x512xf32>
    %c9 = arith.constant 9 : index
    %c0_33 = arith.constant 0 : index
    %43 = vector.load %arg10[%c9, %c0_33] : memref<27x512xf32, #tpu.memory_space<vmem>>, vector<1x512xf32>
    %44 = arith.mulf %42, %43 : vector<1x512xf32>
    %c9_34 = arith.constant 9 : index
    %c0_35 = arith.constant 0 : index
    %45 = vector.load %arg15[%c9_34, %c0_35] : memref<216x512xf32, #tpu.memory_space<vmem>>, vector<1x512xf32>
    tpu.vector_store %arg15[%c9_34, %c0_35], %44 {strides = array<i32>} : memref<216x512xf32, #tpu.memory_space<vmem>>, vector<1x512xf32>,
    %c8_i32 = arith.constant 8 : i32
    %46 = tpu.dynamic_rotate %5 by %c8_i32 dim 1 : vector<1x512xf32>, i32 -> vector<1x512xf32>
    %c10 = arith.constant 10 : index
    %c0_36 = arith.constant 0 : index
    %47 = vector.load %arg10[%c10, %c0_36] : memref<27x512xf32, #tpu.memory_space<vmem>>, vector<1x512xf32>
    %48 = arith.mulf %46, %47 : vector<1x512xf32>
    %c10_37 = arith.constant 10 : index
    %c0_38 = arith.constant 0 : index
    %49 = vector.load %arg15[%c10_37, %c0_38] : memref<216x512xf32, #tpu.memory_space<vmem>>, vector<1x512xf32>
    tpu.vector_store %arg15[%c10_37, %c0_38], %48 {strides = array<i32>} : memref<216x512xf32, #tpu.memory_space<vmem>>, vector<1x512xf32>,
    %c7_i32 = arith.constant 7 : i32
    %50 = tpu.dynamic_rotate %5 by %c7_i32 dim 1 : vector<1x512xf32>, i32 -> vector<1x512xf32>
    %c11 = arith.constant 11 : index
    %c0_39 = arith.constant 0 : index
    %51 = vector.load %arg10[%c11, %c0_39] : memref<27x512xf32, #tpu.memory_space<vmem>>, vector<1x512xf32>
    %52 = arith.mulf %50, %51 : vector<1x512xf32>
    %c11_40 = arith.constant 11 : index
    %c0_41 = arith.constant 0 : index
    %53 = vector.load %arg15[%c11_40, %c0_41] : memref<216x512xf32, #tpu.memory_space<vmem>>, vector<1x512xf32>
    tpu.vector_store %arg15[%c11_40, %c0_41], %52 {strides = array<i32>} : memref<216x512xf32, #tpu.memory_space<vmem>>, vector<1x512xf32>,
    %c1_i32 = arith.constant 1 : i32
    %54 = tpu.dynamic_rotate %5 by %c1_i32 dim 1 : vector<1x512xf32>, i32 -> vector<1x512xf32>
    %c12 = arith.constant 12 : index
    %c0_42 = arith.constant 0 : index
    %55 = vector.load %arg10[%c12, %c0_42] : memref<27x512xf32, #tpu.memory_space<vmem>>, vector<1x512xf32>
    %56 = arith.mulf %54, %55 : vector<1x512xf32>
    %c12_43 = arith.constant 12 : index
    %c0_44 = arith.constant 0 : index
    %57 = vector.load %arg15[%c12_43, %c0_44] : memref<216x512xf32, #tpu.memory_space<vmem>>, vector<1x512xf32>
    tpu.vector_store %arg15[%c12_43, %c0_44], %56 {strides = array<i32>} : memref<216x512xf32, #tpu.memory_space<vmem>>, vector<1x512xf32>,
    %c13 = arith.constant 13 : index
    %c0_45 = arith.constant 0 : index
    %58 = vector.load %arg10[%c13, %c0_45] : memref<27x512xf32, #tpu.memory_space<vmem>>, vector<1x512xf32>
    %59 = arith.mulf %5, %58 : vector<1x512xf32>
    %c13_46 = arith.constant 13 : index
    %c0_47 = arith.constant 0 : index
    %60 = vector.load %arg15[%c13_46, %c0_47] : memref<216x512xf32, #tpu.memory_space<vmem>>, vector<1x512xf32>
    tpu.vector_store %arg15[%c13_46, %c0_47], %59 {strides = array<i32>} : memref<216x512xf32, #tpu.memory_space<vmem>>, vector<1x512xf32>,
    %c511_i32 = arith.constant 511 : i32
    %61 = tpu.dynamic_rotate %5 by %c511_i32 dim 1 : vector<1x512xf32>, i32 -> vector<1x512xf32>
    %c14 = arith.constant 14 : index
    %c0_48 = arith.constant 0 : index
    %62 = vector.load %arg10[%c14, %c0_48] : memref<27x512xf32, #tpu.memory_space<vmem>>, vector<1x512xf32>
    %63 = arith.mulf %61, %62 : vector<1x512xf32>
    %c14_49 = arith.constant 14 : index
    %c0_50 = arith.constant 0 : index
    %64 = vector.load %arg15[%c14_49, %c0_50] : memref<216x512xf32, #tpu.memory_space<vmem>>, vector<1x512xf32>
    tpu.vector_store %arg15[%c14_49, %c0_50], %63 {strides = array<i32>} : memref<216x512xf32, #tpu.memory_space<vmem>>, vector<1x512xf32>,
    %c505_i32 = arith.constant 505 : i32
    %65 = tpu.dynamic_rotate %5 by %c505_i32 dim 1 : vector<1x512xf32>, i32 -> vector<1x512xf32>
    %c15 = arith.constant 15 : index
    %c0_51 = arith.constant 0 : index
    %66 = vector.load %arg10[%c15, %c0_51] : memref<27x512xf32, #tpu.memory_space<vmem>>, vector<1x512xf32>
    %67 = arith.mulf %65, %66 : vector<1x512xf32>
    %c15_52 = arith.constant 15 : index
    %c0_53 = arith.constant 0 : index
    %68 = vector.load %arg15[%c15_52, %c0_53] : memref<216x512xf32, #tpu.memory_space<vmem>>, vector<1x512xf32>
    tpu.vector_store %arg15[%c15_52, %c0_53], %67 {strides = array<i32>} : memref<216x512xf32, #tpu.memory_space<vmem>>, vector<1x512xf32>,
    %c504_i32 = arith.constant 504 : i32
    %69 = tpu.dynamic_rotate %5 by %c504_i32 dim 1 : vector<1x512xf32>, i32 -> vector<1x512xf32>
    %c16 = arith.constant 16 : index
    %c0_54 = arith.constant 0 : index
    %70 = vector.load %arg10[%c16, %c0_54] : memref<27x512xf32, #tpu.memory_space<vmem>>, vector<1x512xf32>
    %71 = arith.mulf %69, %70 : vector<1x512xf32>
    %c16_55 = arith.constant 16 : index
    %c0_56 = arith.constant 0 : index
    %72 = vector.load %arg15[%c16_55, %c0_56] : memref<216x512xf32, #tpu.memory_space<vmem>>, vector<1x512xf32>
    tpu.vector_store %arg15[%c16_55, %c0_56], %71 {strides = array<i32>} : memref<216x512xf32, #tpu.memory_space<vmem>>, vector<1x512xf32>,
    %c503_i32 = arith.constant 503 : i32
    %73 = tpu.dynamic_rotate %5 by %c503_i32 dim 1 : vector<1x512xf32>, i32 -> vector<1x512xf32>
    %c17 = arith.constant 17 : index
    %c0_57 = arith.constant 0 : index
    %74 = vector.load %arg10[%c17, %c0_57] : memref<27x512xf32, #tpu.memory_space<vmem>>, vector<1x512xf32>
    %75 = arith.mulf %73, %74 : vector<1x512xf32>
    %c17_58 = arith.constant 17 : index
    %c0_59 = arith.constant 0 : index
    %76 = vector.load %arg15[%c17_58, %c0_59] : memref<216x512xf32, #tpu.memory_space<vmem>>, vector<1x512xf32>
    tpu.vector_store %arg15[%c17_58, %c0_59], %75 {strides = array<i32>} : memref<216x512xf32, #tpu.memory_space<vmem>>, vector<1x512xf32>,
    %c457_i32 = arith.constant 457 : i32
    %77 = tpu.dynamic_rotate %5 by %c457_i32 dim 1 : vector<1x512xf32>, i32 -> vector<1x512xf32>
    %c18 = arith.constant 18 : index
    %c0_60 = arith.constant 0 : index
    %78 = vector.load %arg10[%c18, %c0_60] : memref<27x512xf32, #tpu.memory_space<vmem>>, vector<1x512xf32>
    %79 = arith.mulf %77, %78 : vector<1x512xf32>
    %c18_61 = arith.constant 18 : index
    %c0_62 = arith.constant 0 : index
    %80 = vector.load %arg15[%c18_61, %c0_62] : memref<216x512xf32, #tpu.memory_space<vmem>>, vector<1x512xf32>
    tpu.vector_store %arg15[%c18_61, %c0_62], %79 {strides = array<i32>} : memref<216x512xf32, #tpu.memory_space<vmem>>, vector<1x512xf32>,
    %c456_i32 = arith.constant 456 : i32
    %81 = tpu.dynamic_rotate %5 by %c456_i32 dim 1 : vector<1x512xf32>, i32 -> vector<1x512xf32>
    %c19 = arith.constant 19 : index
    %c0_63 = arith.constant 0 : index
    %82 = vector.load %arg10[%c19, %c0_63] : memref<27x512xf32, #tpu.memory_space<vmem>>, vector<1x512xf32>
    %83 = arith.mulf %81, %82 : vector<1x512xf32>
    %c19_64 = arith.constant 19 : index
    %c0_65 = arith.constant 0 : index
    %84 = vector.load %arg15[%c19_64, %c0_65] : memref<216x512xf32, #tpu.memory_space<vmem>>, vector<1x512xf32>
    tpu.vector_store %arg15[%c19_64, %c0_65], %83 {strides = array<i32>} : memref<216x512xf32, #tpu.memory_space<vmem>>, vector<1x512xf32>,
    %c455_i32 = arith.constant 455 : i32
    %85 = tpu.dynamic_rotate %5 by %c455_i32 dim 1 : vector<1x512xf32>, i32 -> vector<1x512xf32>
    %c20 = arith.constant 20 : index
    %c0_66 = arith.constant 0 : index
    %86 = vector.load %arg10[%c20, %c0_66] : memref<27x512xf32, #tpu.memory_space<vmem>>, vector<1x512xf32>
    %87 = arith.mulf %85, %86 : vector<1x512xf32>
    %c20_67 = arith.constant 20 : index
    %c0_68 = arith.constant 0 : index
    %88 = vector.load %arg15[%c20_67, %c0_68] : memref<216x512xf32, #tpu.memory_space<vmem>>, vector<1x512xf32>
    tpu.vector_store %arg15[%c20_67, %c0_68], %87 {strides = array<i32>} : memref<216x512xf32, #tpu.memory_space<vmem>>, vector<1x512xf32>,
    %c449_i32 = arith.constant 449 : i32
    %89 = tpu.dynamic_rotate %5 by %c449_i32 dim 1 : vector<1x512xf32>, i32 -> vector<1x512xf32>
    %c21 = arith.constant 21 : index
    %c0_69 = arith.constant 0 : index
    %90 = vector.load %arg10[%c21, %c0_69] : memref<27x512xf32, #tpu.memory_space<vmem>>, vector<1x512xf32>
    %91 = arith.mulf %89, %90 : vector<1x512xf32>
    %c21_70 = arith.constant 21 : index
    %c0_71 = arith.constant 0 : index
    %92 = vector.load %arg15[%c21_70, %c0_71] : memref<216x512xf32, #tpu.memory_space<vmem>>, vector<1x512xf32>
    tpu.vector_store %arg15[%c21_70, %c0_71], %91 {strides = array<i32>} : memref<216x512xf32, #tpu.memory_space<vmem>>, vector<1x512xf32>,
    %c448_i32 = arith.constant 448 : i32
    %93 = tpu.dynamic_rotate %5 by %c448_i32 dim 1 : vector<1x512xf32>, i32 -> vector<1x512xf32>
    %c22 = arith.constant 22 : index
    %c0_72 = arith.constant 0 : index
    %94 = vector.load %arg10[%c22, %c0_72] : memref<27x512xf32, #tpu.memory_space<vmem>>, vector<1x512xf32>
    %95 = arith.mulf %93, %94 : vector<1x512xf32>
    %c22_73 = arith.constant 22 : index
    %c0_74 = arith.constant 0 : index
    %96 = vector.load %arg15[%c22_73, %c0_74] : memref<216x512xf32, #tpu.memory_space<vmem>>, vector<1x512xf32>
    tpu.vector_store %arg15[%c22_73, %c0_74], %95 {strides = array<i32>} : memref<216x512xf32, #tpu.memory_space<vmem>>, vector<1x512xf32>,
    %c447_i32 = arith.constant 447 : i32
    %97 = tpu.dynamic_rotate %5 by %c447_i32 dim 1 : vector<1x512xf32>, i32 -> vector<1x512xf32>
    %c23 = arith.constant 23 : index
    %c0_75 = arith.constant 0 : index
    %98 = vector.load %arg10[%c23, %c0_75] : memref<27x512xf32, #tpu.memory_space<vmem>>, vector<1x512xf32>
    %99 = arith.mulf %97, %98 : vector<1x512xf32>
    %c23_76 = arith.constant 23 : index
    %c0_77 = arith.constant 0 : index
    %100 = vector.load %arg15[%c23_76, %c0_77] : memref<216x512xf32, #tpu.memory_space<vmem>>, vector<1x512xf32>
    tpu.vector_store %arg15[%c23_76, %c0_77], %99 {strides = array<i32>} : memref<216x512xf32, #tpu.memory_space<vmem>>, vector<1x512xf32>,
    %c441_i32 = arith.constant 441 : i32
    %101 = tpu.dynamic_rotate %5 by %c441_i32 dim 1 : vector<1x512xf32>, i32 -> vector<1x512xf32>
    %c24 = arith.constant 24 : index
    %c0_78 = arith.constant 0 : index
    %102 = vector.load %arg10[%c24, %c0_78] : memref<27x512xf32, #tpu.memory_space<vmem>>, vector<1x512xf32>
    %103 = arith.mulf %101, %102 : vector<1x512xf32>
    %c24_79 = arith.constant 24 : index
    %c0_80 = arith.constant 0 : index
    %104 = vector.load %arg15[%c24_79, %c0_80] : memref<216x512xf32, #tpu.memory_space<vmem>>, vector<1x512xf32>
    tpu.vector_store %arg15[%c24_79, %c0_80], %103 {strides = array<i32>} : memref<216x512xf32, #tpu.memory_space<vmem>>, vector<1x512xf32>,
    %c440_i32 = arith.constant 440 : i32
    %105 = tpu.dynamic_rotate %5 by %c440_i32 dim 1 : vector<1x512xf32>, i32 -> vector<1x512xf32>
    %c25 = arith.constant 25 : index
    %c0_81 = arith.constant 0 : index
    %106 = vector.load %arg10[%c25, %c0_81] : memref<27x512xf32, #tpu.memory_space<vmem>>, vector<1x512xf32>
    %107 = arith.mulf %105, %106 : vector<1x512xf32>
    %c25_82 = arith.constant 25 : index
    %c0_83 = arith.constant 0 : index
    %108 = vector.load %arg15[%c25_82, %c0_83] : memref<216x512xf32, #tpu.memory_space<vmem>>, vector<1x512xf32>
    tpu.vector_store %arg15[%c25_82, %c0_83], %107 {strides = array<i32>} : memref<216x512xf32, #tpu.memory_space<vmem>>, vector<1x512xf32>,
    %c439_i32 = arith.constant 439 : i32
    %109 = tpu.dynamic_rotate %5 by %c439_i32 dim 1 : vector<1x512xf32>, i32 -> vector<1x512xf32>
    %c26 = arith.constant 26 : index
    %c0_84 = arith.constant 0 : index
    %110 = vector.load %arg10[%c26, %c0_84] : memref<27x512xf32, #tpu.memory_space<vmem>>, vector<1x512xf32>
    %111 = arith.mulf %109, %110 : vector<1x512xf32>
    %c26_85 = arith.constant 26 : index
    %c0_86 = arith.constant 0 : index
    %112 = vector.load %arg15[%c26_85, %c0_86] : memref<216x512xf32, #tpu.memory_space<vmem>>, vector<1x512xf32>
    tpu.vector_store %arg15[%c26_85, %c0_86], %111 {strides = array<i32>} : memref<216x512xf32, #tpu.memory_space<vmem>>, vector<1x512xf32>,
    %c0_87 = arith.constant 0 : index
    %c0_88 = arith.constant 0 : index
    %113 = vector.load %arg2[%c0_87, %c0_88] : memref<8x32xf32, #tpu.memory_space<vmem>>, vector<8x32xf32>
    %c0_89 = arith.constant 0 : index
    %c0_90 = arith.constant 0 : index
    %114 = vector.load %arg15[%c0_89, %c0_90] : memref<216x512xf32, #tpu.memory_space<vmem>>, vector<32x512xf32>
    %cst_91 = arith.constant dense<0.000000e+00> : vector<8x512xf32>
    %115 = tpu.matmul %113, %114, %cst_91 {dimension_numbers = #tpu.dot_dimension_numbers<[1], [0], [0], [1], [0, 0, 1, 1], [], []>} : vector<8x32xf32>, vector<32x512xf32>, vector<8x512xf32> -> vector<8x512xf32>
    %c0_92 = arith.constant 0 : index
    %c0_93 = arith.constant 0 : index
    %116 = vector.load %arg3[%c0_92, %c0_93] : memref<8x1xf32, #tpu.memory_space<vmem>>, vector<8x1xf32>
    %117 = vector.broadcast %116 : vector<8x1xf32> to vector<8x512xf32>
    %118 = arith.addf %115, %117 : vector<8x512xf32>
    %cst_94 = arith.constant 0.000000e+00 : f32
    %119 = vector.broadcast %cst_94 : f32 to vector<8x512xf32>
    %120 = arith.maximumf %118, %119 : vector<8x512xf32>
    %c13_95 = arith.constant 13 : index
    %c0_96 = arith.constant 0 : index
    %121 = vector.load %arg10[%c13_95, %c0_96] : memref<27x512xf32, #tpu.memory_space<vmem>>, vector<1x512xf32>
    %122 = vector.broadcast %121 : vector<1x512xf32> to vector<8x512xf32>
    %123 = arith.mulf %120, %122 : vector<8x512xf32>
    %c511_i32_97 = arith.constant 511 : i32
    %124 = tpu.dynamic_rotate %123 by %c511_i32_97 dim 1 : vector<8x512xf32>, i32 -> vector<8x512xf32>
    %125 = arith.cmpf ogt, %124, %123 : vector<8x512xf32>
    %126 = arith.extui %125 : vector<8x512xi1> to vector<8x512xi32>
    %127 = arith.sitofp %126 : vector<8x512xi32> to vector<8x512xf32>
    %128 = arith.maximumf %123, %124 : vector<8x512xf32>
    %c504_i32_98 = arith.constant 504 : i32
    %129 = tpu.dynamic_rotate %128 by %c504_i32_98 dim 1 : vector<8x512xf32>, i32 -> vector<8x512xf32>
    %c504_i32_99 = arith.constant 504 : i32
    %130 = tpu.dynamic_rotate %127 by %c504_i32_99 dim 1 : vector<8x512xf32>, i32 -> vector<8x512xf32>
    %131 = arith.cmpf ogt, %129, %128 : vector<8x512xf32>
    %132 = arith.extui %131 : vector<8x512xi1> to vector<8x512xi32>
    %133 = arith.sitofp %132 : vector<8x512xi32> to vector<8x512xf32>
    %134 = arith.select %131, %130, %127 : vector<8x512xi1>, vector<8x512xf32>
    %135 = arith.maximumf %128, %129 : vector<8x512xf32>
    %c448_i32_100 = arith.constant 448 : i32
    %136 = tpu.dynamic_rotate %135 by %c448_i32_100 dim 1 : vector<8x512xf32>, i32 -> vector<8x512xf32>
    %c448_i32_101 = arith.constant 448 : i32
    %137 = tpu.dynamic_rotate %134 by %c448_i32_101 dim 1 : vector<8x512xf32>, i32 -> vector<8x512xf32>
    %c448_i32_102 = arith.constant 448 : i32
    %138 = tpu.dynamic_rotate %133 by %c448_i32_102 dim 1 : vector<8x512xf32>, i32 -> vector<8x512xf32>
    %139 = arith.cmpf ogt, %136, %135 : vector<8x512xf32>
    %140 = arith.extui %139 : vector<8x512xi1> to vector<8x512xi32>
    %141 = arith.sitofp %140 : vector<8x512xi32> to vector<8x512xf32>
    %142 = arith.select %139, %137, %134 : vector<8x512xi1>, vector<8x512xf32>
    %143 = arith.select %139, %138, %133 : vector<8x512xi1>, vector<8x512xf32>
    %144 = arith.maximumf %135, %136 : vector<8x512xf32>
    %cst_103 = arith.constant 4.000000e+00 : f32
    %145 = vector.broadcast %cst_103 : f32 to vector<8x512xf32>
    %146 = arith.mulf %145, %141 : vector<8x512xf32>
    %cst_104 = arith.constant 2.000000e+00 : f32
    %147 = vector.broadcast %cst_104 : f32 to vector<8x512xf32>
    %148 = arith.mulf %147, %143 : vector<8x512xf32>
    %149 = arith.addf %146, %148 : vector<8x512xf32>
    %150 = arith.addf %149, %142 : vector<8x512xf32>
    %151 = vector.extract_strided_slice %144 {offsets = [0, 0], sizes = [4, 512], strides = [1, 1]} : vector<8x512xf32> to vector<4x512xf32>
    %c146_i32 = arith.constant 146 : i32
    %152 = tpu.dynamic_rotate %151 by %c146_i32 dim 1 : vector<4x512xf32>, i32 -> vector<4x512xf32>
    %c0_105 = arith.constant 0 : index
    %c0_106 = arith.constant 0 : index
    %153 = vector.load %arg11[%c0_105, %c0_106] : memref<27x512xf32, #tpu.memory_space<vmem>>, vector<1x512xf32>
    %154 = vector.broadcast %153 : vector<1x512xf32> to vector<4x512xf32>
    %155 = arith.mulf %152, %154 : vector<4x512xf32>
    %c0_107 = arith.constant 0 : index
    %c0_108 = arith.constant 0 : index
    %156 = vector.load %arg15[%c0_107, %c0_108] : memref<216x512xf32, #tpu.memory_space<vmem>>, vector<4x512xf32>
    tpu.vector_store %arg15[%c0_107, %c0_108], %155 {strides = array<i32>} : memref<216x512xf32, #tpu.memory_space<vmem>>, vector<4x512xf32>,
    %c144_i32 = arith.constant 144 : i32
    %157 = tpu.dynamic_rotate %151 by %c144_i32 dim 1 : vector<4x512xf32>, i32 -> vector<4x512xf32>
    %c1_109 = arith.constant 1 : index
    %c0_110 = arith.constant 0 : index
    %158 = vector.load %arg11[%c1_109, %c0_110] : memref<27x512xf32, #tpu.memory_space<vmem>>, vector<1x512xf32>
    %159 = vector.broadcast %158 : vector<1x512xf32> to vector<4x512xf32>
    %160 = arith.mulf %157, %159 : vector<4x512xf32>
    %c4_111 = arith.constant 4 : index
    %c0_112 = arith.constant 0 : index
    %161 = vector.load %arg15[%c4_111, %c0_112] : memref<216x512xf32, #tpu.memory_space<vmem>>, vector<4x512xf32>
    tpu.vector_store %arg15[%c4_111, %c0_112], %160 {strides = array<i32>} : memref<216x512xf32, #tpu.memory_space<vmem>>, vector<4x512xf32>,
    %c142_i32 = arith.constant 142 : i32
    %162 = tpu.dynamic_rotate %151 by %c142_i32 dim 1 : vector<4x512xf32>, i32 -> vector<4x512xf32>
    %c2_113 = arith.constant 2 : index
    %c0_114 = arith.constant 0 : index
    %163 = vector.load %arg11[%c2_113, %c0_114] : memref<27x512xf32, #tpu.memory_space<vmem>>, vector<1x512xf32>
    %164 = vector.broadcast %163 : vector<1x512xf32> to vector<4x512xf32>
    %165 = arith.mulf %162, %164 : vector<4x512xf32>
    %c8_115 = arith.constant 8 : index
    %c0_116 = arith.constant 0 : index
    %166 = vector.load %arg15[%c8_115, %c0_116] : memref<216x512xf32, #tpu.memory_space<vmem>>, vector<4x512xf32>
    tpu.vector_store %arg15[%c8_115, %c0_116], %165 {strides = array<i32>} : memref<216x512xf32, #tpu.memory_space<vmem>>, vector<4x512xf32>,
    %c130_i32 = arith.constant 130 : i32
    %167 = tpu.dynamic_rotate %151 by %c130_i32 dim 1 : vector<4x512xf32>, i32 -> vector<4x512xf32>
    %c3_117 = arith.constant 3 : index
    %c0_118 = arith.constant 0 : index
    %168 = vector.load %arg11[%c3_117, %c0_118] : memref<27x512xf32, #tpu.memory_space<vmem>>, vector<1x512xf32>
    %169 = vector.broadcast %168 : vector<1x512xf32> to vector<4x512xf32>
    %170 = arith.mulf %167, %169 : vector<4x512xf32>
    %c12_119 = arith.constant 12 : index
    %c0_120 = arith.constant 0 : index
    %171 = vector.load %arg15[%c12_119, %c0_120] : memref<216x512xf32, #tpu.memory_space<vmem>>, vector<4x512xf32>
    tpu.vector_store %arg15[%c12_119, %c0_120], %170 {strides = array<i32>} : memref<216x512xf32, #tpu.memory_space<vmem>>, vector<4x512xf32>,
    %c128_i32 = arith.constant 128 : i32
    %172 = tpu.dynamic_rotate %151 by %c128_i32 dim 1 : vector<4x512xf32>, i32 -> vector<4x512xf32>
    %c4_121 = arith.constant 4 : index
    %c0_122 = arith.constant 0 : index
    %173 = vector.load %arg11[%c4_121, %c0_122] : memref<27x512xf32, #tpu.memory_space<vmem>>, vector<1x512xf32>
    %174 = vector.broadcast %173 : vector<1x512xf32> to vector<4x512xf32>
    %175 = arith.mulf %172, %174 : vector<4x512xf32>
    %c16_123 = arith.constant 16 : index
    %c0_124 = arith.constant 0 : index
    %176 = vector.load %arg15[%c16_123, %c0_124] : memref<216x512xf32, #tpu.memory_space<vmem>>, vector<4x512xf32>
    tpu.vector_store %arg15[%c16_123, %c0_124], %175 {strides = array<i32>} : memref<216x512xf32, #tpu.memory_space<vmem>>, vector<4x512xf32>,
    %c126_i32 = arith.constant 126 : i32
    %177 = tpu.dynamic_rotate %151 by %c126_i32 dim 1 : vector<4x512xf32>, i32 -> vector<4x512xf32>
    %c5_125 = arith.constant 5 : index
    %c0_126 = arith.constant 0 : index
    %178 = vector.load %arg11[%c5_125, %c0_126] : memref<27x512xf32, #tpu.memory_space<vmem>>, vector<1x512xf32>
    %179 = vector.broadcast %178 : vector<1x512xf32> to vector<4x512xf32>
    %180 = arith.mulf %177, %179 : vector<4x512xf32>
    %c20_127 = arith.constant 20 : index
    %c0_128 = arith.constant 0 : index
    %181 = vector.load %arg15[%c20_127, %c0_128] : memref<216x512xf32, #tpu.memory_space<vmem>>, vector<4x512xf32>
    tpu.vector_store %arg15[%c20_127, %c0_128], %180 {strides = array<i32>} : memref<216x512xf32, #tpu.memory_space<vmem>>, vector<4x512xf32>,
    %c114_i32 = arith.constant 114 : i32
    %182 = tpu.dynamic_rotate %151 by %c114_i32 dim 1 : vector<4x512xf32>, i32 -> vector<4x512xf32>
    %c6_129 = arith.constant 6 : index
    %c0_130 = arith.constant 0 : index
    %183 = vector.load %arg11[%c6_129, %c0_130] : memref<27x512xf32, #tpu.memory_space<vmem>>, vector<1x512xf32>
    %184 = vector.broadcast %183 : vector<1x512xf32> to vector<4x512xf32>
    %185 = arith.mulf %182, %184 : vector<4x512xf32>
    %c24_131 = arith.constant 24 : index
    %c0_132 = arith.constant 0 : index
    %186 = vector.load %arg15[%c24_131, %c0_132] : memref<216x512xf32, #tpu.memory_space<vmem>>, vector<4x512xf32>
    tpu.vector_store %arg15[%c24_131, %c0_132], %185 {strides = array<i32>} : memref<216x512xf32, #tpu.memory_space<vmem>>, vector<4x512xf32>,
    %c112_i32 = arith.constant 112 : i32
    %187 = tpu.dynamic_rotate %151 by %c112_i32 dim 1 : vector<4x512xf32>, i32 -> vector<4x512xf32>
    %c7_133 = arith.constant 7 : index
    %c0_134 = arith.constant 0 : index
    %188 = vector.load %arg11[%c7_133, %c0_134] : memref<27x512xf32, #tpu.memory_space<vmem>>, vector<1x512xf32>
    %189 = vector.broadcast %188 : vector<1x512xf32> to vector<4x512xf32>
    %190 = arith.mulf %187, %189 : vector<4x512xf32>
    %c28 = arith.constant 28 : index
    %c0_135 = arith.constant 0 : index
    %191 = vector.load %arg15[%c28, %c0_135] : memref<216x512xf32, #tpu.memory_space<vmem>>, vector<4x512xf32>
    tpu.vector_store %arg15[%c28, %c0_135], %190 {strides = array<i32>} : memref<216x512xf32, #tpu.memory_space<vmem>>, vector<4x512xf32>,
    %c110_i32 = arith.constant 110 : i32
    %192 = tpu.dynamic_rotate %151 by %c110_i32 dim 1 : vector<4x512xf32>, i32 -> vector<4x512xf32>
    %c8_136 = arith.constant 8 : index
    %c0_137 = arith.constant 0 : index
    %193 = vector.load %arg11[%c8_136, %c0_137] : memref<27x512xf32, #tpu.memory_space<vmem>>, vector<1x512xf32>
    %194 = vector.broadcast %193 : vector<1x512xf32> to vector<4x512xf32>
    %195 = arith.mulf %192, %194 : vector<4x512xf32>
    %c32 = arith.constant 32 : index
    %c0_138 = arith.constant 0 : index
    %196 = vector.load %arg15[%c32, %c0_138] : memref<216x512xf32, #tpu.memory_space<vmem>>, vector<4x512xf32>
    tpu.vector_store %arg15[%c32, %c0_138], %195 {strides = array<i32>} : memref<216x512xf32, #tpu.memory_space<vmem>>, vector<4x512xf32>,
    %c18_i32 = arith.constant 18 : i32
    %197 = tpu.dynamic_rotate %151 by %c18_i32 dim 1 : vector<4x512xf32>, i32 -> vector<4x512xf32>
    %c9_139 = arith.constant 9 : index
    %c0_140 = arith.constant 0 : index
    %198 = vector.load %arg11[%c9_139, %c0_140] : memref<27x512xf32, #tpu.memory_space<vmem>>, vector<1x512xf32>
    %199 = vector.broadcast %198 : vector<1x512xf32> to vector<4x512xf32>
    %200 = arith.mulf %197, %199 : vector<4x512xf32>
    %c36 = arith.constant 36 : index
    %c0_141 = arith.constant 0 : index
    %201 = vector.load %arg15[%c36, %c0_141] : memref<216x512xf32, #tpu.memory_space<vmem>>, vector<4x512xf32>
    tpu.vector_store %arg15[%c36, %c0_141], %200 {strides = array<i32>} : memref<216x512xf32, #tpu.memory_space<vmem>>, vector<4x512xf32>,
    %c16_i32 = arith.constant 16 : i32
    %202 = tpu.dynamic_rotate %151 by %c16_i32 dim 1 : vector<4x512xf32>, i32 -> vector<4x512xf32>
    %c10_142 = arith.constant 10 : index
    %c0_143 = arith.constant 0 : index
    %203 = vector.load %arg11[%c10_142, %c0_143] : memref<27x512xf32, #tpu.memory_space<vmem>>, vector<1x512xf32>
    %204 = vector.broadcast %203 : vector<1x512xf32> to vector<4x512xf32>
    %205 = arith.mulf %202, %204 : vector<4x512xf32>
    %c40 = arith.constant 40 : index
    %c0_144 = arith.constant 0 : index
    %206 = vector.load %arg15[%c40, %c0_144] : memref<216x512xf32, #tpu.memory_space<vmem>>, vector<4x512xf32>
    tpu.vector_store %arg15[%c40, %c0_144], %205 {strides = array<i32>} : memref<216x512xf32, #tpu.memory_space<vmem>>, vector<4x512xf32>,
    %c14_i32 = arith.constant 14 : i32
    %207 = tpu.dynamic_rotate %151 by %c14_i32 dim 1 : vector<4x512xf32>, i32 -> vector<4x512xf32>
    %c11_145 = arith.constant 11 : index
    %c0_146 = arith.constant 0 : index
    %208 = vector.load %arg11[%c11_145, %c0_146] : memref<27x512xf32, #tpu.memory_space<vmem>>, vector<1x512xf32>
    %209 = vector.broadcast %208 : vector<1x512xf32> to vector<4x512xf32>
    %210 = arith.mulf %207, %209 : vector<4x512xf32>
    %c44 = arith.constant 44 : index
    %c0_147 = arith.constant 0 : index
    %211 = vector.load %arg15[%c44, %c0_147] : memref<216x512xf32, #tpu.memory_space<vmem>>, vector<4x512xf32>
    tpu.vector_store %arg15[%c44, %c0_147], %210 {strides = array<i32>} : memref<216x512xf32, #tpu.memory_space<vmem>>, vector<4x512xf32>,
    %c2_i32 = arith.constant 2 : i32
    %212 = tpu.dynamic_rotate %151 by %c2_i32 dim 1 : vector<4x512xf32>, i32 -> vector<4x512xf32>
    %c12_148 = arith.constant 12 : index
    %c0_149 = arith.constant 0 : index
    %213 = vector.load %arg11[%c12_148, %c0_149] : memref<27x512xf32, #tpu.memory_space<vmem>>, vector<1x512xf32>
    %214 = vector.broadcast %213 : vector<1x512xf32> to vector<4x512xf32>
    %215 = arith.mulf %212, %214 : vector<4x512xf32>
    %c48 = arith.constant 48 : index
    %c0_150 = arith.constant 0 : index
    %216 = vector.load %arg15[%c48, %c0_150] : memref<216x512xf32, #tpu.memory_space<vmem>>, vector<4x512xf32>
    tpu.vector_store %arg15[%c48, %c0_150], %215 {strides = array<i32>} : memref<216x512xf32, #tpu.memory_space<vmem>>, vector<4x512xf32>,
    %c13_151 = arith.constant 13 : index
    %c0_152 = arith.constant 0 : index
    %217 = vector.load %arg11[%c13_151, %c0_152] : memref<27x512xf32, #tpu.memory_space<vmem>>, vector<1x512xf32>
    %218 = vector.broadcast %217 : vector<1x512xf32> to vector<4x512xf32>
    %219 = arith.mulf %151, %218 : vector<4x512xf32>
    %c52 = arith.constant 52 : index
    %c0_153 = arith.constant 0 : index
    %220 = vector.load %arg15[%c52, %c0_153] : memref<216x512xf32, #tpu.memory_space<vmem>>, vector<4x512xf32>
    tpu.vector_store %arg15[%c52, %c0_153], %219 {strides = array<i32>} : memref<216x512xf32, #tpu.memory_space<vmem>>, vector<4x512xf32>,
    %c510_i32 = arith.constant 510 : i32
    %221 = tpu.dynamic_rotate %151 by %c510_i32 dim 1 : vector<4x512xf32>, i32 -> vector<4x512xf32>
    %c14_154 = arith.constant 14 : index
    %c0_155 = arith.constant 0 : index
    %222 = vector.load %arg11[%c14_154, %c0_155] : memref<27x512xf32, #tpu.memory_space<vmem>>, vector<1x512xf32>
    %223 = vector.broadcast %222 : vector<1x512xf32> to vector<4x512xf32>
    %224 = arith.mulf %221, %223 : vector<4x512xf32>
    %c56 = arith.constant 56 : index
    %c0_156 = arith.constant 0 : index
    %225 = vector.load %arg15[%c56, %c0_156] : memref<216x512xf32, #tpu.memory_space<vmem>>, vector<4x512xf32>
    tpu.vector_store %arg15[%c56, %c0_156], %224 {strides = array<i32>} : memref<216x512xf32, #tpu.memory_space<vmem>>, vector<4x512xf32>,
    %c498_i32 = arith.constant 498 : i32
    %226 = tpu.dynamic_rotate %151 by %c498_i32 dim 1 : vector<4x512xf32>, i32 -> vector<4x512xf32>
    %c15_157 = arith.constant 15 : index
    %c0_158 = arith.constant 0 : index
    %227 = vector.load %arg11[%c15_157, %c0_158] : memref<27x512xf32, #tpu.memory_space<vmem>>, vector<1x512xf32>
    %228 = vector.broadcast %227 : vector<1x512xf32> to vector<4x512xf32>
    %229 = arith.mulf %226, %228 : vector<4x512xf32>
    %c60 = arith.constant 60 : index
    %c0_159 = arith.constant 0 : index
    %230 = vector.load %arg15[%c60, %c0_159] : memref<216x512xf32, #tpu.memory_space<vmem>>, vector<4x512xf32>
    tpu.vector_store %arg15[%c60, %c0_159], %229 {strides = array<i32>} : memref<216x512xf32, #tpu.memory_space<vmem>>, vector<4x512xf32>,
    %c496_i32 = arith.constant 496 : i32
    %231 = tpu.dynamic_rotate %151 by %c496_i32 dim 1 : vector<4x512xf32>, i32 -> vector<4x512xf32>
    %c16_160 = arith.constant 16 : index
    %c0_161 = arith.constant 0 : index
    %232 = vector.load %arg11[%c16_160, %c0_161] : memref<27x512xf32, #tpu.memory_space<vmem>>, vector<1x512xf32>
    %233 = vector.broadcast %232 : vector<1x512xf32> to vector<4x512xf32>
    %234 = arith.mulf %231, %233 : vector<4x512xf32>
    %c64 = arith.constant 64 : index
    %c0_162 = arith.constant 0 : index
    %235 = vector.load %arg15[%c64, %c0_162] : memref<216x512xf32, #tpu.memory_space<vmem>>, vector<4x512xf32>
    tpu.vector_store %arg15[%c64, %c0_162], %234 {strides = array<i32>} : memref<216x512xf32, #tpu.memory_space<vmem>>, vector<4x512xf32>,
    %c494_i32 = arith.constant 494 : i32
    %236 = tpu.dynamic_rotate %151 by %c494_i32 dim 1 : vector<4x512xf32>, i32 -> vector<4x512xf32>
    %c17_163 = arith.constant 17 : index
    %c0_164 = arith.constant 0 : index
    %237 = vector.load %arg11[%c17_163, %c0_164] : memref<27x512xf32, #tpu.memory_space<vmem>>, vector<1x512xf32>
    %238 = vector.broadcast %237 : vector<1x512xf32> to vector<4x512xf32>
    %239 = arith.mulf %236, %238 : vector<4x512xf32>
    %c68 = arith.constant 68 : index
    %c0_165 = arith.constant 0 : index
    %240 = vector.load %arg15[%c68, %c0_165] : memref<216x512xf32, #tpu.memory_space<vmem>>, vector<4x512xf32>
    tpu.vector_store %arg15[%c68, %c0_165], %239 {strides = array<i32>} : memref<216x512xf32, #tpu.memory_space<vmem>>, vector<4x512xf32>,
    %c402_i32 = arith.constant 402 : i32
    %241 = tpu.dynamic_rotate %151 by %c402_i32 dim 1 : vector<4x512xf32>, i32 -> vector<4x512xf32>
    %c18_166 = arith.constant 18 : index
    %c0_167 = arith.constant 0 : index
    %242 = vector.load %arg11[%c18_166, %c0_167] : memref<27x512xf32, #tpu.memory_space<vmem>>, vector<1x512xf32>
    %243 = vector.broadcast %242 : vector<1x512xf32> to vector<4x512xf32>
    %244 = arith.mulf %241, %243 : vector<4x512xf32>
    %c72 = arith.constant 72 : index
    %c0_168 = arith.constant 0 : index
    %245 = vector.load %arg15[%c72, %c0_168] : memref<216x512xf32, #tpu.memory_space<vmem>>, vector<4x512xf32>
    tpu.vector_store %arg15[%c72, %c0_168], %244 {strides = array<i32>} : memref<216x512xf32, #tpu.memory_space<vmem>>, vector<4x512xf32>,
    %c400_i32 = arith.constant 400 : i32
    %246 = tpu.dynamic_rotate %151 by %c400_i32 dim 1 : vector<4x512xf32>, i32 -> vector<4x512xf32>
    %c19_169 = arith.constant 19 : index
    %c0_170 = arith.constant 0 : index
    %247 = vector.load %arg11[%c19_169, %c0_170] : memref<27x512xf32, #tpu.memory_space<vmem>>, vector<1x512xf32>
    %248 = vector.broadcast %247 : vector<1x512xf32> to vector<4x512xf32>
    %249 = arith.mulf %246, %248 : vector<4x512xf32>
    %c76 = arith.constant 76 : index
    %c0_171 = arith.constant 0 : index
    %250 = vector.load %arg15[%c76, %c0_171] : memref<216x512xf32, #tpu.memory_space<vmem>>, vector<4x512xf32>
    tpu.vector_store %arg15[%c76, %c0_171], %249 {strides = array<i32>} : memref<216x512xf32, #tpu.memory_space<vmem>>, vector<4x512xf32>,
    %c398_i32 = arith.constant 398 : i32
    %251 = tpu.dynamic_rotate %151 by %c398_i32 dim 1 : vector<4x512xf32>, i32 -> vector<4x512xf32>
    %c20_172 = arith.constant 20 : index
    %c0_173 = arith.constant 0 : index
    %252 = vector.load %arg11[%c20_172, %c0_173] : memref<27x512xf32, #tpu.memory_space<vmem>>, vector<1x512xf32>
    %253 = vector.broadcast %252 : vector<1x512xf32> to vector<4x512xf32>
    %254 = arith.mulf %251, %253 : vector<4x512xf32>
    %c80 = arith.constant 80 : index
    %c0_174 = arith.constant 0 : index
    %255 = vector.load %arg15[%c80, %c0_174] : memref<216x512xf32, #tpu.memory_space<vmem>>, vector<4x512xf32>
    tpu.vector_store %arg15[%c80, %c0_174], %254 {strides = array<i32>} : memref<216x512xf32, #tpu.memory_space<vmem>>, vector<4x512xf32>,
    %c386_i32 = arith.constant 386 : i32
    %256 = tpu.dynamic_rotate %151 by %c386_i32 dim 1 : vector<4x512xf32>, i32 -> vector<4x512xf32>
    %c21_175 = arith.constant 21 : index
    %c0_176 = arith.constant 0 : index
    %257 = vector.load %arg11[%c21_175, %c0_176] : memref<27x512xf32, #tpu.memory_space<vmem>>, vector<1x512xf32>
    %258 = vector.broadcast %257 : vector<1x512xf32> to vector<4x512xf32>
    %259 = arith.mulf %256, %258 : vector<4x512xf32>
    %c84 = arith.constant 84 : index
    %c0_177 = arith.constant 0 : index
    %260 = vector.load %arg15[%c84, %c0_177] : memref<216x512xf32, #tpu.memory_space<vmem>>, vector<4x512xf32>
    tpu.vector_store %arg15[%c84, %c0_177], %259 {strides = array<i32>} : memref<216x512xf32, #tpu.memory_space<vmem>>, vector<4x512xf32>,
    %c384_i32 = arith.constant 384 : i32
    %261 = tpu.dynamic_rotate %151 by %c384_i32 dim 1 : vector<4x512xf32>, i32 -> vector<4x512xf32>
    %c22_178 = arith.constant 22 : index
    %c0_179 = arith.constant 0 : index
    %262 = vector.load %arg11[%c22_178, %c0_179] : memref<27x512xf32, #tpu.memory_space<vmem>>, vector<1x512xf32>
    %263 = vector.broadcast %262 : vector<1x512xf32> to vector<4x512xf32>
    %264 = arith.mulf %261, %263 : vector<4x512xf32>
    %c88 = arith.constant 88 : index
    %c0_180 = arith.constant 0 : index
    %265 = vector.load %arg15[%c88, %c0_180] : memref<216x512xf32, #tpu.memory_space<vmem>>, vector<4x512xf32>
    tpu.vector_store %arg15[%c88, %c0_180], %264 {strides = array<i32>} : memref<216x512xf32, #tpu.memory_space<vmem>>, vector<4x512xf32>,
    %c382_i32 = arith.constant 382 : i32
    %266 = tpu.dynamic_rotate %151 by %c382_i32 dim 1 : vector<4x512xf32>, i32 -> vector<4x512xf32>
    %c23_181 = arith.constant 23 : index
    %c0_182 = arith.constant 0 : index
    %267 = vector.load %arg11[%c23_181, %c0_182] : memref<27x512xf32, #tpu.memory_space<vmem>>, vector<1x512xf32>
    %268 = vector.broadcast %267 : vector<1x512xf32> to vector<4x512xf32>
    %269 = arith.mulf %266, %268 : vector<4x512xf32>
    %c92 = arith.constant 92 : index
    %c0_183 = arith.constant 0 : index
    %270 = vector.load %arg15[%c92, %c0_183] : memref<216x512xf32, #tpu.memory_space<vmem>>, vector<4x512xf32>
    tpu.vector_store %arg15[%c92, %c0_183], %269 {strides = array<i32>} : memref<216x512xf32, #tpu.memory_space<vmem>>, vector<4x512xf32>,
    %c370_i32 = arith.constant 370 : i32
    %271 = tpu.dynamic_rotate %151 by %c370_i32 dim 1 : vector<4x512xf32>, i32 -> vector<4x512xf32>
    %c24_184 = arith.constant 24 : index
    %c0_185 = arith.constant 0 : index
    %272 = vector.load %arg11[%c24_184, %c0_185] : memref<27x512xf32, #tpu.memory_space<vmem>>, vector<1x512xf32>
    %273 = vector.broadcast %272 : vector<1x512xf32> to vector<4x512xf32>
    %274 = arith.mulf %271, %273 : vector<4x512xf32>
    %c96 = arith.constant 96 : index
    %c0_186 = arith.constant 0 : index
    %275 = vector.load %arg15[%c96, %c0_186] : memref<216x512xf32, #tpu.memory_space<vmem>>, vector<4x512xf32>
    tpu.vector_store %arg15[%c96, %c0_186], %274 {strides = array<i32>} : memref<216x512xf32, #tpu.memory_space<vmem>>, vector<4x512xf32>,
    %c368_i32 = arith.constant 368 : i32
    %276 = tpu.dynamic_rotate %151 by %c368_i32 dim 1 : vector<4x512xf32>, i32 -> vector<4x512xf32>
    %c25_187 = arith.constant 25 : index
    %c0_188 = arith.constant 0 : index
    %277 = vector.load %arg11[%c25_187, %c0_188] : memref<27x512xf32, #tpu.memory_space<vmem>>, vector<1x512xf32>
    %278 = vector.broadcast %277 : vector<1x512xf32> to vector<4x512xf32>
    %279 = arith.mulf %276, %278 : vector<4x512xf32>
    %c100 = arith.constant 100 : index
    %c0_189 = arith.constant 0 : index
    %280 = vector.load %arg15[%c100, %c0_189] : memref<216x512xf32, #tpu.memory_space<vmem>>, vector<4x512xf32>
    tpu.vector_store %arg15[%c100, %c0_189], %279 {strides = array<i32>} : memref<216x512xf32, #tpu.memory_space<vmem>>, vector<4x512xf32>,
    %c366_i32 = arith.constant 366 : i32
    %281 = tpu.dynamic_rotate %151 by %c366_i32 dim 1 : vector<4x512xf32>, i32 -> vector<4x512xf32>
    %c26_190 = arith.constant 26 : index
    %c0_191 = arith.constant 0 : index
    %282 = vector.load %arg11[%c26_190, %c0_191] : memref<27x512xf32, #tpu.memory_space<vmem>>, vector<1x512xf32>
    %283 = vector.broadcast %282 : vector<1x512xf32> to vector<4x512xf32>
    %284 = arith.mulf %281, %283 : vector<4x512xf32>
    %c104 = arith.constant 104 : index
    %c0_192 = arith.constant 0 : index
    %285 = vector.load %arg15[%c104, %c0_192] : memref<216x512xf32, #tpu.memory_space<vmem>>, vector<4x512xf32>
    tpu.vector_store %arg15[%c104, %c0_192], %284 {strides = array<i32>} : memref<216x512xf32, #tpu.memory_space<vmem>>, vector<4x512xf32>,
    %c0_193 = arith.constant 0 : index
    %c0_194 = arith.constant 0 : index
    %286 = vector.load %arg4[%c0_193, %c0_194] : memref<8x112xf32, #tpu.memory_space<vmem>>, vector<8x112xf32>
    %c0_195 = arith.constant 0 : index
    %c0_196 = arith.constant 0 : index
    %287 = vector.load %arg15[%c0_195, %c0_196] : memref<216x512xf32, #tpu.memory_space<vmem>>, vector<112x512xf32>
    %cst_197 = arith.constant dense<0.000000e+00> : vector<8x512xf32>
    %288 = tpu.matmul %286, %287, %cst_197 {dimension_numbers = #tpu.dot_dimension_numbers<[1], [0], [0], [1], [0, 0, 1, 1], [], []>} : vector<8x112xf32>, vector<112x512xf32>, vector<8x512xf32> -> vector<8x512xf32>
    %c0_198 = arith.constant 0 : index
    %c0_199 = arith.constant 0 : index
    %289 = vector.load %arg5[%c0_198, %c0_199] : memref<8x1xf32, #tpu.memory_space<vmem>>, vector<8x1xf32>
    %290 = vector.broadcast %289 : vector<8x1xf32> to vector<8x512xf32>
    %291 = arith.addf %288, %290 : vector<8x512xf32>
    %cst_200 = arith.constant 0.000000e+00 : f32
    %292 = vector.broadcast %cst_200 : f32 to vector<8x512xf32>
    %293 = arith.maximumf %291, %292 : vector<8x512xf32>
    %c13_201 = arith.constant 13 : index
    %c0_202 = arith.constant 0 : index
    %294 = vector.load %arg11[%c13_201, %c0_202] : memref<27x512xf32, #tpu.memory_space<vmem>>, vector<1x512xf32>
    %295 = vector.broadcast %294 : vector<1x512xf32> to vector<8x512xf32>
    %296 = arith.mulf %293, %295 : vector<8x512xf32>
    %c510_i32_203 = arith.constant 510 : i32
    %297 = tpu.dynamic_rotate %296 by %c510_i32_203 dim 1 : vector<8x512xf32>, i32 -> vector<8x512xf32>
    %298 = arith.cmpf ogt, %297, %296 : vector<8x512xf32>
    %299 = arith.extui %298 : vector<8x512xi1> to vector<8x512xi32>
    %300 = arith.sitofp %299 : vector<8x512xi32> to vector<8x512xf32>
    %301 = arith.maximumf %296, %297 : vector<8x512xf32>
    %c496_i32_204 = arith.constant 496 : i32
    %302 = tpu.dynamic_rotate %301 by %c496_i32_204 dim 1 : vector<8x512xf32>, i32 -> vector<8x512xf32>
    %c496_i32_205 = arith.constant 496 : i32
    %303 = tpu.dynamic_rotate %300 by %c496_i32_205 dim 1 : vector<8x512xf32>, i32 -> vector<8x512xf32>
    %304 = arith.cmpf ogt, %302, %301 : vector<8x512xf32>
    %305 = arith.extui %304 : vector<8x512xi1> to vector<8x512xi32>
    %306 = arith.sitofp %305 : vector<8x512xi32> to vector<8x512xf32>
    %307 = arith.select %304, %303, %300 : vector<8x512xi1>, vector<8x512xf32>
    %308 = arith.maximumf %301, %302 : vector<8x512xf32>
    %c384_i32_206 = arith.constant 384 : i32
    %309 = tpu.dynamic_rotate %308 by %c384_i32_206 dim 1 : vector<8x512xf32>, i32 -> vector<8x512xf32>
    %c384_i32_207 = arith.constant 384 : i32
    %310 = tpu.dynamic_rotate %307 by %c384_i32_207 dim 1 : vector<8x512xf32>, i32 -> vector<8x512xf32>
    %c384_i32_208 = arith.constant 384 : i32
    %311 = tpu.dynamic_rotate %306 by %c384_i32_208 dim 1 : vector<8x512xf32>, i32 -> vector<8x512xf32>
    %312 = arith.cmpf ogt, %309, %308 : vector<8x512xf32>
    %313 = arith.extui %312 : vector<8x512xi1> to vector<8x512xi32>
    %314 = arith.sitofp %313 : vector<8x512xi32> to vector<8x512xf32>
    %315 = arith.select %312, %310, %307 : vector<8x512xi1>, vector<8x512xf32>
    %316 = arith.select %312, %311, %306 : vector<8x512xi1>, vector<8x512xf32>
    %317 = arith.maximumf %308, %309 : vector<8x512xf32>
    %cst_209 = arith.constant 4.000000e+00 : f32
    %318 = vector.broadcast %cst_209 : f32 to vector<8x512xf32>
    %319 = arith.mulf %318, %314 : vector<8x512xf32>
    %cst_210 = arith.constant 2.000000e+00 : f32
    %320 = vector.broadcast %cst_210 : f32 to vector<8x512xf32>
    %321 = arith.mulf %320, %316 : vector<8x512xf32>
    %322 = arith.addf %319, %321 : vector<8x512xf32>
    %323 = arith.addf %322, %315 : vector<8x512xf32>
    %c0_211 = arith.constant 0 : index
    %c0_212 = arith.constant 0 : index
    %324 = vector.load %arg13[%c0_211, %c0_212] : memref<1x512xf32, #tpu.memory_space<vmem>>, vector<1x512xf32>
    %cst_213 = arith.constant 0.000000e+00 : f32
    %325 = vector.broadcast %cst_213 : f32 to vector<8x512xf32>
    %cst_214 = arith.constant 0.000000e+00 : f32
    %326 = vector.broadcast %cst_214 : f32 to vector<1x512xf32>
    %327 = arith.cmpf oeq, %324, %326 : vector<1x512xf32>
    %cst_215 = arith.constant 0.000000e+00 : f32
    %328 = vector.broadcast %cst_215 : f32 to vector<8x512xf32>
    %329 = arith.cmpf oeq, %323, %328 : vector<8x512xf32>
    %330 = vector.broadcast %327 : vector<1x512xi1> to vector<8x512xi1>
    %331 = arith.andi %330, %329 : vector<8x512xi1>
    %cst_216 = arith.constant 0.000000e+00 : f32
    %332 = vector.broadcast %cst_216 : f32 to vector<8x512xf32>
    %333 = arith.select %331, %317, %332 : vector<8x512xi1>, vector<8x512xf32>
    %334 = arith.addf %325, %333 : vector<8x512xf32>
    %cst_217 = arith.constant 1.000000e+00 : f32
    %335 = vector.broadcast %cst_217 : f32 to vector<1x512xf32>
    %336 = arith.cmpf oeq, %324, %335 : vector<1x512xf32>
    %c2_i32_218 = arith.constant 2 : i32
    %337 = tpu.dynamic_rotate %323 by %c2_i32_218 dim 1 : vector<8x512xf32>, i32 -> vector<8x512xf32>
    %cst_219 = arith.constant 1.000000e+00 : f32
    %338 = vector.broadcast %cst_219 : f32 to vector<8x512xf32>
    %339 = arith.cmpf oeq, %337, %338 : vector<8x512xf32>
    %340 = vector.broadcast %336 : vector<1x512xi1> to vector<8x512xi1>
    %341 = arith.andi %340, %339 : vector<8x512xi1>
    %c2_i32_220 = arith.constant 2 : i32
    %342 = tpu.dynamic_rotate %317 by %c2_i32_220 dim 1 : vector<8x512xf32>, i32 -> vector<8x512xf32>
    %cst_221 = arith.constant 0.000000e+00 : f32
    %343 = vector.broadcast %cst_221 : f32 to vector<8x512xf32>
    %344 = arith.select %341, %342, %343 : vector<8x512xi1>, vector<8x512xf32>
    %345 = arith.addf %334, %344 : vector<8x512xf32>
    %cst_222 = arith.constant 2.000000e+00 : f32
    %346 = vector.broadcast %cst_222 : f32 to vector<1x512xf32>
    %347 = arith.cmpf oeq, %324, %346 : vector<1x512xf32>
    %c16_i32_223 = arith.constant 16 : i32
    %348 = tpu.dynamic_rotate %323 by %c16_i32_223 dim 1 : vector<8x512xf32>, i32 -> vector<8x512xf32>
    %cst_224 = arith.constant 2.000000e+00 : f32
    %349 = vector.broadcast %cst_224 : f32 to vector<8x512xf32>
    %350 = arith.cmpf oeq, %348, %349 : vector<8x512xf32>
    %351 = vector.broadcast %347 : vector<1x512xi1> to vector<8x512xi1>
    %352 = arith.andi %351, %350 : vector<8x512xi1>
    %c16_i32_225 = arith.constant 16 : i32
    %353 = tpu.dynamic_rotate %317 by %c16_i32_225 dim 1 : vector<8x512xf32>, i32 -> vector<8x512xf32>
    %cst_226 = arith.constant 0.000000e+00 : f32
    %354 = vector.broadcast %cst_226 : f32 to vector<8x512xf32>
    %355 = arith.select %352, %353, %354 : vector<8x512xi1>, vector<8x512xf32>
    %356 = arith.addf %345, %355 : vector<8x512xf32>
    %cst_227 = arith.constant 3.000000e+00 : f32
    %357 = vector.broadcast %cst_227 : f32 to vector<1x512xf32>
    %358 = arith.cmpf oeq, %324, %357 : vector<1x512xf32>
    %c18_i32_228 = arith.constant 18 : i32
    %359 = tpu.dynamic_rotate %323 by %c18_i32_228 dim 1 : vector<8x512xf32>, i32 -> vector<8x512xf32>
    %cst_229 = arith.constant 3.000000e+00 : f32
    %360 = vector.broadcast %cst_229 : f32 to vector<8x512xf32>
    %361 = arith.cmpf oeq, %359, %360 : vector<8x512xf32>
    %362 = vector.broadcast %358 : vector<1x512xi1> to vector<8x512xi1>
    %363 = arith.andi %362, %361 : vector<8x512xi1>
    %c18_i32_230 = arith.constant 18 : i32
    %364 = tpu.dynamic_rotate %317 by %c18_i32_230 dim 1 : vector<8x512xf32>, i32 -> vector<8x512xf32>
    %cst_231 = arith.constant 0.000000e+00 : f32
    %365 = vector.broadcast %cst_231 : f32 to vector<8x512xf32>
    %366 = arith.select %363, %364, %365 : vector<8x512xi1>, vector<8x512xf32>
    %367 = arith.addf %356, %366 : vector<8x512xf32>
    %cst_232 = arith.constant 4.000000e+00 : f32
    %368 = vector.broadcast %cst_232 : f32 to vector<1x512xf32>
    %369 = arith.cmpf oeq, %324, %368 : vector<1x512xf32>
    %c128_i32_233 = arith.constant 128 : i32
    %370 = tpu.dynamic_rotate %323 by %c128_i32_233 dim 1 : vector<8x512xf32>, i32 -> vector<8x512xf32>
    %cst_234 = arith.constant 4.000000e+00 : f32
    %371 = vector.broadcast %cst_234 : f32 to vector<8x512xf32>
    %372 = arith.cmpf oeq, %370, %371 : vector<8x512xf32>
    %373 = vector.broadcast %369 : vector<1x512xi1> to vector<8x512xi1>
    %374 = arith.andi %373, %372 : vector<8x512xi1>
    %c128_i32_235 = arith.constant 128 : i32
    %375 = tpu.dynamic_rotate %317 by %c128_i32_235 dim 1 : vector<8x512xf32>, i32 -> vector<8x512xf32>
    %cst_236 = arith.constant 0.000000e+00 : f32
    %376 = vector.broadcast %cst_236 : f32 to vector<8x512xf32>
    %377 = arith.select %374, %375, %376 : vector<8x512xi1>, vector<8x512xf32>
    %378 = arith.addf %367, %377 : vector<8x512xf32>
    %cst_237 = arith.constant 5.000000e+00 : f32
    %379 = vector.broadcast %cst_237 : f32 to vector<1x512xf32>
    %380 = arith.cmpf oeq, %324, %379 : vector<1x512xf32>
    %c130_i32_238 = arith.constant 130 : i32
    %381 = tpu.dynamic_rotate %323 by %c130_i32_238 dim 1 : vector<8x512xf32>, i32 -> vector<8x512xf32>
    %cst_239 = arith.constant 5.000000e+00 : f32
    %382 = vector.broadcast %cst_239 : f32 to vector<8x512xf32>
    %383 = arith.cmpf oeq, %381, %382 : vector<8x512xf32>
    %384 = vector.broadcast %380 : vector<1x512xi1> to vector<8x512xi1>
    %385 = arith.andi %384, %383 : vector<8x512xi1>
    %c130_i32_240 = arith.constant 130 : i32
    %386 = tpu.dynamic_rotate %317 by %c130_i32_240 dim 1 : vector<8x512xf32>, i32 -> vector<8x512xf32>
    %cst_241 = arith.constant 0.000000e+00 : f32
    %387 = vector.broadcast %cst_241 : f32 to vector<8x512xf32>
    %388 = arith.select %385, %386, %387 : vector<8x512xi1>, vector<8x512xf32>
    %389 = arith.addf %378, %388 : vector<8x512xf32>
    %cst_242 = arith.constant 6.000000e+00 : f32
    %390 = vector.broadcast %cst_242 : f32 to vector<1x512xf32>
    %391 = arith.cmpf oeq, %324, %390 : vector<1x512xf32>
    %c144_i32_243 = arith.constant 144 : i32
    %392 = tpu.dynamic_rotate %323 by %c144_i32_243 dim 1 : vector<8x512xf32>, i32 -> vector<8x512xf32>
    %cst_244 = arith.constant 6.000000e+00 : f32
    %393 = vector.broadcast %cst_244 : f32 to vector<8x512xf32>
    %394 = arith.cmpf oeq, %392, %393 : vector<8x512xf32>
    %395 = vector.broadcast %391 : vector<1x512xi1> to vector<8x512xi1>
    %396 = arith.andi %395, %394 : vector<8x512xi1>
    %c144_i32_245 = arith.constant 144 : i32
    %397 = tpu.dynamic_rotate %317 by %c144_i32_245 dim 1 : vector<8x512xf32>, i32 -> vector<8x512xf32>
    %cst_246 = arith.constant 0.000000e+00 : f32
    %398 = vector.broadcast %cst_246 : f32 to vector<8x512xf32>
    %399 = arith.select %396, %397, %398 : vector<8x512xi1>, vector<8x512xf32>
    %400 = arith.addf %389, %399 : vector<8x512xf32>
    %cst_247 = arith.constant 7.000000e+00 : f32
    %401 = vector.broadcast %cst_247 : f32 to vector<1x512xf32>
    %402 = arith.cmpf oeq, %324, %401 : vector<1x512xf32>
    %c146_i32_248 = arith.constant 146 : i32
    %403 = tpu.dynamic_rotate %323 by %c146_i32_248 dim 1 : vector<8x512xf32>, i32 -> vector<8x512xf32>
    %cst_249 = arith.constant 7.000000e+00 : f32
    %404 = vector.broadcast %cst_249 : f32 to vector<8x512xf32>
    %405 = arith.cmpf oeq, %403, %404 : vector<8x512xf32>
    %406 = vector.broadcast %402 : vector<1x512xi1> to vector<8x512xi1>
    %407 = arith.andi %406, %405 : vector<8x512xi1>
    %c146_i32_250 = arith.constant 146 : i32
    %408 = tpu.dynamic_rotate %317 by %c146_i32_250 dim 1 : vector<8x512xf32>, i32 -> vector<8x512xf32>
    %cst_251 = arith.constant 0.000000e+00 : f32
    %409 = vector.broadcast %cst_251 : f32 to vector<8x512xf32>
    %410 = arith.select %407, %408, %409 : vector<8x512xi1>, vector<8x512xf32>
    %411 = arith.addf %400, %410 : vector<8x512xf32>
    %c146_i32_252 = arith.constant 146 : i32
    %412 = tpu.dynamic_rotate %411 by %c146_i32_252 dim 1 : vector<8x512xf32>, i32 -> vector<8x512xf32>
    %c0_253 = arith.constant 0 : index
    %c0_254 = arith.constant 0 : index
    %413 = vector.load %arg11[%c0_253, %c0_254] : memref<27x512xf32, #tpu.memory_space<vmem>>, vector<1x512xf32>
    %414 = vector.broadcast %413 : vector<1x512xf32> to vector<8x512xf32>
    %415 = arith.mulf %412, %414 : vector<8x512xf32>
    %c0_255 = arith.constant 0 : index
    %c0_256 = arith.constant 0 : index
    %416 = vector.load %arg15[%c0_255, %c0_256] : memref<216x512xf32, #tpu.memory_space<vmem>>, vector<8x512xf32>
    tpu.vector_store %arg15[%c0_255, %c0_256], %415 {strides = array<i32>} : memref<216x512xf32, #tpu.memory_space<vmem>>, vector<8x512xf32>,
    %c144_i32_257 = arith.constant 144 : i32
    %417 = tpu.dynamic_rotate %411 by %c144_i32_257 dim 1 : vector<8x512xf32>, i32 -> vector<8x512xf32>
    %c1_258 = arith.constant 1 : index
    %c0_259 = arith.constant 0 : index
    %418 = vector.load %arg11[%c1_258, %c0_259] : memref<27x512xf32, #tpu.memory_space<vmem>>, vector<1x512xf32>
    %419 = vector.broadcast %418 : vector<1x512xf32> to vector<8x512xf32>
    %420 = arith.mulf %417, %419 : vector<8x512xf32>
    %c8_260 = arith.constant 8 : index
    %c0_261 = arith.constant 0 : index
    %421 = vector.load %arg15[%c8_260, %c0_261] : memref<216x512xf32, #tpu.memory_space<vmem>>, vector<8x512xf32>
    tpu.vector_store %arg15[%c8_260, %c0_261], %420 {strides = array<i32>} : memref<216x512xf32, #tpu.memory_space<vmem>>, vector<8x512xf32>,
    %c142_i32_262 = arith.constant 142 : i32
    %422 = tpu.dynamic_rotate %411 by %c142_i32_262 dim 1 : vector<8x512xf32>, i32 -> vector<8x512xf32>
    %c2_263 = arith.constant 2 : index
    %c0_264 = arith.constant 0 : index
    %423 = vector.load %arg11[%c2_263, %c0_264] : memref<27x512xf32, #tpu.memory_space<vmem>>, vector<1x512xf32>
    %424 = vector.broadcast %423 : vector<1x512xf32> to vector<8x512xf32>
    %425 = arith.mulf %422, %424 : vector<8x512xf32>
    %c16_265 = arith.constant 16 : index
    %c0_266 = arith.constant 0 : index
    %426 = vector.load %arg15[%c16_265, %c0_266] : memref<216x512xf32, #tpu.memory_space<vmem>>, vector<8x512xf32>
    tpu.vector_store %arg15[%c16_265, %c0_266], %425 {strides = array<i32>} : memref<216x512xf32, #tpu.memory_space<vmem>>, vector<8x512xf32>,
    %c130_i32_267 = arith.constant 130 : i32
    %427 = tpu.dynamic_rotate %411 by %c130_i32_267 dim 1 : vector<8x512xf32>, i32 -> vector<8x512xf32>
    %c3_268 = arith.constant 3 : index
    %c0_269 = arith.constant 0 : index
    %428 = vector.load %arg11[%c3_268, %c0_269] : memref<27x512xf32, #tpu.memory_space<vmem>>, vector<1x512xf32>
    %429 = vector.broadcast %428 : vector<1x512xf32> to vector<8x512xf32>
    %430 = arith.mulf %427, %429 : vector<8x512xf32>
    %c24_270 = arith.constant 24 : index
    %c0_271 = arith.constant 0 : index
    %431 = vector.load %arg15[%c24_270, %c0_271] : memref<216x512xf32, #tpu.memory_space<vmem>>, vector<8x512xf32>
    tpu.vector_store %arg15[%c24_270, %c0_271], %430 {strides = array<i32>} : memref<216x512xf32, #tpu.memory_space<vmem>>, vector<8x512xf32>,
    %c128_i32_272 = arith.constant 128 : i32
    %432 = tpu.dynamic_rotate %411 by %c128_i32_272 dim 1 : vector<8x512xf32>, i32 -> vector<8x512xf32>
    %c4_273 = arith.constant 4 : index
    %c0_274 = arith.constant 0 : index
    %433 = vector.load %arg11[%c4_273, %c0_274] : memref<27x512xf32, #tpu.memory_space<vmem>>, vector<1x512xf32>
    %434 = vector.broadcast %433 : vector<1x512xf32> to vector<8x512xf32>
    %435 = arith.mulf %432, %434 : vector<8x512xf32>
    %c32_275 = arith.constant 32 : index
    %c0_276 = arith.constant 0 : index
    %436 = vector.load %arg15[%c32_275, %c0_276] : memref<216x512xf32, #tpu.memory_space<vmem>>, vector<8x512xf32>
    tpu.vector_store %arg15[%c32_275, %c0_276], %435 {strides = array<i32>} : memref<216x512xf32, #tpu.memory_space<vmem>>, vector<8x512xf32>,
    %c126_i32_277 = arith.constant 126 : i32
    %437 = tpu.dynamic_rotate %411 by %c126_i32_277 dim 1 : vector<8x512xf32>, i32 -> vector<8x512xf32>
    %c5_278 = arith.constant 5 : index
    %c0_279 = arith.constant 0 : index
    %438 = vector.load %arg11[%c5_278, %c0_279] : memref<27x512xf32, #tpu.memory_space<vmem>>, vector<1x512xf32>
    %439 = vector.broadcast %438 : vector<1x512xf32> to vector<8x512xf32>
    %440 = arith.mulf %437, %439 : vector<8x512xf32>
    %c40_280 = arith.constant 40 : index
    %c0_281 = arith.constant 0 : index
    %441 = vector.load %arg15[%c40_280, %c0_281] : memref<216x512xf32, #tpu.memory_space<vmem>>, vector<8x512xf32>
    tpu.vector_store %arg15[%c40_280, %c0_281], %440 {strides = array<i32>} : memref<216x512xf32, #tpu.memory_space<vmem>>, vector<8x512xf32>,
    %c114_i32_282 = arith.constant 114 : i32
    %442 = tpu.dynamic_rotate %411 by %c114_i32_282 dim 1 : vector<8x512xf32>, i32 -> vector<8x512xf32>
    %c6_283 = arith.constant 6 : index
    %c0_284 = arith.constant 0 : index
    %443 = vector.load %arg11[%c6_283, %c0_284] : memref<27x512xf32, #tpu.memory_space<vmem>>, vector<1x512xf32>
    %444 = vector.broadcast %443 : vector<1x512xf32> to vector<8x512xf32>
    %445 = arith.mulf %442, %444 : vector<8x512xf32>
    %c48_285 = arith.constant 48 : index
    %c0_286 = arith.constant 0 : index
    %446 = vector.load %arg15[%c48_285, %c0_286] : memref<216x512xf32, #tpu.memory_space<vmem>>, vector<8x512xf32>
    tpu.vector_store %arg15[%c48_285, %c0_286], %445 {strides = array<i32>} : memref<216x512xf32, #tpu.memory_space<vmem>>, vector<8x512xf32>,
    %c112_i32_287 = arith.constant 112 : i32
    %447 = tpu.dynamic_rotate %411 by %c112_i32_287 dim 1 : vector<8x512xf32>, i32 -> vector<8x512xf32>
    %c7_288 = arith.constant 7 : index
    %c0_289 = arith.constant 0 : index
    %448 = vector.load %arg11[%c7_288, %c0_289] : memref<27x512xf32, #tpu.memory_space<vmem>>, vector<1x512xf32>
    %449 = vector.broadcast %448 : vector<1x512xf32> to vector<8x512xf32>
    %450 = arith.mulf %447, %449 : vector<8x512xf32>
    %c56_290 = arith.constant 56 : index
    %c0_291 = arith.constant 0 : index
    %451 = vector.load %arg15[%c56_290, %c0_291] : memref<216x512xf32, #tpu.memory_space<vmem>>, vector<8x512xf32>
    tpu.vector_store %arg15[%c56_290, %c0_291], %450 {strides = array<i32>} : memref<216x512xf32, #tpu.memory_space<vmem>>, vector<8x512xf32>,
    %c110_i32_292 = arith.constant 110 : i32
    %452 = tpu.dynamic_rotate %411 by %c110_i32_292 dim 1 : vector<8x512xf32>, i32 -> vector<8x512xf32>
    %c8_293 = arith.constant 8 : index
    %c0_294 = arith.constant 0 : index
    %453 = vector.load %arg11[%c8_293, %c0_294] : memref<27x512xf32, #tpu.memory_space<vmem>>, vector<1x512xf32>
    %454 = vector.broadcast %453 : vector<1x512xf32> to vector<8x512xf32>
    %455 = arith.mulf %452, %454 : vector<8x512xf32>
    %c64_295 = arith.constant 64 : index
    %c0_296 = arith.constant 0 : index
    %456 = vector.load %arg15[%c64_295, %c0_296] : memref<216x512xf32, #tpu.memory_space<vmem>>, vector<8x512xf32>
    tpu.vector_store %arg15[%c64_295, %c0_296], %455 {strides = array<i32>} : memref<216x512xf32, #tpu.memory_space<vmem>>, vector<8x512xf32>,
    %c18_i32_297 = arith.constant 18 : i32
    %457 = tpu.dynamic_rotate %411 by %c18_i32_297 dim 1 : vector<8x512xf32>, i32 -> vector<8x512xf32>
    %c9_298 = arith.constant 9 : index
    %c0_299 = arith.constant 0 : index
    %458 = vector.load %arg11[%c9_298, %c0_299] : memref<27x512xf32, #tpu.memory_space<vmem>>, vector<1x512xf32>
    %459 = vector.broadcast %458 : vector<1x512xf32> to vector<8x512xf32>
    %460 = arith.mulf %457, %459 : vector<8x512xf32>
    %c72_300 = arith.constant 72 : index
    %c0_301 = arith.constant 0 : index
    %461 = vector.load %arg15[%c72_300, %c0_301] : memref<216x512xf32, #tpu.memory_space<vmem>>, vector<8x512xf32>
    tpu.vector_store %arg15[%c72_300, %c0_301], %460 {strides = array<i32>} : memref<216x512xf32, #tpu.memory_space<vmem>>, vector<8x512xf32>,
    %c16_i32_302 = arith.constant 16 : i32
    %462 = tpu.dynamic_rotate %411 by %c16_i32_302 dim 1 : vector<8x512xf32>, i32 -> vector<8x512xf32>
    %c10_303 = arith.constant 10 : index
    %c0_304 = arith.constant 0 : index
    %463 = vector.load %arg11[%c10_303, %c0_304] : memref<27x512xf32, #tpu.memory_space<vmem>>, vector<1x512xf32>
    %464 = vector.broadcast %463 : vector<1x512xf32> to vector<8x512xf32>
    %465 = arith.mulf %462, %464 : vector<8x512xf32>
    %c80_305 = arith.constant 80 : index
    %c0_306 = arith.constant 0 : index
    %466 = vector.load %arg15[%c80_305, %c0_306] : memref<216x512xf32, #tpu.memory_space<vmem>>, vector<8x512xf32>
    tpu.vector_store %arg15[%c80_305, %c0_306], %465 {strides = array<i32>} : memref<216x512xf32, #tpu.memory_space<vmem>>, vector<8x512xf32>,
    %c14_i32_307 = arith.constant 14 : i32
    %467 = tpu.dynamic_rotate %411 by %c14_i32_307 dim 1 : vector<8x512xf32>, i32 -> vector<8x512xf32>
    %c11_308 = arith.constant 11 : index
    %c0_309 = arith.constant 0 : index
    %468 = vector.load %arg11[%c11_308, %c0_309] : memref<27x512xf32, #tpu.memory_space<vmem>>, vector<1x512xf32>
    %469 = vector.broadcast %468 : vector<1x512xf32> to vector<8x512xf32>
    %470 = arith.mulf %467, %469 : vector<8x512xf32>
    %c88_310 = arith.constant 88 : index
    %c0_311 = arith.constant 0 : index
    %471 = vector.load %arg15[%c88_310, %c0_311] : memref<216x512xf32, #tpu.memory_space<vmem>>, vector<8x512xf32>
    tpu.vector_store %arg15[%c88_310, %c0_311], %470 {strides = array<i32>} : memref<216x512xf32, #tpu.memory_space<vmem>>, vector<8x512xf32>,
    %c2_i32_312 = arith.constant 2 : i32
    %472 = tpu.dynamic_rotate %411 by %c2_i32_312 dim 1 : vector<8x512xf32>, i32 -> vector<8x512xf32>
    %c12_313 = arith.constant 12 : index
    %c0_314 = arith.constant 0 : index
    %473 = vector.load %arg11[%c12_313, %c0_314] : memref<27x512xf32, #tpu.memory_space<vmem>>, vector<1x512xf32>
    %474 = vector.broadcast %473 : vector<1x512xf32> to vector<8x512xf32>
    %475 = arith.mulf %472, %474 : vector<8x512xf32>
    %c96_315 = arith.constant 96 : index
    %c0_316 = arith.constant 0 : index
    %476 = vector.load %arg15[%c96_315, %c0_316] : memref<216x512xf32, #tpu.memory_space<vmem>>, vector<8x512xf32>
    tpu.vector_store %arg15[%c96_315, %c0_316], %475 {strides = array<i32>} : memref<216x512xf32, #tpu.memory_space<vmem>>, vector<8x512xf32>,
    %c13_317 = arith.constant 13 : index
    %c0_318 = arith.constant 0 : index
    %477 = vector.load %arg11[%c13_317, %c0_318] : memref<27x512xf32, #tpu.memory_space<vmem>>, vector<1x512xf32>
    %478 = vector.broadcast %477 : vector<1x512xf32> to vector<8x512xf32>
    %479 = arith.mulf %411, %478 : vector<8x512xf32>
    %c104_319 = arith.constant 104 : index
    %c0_320 = arith.constant 0 : index
    %480 = vector.load %arg15[%c104_319, %c0_320] : memref<216x512xf32, #tpu.memory_space<vmem>>, vector<8x512xf32>
    tpu.vector_store %arg15[%c104_319, %c0_320], %479 {strides = array<i32>} : memref<216x512xf32, #tpu.memory_space<vmem>>, vector<8x512xf32>,
    %c510_i32_321 = arith.constant 510 : i32
    %481 = tpu.dynamic_rotate %411 by %c510_i32_321 dim 1 : vector<8x512xf32>, i32 -> vector<8x512xf32>
    %c14_322 = arith.constant 14 : index
    %c0_323 = arith.constant 0 : index
    %482 = vector.load %arg11[%c14_322, %c0_323] : memref<27x512xf32, #tpu.memory_space<vmem>>, vector<1x512xf32>
    %483 = vector.broadcast %482 : vector<1x512xf32> to vector<8x512xf32>
    %484 = arith.mulf %481, %483 : vector<8x512xf32>
    %c112 = arith.constant 112 : index
    %c0_324 = arith.constant 0 : index
    %485 = vector.load %arg15[%c112, %c0_324] : memref<216x512xf32, #tpu.memory_space<vmem>>, vector<8x512xf32>
    tpu.vector_store %arg15[%c112, %c0_324], %484 {strides = array<i32>} : memref<216x512xf32, #tpu.memory_space<vmem>>, vector<8x512xf32>,
    %c498_i32_325 = arith.constant 498 : i32
    %486 = tpu.dynamic_rotate %411 by %c498_i32_325 dim 1 : vector<8x512xf32>, i32 -> vector<8x512xf32>
    %c15_326 = arith.constant 15 : index
    %c0_327 = arith.constant 0 : index
    %487 = vector.load %arg11[%c15_326, %c0_327] : memref<27x512xf32, #tpu.memory_space<vmem>>, vector<1x512xf32>
    %488 = vector.broadcast %487 : vector<1x512xf32> to vector<8x512xf32>
    %489 = arith.mulf %486, %488 : vector<8x512xf32>
    %c120 = arith.constant 120 : index
    %c0_328 = arith.constant 0 : index
    %490 = vector.load %arg15[%c120, %c0_328] : memref<216x512xf32, #tpu.memory_space<vmem>>, vector<8x512xf32>
    tpu.vector_store %arg15[%c120, %c0_328], %489 {strides = array<i32>} : memref<216x512xf32, #tpu.memory_space<vmem>>, vector<8x512xf32>,
    %c496_i32_329 = arith.constant 496 : i32
    %491 = tpu.dynamic_rotate %411 by %c496_i32_329 dim 1 : vector<8x512xf32>, i32 -> vector<8x512xf32>
    %c16_330 = arith.constant 16 : index
    %c0_331 = arith.constant 0 : index
    %492 = vector.load %arg11[%c16_330, %c0_331] : memref<27x512xf32, #tpu.memory_space<vmem>>, vector<1x512xf32>
    %493 = vector.broadcast %492 : vector<1x512xf32> to vector<8x512xf32>
    %494 = arith.mulf %491, %493 : vector<8x512xf32>
    %c128 = arith.constant 128 : index
    %c0_332 = arith.constant 0 : index
    %495 = vector.load %arg15[%c128, %c0_332] : memref<216x512xf32, #tpu.memory_space<vmem>>, vector<8x512xf32>
    tpu.vector_store %arg15[%c128, %c0_332], %494 {strides = array<i32>} : memref<216x512xf32, #tpu.memory_space<vmem>>, vector<8x512xf32>,
    %c494_i32_333 = arith.constant 494 : i32
    %496 = tpu.dynamic_rotate %411 by %c494_i32_333 dim 1 : vector<8x512xf32>, i32 -> vector<8x512xf32>
    %c17_334 = arith.constant 17 : index
    %c0_335 = arith.constant 0 : index
    %497 = vector.load %arg11[%c17_334, %c0_335] : memref<27x512xf32, #tpu.memory_space<vmem>>, vector<1x512xf32>
    %498 = vector.broadcast %497 : vector<1x512xf32> to vector<8x512xf32>
    %499 = arith.mulf %496, %498 : vector<8x512xf32>
    %c136 = arith.constant 136 : index
    %c0_336 = arith.constant 0 : index
    %500 = vector.load %arg15[%c136, %c0_336] : memref<216x512xf32, #tpu.memory_space<vmem>>, vector<8x512xf32>
    tpu.vector_store %arg15[%c136, %c0_336], %499 {strides = array<i32>} : memref<216x512xf32, #tpu.memory_space<vmem>>, vector<8x512xf32>,
    %c402_i32_337 = arith.constant 402 : i32
    %501 = tpu.dynamic_rotate %411 by %c402_i32_337 dim 1 : vector<8x512xf32>, i32 -> vector<8x512xf32>
    %c18_338 = arith.constant 18 : index
    %c0_339 = arith.constant 0 : index
    %502 = vector.load %arg11[%c18_338, %c0_339] : memref<27x512xf32, #tpu.memory_space<vmem>>, vector<1x512xf32>
    %503 = vector.broadcast %502 : vector<1x512xf32> to vector<8x512xf32>
    %504 = arith.mulf %501, %503 : vector<8x512xf32>
    %c144 = arith.constant 144 : index
    %c0_340 = arith.constant 0 : index
    %505 = vector.load %arg15[%c144, %c0_340] : memref<216x512xf32, #tpu.memory_space<vmem>>, vector<8x512xf32>
    tpu.vector_store %arg15[%c144, %c0_340], %504 {strides = array<i32>} : memref<216x512xf32, #tpu.memory_space<vmem>>, vector<8x512xf32>,
    %c400_i32_341 = arith.constant 400 : i32
    %506 = tpu.dynamic_rotate %411 by %c400_i32_341 dim 1 : vector<8x512xf32>, i32 -> vector<8x512xf32>
    %c19_342 = arith.constant 19 : index
    %c0_343 = arith.constant 0 : index
    %507 = vector.load %arg11[%c19_342, %c0_343] : memref<27x512xf32, #tpu.memory_space<vmem>>, vector<1x512xf32>
    %508 = vector.broadcast %507 : vector<1x512xf32> to vector<8x512xf32>
    %509 = arith.mulf %506, %508 : vector<8x512xf32>
    %c152 = arith.constant 152 : index
    %c0_344 = arith.constant 0 : index
    %510 = vector.load %arg15[%c152, %c0_344] : memref<216x512xf32, #tpu.memory_space<vmem>>, vector<8x512xf32>
    tpu.vector_store %arg15[%c152, %c0_344], %509 {strides = array<i32>} : memref<216x512xf32, #tpu.memory_space<vmem>>, vector<8x512xf32>,
    %c398_i32_345 = arith.constant 398 : i32
    %511 = tpu.dynamic_rotate %411 by %c398_i32_345 dim 1 : vector<8x512xf32>, i32 -> vector<8x512xf32>
    %c20_346 = arith.constant 20 : index
    %c0_347 = arith.constant 0 : index
    %512 = vector.load %arg11[%c20_346, %c0_347] : memref<27x512xf32, #tpu.memory_space<vmem>>, vector<1x512xf32>
    %513 = vector.broadcast %512 : vector<1x512xf32> to vector<8x512xf32>
    %514 = arith.mulf %511, %513 : vector<8x512xf32>
    %c160 = arith.constant 160 : index
    %c0_348 = arith.constant 0 : index
    %515 = vector.load %arg15[%c160, %c0_348] : memref<216x512xf32, #tpu.memory_space<vmem>>, vector<8x512xf32>
    tpu.vector_store %arg15[%c160, %c0_348], %514 {strides = array<i32>} : memref<216x512xf32, #tpu.memory_space<vmem>>, vector<8x512xf32>,
    %c386_i32_349 = arith.constant 386 : i32
    %516 = tpu.dynamic_rotate %411 by %c386_i32_349 dim 1 : vector<8x512xf32>, i32 -> vector<8x512xf32>
    %c21_350 = arith.constant 21 : index
    %c0_351 = arith.constant 0 : index
    %517 = vector.load %arg11[%c21_350, %c0_351] : memref<27x512xf32, #tpu.memory_space<vmem>>, vector<1x512xf32>
    %518 = vector.broadcast %517 : vector<1x512xf32> to vector<8x512xf32>
    %519 = arith.mulf %516, %518 : vector<8x512xf32>
    %c168 = arith.constant 168 : index
    %c0_352 = arith.constant 0 : index
    %520 = vector.load %arg15[%c168, %c0_352] : memref<216x512xf32, #tpu.memory_space<vmem>>, vector<8x512xf32>
    tpu.vector_store %arg15[%c168, %c0_352], %519 {strides = array<i32>} : memref<216x512xf32, #tpu.memory_space<vmem>>, vector<8x512xf32>,
    %c384_i32_353 = arith.constant 384 : i32
    %521 = tpu.dynamic_rotate %411 by %c384_i32_353 dim 1 : vector<8x512xf32>, i32 -> vector<8x512xf32>
    %c22_354 = arith.constant 22 : index
    %c0_355 = arith.constant 0 : index
    %522 = vector.load %arg11[%c22_354, %c0_355] : memref<27x512xf32, #tpu.memory_space<vmem>>, vector<1x512xf32>
    %523 = vector.broadcast %522 : vector<1x512xf32> to vector<8x512xf32>
    %524 = arith.mulf %521, %523 : vector<8x512xf32>
    %c176 = arith.constant 176 : index
    %c0_356 = arith.constant 0 : index
    %525 = vector.load %arg15[%c176, %c0_356] : memref<216x512xf32, #tpu.memory_space<vmem>>, vector<8x512xf32>
    tpu.vector_store %arg15[%c176, %c0_356], %524 {strides = array<i32>} : memref<216x512xf32, #tpu.memory_space<vmem>>, vector<8x512xf32>,
    %c382_i32_357 = arith.constant 382 : i32
    %526 = tpu.dynamic_rotate %411 by %c382_i32_357 dim 1 : vector<8x512xf32>, i32 -> vector<8x512xf32>
    %c23_358 = arith.constant 23 : index
    %c0_359 = arith.constant 0 : index
    %527 = vector.load %arg11[%c23_358, %c0_359] : memref<27x512xf32, #tpu.memory_space<vmem>>, vector<1x512xf32>
    %528 = vector.broadcast %527 : vector<1x512xf32> to vector<8x512xf32>
    %529 = arith.mulf %526, %528 : vector<8x512xf32>
    %c184 = arith.constant 184 : index
    %c0_360 = arith.constant 0 : index
    %530 = vector.load %arg15[%c184, %c0_360] : memref<216x512xf32, #tpu.memory_space<vmem>>, vector<8x512xf32>
    tpu.vector_store %arg15[%c184, %c0_360], %529 {strides = array<i32>} : memref<216x512xf32, #tpu.memory_space<vmem>>, vector<8x512xf32>,
    %c370_i32_361 = arith.constant 370 : i32
    %531 = tpu.dynamic_rotate %411 by %c370_i32_361 dim 1 : vector<8x512xf32>, i32 -> vector<8x512xf32>
    %c24_362 = arith.constant 24 : index
    %c0_363 = arith.constant 0 : index
    %532 = vector.load %arg11[%c24_362, %c0_363] : memref<27x512xf32, #tpu.memory_space<vmem>>, vector<1x512xf32>
    %533 = vector.broadcast %532 : vector<1x512xf32> to vector<8x512xf32>
    %534 = arith.mulf %531, %533 : vector<8x512xf32>
    %c192 = arith.constant 192 : index
    %c0_364 = arith.constant 0 : index
    %535 = vector.load %arg15[%c192, %c0_364] : memref<216x512xf32, #tpu.memory_space<vmem>>, vector<8x512xf32>
    tpu.vector_store %arg15[%c192, %c0_364], %534 {strides = array<i32>} : memref<216x512xf32, #tpu.memory_space<vmem>>, vector<8x512xf32>,
    %c368_i32_365 = arith.constant 368 : i32
    %536 = tpu.dynamic_rotate %411 by %c368_i32_365 dim 1 : vector<8x512xf32>, i32 -> vector<8x512xf32>
    %c25_366 = arith.constant 25 : index
    %c0_367 = arith.constant 0 : index
    %537 = vector.load %arg11[%c25_366, %c0_367] : memref<27x512xf32, #tpu.memory_space<vmem>>, vector<1x512xf32>
    %538 = vector.broadcast %537 : vector<1x512xf32> to vector<8x512xf32>
    %539 = arith.mulf %536, %538 : vector<8x512xf32>
    %c200 = arith.constant 200 : index
    %c0_368 = arith.constant 0 : index
    %540 = vector.load %arg15[%c200, %c0_368] : memref<216x512xf32, #tpu.memory_space<vmem>>, vector<8x512xf32>
    tpu.vector_store %arg15[%c200, %c0_368], %539 {strides = array<i32>} : memref<216x512xf32, #tpu.memory_space<vmem>>, vector<8x512xf32>,
    %c366_i32_369 = arith.constant 366 : i32
    %541 = tpu.dynamic_rotate %411 by %c366_i32_369 dim 1 : vector<8x512xf32>, i32 -> vector<8x512xf32>
    %c26_370 = arith.constant 26 : index
    %c0_371 = arith.constant 0 : index
    %542 = vector.load %arg11[%c26_370, %c0_371] : memref<27x512xf32, #tpu.memory_space<vmem>>, vector<1x512xf32>
    %543 = vector.broadcast %542 : vector<1x512xf32> to vector<8x512xf32>
    %544 = arith.mulf %541, %543 : vector<8x512xf32>
    %c208 = arith.constant 208 : index
    %c0_372 = arith.constant 0 : index
    %545 = vector.load %arg15[%c208, %c0_372] : memref<216x512xf32, #tpu.memory_space<vmem>>, vector<8x512xf32>
    tpu.vector_store %arg15[%c208, %c0_372], %544 {strides = array<i32>} : memref<216x512xf32, #tpu.memory_space<vmem>>, vector<8x512xf32>,
    %c0_373 = arith.constant 0 : index
    %c0_374 = arith.constant 0 : index
    %546 = vector.load %arg6[%c0_373, %c0_374] : memref<8x216xf32, #tpu.memory_space<vmem>>, vector<8x216xf32>
    %c0_375 = arith.constant 0 : index
    %c0_376 = arith.constant 0 : index
    %547 = vector.load %arg15[%c0_375, %c0_376] : memref<216x512xf32, #tpu.memory_space<vmem>>, vector<216x512xf32>
    %cst_377 = arith.constant dense<0.000000e+00> : vector<8x512xf32>
    %548 = tpu.matmul %546, %547, %cst_377 {dimension_numbers = #tpu.dot_dimension_numbers<[1], [0], [0], [1], [0, 0, 1, 1], [], []>} : vector<8x216xf32>, vector<216x512xf32>, vector<8x512xf32> -> vector<8x512xf32>
    %c0_378 = arith.constant 0 : index
    %c0_379 = arith.constant 0 : index
    %549 = vector.load %arg7[%c0_378, %c0_379] : memref<8x1xf32, #tpu.memory_space<vmem>>, vector<8x1xf32>
    %550 = vector.broadcast %549 : vector<8x1xf32> to vector<8x512xf32>
    %551 = arith.addf %548, %550 : vector<8x512xf32>
    %cst_380 = arith.constant 0.000000e+00 : f32
    %552 = vector.broadcast %cst_380 : f32 to vector<8x512xf32>
    %553 = arith.maximumf %551, %552 : vector<8x512xf32>
    %c13_381 = arith.constant 13 : index
    %c0_382 = arith.constant 0 : index
    %554 = vector.load %arg11[%c13_381, %c0_382] : memref<27x512xf32, #tpu.memory_space<vmem>>, vector<1x512xf32>
    %555 = vector.broadcast %554 : vector<1x512xf32> to vector<8x512xf32>
    %556 = arith.mulf %553, %555 : vector<8x512xf32>
    %c0_383 = arith.constant 0 : index
    %c0_384 = arith.constant 0 : index
    %557 = vector.load %arg12[%c0_383, %c0_384] : memref<1x512xf32, #tpu.memory_space<vmem>>, vector<1x512xf32>
    %cst_385 = arith.constant 0.000000e+00 : f32
    %558 = vector.broadcast %cst_385 : f32 to vector<8x512xf32>
    %cst_386 = arith.constant 0.000000e+00 : f32
    %559 = vector.broadcast %cst_386 : f32 to vector<1x512xf32>
    %560 = arith.cmpf oeq, %557, %559 : vector<1x512xf32>
    %cst_387 = arith.constant 0.000000e+00 : f32
    %561 = vector.broadcast %cst_387 : f32 to vector<8x512xf32>
    %562 = arith.cmpf oeq, %150, %561 : vector<8x512xf32>
    %563 = vector.broadcast %560 : vector<1x512xi1> to vector<8x512xi1>
    %564 = arith.andi %563, %562 : vector<8x512xi1>
    %cst_388 = arith.constant 0.000000e+00 : f32
    %565 = vector.broadcast %cst_388 : f32 to vector<8x512xf32>
    %566 = arith.select %564, %556, %565 : vector<8x512xi1>, vector<8x512xf32>
    %567 = arith.addf %558, %566 : vector<8x512xf32>
    %cst_389 = arith.constant 1.000000e+00 : f32
    %568 = vector.broadcast %cst_389 : f32 to vector<1x512xf32>
    %569 = arith.cmpf oeq, %557, %568 : vector<1x512xf32>
    %c1_i32_390 = arith.constant 1 : i32
    %570 = tpu.dynamic_rotate %150 by %c1_i32_390 dim 1 : vector<8x512xf32>, i32 -> vector<8x512xf32>
    %cst_391 = arith.constant 1.000000e+00 : f32
    %571 = vector.broadcast %cst_391 : f32 to vector<8x512xf32>
    %572 = arith.cmpf oeq, %570, %571 : vector<8x512xf32>
    %573 = vector.broadcast %569 : vector<1x512xi1> to vector<8x512xi1>
    %574 = arith.andi %573, %572 : vector<8x512xi1>
    %c1_i32_392 = arith.constant 1 : i32
    %575 = tpu.dynamic_rotate %556 by %c1_i32_392 dim 1 : vector<8x512xf32>, i32 -> vector<8x512xf32>
    %cst_393 = arith.constant 0.000000e+00 : f32
    %576 = vector.broadcast %cst_393 : f32 to vector<8x512xf32>
    %577 = arith.select %574, %575, %576 : vector<8x512xi1>, vector<8x512xf32>
    %578 = arith.addf %567, %577 : vector<8x512xf32>
    %cst_394 = arith.constant 2.000000e+00 : f32
    %579 = vector.broadcast %cst_394 : f32 to vector<1x512xf32>
    %580 = arith.cmpf oeq, %557, %579 : vector<1x512xf32>
    %c8_i32_395 = arith.constant 8 : i32
    %581 = tpu.dynamic_rotate %150 by %c8_i32_395 dim 1 : vector<8x512xf32>, i32 -> vector<8x512xf32>
    %cst_396 = arith.constant 2.000000e+00 : f32
    %582 = vector.broadcast %cst_396 : f32 to vector<8x512xf32>
    %583 = arith.cmpf oeq, %581, %582 : vector<8x512xf32>
    %584 = vector.broadcast %580 : vector<1x512xi1> to vector<8x512xi1>
    %585 = arith.andi %584, %583 : vector<8x512xi1>
    %c8_i32_397 = arith.constant 8 : i32
    %586 = tpu.dynamic_rotate %556 by %c8_i32_397 dim 1 : vector<8x512xf32>, i32 -> vector<8x512xf32>
    %cst_398 = arith.constant 0.000000e+00 : f32
    %587 = vector.broadcast %cst_398 : f32 to vector<8x512xf32>
    %588 = arith.select %585, %586, %587 : vector<8x512xi1>, vector<8x512xf32>
    %589 = arith.addf %578, %588 : vector<8x512xf32>
    %cst_399 = arith.constant 3.000000e+00 : f32
    %590 = vector.broadcast %cst_399 : f32 to vector<1x512xf32>
    %591 = arith.cmpf oeq, %557, %590 : vector<1x512xf32>
    %c9_i32_400 = arith.constant 9 : i32
    %592 = tpu.dynamic_rotate %150 by %c9_i32_400 dim 1 : vector<8x512xf32>, i32 -> vector<8x512xf32>
    %cst_401 = arith.constant 3.000000e+00 : f32
    %593 = vector.broadcast %cst_401 : f32 to vector<8x512xf32>
    %594 = arith.cmpf oeq, %592, %593 : vector<8x512xf32>
    %595 = vector.broadcast %591 : vector<1x512xi1> to vector<8x512xi1>
    %596 = arith.andi %595, %594 : vector<8x512xi1>
    %c9_i32_402 = arith.constant 9 : i32
    %597 = tpu.dynamic_rotate %556 by %c9_i32_402 dim 1 : vector<8x512xf32>, i32 -> vector<8x512xf32>
    %cst_403 = arith.constant 0.000000e+00 : f32
    %598 = vector.broadcast %cst_403 : f32 to vector<8x512xf32>
    %599 = arith.select %596, %597, %598 : vector<8x512xi1>, vector<8x512xf32>
    %600 = arith.addf %589, %599 : vector<8x512xf32>
    %cst_404 = arith.constant 4.000000e+00 : f32
    %601 = vector.broadcast %cst_404 : f32 to vector<1x512xf32>
    %602 = arith.cmpf oeq, %557, %601 : vector<1x512xf32>
    %c64_i32_405 = arith.constant 64 : i32
    %603 = tpu.dynamic_rotate %150 by %c64_i32_405 dim 1 : vector<8x512xf32>, i32 -> vector<8x512xf32>
    %cst_406 = arith.constant 4.000000e+00 : f32
    %604 = vector.broadcast %cst_406 : f32 to vector<8x512xf32>
    %605 = arith.cmpf oeq, %603, %604 : vector<8x512xf32>
    %606 = vector.broadcast %602 : vector<1x512xi1> to vector<8x512xi1>
    %607 = arith.andi %606, %605 : vector<8x512xi1>
    %c64_i32_407 = arith.constant 64 : i32
    %608 = tpu.dynamic_rotate %556 by %c64_i32_407 dim 1 : vector<8x512xf32>, i32 -> vector<8x512xf32>
    %cst_408 = arith.constant 0.000000e+00 : f32
    %609 = vector.broadcast %cst_408 : f32 to vector<8x512xf32>
    %610 = arith.select %607, %608, %609 : vector<8x512xi1>, vector<8x512xf32>
    %611 = arith.addf %600, %610 : vector<8x512xf32>
    %cst_409 = arith.constant 5.000000e+00 : f32
    %612 = vector.broadcast %cst_409 : f32 to vector<1x512xf32>
    %613 = arith.cmpf oeq, %557, %612 : vector<1x512xf32>
    %c65_i32_410 = arith.constant 65 : i32
    %614 = tpu.dynamic_rotate %150 by %c65_i32_410 dim 1 : vector<8x512xf32>, i32 -> vector<8x512xf32>
    %cst_411 = arith.constant 5.000000e+00 : f32
    %615 = vector.broadcast %cst_411 : f32 to vector<8x512xf32>
    %616 = arith.cmpf oeq, %614, %615 : vector<8x512xf32>
    %617 = vector.broadcast %613 : vector<1x512xi1> to vector<8x512xi1>
    %618 = arith.andi %617, %616 : vector<8x512xi1>
    %c65_i32_412 = arith.constant 65 : i32
    %619 = tpu.dynamic_rotate %556 by %c65_i32_412 dim 1 : vector<8x512xf32>, i32 -> vector<8x512xf32>
    %cst_413 = arith.constant 0.000000e+00 : f32
    %620 = vector.broadcast %cst_413 : f32 to vector<8x512xf32>
    %621 = arith.select %618, %619, %620 : vector<8x512xi1>, vector<8x512xf32>
    %622 = arith.addf %611, %621 : vector<8x512xf32>
    %cst_414 = arith.constant 6.000000e+00 : f32
    %623 = vector.broadcast %cst_414 : f32 to vector<1x512xf32>
    %624 = arith.cmpf oeq, %557, %623 : vector<1x512xf32>
    %c72_i32_415 = arith.constant 72 : i32
    %625 = tpu.dynamic_rotate %150 by %c72_i32_415 dim 1 : vector<8x512xf32>, i32 -> vector<8x512xf32>
    %cst_416 = arith.constant 6.000000e+00 : f32
    %626 = vector.broadcast %cst_416 : f32 to vector<8x512xf32>
    %627 = arith.cmpf oeq, %625, %626 : vector<8x512xf32>
    %628 = vector.broadcast %624 : vector<1x512xi1> to vector<8x512xi1>
    %629 = arith.andi %628, %627 : vector<8x512xi1>
    %c72_i32_417 = arith.constant 72 : i32
    %630 = tpu.dynamic_rotate %556 by %c72_i32_417 dim 1 : vector<8x512xf32>, i32 -> vector<8x512xf32>
    %cst_418 = arith.constant 0.000000e+00 : f32
    %631 = vector.broadcast %cst_418 : f32 to vector<8x512xf32>
    %632 = arith.select %629, %630, %631 : vector<8x512xi1>, vector<8x512xf32>
    %633 = arith.addf %622, %632 : vector<8x512xf32>
    %cst_419 = arith.constant 7.000000e+00 : f32
    %634 = vector.broadcast %cst_419 : f32 to vector<1x512xf32>
    %635 = arith.cmpf oeq, %557, %634 : vector<1x512xf32>
    %c73_i32_420 = arith.constant 73 : i32
    %636 = tpu.dynamic_rotate %150 by %c73_i32_420 dim 1 : vector<8x512xf32>, i32 -> vector<8x512xf32>
    %cst_421 = arith.constant 7.000000e+00 : f32
    %637 = vector.broadcast %cst_421 : f32 to vector<8x512xf32>
    %638 = arith.cmpf oeq, %636, %637 : vector<8x512xf32>
    %639 = vector.broadcast %635 : vector<1x512xi1> to vector<8x512xi1>
    %640 = arith.andi %639, %638 : vector<8x512xi1>
    %c73_i32_422 = arith.constant 73 : i32
    %641 = tpu.dynamic_rotate %556 by %c73_i32_422 dim 1 : vector<8x512xf32>, i32 -> vector<8x512xf32>
    %cst_423 = arith.constant 0.000000e+00 : f32
    %642 = vector.broadcast %cst_423 : f32 to vector<8x512xf32>
    %643 = arith.select %640, %641, %642 : vector<8x512xi1>, vector<8x512xf32>
    %644 = arith.addf %633, %643 : vector<8x512xf32>
    %645 = vector.extract_strided_slice %644 {offsets = [0, 0], sizes = [4, 512], strides = [1, 1]} : vector<8x512xf32> to vector<4x512xf32>
    %c73_i32_424 = arith.constant 73 : i32
    %646 = tpu.dynamic_rotate %645 by %c73_i32_424 dim 1 : vector<4x512xf32>, i32 -> vector<4x512xf32>
    %c0_425 = arith.constant 0 : index
    %c0_426 = arith.constant 0 : index
    %647 = vector.load %arg10[%c0_425, %c0_426] : memref<27x512xf32, #tpu.memory_space<vmem>>, vector<1x512xf32>
    %648 = vector.broadcast %647 : vector<1x512xf32> to vector<4x512xf32>
    %649 = arith.mulf %646, %648 : vector<4x512xf32>
    %c0_427 = arith.constant 0 : index
    %c0_428 = arith.constant 0 : index
    %650 = vector.load %arg15[%c0_427, %c0_428] : memref<216x512xf32, #tpu.memory_space<vmem>>, vector<4x512xf32>
    tpu.vector_store %arg15[%c0_427, %c0_428], %649 {strides = array<i32>} : memref<216x512xf32, #tpu.memory_space<vmem>>, vector<4x512xf32>,
    %c72_i32_429 = arith.constant 72 : i32
    %651 = tpu.dynamic_rotate %645 by %c72_i32_429 dim 1 : vector<4x512xf32>, i32 -> vector<4x512xf32>
    %c1_430 = arith.constant 1 : index
    %c0_431 = arith.constant 0 : index
    %652 = vector.load %arg10[%c1_430, %c0_431] : memref<27x512xf32, #tpu.memory_space<vmem>>, vector<1x512xf32>
    %653 = vector.broadcast %652 : vector<1x512xf32> to vector<4x512xf32>
    %654 = arith.mulf %651, %653 : vector<4x512xf32>
    %c4_432 = arith.constant 4 : index
    %c0_433 = arith.constant 0 : index
    %655 = vector.load %arg15[%c4_432, %c0_433] : memref<216x512xf32, #tpu.memory_space<vmem>>, vector<4x512xf32>
    tpu.vector_store %arg15[%c4_432, %c0_433], %654 {strides = array<i32>} : memref<216x512xf32, #tpu.memory_space<vmem>>, vector<4x512xf32>,
    %c71_i32_434 = arith.constant 71 : i32
    %656 = tpu.dynamic_rotate %645 by %c71_i32_434 dim 1 : vector<4x512xf32>, i32 -> vector<4x512xf32>
    %c2_435 = arith.constant 2 : index
    %c0_436 = arith.constant 0 : index
    %657 = vector.load %arg10[%c2_435, %c0_436] : memref<27x512xf32, #tpu.memory_space<vmem>>, vector<1x512xf32>
    %658 = vector.broadcast %657 : vector<1x512xf32> to vector<4x512xf32>
    %659 = arith.mulf %656, %658 : vector<4x512xf32>
    %c8_437 = arith.constant 8 : index
    %c0_438 = arith.constant 0 : index
    %660 = vector.load %arg15[%c8_437, %c0_438] : memref<216x512xf32, #tpu.memory_space<vmem>>, vector<4x512xf32>
    tpu.vector_store %arg15[%c8_437, %c0_438], %659 {strides = array<i32>} : memref<216x512xf32, #tpu.memory_space<vmem>>, vector<4x512xf32>,
    %c65_i32_439 = arith.constant 65 : i32
    %661 = tpu.dynamic_rotate %645 by %c65_i32_439 dim 1 : vector<4x512xf32>, i32 -> vector<4x512xf32>
    %c3_440 = arith.constant 3 : index
    %c0_441 = arith.constant 0 : index
    %662 = vector.load %arg10[%c3_440, %c0_441] : memref<27x512xf32, #tpu.memory_space<vmem>>, vector<1x512xf32>
    %663 = vector.broadcast %662 : vector<1x512xf32> to vector<4x512xf32>
    %664 = arith.mulf %661, %663 : vector<4x512xf32>
    %c12_442 = arith.constant 12 : index
    %c0_443 = arith.constant 0 : index
    %665 = vector.load %arg15[%c12_442, %c0_443] : memref<216x512xf32, #tpu.memory_space<vmem>>, vector<4x512xf32>
    tpu.vector_store %arg15[%c12_442, %c0_443], %664 {strides = array<i32>} : memref<216x512xf32, #tpu.memory_space<vmem>>, vector<4x512xf32>,
    %c64_i32_444 = arith.constant 64 : i32
    %666 = tpu.dynamic_rotate %645 by %c64_i32_444 dim 1 : vector<4x512xf32>, i32 -> vector<4x512xf32>
    %c4_445 = arith.constant 4 : index
    %c0_446 = arith.constant 0 : index
    %667 = vector.load %arg10[%c4_445, %c0_446] : memref<27x512xf32, #tpu.memory_space<vmem>>, vector<1x512xf32>
    %668 = vector.broadcast %667 : vector<1x512xf32> to vector<4x512xf32>
    %669 = arith.mulf %666, %668 : vector<4x512xf32>
    %c16_447 = arith.constant 16 : index
    %c0_448 = arith.constant 0 : index
    %670 = vector.load %arg15[%c16_447, %c0_448] : memref<216x512xf32, #tpu.memory_space<vmem>>, vector<4x512xf32>
    tpu.vector_store %arg15[%c16_447, %c0_448], %669 {strides = array<i32>} : memref<216x512xf32, #tpu.memory_space<vmem>>, vector<4x512xf32>,
    %c63_i32_449 = arith.constant 63 : i32
    %671 = tpu.dynamic_rotate %645 by %c63_i32_449 dim 1 : vector<4x512xf32>, i32 -> vector<4x512xf32>
    %c5_450 = arith.constant 5 : index
    %c0_451 = arith.constant 0 : index
    %672 = vector.load %arg10[%c5_450, %c0_451] : memref<27x512xf32, #tpu.memory_space<vmem>>, vector<1x512xf32>
    %673 = vector.broadcast %672 : vector<1x512xf32> to vector<4x512xf32>
    %674 = arith.mulf %671, %673 : vector<4x512xf32>
    %c20_452 = arith.constant 20 : index
    %c0_453 = arith.constant 0 : index
    %675 = vector.load %arg15[%c20_452, %c0_453] : memref<216x512xf32, #tpu.memory_space<vmem>>, vector<4x512xf32>
    tpu.vector_store %arg15[%c20_452, %c0_453], %674 {strides = array<i32>} : memref<216x512xf32, #tpu.memory_space<vmem>>, vector<4x512xf32>,
    %c57_i32_454 = arith.constant 57 : i32
    %676 = tpu.dynamic_rotate %645 by %c57_i32_454 dim 1 : vector<4x512xf32>, i32 -> vector<4x512xf32>
    %c6_455 = arith.constant 6 : index
    %c0_456 = arith.constant 0 : index
    %677 = vector.load %arg10[%c6_455, %c0_456] : memref<27x512xf32, #tpu.memory_space<vmem>>, vector<1x512xf32>
    %678 = vector.broadcast %677 : vector<1x512xf32> to vector<4x512xf32>
    %679 = arith.mulf %676, %678 : vector<4x512xf32>
    %c24_457 = arith.constant 24 : index
    %c0_458 = arith.constant 0 : index
    %680 = vector.load %arg15[%c24_457, %c0_458] : memref<216x512xf32, #tpu.memory_space<vmem>>, vector<4x512xf32>
    tpu.vector_store %arg15[%c24_457, %c0_458], %679 {strides = array<i32>} : memref<216x512xf32, #tpu.memory_space<vmem>>, vector<4x512xf32>,
    %c56_i32_459 = arith.constant 56 : i32
    %681 = tpu.dynamic_rotate %645 by %c56_i32_459 dim 1 : vector<4x512xf32>, i32 -> vector<4x512xf32>
    %c7_460 = arith.constant 7 : index
    %c0_461 = arith.constant 0 : index
    %682 = vector.load %arg10[%c7_460, %c0_461] : memref<27x512xf32, #tpu.memory_space<vmem>>, vector<1x512xf32>
    %683 = vector.broadcast %682 : vector<1x512xf32> to vector<4x512xf32>
    %684 = arith.mulf %681, %683 : vector<4x512xf32>
    %c28_462 = arith.constant 28 : index
    %c0_463 = arith.constant 0 : index
    %685 = vector.load %arg15[%c28_462, %c0_463] : memref<216x512xf32, #tpu.memory_space<vmem>>, vector<4x512xf32>
    tpu.vector_store %arg15[%c28_462, %c0_463], %684 {strides = array<i32>} : memref<216x512xf32, #tpu.memory_space<vmem>>, vector<4x512xf32>,
    %c55_i32_464 = arith.constant 55 : i32
    %686 = tpu.dynamic_rotate %645 by %c55_i32_464 dim 1 : vector<4x512xf32>, i32 -> vector<4x512xf32>
    %c8_465 = arith.constant 8 : index
    %c0_466 = arith.constant 0 : index
    %687 = vector.load %arg10[%c8_465, %c0_466] : memref<27x512xf32, #tpu.memory_space<vmem>>, vector<1x512xf32>
    %688 = vector.broadcast %687 : vector<1x512xf32> to vector<4x512xf32>
    %689 = arith.mulf %686, %688 : vector<4x512xf32>
    %c32_467 = arith.constant 32 : index
    %c0_468 = arith.constant 0 : index
    %690 = vector.load %arg15[%c32_467, %c0_468] : memref<216x512xf32, #tpu.memory_space<vmem>>, vector<4x512xf32>
    tpu.vector_store %arg15[%c32_467, %c0_468], %689 {strides = array<i32>} : memref<216x512xf32, #tpu.memory_space<vmem>>, vector<4x512xf32>,
    %c9_i32_469 = arith.constant 9 : i32
    %691 = tpu.dynamic_rotate %645 by %c9_i32_469 dim 1 : vector<4x512xf32>, i32 -> vector<4x512xf32>
    %c9_470 = arith.constant 9 : index
    %c0_471 = arith.constant 0 : index
    %692 = vector.load %arg10[%c9_470, %c0_471] : memref<27x512xf32, #tpu.memory_space<vmem>>, vector<1x512xf32>
    %693 = vector.broadcast %692 : vector<1x512xf32> to vector<4x512xf32>
    %694 = arith.mulf %691, %693 : vector<4x512xf32>
    %c36_472 = arith.constant 36 : index
    %c0_473 = arith.constant 0 : index
    %695 = vector.load %arg15[%c36_472, %c0_473] : memref<216x512xf32, #tpu.memory_space<vmem>>, vector<4x512xf32>
    tpu.vector_store %arg15[%c36_472, %c0_473], %694 {strides = array<i32>} : memref<216x512xf32, #tpu.memory_space<vmem>>, vector<4x512xf32>,
    %c8_i32_474 = arith.constant 8 : i32
    %696 = tpu.dynamic_rotate %645 by %c8_i32_474 dim 1 : vector<4x512xf32>, i32 -> vector<4x512xf32>
    %c10_475 = arith.constant 10 : index
    %c0_476 = arith.constant 0 : index
    %697 = vector.load %arg10[%c10_475, %c0_476] : memref<27x512xf32, #tpu.memory_space<vmem>>, vector<1x512xf32>
    %698 = vector.broadcast %697 : vector<1x512xf32> to vector<4x512xf32>
    %699 = arith.mulf %696, %698 : vector<4x512xf32>
    %c40_477 = arith.constant 40 : index
    %c0_478 = arith.constant 0 : index
    %700 = vector.load %arg15[%c40_477, %c0_478] : memref<216x512xf32, #tpu.memory_space<vmem>>, vector<4x512xf32>
    tpu.vector_store %arg15[%c40_477, %c0_478], %699 {strides = array<i32>} : memref<216x512xf32, #tpu.memory_space<vmem>>, vector<4x512xf32>,
    %c7_i32_479 = arith.constant 7 : i32
    %701 = tpu.dynamic_rotate %645 by %c7_i32_479 dim 1 : vector<4x512xf32>, i32 -> vector<4x512xf32>
    %c11_480 = arith.constant 11 : index
    %c0_481 = arith.constant 0 : index
    %702 = vector.load %arg10[%c11_480, %c0_481] : memref<27x512xf32, #tpu.memory_space<vmem>>, vector<1x512xf32>
    %703 = vector.broadcast %702 : vector<1x512xf32> to vector<4x512xf32>
    %704 = arith.mulf %701, %703 : vector<4x512xf32>
    %c44_482 = arith.constant 44 : index
    %c0_483 = arith.constant 0 : index
    %705 = vector.load %arg15[%c44_482, %c0_483] : memref<216x512xf32, #tpu.memory_space<vmem>>, vector<4x512xf32>
    tpu.vector_store %arg15[%c44_482, %c0_483], %704 {strides = array<i32>} : memref<216x512xf32, #tpu.memory_space<vmem>>, vector<4x512xf32>,
    %c1_i32_484 = arith.constant 1 : i32
    %706 = tpu.dynamic_rotate %645 by %c1_i32_484 dim 1 : vector<4x512xf32>, i32 -> vector<4x512xf32>
    %c12_485 = arith.constant 12 : index
    %c0_486 = arith.constant 0 : index
    %707 = vector.load %arg10[%c12_485, %c0_486] : memref<27x512xf32, #tpu.memory_space<vmem>>, vector<1x512xf32>
    %708 = vector.broadcast %707 : vector<1x512xf32> to vector<4x512xf32>
    %709 = arith.mulf %706, %708 : vector<4x512xf32>
    %c48_487 = arith.constant 48 : index
    %c0_488 = arith.constant 0 : index
    %710 = vector.load %arg15[%c48_487, %c0_488] : memref<216x512xf32, #tpu.memory_space<vmem>>, vector<4x512xf32>
    tpu.vector_store %arg15[%c48_487, %c0_488], %709 {strides = array<i32>} : memref<216x512xf32, #tpu.memory_space<vmem>>, vector<4x512xf32>,
    %c13_489 = arith.constant 13 : index
    %c0_490 = arith.constant 0 : index
    %711 = vector.load %arg10[%c13_489, %c0_490] : memref<27x512xf32, #tpu.memory_space<vmem>>, vector<1x512xf32>
    %712 = vector.broadcast %711 : vector<1x512xf32> to vector<4x512xf32>
    %713 = arith.mulf %645, %712 : vector<4x512xf32>
    %c52_491 = arith.constant 52 : index
    %c0_492 = arith.constant 0 : index
    %714 = vector.load %arg15[%c52_491, %c0_492] : memref<216x512xf32, #tpu.memory_space<vmem>>, vector<4x512xf32>
    tpu.vector_store %arg15[%c52_491, %c0_492], %713 {strides = array<i32>} : memref<216x512xf32, #tpu.memory_space<vmem>>, vector<4x512xf32>,
    %c511_i32_493 = arith.constant 511 : i32
    %715 = tpu.dynamic_rotate %645 by %c511_i32_493 dim 1 : vector<4x512xf32>, i32 -> vector<4x512xf32>
    %c14_494 = arith.constant 14 : index
    %c0_495 = arith.constant 0 : index
    %716 = vector.load %arg10[%c14_494, %c0_495] : memref<27x512xf32, #tpu.memory_space<vmem>>, vector<1x512xf32>
    %717 = vector.broadcast %716 : vector<1x512xf32> to vector<4x512xf32>
    %718 = arith.mulf %715, %717 : vector<4x512xf32>
    %c56_496 = arith.constant 56 : index
    %c0_497 = arith.constant 0 : index
    %719 = vector.load %arg15[%c56_496, %c0_497] : memref<216x512xf32, #tpu.memory_space<vmem>>, vector<4x512xf32>
    tpu.vector_store %arg15[%c56_496, %c0_497], %718 {strides = array<i32>} : memref<216x512xf32, #tpu.memory_space<vmem>>, vector<4x512xf32>,
    %c505_i32_498 = arith.constant 505 : i32
    %720 = tpu.dynamic_rotate %645 by %c505_i32_498 dim 1 : vector<4x512xf32>, i32 -> vector<4x512xf32>
    %c15_499 = arith.constant 15 : index
    %c0_500 = arith.constant 0 : index
    %721 = vector.load %arg10[%c15_499, %c0_500] : memref<27x512xf32, #tpu.memory_space<vmem>>, vector<1x512xf32>
    %722 = vector.broadcast %721 : vector<1x512xf32> to vector<4x512xf32>
    %723 = arith.mulf %720, %722 : vector<4x512xf32>
    %c60_501 = arith.constant 60 : index
    %c0_502 = arith.constant 0 : index
    %724 = vector.load %arg15[%c60_501, %c0_502] : memref<216x512xf32, #tpu.memory_space<vmem>>, vector<4x512xf32>
    tpu.vector_store %arg15[%c60_501, %c0_502], %723 {strides = array<i32>} : memref<216x512xf32, #tpu.memory_space<vmem>>, vector<4x512xf32>,
    %c504_i32_503 = arith.constant 504 : i32
    %725 = tpu.dynamic_rotate %645 by %c504_i32_503 dim 1 : vector<4x512xf32>, i32 -> vector<4x512xf32>
    %c16_504 = arith.constant 16 : index
    %c0_505 = arith.constant 0 : index
    %726 = vector.load %arg10[%c16_504, %c0_505] : memref<27x512xf32, #tpu.memory_space<vmem>>, vector<1x512xf32>
    %727 = vector.broadcast %726 : vector<1x512xf32> to vector<4x512xf32>
    %728 = arith.mulf %725, %727 : vector<4x512xf32>
    %c64_506 = arith.constant 64 : index
    %c0_507 = arith.constant 0 : index
    %729 = vector.load %arg15[%c64_506, %c0_507] : memref<216x512xf32, #tpu.memory_space<vmem>>, vector<4x512xf32>
    tpu.vector_store %arg15[%c64_506, %c0_507], %728 {strides = array<i32>} : memref<216x512xf32, #tpu.memory_space<vmem>>, vector<4x512xf32>,
    %c503_i32_508 = arith.constant 503 : i32
    %730 = tpu.dynamic_rotate %645 by %c503_i32_508 dim 1 : vector<4x512xf32>, i32 -> vector<4x512xf32>
    %c17_509 = arith.constant 17 : index
    %c0_510 = arith.constant 0 : index
    %731 = vector.load %arg10[%c17_509, %c0_510] : memref<27x512xf32, #tpu.memory_space<vmem>>, vector<1x512xf32>
    %732 = vector.broadcast %731 : vector<1x512xf32> to vector<4x512xf32>
    %733 = arith.mulf %730, %732 : vector<4x512xf32>
    %c68_511 = arith.constant 68 : index
    %c0_512 = arith.constant 0 : index
    %734 = vector.load %arg15[%c68_511, %c0_512] : memref<216x512xf32, #tpu.memory_space<vmem>>, vector<4x512xf32>
    tpu.vector_store %arg15[%c68_511, %c0_512], %733 {strides = array<i32>} : memref<216x512xf32, #tpu.memory_space<vmem>>, vector<4x512xf32>,
    %c457_i32_513 = arith.constant 457 : i32
    %735 = tpu.dynamic_rotate %645 by %c457_i32_513 dim 1 : vector<4x512xf32>, i32 -> vector<4x512xf32>
    %c18_514 = arith.constant 18 : index
    %c0_515 = arith.constant 0 : index
    %736 = vector.load %arg10[%c18_514, %c0_515] : memref<27x512xf32, #tpu.memory_space<vmem>>, vector<1x512xf32>
    %737 = vector.broadcast %736 : vector<1x512xf32> to vector<4x512xf32>
    %738 = arith.mulf %735, %737 : vector<4x512xf32>
    %c72_516 = arith.constant 72 : index
    %c0_517 = arith.constant 0 : index
    %739 = vector.load %arg15[%c72_516, %c0_517] : memref<216x512xf32, #tpu.memory_space<vmem>>, vector<4x512xf32>
    tpu.vector_store %arg15[%c72_516, %c0_517], %738 {strides = array<i32>} : memref<216x512xf32, #tpu.memory_space<vmem>>, vector<4x512xf32>,
    %c456_i32_518 = arith.constant 456 : i32
    %740 = tpu.dynamic_rotate %645 by %c456_i32_518 dim 1 : vector<4x512xf32>, i32 -> vector<4x512xf32>
    %c19_519 = arith.constant 19 : index
    %c0_520 = arith.constant 0 : index
    %741 = vector.load %arg10[%c19_519, %c0_520] : memref<27x512xf32, #tpu.memory_space<vmem>>, vector<1x512xf32>
    %742 = vector.broadcast %741 : vector<1x512xf32> to vector<4x512xf32>
    %743 = arith.mulf %740, %742 : vector<4x512xf32>
    %c76_521 = arith.constant 76 : index
    %c0_522 = arith.constant 0 : index
    %744 = vector.load %arg15[%c76_521, %c0_522] : memref<216x512xf32, #tpu.memory_space<vmem>>, vector<4x512xf32>
    tpu.vector_store %arg15[%c76_521, %c0_522], %743 {strides = array<i32>} : memref<216x512xf32, #tpu.memory_space<vmem>>, vector<4x512xf32>,
    %c455_i32_523 = arith.constant 455 : i32
    %745 = tpu.dynamic_rotate %645 by %c455_i32_523 dim 1 : vector<4x512xf32>, i32 -> vector<4x512xf32>
    %c20_524 = arith.constant 20 : index
    %c0_525 = arith.constant 0 : index
    %746 = vector.load %arg10[%c20_524, %c0_525] : memref<27x512xf32, #tpu.memory_space<vmem>>, vector<1x512xf32>
    %747 = vector.broadcast %746 : vector<1x512xf32> to vector<4x512xf32>
    %748 = arith.mulf %745, %747 : vector<4x512xf32>
    %c80_526 = arith.constant 80 : index
    %c0_527 = arith.constant 0 : index
    %749 = vector.load %arg15[%c80_526, %c0_527] : memref<216x512xf32, #tpu.memory_space<vmem>>, vector<4x512xf32>
    tpu.vector_store %arg15[%c80_526, %c0_527], %748 {strides = array<i32>} : memref<216x512xf32, #tpu.memory_space<vmem>>, vector<4x512xf32>,
    %c449_i32_528 = arith.constant 449 : i32
    %750 = tpu.dynamic_rotate %645 by %c449_i32_528 dim 1 : vector<4x512xf32>, i32 -> vector<4x512xf32>
    %c21_529 = arith.constant 21 : index
    %c0_530 = arith.constant 0 : index
    %751 = vector.load %arg10[%c21_529, %c0_530] : memref<27x512xf32, #tpu.memory_space<vmem>>, vector<1x512xf32>
    %752 = vector.broadcast %751 : vector<1x512xf32> to vector<4x512xf32>
    %753 = arith.mulf %750, %752 : vector<4x512xf32>
    %c84_531 = arith.constant 84 : index
    %c0_532 = arith.constant 0 : index
    %754 = vector.load %arg15[%c84_531, %c0_532] : memref<216x512xf32, #tpu.memory_space<vmem>>, vector<4x512xf32>
    tpu.vector_store %arg15[%c84_531, %c0_532], %753 {strides = array<i32>} : memref<216x512xf32, #tpu.memory_space<vmem>>, vector<4x512xf32>,
    %c448_i32_533 = arith.constant 448 : i32
    %755 = tpu.dynamic_rotate %645 by %c448_i32_533 dim 1 : vector<4x512xf32>, i32 -> vector<4x512xf32>
    %c22_534 = arith.constant 22 : index
    %c0_535 = arith.constant 0 : index
    %756 = vector.load %arg10[%c22_534, %c0_535] : memref<27x512xf32, #tpu.memory_space<vmem>>, vector<1x512xf32>
    %757 = vector.broadcast %756 : vector<1x512xf32> to vector<4x512xf32>
    %758 = arith.mulf %755, %757 : vector<4x512xf32>
    %c88_536 = arith.constant 88 : index
    %c0_537 = arith.constant 0 : index
    %759 = vector.load %arg15[%c88_536, %c0_537] : memref<216x512xf32, #tpu.memory_space<vmem>>, vector<4x512xf32>
    tpu.vector_store %arg15[%c88_536, %c0_537], %758 {strides = array<i32>} : memref<216x512xf32, #tpu.memory_space<vmem>>, vector<4x512xf32>,
    %c447_i32_538 = arith.constant 447 : i32
    %760 = tpu.dynamic_rotate %645 by %c447_i32_538 dim 1 : vector<4x512xf32>, i32 -> vector<4x512xf32>
    %c23_539 = arith.constant 23 : index
    %c0_540 = arith.constant 0 : index
    %761 = vector.load %arg10[%c23_539, %c0_540] : memref<27x512xf32, #tpu.memory_space<vmem>>, vector<1x512xf32>
    %762 = vector.broadcast %761 : vector<1x512xf32> to vector<4x512xf32>
    %763 = arith.mulf %760, %762 : vector<4x512xf32>
    %c92_541 = arith.constant 92 : index
    %c0_542 = arith.constant 0 : index
    %764 = vector.load %arg15[%c92_541, %c0_542] : memref<216x512xf32, #tpu.memory_space<vmem>>, vector<4x512xf32>
    tpu.vector_store %arg15[%c92_541, %c0_542], %763 {strides = array<i32>} : memref<216x512xf32, #tpu.memory_space<vmem>>, vector<4x512xf32>,
    %c441_i32_543 = arith.constant 441 : i32
    %765 = tpu.dynamic_rotate %645 by %c441_i32_543 dim 1 : vector<4x512xf32>, i32 -> vector<4x512xf32>
    %c24_544 = arith.constant 24 : index
    %c0_545 = arith.constant 0 : index
    %766 = vector.load %arg10[%c24_544, %c0_545] : memref<27x512xf32, #tpu.memory_space<vmem>>, vector<1x512xf32>
    %767 = vector.broadcast %766 : vector<1x512xf32> to vector<4x512xf32>
    %768 = arith.mulf %765, %767 : vector<4x512xf32>
    %c96_546 = arith.constant 96 : index
    %c0_547 = arith.constant 0 : index
    %769 = vector.load %arg15[%c96_546, %c0_547] : memref<216x512xf32, #tpu.memory_space<vmem>>, vector<4x512xf32>
    tpu.vector_store %arg15[%c96_546, %c0_547], %768 {strides = array<i32>} : memref<216x512xf32, #tpu.memory_space<vmem>>, vector<4x512xf32>,
    %c440_i32_548 = arith.constant 440 : i32
    %770 = tpu.dynamic_rotate %645 by %c440_i32_548 dim 1 : vector<4x512xf32>, i32 -> vector<4x512xf32>
    %c25_549 = arith.constant 25 : index
    %c0_550 = arith.constant 0 : index
    %771 = vector.load %arg10[%c25_549, %c0_550] : memref<27x512xf32, #tpu.memory_space<vmem>>, vector<1x512xf32>
    %772 = vector.broadcast %771 : vector<1x512xf32> to vector<4x512xf32>
    %773 = arith.mulf %770, %772 : vector<4x512xf32>
    %c100_551 = arith.constant 100 : index
    %c0_552 = arith.constant 0 : index
    %774 = vector.load %arg15[%c100_551, %c0_552] : memref<216x512xf32, #tpu.memory_space<vmem>>, vector<4x512xf32>
    tpu.vector_store %arg15[%c100_551, %c0_552], %773 {strides = array<i32>} : memref<216x512xf32, #tpu.memory_space<vmem>>, vector<4x512xf32>,
    %c439_i32_553 = arith.constant 439 : i32
    %775 = tpu.dynamic_rotate %645 by %c439_i32_553 dim 1 : vector<4x512xf32>, i32 -> vector<4x512xf32>
    %c26_554 = arith.constant 26 : index
    %c0_555 = arith.constant 0 : index
    %776 = vector.load %arg10[%c26_554, %c0_555] : memref<27x512xf32, #tpu.memory_space<vmem>>, vector<1x512xf32>
    %777 = vector.broadcast %776 : vector<1x512xf32> to vector<4x512xf32>
    %778 = arith.mulf %775, %777 : vector<4x512xf32>
    %c104_556 = arith.constant 104 : index
    %c0_557 = arith.constant 0 : index
    %779 = vector.load %arg15[%c104_556, %c0_557] : memref<216x512xf32, #tpu.memory_space<vmem>>, vector<4x512xf32>
    tpu.vector_store %arg15[%c104_556, %c0_557], %778 {strides = array<i32>} : memref<216x512xf32, #tpu.memory_space<vmem>>, vector<4x512xf32>,
    %c0_558 = arith.constant 0 : index
    %c0_559 = arith.constant 0 : index
    %780 = vector.load %arg8[%c0_558, %c0_559] : memref<8x112xf32, #tpu.memory_space<vmem>>, vector<8x112xf32>
    %c0_560 = arith.constant 0 : index
    %c0_561 = arith.constant 0 : index
    %781 = vector.load %arg15[%c0_560, %c0_561] : memref<216x512xf32, #tpu.memory_space<vmem>>, vector<112x512xf32>
    %cst_562 = arith.constant dense<0.000000e+00> : vector<8x512xf32>
    %782 = tpu.matmul %780, %781, %cst_562 {dimension_numbers = #tpu.dot_dimension_numbers<[1], [0], [0], [1], [0, 0, 1, 1], [], []>} : vector<8x112xf32>, vector<112x512xf32>, vector<8x512xf32> -> vector<8x512xf32>
    %c0_563 = arith.constant 0 : index
    %c0_564 = arith.constant 0 : index
    %783 = vector.load %arg9[%c0_563, %c0_564] : memref<8x1xf32, #tpu.memory_space<vmem>>, vector<8x1xf32>
    %784 = vector.broadcast %783 : vector<8x1xf32> to vector<8x512xf32>
    %785 = arith.addf %782, %784 : vector<8x512xf32>
    %cst_565 = arith.constant 0.000000e+00 : f32
    %786 = vector.broadcast %cst_565 : f32 to vector<8x512xf32>
    %787 = arith.maximumf %785, %786 : vector<8x512xf32>
    %c13_566 = arith.constant 13 : index
    %c0_567 = arith.constant 0 : index
    %788 = vector.load %arg10[%c13_566, %c0_567] : memref<27x512xf32, #tpu.memory_space<vmem>>, vector<1x512xf32>
    %789 = vector.broadcast %788 : vector<1x512xf32> to vector<8x512xf32>
    %790 = arith.mulf %787, %789 : vector<8x512xf32>
    %791 = vector.extract_strided_slice %790 {offsets = [0, 0], sizes = [1, 512], strides = [1, 1]} : vector<8x512xf32> to vector<1x512xf32>
    %c0_568 = arith.constant 0 : index
    %c0_569 = arith.constant 0 : index
    %c0_570 = arith.constant 0 : index
    %792 = vector.load %arg14[%c0_568, %c0_569, %c0_570] : memref<1x1x512xf32, #tpu.memory_space<vmem>>, vector<1x1x512xf32>
    %793 = vector.shape_cast %792 : vector<1x1x512xf32> to vector<1x512xf32>
    %794 = vector.shape_cast %791 : vector<1x512xf32> to vector<1x1x512xf32>
    tpu.vector_store %arg14[%c0_568, %c0_569, %c0_570], %794 {strides = array<i32>} : memref<1x1x512xf32, #tpu.memory_space<vmem>>, vector<1x1x512xf32>,
    return
  }
  func.func @transform_0(%arg0: i32) -> (i32, i32, i32) {
    %c0_i32 = arith.constant 0 : i32
    %c0_i32_0 = arith.constant 0 : i32
    %c0_i32_1 = arith.constant 0 : i32
    return %arg0, %c0_i32, %c0_i32_0 : i32, i32, i32
  }
  func.func @transform_1(%arg0: i32) -> (i32, i32) {
    %c0_i32 = arith.constant 0 : i32
    %c0_i32_0 = arith.constant 0 : i32
    %c0_i32_1 = arith.constant 0 : i32
    return %c0_i32, %c0_i32_0 : i32, i32
  }
  func.func @transform_2(%arg0: i32) -> (i32, i32) {
    %c0_i32 = arith.constant 0 : i32
    %c0_i32_0 = arith.constant 0 : i32
    %c0_i32_1 = arith.constant 0 : i32
    return %c0_i32, %c0_i32_0 : i32, i32
  }
  func.func @transform_3(%arg0: i32) -> (i32, i32) {
    %c0_i32 = arith.constant 0 : i32
    %c0_i32_0 = arith.constant 0 : i32
    %c0_i32_1 = arith.constant 0 : i32
    return %c0_i32, %c0_i32_0 : i32, i32
  }
  func.func @transform_4(%arg0: i32) -> (i32, i32) {
    %c0_i32 = arith.constant 0 : i32
    %c0_i32_0 = arith.constant 0 : i32
    %c0_i32_1 = arith.constant 0 : i32
    return %c0_i32, %c0_i32_0 : i32, i32
  }
  func.func @transform_5(%arg0: i32) -> (i32, i32) {
    %c0_i32 = arith.constant 0 : i32
    %c0_i32_0 = arith.constant 0 : i32
    %c0_i32_1 = arith.constant 0 : i32
    return %c0_i32, %c0_i32_0 : i32, i32
  }
  func.func @transform_6(%arg0: i32) -> (i32, i32) {
    %c0_i32 = arith.constant 0 : i32
    %c0_i32_0 = arith.constant 0 : i32
    %c0_i32_1 = arith.constant 0 : i32
    return %c0_i32, %c0_i32_0 : i32, i32
  }
  func.func @transform_7(%arg0: i32) -> (i32, i32) {
    %c0_i32 = arith.constant 0 : i32
    %c0_i32_0 = arith.constant 0 : i32
    %c0_i32_1 = arith.constant 0 : i32
    return %c0_i32, %c0_i32_0 : i32, i32
  }
  func.func @transform_8(%arg0: i32) -> (i32, i32) {
    %c0_i32 = arith.constant 0 : i32
    %c0_i32_0 = arith.constant 0 : i32
    %c0_i32_1 = arith.constant 0 : i32
    return %c0_i32, %c0_i32_0 : i32, i32
  }
  func.func @transform_9(%arg0: i32) -> (i32, i32) {
    %c0_i32 = arith.constant 0 : i32
    %c0_i32_0 = arith.constant 0 : i32
    %c0_i32_1 = arith.constant 0 : i32
    return %c0_i32, %c0_i32_0 : i32, i32
  }
  func.func @transform_10(%arg0: i32) -> (i32, i32) {
    %c0_i32 = arith.constant 0 : i32
    %c0_i32_0 = arith.constant 0 : i32
    %c0_i32_1 = arith.constant 0 : i32
    return %c0_i32, %c0_i32_0 : i32, i32
  }
  func.func @transform_11(%arg0: i32) -> (i32, i32) {
    %c0_i32 = arith.constant 0 : i32
    %c0_i32_0 = arith.constant 0 : i32
    %c0_i32_1 = arith.constant 0 : i32
    return %c0_i32, %c0_i32_0 : i32, i32
  }
  func.func @transform_12(%arg0: i32) -> (i32, i32) {
    %c0_i32 = arith.constant 0 : i32
    %c0_i32_0 = arith.constant 0 : i32
    %c0_i32_1 = arith.constant 0 : i32
    return %c0_i32, %c0_i32_0 : i32, i32
  }
  func.func @transform_13(%arg0: i32) -> (i32, i32, i32) {
    %c0_i32 = arith.constant 0 : i32
    %c0_i32_0 = arith.constant 0 : i32
    %c0_i32_1 = arith.constant 0 : i32
    return %arg0, %c0_i32, %c0_i32_0 : i32, i32, i32
  }
}

</mosaic_0001>

<llo_original>
// kernel: cae3d_forward.1
$region0: #{cae3d_forward.1}
  #allocation0 [shape = 'u32[]', space=smem, size = 0x4, offset = 0x4, fixed_abs, tag = 'smem constant byte address 0x4 - core index']
  #allocation1 [shape = 'u32[144,128]{1,0:T(1,128)}', space=vmem, size = 0x12000, scoped, tag = 'internal scratch']
  #allocation2 [shape = 'f32[216,512]{1,0:T(8,128)}', space=vmem, size = 0x6c000, scoped, tag = 'scratch operand']
  %s0 = inlined_call_operand.vmem [shape: f32[2,1,512], index: 0, kind: input, shape index: {}]
  %s1 = inlined_call_operand.vmem [shape: f32[8,32], index: 1, kind: input, shape index: {}]
  %s2 = inlined_call_operand.vmem [shape: f32[8,1], index: 2, kind: input, shape index: {}]
  %s3 = inlined_call_operand.vmem [shape: f32[8,112], index: 3, kind: input, shape index: {}]
  %s4 = inlined_call_operand.vmem [shape: f32[8,1], index: 4, kind: input, shape index: {}]
  %s5 = inlined_call_operand.vmem [shape: f32[8,216], index: 5, kind: input, shape index: {}]
  %s6 = inlined_call_operand.vmem [shape: f32[8,1], index: 6, kind: input, shape index: {}]
  %s7 = inlined_call_operand.vmem [shape: f32[8,112], index: 7, kind: input, shape index: {}]
  %s8 = inlined_call_operand.vmem [shape: f32[8,1], index: 8, kind: input, shape index: {}]
  %s9 = inlined_call_operand.vmem [shape: f32[27,512], index: 9, kind: input, shape index: {}]
  %s10 = inlined_call_operand.vmem [shape: f32[27,512], index: 10, kind: input, shape index: {}]
  %s11 = inlined_call_operand.vmem [shape: f32[1,512], index: 11, kind: input, shape index: {}]
  %s12 = inlined_call_operand.vmem [shape: f32[1,512], index: 12, kind: input, shape index: {}]
  %s13 = inlined_call_operand.vmem [shape: f32[2,1,512], index: 13, kind: output, shape index: {}]
  %s14 = sld [smem:[#allocation0]]
  $region85: #{cae3d_forward.1} parent=0
    _
  %s16 = ssub.s32 1, %s14
  %s17 = scalar_select 0, %s16, %s14
  loop: start=0, step=1, limit=4
  $region2: #{cae3d_forward.1} parent=0 // loop_pre_header
    _
  $region3: #{cae3d_forward.1} parent=0 // loop_header
    %s19 = sphi 0, %s23
    %p20 = scmp.ge.s32.totalorder %s19, 4
    %s29 = sphi 0, %s31
    %s32 = sphi 0, %s29
    %s33 = sphi 0, %s32
    %s49 = sphi 0, %s33
    %s53 = sphi 0, %s53
    %s55 = sphi 0, %s53
    %s56 = sphi 0, %s55
    %s70 = sphi 0, %s56
    %s74 = sphi 0, %s74
    %s76 = sphi 0, %s74
    %s77 = sphi 0, %s76
    %s91 = sphi 0, %s77
    %s95 = sphi 0, %s95
    %s97 = sphi 0, %s95
    %s98 = sphi 0, %s97
    %s112 = sphi 0, %s98
    %s116 = sphi 0, %s116
    %s118 = sphi 0, %s116
    %s119 = sphi 0, %s118
    %s133 = sphi 0, %s119
    %s137 = sphi 0, %s137
    %s139 = sphi 0, %s137
    %s140 = sphi 0, %s139
    %s154 = sphi 0, %s140
    %s158 = sphi 0, %s158
    %s160 = sphi 0, %s158
    %s161 = sphi 0, %s160
    %s175 = sphi 0, %s161
    %s179 = sphi 0, %s179
    %s181 = sphi 0, %s179
    %s182 = sphi 0, %s181
    %s196 = sphi 0, %s182
    %s200 = sphi 0, %s200
    %s202 = sphi 0, %s200
    %s203 = sphi 0, %s202
    %s217 = sphi 0, %s203
    %s221 = sphi 0, %s221
    %s223 = sphi 0, %s221
    %s224 = sphi 0, %s223
    %s238 = sphi 0, %s224
    %s242 = sphi 0, %s242
    %s244 = sphi 0, %s242
    %s245 = sphi 0, %s244
    %s259 = sphi 0, %s245
    %s263 = sphi 0, %s263
    %s265 = sphi 0, %s263
    %s266 = sphi 0, %s265
    %s280 = sphi 0, %s266
    %s284 = sphi 0, %s284
    %s286 = sphi 0, %s284
    %s287 = sphi 0, %s286
    %s301 = sphi 0, %s287
    %s307 = sphi 0, %s309
    %s310 = sphi 0, %s307
    %s311 = sphi 0, %s310
    %s327 = sphi 0, %s311
  $region4: #{cae3d_forward.1} parent=0 // loop_header_branch
    %22 = sbr.rel (%p20) target = $region8
  $region5: #{cae3d_forward.1} parent=0 // loop_body
    %s24 = ssub.s32 %s19, 1
    %s25 = ssub.s32 %s19, 2
    %s26 = sadd.s32 %s19, 1
    %s27 = ssub.s32 %s19, %s26
    %p28 = scmp.eq.s32.totalorder %s27, 0
    %s30 = sadd.s32 %s29, 1
    %s31 = scalar_select %p28, %s29, %s30
    %p34 = pneg %p28
    %p35 = scmp.eq.s32.totalorder %s19, 1
    %p36 = por %p34, %p35
    %p37 = scmp.ne.s32.totalorder %s29, %s32
    %p38 = scmp.eq.s32.totalorder %s19, 0
    %p39 = por %p37, %p38
    %p40 = scmp.ne.s32.totalorder %s29, %s32
    %p41 = scmp.eq.s32.totalorder %s24, 1
    %p42 = por %p40, %p41
    %p43 = scmp.ne.s32.totalorder %s32, %s33
    %p44 = scmp.eq.s32.totalorder %s24, 0
    %p45 = por %p43, %p44
    %p46 = scmp.ne.s32.totalorder %s32, %s33
    %p47 = scmp.eq.s32.totalorder %s25, 1
    %p48 = por %p46, %p47
    %p50 = scmp.ne.s32.totalorder %s33, %s49
    %p51 = scmp.eq.s32.totalorder %s25, 0
    %p52 = por %p50, %p51
    %s54 = sadd.s32 %s53, 1
    %p57 = scmp.eq.s32.totalorder %s19, 1
    %p58 = scmp.ne.s32.totalorder %s53, %s55
    %p59 = scmp.eq.s32.totalorder %s19, 0
    %p60 = por %p58, %p59
    %p61 = scmp.ne.s32.totalorder %s53, %s55
    %p62 = scmp.eq.s32.totalorder %s24, 1
    %p63 = por %p61, %p62
    %p64 = scmp.ne.s32.totalorder %s55, %s56
    %p65 = scmp.eq.s32.totalorder %s24, 0
    %p66 = por %p64, %p65
    %p67 = scmp.ne.s32.totalorder %s55, %s56
    %p68 = scmp.eq.s32.totalorder %s25, 1
    %p69 = por %p67, %p68
    %p71 = scmp.ne.s32.totalorder %s56, %s70
    %p72 = scmp.eq.s32.totalorder %s25, 0
    %p73 = por %p71, %p72
    %s75 = sadd.s32 %s74, 1
    %p78 = scmp.eq.s32.totalorder %s19, 1
    %p79 = scmp.ne.s32.totalorder %s74, %s76
    %p80 = scmp.eq.s32.totalorder %s19, 0
    %p81 = por %p79, %p80
    %p82 = scmp.ne.s32.totalorder %s74, %s76
    %p83 = scmp.eq.s32.totalorder %s24, 1
    %p84 = por %p82, %p83
    %p85 = scmp.ne.s32.totalorder %s76, %s77
    %p86 = scmp.eq.s32.totalorder %s24, 0
    %p87 = por %p85, %p86
    %p88 = scmp.ne.s32.totalorder %s76, %s77
    %p89 = scmp.eq.s32.totalorder %s25, 1
    %p90 = por %p88, %p89
    %p92 = scmp.ne.s32.totalorder %s77, %s91
    %p93 = scmp.eq.s32.totalorder %s25, 0
    %p94 = por %p92, %p93
    %s96 = sadd.s32 %s95, 1
    %p99 = scmp.eq.s32.totalorder %s19, 1
    %p100 = scmp.ne.s32.totalorder %s95, %s97
    %p101 = scmp.eq.s32.totalorder %s19, 0
    %p102 = por %p100, %p101
    %p103 = scmp.ne.s32.totalorder %s95, %s97
    %p104 = scmp.eq.s32.totalorder %s24, 1
    %p105 = por %p103, %p104
    %p106 = scmp.ne.s32.totalorder %s97, %s98
    %p107 = scmp.eq.s32.totalorder %s24, 0
    %p108 = por %p106, %p107
    %p109 = scmp.ne.s32.totalorder %s97, %s98
    %p110 = scmp.eq.s32.totalorder %s25, 1
    %p111 = por %p109, %p110
    %p113 = scmp.ne.s32.totalorder %s98, %s112
    %p114 = scmp.eq.s32.totalorder %s25, 0
    %p115 = por %p113, %p114
    %s117 = sadd.s32 %s116, 1
    %p120 = scmp.eq.s32.totalorder %s19, 1
    %p121 = scmp.ne.s32.totalorder %s116, %s118
    %p122 = scmp.eq.s32.totalorder %s19, 0
    %p123 = por %p121, %p122
    %p124 = scmp.ne.s32.totalorder %s116, %s118
    %p125 = scmp.eq.s32.totalorder %s24, 1
    %p126 = por %p124, %p125
    %p127 = scmp.ne.s32.totalorder %s118, %s119
    %p128 = scmp.eq.s32.totalorder %s24, 0
    %p129 = por %p127, %p128
    %p130 = scmp.ne.s32.totalorder %s118, %s119
    %p131 = scmp.eq.s32.totalorder %s25, 1
    %p132 = por %p130, %p131
    %p134 = scmp.ne.s32.totalorder %s119, %s133
    %p135 = scmp.eq.s32.totalorder %s25, 0
    %p136 = por %p134, %p135
    %s138 = sadd.s32 %s137, 1
    %p141 = scmp.eq.s32.totalorder %s19, 1
    %p142 = scmp.ne.s32.totalorder %s137, %s139
    %p143 = scmp.eq.s32.totalorder %s19, 0
    %p144 = por %p142, %p143
    %p145 = scmp.ne.s32.totalorder %s137, %s139
    %p146 = scmp.eq.s32.totalorder %s24, 1
    %p147 = por %p145, %p146
    %p148 = scmp.ne.s32.totalorder %s139, %s140
    %p149 = scmp.eq.s32.totalorder %s24, 0
    %p150 = por %p148, %p149
    %p151 = scmp.ne.s32.totalorder %s139, %s140
    %p152 = scmp.eq.s32.totalorder %s25, 1
    %p153 = por %p151, %p152
    %p155 = scmp.ne.s32.totalorder %s140, %s154
    %p156 = scmp.eq.s32.totalorder %s25, 0
    %p157 = por %p155, %p156
    %s159 = sadd.s32 %s158, 1
    %p162 = scmp.eq.s32.totalorder %s19, 1
    %p163 = scmp.ne.s32.totalorder %s158, %s160
    %p164 = scmp.eq.s32.totalorder %s19, 0
    %p165 = por %p163, %p164
    %p166 = scmp.ne.s32.totalorder %s158, %s160
    %p167 = scmp.eq.s32.totalorder %s24, 1
    %p168 = por %p166, %p167
    %p169 = scmp.ne.s32.totalorder %s160, %s161
    %p170 = scmp.eq.s32.totalorder %s24, 0
    %p171 = por %p169, %p170
    %p172 = scmp.ne.s32.totalorder %s160, %s161
    %p173 = scmp.eq.s32.totalorder %s25, 1
    %p174 = por %p172, %p173
    %p176 = scmp.ne.s32.totalorder %s161, %s175
    %p177 = scmp.eq.s32.totalorder %s25, 0
    %p178 = por %p176, %p177
    %s180 = sadd.s32 %s179, 1
    %p183 = scmp.eq.s32.totalorder %s19, 1
    %p184 = scmp.ne.s32.totalorder %s179, %s181
    %p185 = scmp.eq.s32.totalorder %s19, 0
    %p186 = por %p184, %p185
    %p187 = scmp.ne.s32.totalorder %s179, %s181
    %p188 = scmp.eq.s32.totalorder %s24, 1
    %p189 = por %p187, %p188
    %p190 = scmp.ne.s32.totalorder %s181, %s182
    %p191 = scmp.eq.s32.totalorder %s24, 0
    %p192 = por %p190, %p191
    %p193 = scmp.ne.s32.totalorder %s181, %s182
    %p194 = scmp.eq.s32.totalorder %s25, 1
    %p195 = por %p193, %p194
    %p197 = scmp.ne.s32.totalorder %s182, %s196
    %p198 = scmp.eq.s32.totalorder %s25, 0
    %p199 = por %p197, %p198
    %s201 = sadd.s32 %s200, 1
    %p204 = scmp.eq.s32.totalorder %s19, 1
    %p205 = scmp.ne.s32.totalorder %s200, %s202
    %p206 = scmp.eq.s32.totalorder %s19, 0
    %p207 = por %p205, %p206
    %p208 = scmp.ne.s32.totalorder %s200, %s202
    %p209 = scmp.eq.s32.totalorder %s24, 1
    %p210 = por %p208, %p209
    %p211 = scmp.ne.s32.totalorder %s202, %s203
    %p212 = scmp.eq.s32.totalorder %s24, 0
    %p213 = por %p211, %p212
    %p214 = scmp.ne.s32.totalorder %s202, %s203
    %p215 = scmp.eq.s32.totalorder %s25, 1
    %p216 = por %p214, %p215
    %p218 = scmp.ne.s32.totalorder %s203, %s217
    %p219 = scmp.eq.s32.totalorder %s25, 0
    %p220 = por %p218, %p219
    %s222 = sadd.s32 %s221, 1
    %p225 = scmp.eq.s32.totalorder %s19, 1
    %p226 = scmp.ne.s32.totalorder %s221, %s223
    %p227 = scmp.eq.s32.totalorder %s19, 0
    %p228 = por %p226, %p227
    %p229 = scmp.ne.s32.totalorder %s221, %s223
    %p230 = scmp.eq.s32.totalorder %s24, 1
    %p231 = por %p229, %p230
    %p232 = scmp.ne.s32.totalorder %s223, %s224
    %p233 = scmp.eq.s32.totalorder %s24, 0
    %p234 = por %p232, %p233
    %p235 = scmp.ne.s32.totalorder %s223, %s224
    %p236 = scmp.eq.s32.totalorder %s25, 1
    %p237 = por %p235, %p236
    %p239 = scmp.ne.s32.totalorder %s224, %s238
    %p240 = scmp.eq.s32.totalorder %s25, 0
    %p241 = por %p239, %p240
    %s243 = sadd.s32 %s242, 1
    %p246 = scmp.eq.s32.totalorder %s19, 1
    %p247 = scmp.ne.s32.totalorder %s242, %s244
    %p248 = scmp.eq.s32.totalorder %s19, 0
    %p249 = por %p247, %p248
    %p250 = scmp.ne.s32.totalorder %s242, %s244
    %p251 = scmp.eq.s32.totalorder %s24, 1
    %p252 = por %p250, %p251
    %p253 = scmp.ne.s32.totalorder %s244, %s245
    %p254 = scmp.eq.s32.totalorder %s24, 0
    %p255 = por %p253, %p254
    %p256 = scmp.ne.s32.totalorder %s244, %s245
    %p257 = scmp.eq.s32.totalorder %s25, 1
    %p258 = por %p256, %p257
    %p260 = scmp.ne.s32.totalorder %s245, %s259
    %p261 = scmp.eq.s32.totalorder %s25, 0
    %p262 = por %p260, %p261
    %s264 = sadd.s32 %s263, 1
    %p267 = scmp.eq.s32.totalorder %s19, 1
    %p268 = scmp.ne.s32.totalorder %s263, %s265
    %p269 = scmp.eq.s32.totalorder %s19, 0
    %p270 = por %p268, %p269
    %p271 = scmp.ne.s32.totalorder %s263, %s265
    %p272 = scmp.eq.s32.totalorder %s24, 1
    %p273 = por %p271, %p272
    %p274 = scmp.ne.s32.totalorder %s265, %s266
    %p275 = scmp.eq.s32.totalorder %s24, 0
    %p276 = por %p274, %p275
    %p277 = scmp.ne.s32.totalorder %s265, %s266
    %p278 = scmp.eq.s32.totalorder %s25, 1
    %p279 = por %p277, %p278
    %p281 = scmp.ne.s32.totalorder %s266, %s280
    %p282 = scmp.eq.s32.totalorder %s25, 0
    %p283 = por %p281, %p282
    %s285 = sadd.s32 %s284, 1
    %p288 = scmp.eq.s32.totalorder %s19, 1
    %p289 = scmp.ne.s32.totalorder %s284, %s286
    %p290 = scmp.eq.s32.totalorder %s19, 0
    %p291 = por %p289, %p290
    %p292 = scmp.ne.s32.totalorder %s284, %s286
    %p293 = scmp.eq.s32.totalorder %s24, 1
    %p294 = por %p292, %p293
    %p295 = scmp.ne.s32.totalorder %s286, %s287
    %p296 = scmp.eq.s32.totalorder %s24, 0
    %p297 = por %p295, %p296
    %p298 = scmp.ne.s32.totalorder %s286, %s287
    %p299 = scmp.eq.s32.totalorder %s25, 1
    %p300 = por %p298, %p299
    %p302 = scmp.ne.s32.totalorder %s287, %s301
    %p303 = scmp.eq.s32.totalorder %s25, 0
    %p304 = por %p302, %p303
    %s305 = ssub.s32 %s19, %s26
    %p306 = scmp.eq.s32.totalorder %s305, 0
    %s308 = sadd.s32 %s307, 1
    %s309 = scalar_select %p306, %s307, %s308
    %p312 = pneg %p306
    %p313 = scmp.eq.s32.totalorder %s19, 1
    %p314 = por %p312, %p313
    %p315 = scmp.ne.s32.totalorder %s307, %s310
    %p316 = scmp.eq.s32.totalorder %s19, 0
    %p317 = por %p315, %p316
    %p318 = scmp.ne.s32.totalorder %s307, %s310
    %p319 = scmp.eq.s32.totalorder %s24, 1
    %p320 = por %p318, %p319
    %p321 = scmp.ne.s32.totalorder %s310, %s311
    %p322 = scmp.eq.s32.totalorder %s24, 0
    %p323 = por %p321, %p322
    %p324 = scmp.ne.s32.totalorder %s310, %s311
    %p325 = scmp.eq.s32.totalorder %s25, 1
    %p326 = por %p324, %p325
    %p328 = scmp.ne.s32.totalorder %s311, %s327
    %p329 = scmp.eq.s32.totalorder %s25, 0
    %p330 = por %p328, %p329
    %p331 = scmp.le.s32.totalorder 1, %s19
    %p332 = scmp.lt.s32.totalorder %s19, 3
    %p333 = pnand %p331, %p332
    %p334 = pneg %p333
    // Predicated region
    $region9: #{cae3d_forward.1} parent=5 // pred_check
      _
    $region10: #{cae3d_forward.1} parent=5 // pred_check_branch
      %336 = sbr.rel (%p333) target = $region12
    $region11: #{cae3d_forward.1} parent=5 // pred_region
      %s337 = ssub.s32 %s19, 1
      // Predicated region
      $region13: #{cae3d_forward.1} parent=11 // pred_check
        %p338 = pneg %p66
      $region14: #{cae3d_forward.1} parent=11 // pred_check_branch
        %340 = sbr.rel (%p338) target = $region16
      $region15: #{cae3d_forward.1} parent=11 // pred_region
        _
      $region16: #{cae3d_forward.1} parent=11 // pred_fallthru
        _
      // Predicated region
      $region17: #{cae3d_forward.1} parent=11 // pred_check
        %p341 = pneg %p87
      $region18: #{cae3d_forward.1} parent=11 // pred_check_branch
        %343 = sbr.rel (%p341) target = $region20
      $region19: #{cae3d_forward.1} parent=11 // pred_region
        _
      $region20: #{cae3d_forward.1} parent=11 // pred_fallthru
        _
      // Predicated region
      $region21: #{cae3d_forward.1} parent=11 // pred_check
        %p344 = pneg %p108
      $region22: #{cae3d_forward.1} parent=11 // pred_check_branch
        %346 = sbr.rel (%p344) target = $region24
      $region23: #{cae3d_forward.1} parent=11 // pred_region
        _
      $region24: #{cae3d_forward.1} parent=11 // pred_fallthru
        _
      // Predicated region
      $region25: #{cae3d_forward.1} parent=11 // pred_check
        %p347 = pneg %p129
      $region26: #{cae3d_forward.1} parent=11 // pred_check_branch
        %349 = sbr.rel (%p347) target = $region28
      $region27: #{cae3d_forward.1} parent=11 // pred_region
        _
      $region28: #{cae3d_forward.1} parent=11 // pred_fallthru
        _
      // Predicated region
      $region29: #{cae3d_forward.1} parent=11 // pred_check
        %p350 = pneg %p150
      $region30: #{cae3d_forward.1} parent=11 // pred_check_branch
        %352 = sbr.rel (%p350) target = $region32
      $region31: #{cae3d_forward.1} parent=11 // pred_region
        _
      $region32: #{cae3d_forward.1} parent=11 // pred_fallthru
        _
      // Predicated region
      $region33: #{cae3d_forward.1} parent=11 // pred_check
        %p353 = pneg %p171
      $region34: #{cae3d_forward.1} parent=11 // pred_check_branch
        %355 = sbr.rel (%p353) target = $region36
      $region35: #{cae3d_forward.1} parent=11 // pred_region
        _
      $region36: #{cae3d_forward.1} parent=11 // pred_fallthru
        _
      // Predicated region
      $region37: #{cae3d_forward.1} parent=11 // pred_check
        %p356 = pneg %p192
      $region38: #{cae3d_forward.1} parent=11 // pred_check_branch
        %358 = sbr.rel (%p356) target = $region40
      $region39: #{cae3d_forward.1} parent=11 // pred_region
        _
      $region40: #{cae3d_forward.1} parent=11 // pred_fallthru
        _
      // Predicated region
      $region41: #{cae3d_forward.1} parent=11 // pred_check
        %p359 = pneg %p213
      $region42: #{cae3d_forward.1} parent=11 // pred_check_branch
        %361 = sbr.rel (%p359) target = $region44
      $region43: #{cae3d_forward.1} parent=11 // pred_region
        _
      $region44: #{cae3d_forward.1} parent=11 // pred_fallthru
        _
      // Predicated region
      $region45: #{cae3d_forward.1} parent=11 // pred_check
        %p362 = pneg %p234
      $region46: #{cae3d_forward.1} parent=11 // pred_check_branch
        %364 = sbr.rel (%p362) target = $region48
      $region47: #{cae3d_forward.1} parent=11 // pred_region
        _
      $region48: #{cae3d_forward.1} parent=11 // pred_fallthru
        _
      // Predicated region
      $region49: #{cae3d_forward.1} parent=11 // pred_check
        %p365 = pneg %p255
      $region50: #{cae3d_forward.1} parent=11 // pred_check_branch
        %367 = sbr.rel (%p365) target = $region52
      $region51: #{cae3d_forward.1} parent=11 // pred_region
        _
      $region52: #{cae3d_forward.1} parent=11 // pred_fallthru
        _
      // Predicated region
      $region53: #{cae3d_forward.1} parent=11 // pred_check
        %p368 = pneg %p276
      $region54: #{cae3d_forward.1} parent=11 // pred_check_branch
        %370 = sbr.rel (%p368) target = $region56
      $region55: #{cae3d_forward.1} parent=11 // pred_region
        _
      $region56: #{cae3d_forward.1} parent=11 // pred_fallthru
        _
      // Predicated region
      $region57: #{cae3d_forward.1} parent=11 // pred_check
        %p371 = pneg %p297
      $region58: #{cae3d_forward.1} parent=11 // pred_check_branch
        %373 = sbr.rel (%p371) target = $region60
      $region59: #{cae3d_forward.1} parent=11 // pred_region
        _
      $region60: #{cae3d_forward.1} parent=11 // pred_fallthru
        _
    $region12: #{cae3d_forward.1} parent=5 // pred_fallthru
      _
    %p374 = scmp.lt.s32.totalorder %s19, 2
    // Predicated region
    $region61: #{cae3d_forward.1} parent=5 // pred_check
      %p375 = pneg %p374
    $region62: #{cae3d_forward.1} parent=5 // pred_check_branch
      %377 = sbr.rel (%p375) target = $region64
    $region63: #{cae3d_forward.1} parent=5 // pred_region
      // Predicated region
      $region65: #{cae3d_forward.1} parent=63 // pred_check
        %p378 = pneg %p39
      $region66: #{cae3d_forward.1} parent=63 // pred_check_branch
        %380 = sbr.rel (%p378) target = $region68
      $region67: #{cae3d_forward.1} parent=63 // pred_region
        %p381 = scmp.lt.s32.totalorder %s19, 1
        %s382 = scalar_select %p381, %s19, 1
        %s383 = smul.addr %s382, 4
        %s384 = scalar_lea.vmem %s0, %s383
      $region68: #{cae3d_forward.1} parent=63 // pred_fallthru
        _
    $region64: #{cae3d_forward.1} parent=5 // pred_fallthru
      _
    %p385 = scmp.le.s32.totalorder 1, %s19
    %p386 = scmp.lt.s32.totalorder %s19, 3
    %p387 = pnand %p385, %p386
    %p388 = pneg %p387
    // Predicated region
    $region69: #{cae3d_forward.1} parent=5 // pred_check
      _
    $region70: #{cae3d_forward.1} parent=5 // pred_check_branch
      %390 = sbr.rel (%p387) target = $region72
    $region71: #{cae3d_forward.1} parent=5 // pred_region
      %s391 = ssub.s32 %s19, 1
      %p392 = scmp.lt.s32.totalorder %s24, 1
      %s393 = scalar_select %p392, %s24, 1
      %s394 = smul.addr %s393, 4
      %s395 = scalar_lea.vmem %s0, %s394
      %p396 = pneg %p45
      %p397 = pneg %p42
      %p398 = pneg %p66
      %p399 = pneg %p63
      %p400 = pneg %p87
      %p401 = pneg %p84
      %p402 = pneg %p108
      %p403 = pneg %p105
      %p404 = pneg %p129
      %p405 = pneg %p126
      %p406 = pneg %p150
      %p407 = pneg %p147
      %p408 = pneg %p171
      %p409 = pneg %p168
      %p410 = pneg %p192
      %p411 = pneg %p189
      %p412 = pneg %p213
      %p413 = pneg %p210
      %p414 = pneg %p234
      %p415 = pneg %p231
      %p416 = pneg %p255
      %p417 = pneg %p252
      %p418 = pneg %p276
      %p419 = pneg %p273
      %p420 = pneg %p297
      %p421 = pneg %p294
      %p422 = pneg %p323
      %p423 = pneg %p320
      %p424 = scmp.lt.s32.totalorder %s24, 1
      %s425 = scalar_select %p424, %s24, 1
      %s426 = smul.addr %s425, 4
      %s427 = scalar_lea.vmem %s13, %s426
      %p428 = scmp.lt.s32.totalorder %s24, 1
      %s429 = scalar_select %p428, %s24, 1
      %s430 = smul.addr %s429, 4
      %s431 = scalar_lea.vmem %s0, %s430
      %p432 = scmp.lt.s32.totalorder %s24, 1
      %s433 = scalar_select %p432, %s24, 1
      %s434 = smul.addr %s433, 4
      %s435 = scalar_lea.vmem %s13, %s434
      %436 = vst [vmem:[#allocation2 + $0x60] sm:$0xf8] 0.0
      %437 = vst [vmem:[#allocation2 + $0x68] sm:$0xf8] 0.0
      %438 = vst [vmem:[#allocation2 + $0x70] sm:$0xf8] 0.0
      %439 = vst [vmem:[#allocation2 + $0x78] sm:$0xf8] 0.0
      %440 = vst [vmem:[#allocation2 + $0x1a0] sm:$0xf0] 0.0
      %441 = vst [vmem:[#allocation2 + $0x1a8] sm:$0xf0] 0.0
      %442 = vst [vmem:[#allocation2 + $0x1b0] sm:$0xf0] 0.0
      %443 = vst [vmem:[#allocation2 + $0x1b8] sm:$0xf0] 0.0
      %v444 = vld [vmem:[%s431] sm:$0xf]
      %v446 = vlaneseq
      %v447 = vshrl.u32 %v446, 7
      %v448 = vsub.s32 0, %v447
      %v449 = vrot.slane %v444, %v448
      %v450 = vlaneseq
      %v451 = vshrl.u32 %v450, 7
      %v452 = vsub.s32 1, %v451
      %v453 = vrot.slane %v444, %v452
      %v454 = vlaneseq
      %v455 = vshrl.u32 %v454, 7
      %v456 = vsub.s32 2, %v455
      %v457 = vrot.slane %v444, %v456
      %v458 = vlaneseq
      %v459 = vshrl.u32 %v458, 7
      %v460 = vsub.s32 3, %v459
      %v461 = vrot.slane %v444, %v460
      %466 = vrot.lane.b32.xlu0 %v449, 73
      %v467 = vpop.permute.xlu0 %466
      %468 = vrot.lane.b32.xlu0 %v453, 73
      %v469 = vpop.permute.xlu0 %468
      %470 = vrot.lane.b32.xlu0 %v457, 73
      %v471 = vpop.permute.xlu0 %470
      %472 = vrot.lane.b32.xlu0 %v461, 73
      %v473 = vpop.permute.xlu0 %472
      %v474 = vlaneseq
      %v475 = vand.u32 %v474, 127
      %vm476 = vcmp.lt.s32.totalorder %v475, 73
      %v477 = vsel %vm476, %v471, %v473
      %v478 = vsel %vm476, %v469, %v471
      %v479 = vsel %vm476, %v467, %v469
      %v480 = vsel %vm476, %v473, %v467
      %v481 = vld [vmem:[%s9] ss:$8 sm:$0xf]
      %v483 = vlaneseq
      %v484 = vshrl.u32 %v483, 7
      %v485 = vsub.s32 0, %v484
      %v486 = vrot.slane %v481, %v485
      %v487 = vlaneseq
      %v488 = vshrl.u32 %v487, 7
      %v489 = vsub.s32 1, %v488
      %v490 = vrot.slane %v481, %v489
      %v491 = vlaneseq
      %v492 = vshrl.u32 %v491, 7
      %v493 = vsub.s32 2, %v492
      %v494 = vrot.slane %v481, %v493
      %v495 = vlaneseq
      %v496 = vshrl.u32 %v495, 7
      %v497 = vsub.s32 3, %v496
      %v498 = vrot.slane %v481, %v497
      %v503 = vmul.f32 %v480, %v486
      %v504 = vmul.f32 %v479, %v490
      %v505 = vmul.f32 %v478, %v494
      %v506 = vmul.f32 %v477, %v498
      %v511 = vcombine.low %v503, %v504
      %v512 = vcombine.low %v505, %v506
      %v514 = vunpack.c.l.s4 1966171168
      %v515 = vunpack.c.0.s8 %v514
      %v516 = vlaneseq
      %v517 = vshrl.u32 %v516, 7
      %v518 = vsub.s32 %v515, %v517
      %v519 = vrot.slane %v511, %v518
      %v521 = vunpack.c.l.s4 1966171168
      %v522 = vunpack.c.0.s8 %v521
      %v523 = vlaneseq
      %v524 = vshrl.u32 %v523, 7
      %v525 = vsub.s32 %v522, %v524
      %v526 = vrot.slane %v512, %v525
      %v527 = vcombine.low %v519, %v526
      %v529 = vunpack.c.l.s4 1966171168
      %v530 = vunpack.c.0.s8 %v529
      %v531 = vlaneseq
      %v532 = vshrl.u32 %v531, 7
      %v533 = vsub.s32 %v530, %v532
      %v534 = vrot.slane %v527, %v533
      %v536 = vlaneseq
      %vm537 = vcmp.ge.s32.totalorder %v536, 0
      %vm538 = vcmp.lt.s32.totalorder %v536, 512
      %vm539 = vmand %vm537, %vm538
      %540 = vst.msk [vmem:[#allocation2] ss:$8 sm:$0xf] %vm539, %v534
      %541 = vst.msk [vmem:[#allocation2] ss:$8 sm:$0x0] %vm539, %v534
      %542 = vrot.lane.b32.xlu0 %v449, 72
      %v543 = vpop.permute.xlu0 %542
      %544 = vrot.lane.b32.xlu0 %v453, 72
      %v545 = vpop.permute.xlu0 %544
      %546 = vrot.lane.b32.xlu0 %v457, 72
      %v547 = vpop.permute.xlu0 %546
      %548 = vrot.lane.b32.xlu0 %v461, 72
      %v549 = vpop.permute.xlu0 %548
      %vm550 = vcmp.lt.s32.totalorder %v475, 72
      %v551 = vsel %vm550, %v547, %v549
      %v552 = vsel %vm550, %v545, %v547
      %v553 = vsel %vm550, %v543, %v545
      %v554 = vsel %vm550, %v549, %v543
      %s555 = scalar_lea.vmem %s9, 1
      %v556 = vld [vmem:[%s555] ss:$8 sm:$0xf]
      %v558 = vlaneseq
      %v559 = vshrl.u32 %v558, 7
      %v560 = vsub.s32 0, %v559
      %v561 = vrot.slane %v556, %v560
      %v562 = vlaneseq
      %v563 = vshrl.u32 %v562, 7
      %v564 = vsub.s32 1, %v563
      %v565 = vrot.slane %v556, %v564
      %v566 = vlaneseq
      %v567 = vshrl.u32 %v566, 7
      %v568 = vsub.s32 2, %v567
      %v569 = vrot.slane %v556, %v568
      %v570 = vlaneseq
      %v571 = vshrl.u32 %v570, 7
      %v572 = vsub.s32 3, %v571
      %v573 = vrot.slane %v556, %v572
      %v578 = vmul.f32 %v554, %v561
      %v579 = vmul.f32 %v553, %v565
      %v580 = vmul.f32 %v552, %v569
      %v581 = vmul.f32 %v551, %v573
      %v586 = vcombine.low %v578, %v579
      %v587 = vcombine.low %v580, %v581
      %v589 = vunpack.c.l.s4 1966171168
      %v590 = vunpack.c.0.s8 %v589
      %v591 = vlaneseq
      %v592 = vshrl.u32 %v591, 7
      %v593 = vsub.s32 %v590, %v592
      %v594 = vrot.slane %v586, %v593
      %v596 = vunpack.c.l.s4 1966171168
      %v597 = vunpack.c.0.s8 %v596
      %v598 = vlaneseq
      %v599 = vshrl.u32 %v598, 7
      %v600 = vsub.s32 %v597, %v599
      %v601 = vrot.slane %v587, %v600
      %v602 = vcombine.low %v594, %v601
      %v604 = vunpack.c.l.s4 1966171168
      %v605 = vunpack.c.0.s8 %v604
      %v606 = vlaneseq
      %v607 = vshrl.u32 %v606, 7
      %v608 = vsub.s32 %v605, %v607
      %v609 = vrot.slane %v602, %v608
      %s611 = scalar_lea.vmem [#allocation2], 1
      %612 = vst.msk [vmem:[%s611] ss:$8 sm:$0xf] %vm539, %v609
      %613 = vst.msk [vmem:[%s611] ss:$8 sm:$0x0] %vm539, %v609
      %614 = vrot.lane.b32.xlu0 %v449, 71
      %v615 = vpop.permute.xlu0 %614
      %616 = vrot.lane.b32.xlu0 %v453, 71
      %v617 = vpop.permute.xlu0 %616
      %618 = vrot.lane.b32.xlu0 %v457, 71
      %v619 = vpop.permute.xlu0 %618
      %620 = vrot.lane.b32.xlu0 %v461, 71
      %v621 = vpop.permute.xlu0 %620
      %vm622 = vcmp.lt.s32.totalorder %v475, 71
      %v623 = vsel %vm622, %v619, %v621
      %v624 = vsel %vm622, %v617, %v619
      %v625 = vsel %vm622, %v615, %v617
      %v626 = vsel %vm622, %v621, %v615
      %s627 = scalar_lea.vmem %s9, 2
      %v628 = vld [vmem:[%s627] ss:$8 sm:$0xf]
      %v630 = vlaneseq
      %v631 = vshrl.u32 %v630, 7
      %v632 = vsub.s32 0, %v631
      %v633 = vrot.slane %v628, %v632
      %v634 = vlaneseq
      %v635 = vshrl.u32 %v634, 7
      %v636 = vsub.s32 1, %v635
      %v637 = vrot.slane %v628, %v636
      %v638 = vlaneseq
      %v639 = vshrl.u32 %v638, 7
      %v640 = vsub.s32 2, %v639
      %v641 = vrot.slane %v628, %v640
      %v642 = vlaneseq
      %v643 = vshrl.u32 %v642, 7
      %v644 = vsub.s32 3, %v643
      %v645 = vrot.slane %v628, %v644
      %v650 = vmul.f32 %v626, %v633
      %v651 = vmul.f32 %v625, %v637
      %v652 = vmul.f32 %v624, %v641
      %v653 = vmul.f32 %v623, %v645
      %v658 = vcombine.low %v650, %v651
      %v659 = vcombine.low %v652, %v653
      %v661 = vunpack.c.l.s4 1966171168
      %v662 = vunpack.c.0.s8 %v661
      %v663 = vlaneseq
      %v664 = vshrl.u32 %v663, 7
      %v665 = vsub.s32 %v662, %v664
      %v666 = vrot.slane %v658, %v665
      %v668 = vunpack.c.l.s4 1966171168
      %v669 = vunpack.c.0.s8 %v668
      %v670 = vlaneseq
      %v671 = vshrl.u32 %v670, 7
      %v672 = vsub.s32 %v669, %v671
      %v673 = vrot.slane %v659, %v672
      %v674 = vcombine.low %v666, %v673
      %v676 = vunpack.c.l.s4 1966171168
      %v677 = vunpack.c.0.s8 %v676
      %v678 = vlaneseq
      %v679 = vshrl.u32 %v678, 7
      %v680 = vsub.s32 %v677, %v679
      %v681 = vrot.slane %v674, %v680
      %s683 = scalar_lea.vmem [#allocation2], 2
      %684 = vst.msk [vmem:[%s683] ss:$8 sm:$0xf] %vm539, %v681
      %685 = vst.msk [vmem:[%s683] ss:$8 sm:$0x0] %vm539, %v681
      %686 = vrot.lane.b32.xlu0 %v449, 65
      %v687 = vpop.permute.xlu0 %686
      %688 = vrot.lane.b32.xlu0 %v453, 65
      %v689 = vpop.permute.xlu0 %688
      %690 = vrot.lane.b32.xlu0 %v457, 65
      %v691 = vpop.permute.xlu0 %690
      %692 = vrot.lane.b32.xlu0 %v461, 65
      %v693 = vpop.permute.xlu0 %692
      %vm694 = vcmp.lt.s32.totalorder %v475, 65
      %v695 = vsel %vm694, %v691, %v693
      %v696 = vsel %vm694, %v689, %v691
      %v697 = vsel %vm694, %v687, %v689
      %v698 = vsel %vm694, %v693, %v687
      %s699 = scalar_lea.vmem %s9, 3
      %v700 = vld [vmem:[%s699] ss:$8 sm:$0xf]
      %v702 = vlaneseq
      %v703 = vshrl.u32 %v702, 7
      %v704 = vsub.s32 0, %v703
      %v705 = vrot.slane %v700, %v704
      %v706 = vlaneseq
      %v707 = vshrl.u32 %v706, 7
      %v708 = vsub.s32 1, %v707
      %v709 = vrot.slane %v700, %v708
      %v710 = vlaneseq
      %v711 = vshrl.u32 %v710, 7
      %v712 = vsub.s32 2, %v711
      %v713 = vrot.slane %v700, %v712
      %v714 = vlaneseq
      %v715 = vshrl.u32 %v714, 7
      %v716 = vsub.s32 3, %v715
      %v717 = vrot.slane %v700, %v716
      %v722 = vmul.f32 %v698, %v705
      %v723 = vmul.f32 %v697, %v709
      %v724 = vmul.f32 %v696, %v713
      %v725 = vmul.f32 %v695, %v717
      %v730 = vcombine.low %v722, %v723
      %v731 = vcombine.low %v724, %v725
      %v733 = vunpack.c.l.s4 1966171168
      %v734 = vunpack.c.0.s8 %v733
      %v735 = vlaneseq
      %v736 = vshrl.u32 %v735, 7
      %v737 = vsub.s32 %v734, %v736
      %v738 = vrot.slane %v730, %v737
      %v740 = vunpack.c.l.s4 1966171168
      %v741 = vunpack.c.0.s8 %v740
      %v742 = vlaneseq
      %v743 = vshrl.u32 %v742, 7
      %v744 = vsub.s32 %v741, %v743
      %v745 = vrot.slane %v731, %v744
      %v746 = vcombine.low %v738, %v745
      %v748 = vunpack.c.l.s4 1966171168
      %v749 = vunpack.c.0.s8 %v748
      %v750 = vlaneseq
      %v751 = vshrl.u32 %v750, 7
      %v752 = vsub.s32 %v749, %v751
      %v753 = vrot.slane %v746, %v752
      %s755 = scalar_lea.vmem [#allocation2], 3
      %756 = vst.msk [vmem:[%s755] ss:$8 sm:$0xf] %vm539, %v753
      %757 = vst.msk [vmem:[%s755] ss:$8 sm:$0x0] %vm539, %v753
      %758 = vrot.lane.b32.xlu0 %v449, 64
      %v759 = vpop.permute.xlu0 %758
      %760 = vrot.lane.b32.xlu0 %v453, 64
      %v761 = vpop.permute.xlu0 %760
      %762 = vrot.lane.b32.xlu0 %v457, 64
      %v763 = vpop.permute.xlu0 %762
      %764 = vrot.lane.b32.xlu0 %v461, 64
      %v765 = vpop.permute.xlu0 %764
      %vm766 = vcmp.lt.s32.totalorder %v475, 64
      %v767 = vsel %vm766, %v763, %v765
      %v768 = vsel %vm766, %v761, %v763
      %v769 = vsel %vm766, %v759, %v761
      %v770 = vsel %vm766, %v765, %v759
      %s771 = scalar_lea.vmem %s9, 4
      %v772 = vld [vmem:[%s771] ss:$8 sm:$0xf]
      %v774 = vlaneseq
      %v775 = vshrl.u32 %v774, 7
      %v776 = vsub.s32 0, %v775
      %v777 = vrot.slane %v772, %v776
      %v778 = vlaneseq
      %v779 = vshrl.u32 %v778, 7
      %v780 = vsub.s32 1, %v779
      %v781 = vrot.slane %v772, %v780
      %v782 = vlaneseq
      %v783 = vshrl.u32 %v782, 7
      %v784 = vsub.s32 2, %v783
      %v785 = vrot.slane %v772, %v784
      %v786 = vlaneseq
      %v787 = vshrl.u32 %v786, 7
      %v788 = vsub.s32 3, %v787
      %v789 = vrot.slane %v772, %v788
      %v794 = vmul.f32 %v770, %v777
      %v795 = vmul.f32 %v769, %v781
      %v796 = vmul.f32 %v768, %v785
      %v797 = vmul.f32 %v767, %v789
      %v802 = vcombine.low %v794, %v795
      %v803 = vcombine.low %v796, %v797
      %v805 = vunpack.c.l.s4 1966171168
      %v806 = vunpack.c.0.s8 %v805
      %v807 = vlaneseq
      %v808 = vshrl.u32 %v807, 7
      %v809 = vsub.s32 %v806, %v808
      %v810 = vrot.slane %v802, %v809
      %v812 = vunpack.c.l.s4 1966171168
      %v813 = vunpack.c.0.s8 %v812
      %v814 = vlaneseq
      %v815 = vshrl.u32 %v814, 7
      %v816 = vsub.s32 %v813, %v815
      %v817 = vrot.slane %v803, %v816
      %v818 = vcombine.low %v810, %v817
      %v820 = vunpack.c.l.s4 1966171168
      %v821 = vunpack.c.0.s8 %v820
      %v822 = vlaneseq
      %v823 = vshrl.u32 %v822, 7
      %v824 = vsub.s32 %v821, %v823
      %v825 = vrot.slane %v818, %v824
      %s827 = scalar_lea.vmem [#allocation2], 4
      %828 = vst.msk [vmem:[%s827] ss:$8 sm:$0xf] %vm539, %v825
      %829 = vst.msk [vmem:[%s827] ss:$8 sm:$0x0] %vm539, %v825
      %830 = vrot.lane.b32.xlu0 %v449, 63
      %v831 = vpop.permute.xlu0 %830
      %832 = vrot.lane.b32.xlu0 %v453, 63
      %v833 = vpop.permute.xlu0 %832
      %834 = vrot.lane.b32.xlu0 %v457, 63
      %v835 = vpop.permute.xlu0 %834
      %836 = vrot.lane.b32.xlu0 %v461, 63
      %v837 = vpop.permute.xlu0 %836
      %vm838 = vcmp.lt.s32.totalorder %v475, 63
      %v839 = vsel %vm838, %v835, %v837
      %v840 = vsel %vm838, %v833, %v835
      %v841 = vsel %vm838, %v831, %v833
      %v842 = vsel %vm838, %v837, %v831
      %s843 = scalar_lea.vmem %s9, 5
      %v844 = vld [vmem:[%s843] ss:$8 sm:$0xf]
      %v846 = vlaneseq
      %v847 = vshrl.u32 %v846, 7
      %v848 = vsub.s32 0, %v847
      %v849 = vrot.slane %v844, %v848
      %v850 = vlaneseq
      %v851 = vshrl.u32 %v850, 7
      %v852 = vsub.s32 1, %v851
      %v853 = vrot.slane %v844, %v852
      %v854 = vlaneseq
      %v855 = vshrl.u32 %v854, 7
      %v856 = vsub.s32 2, %v855
      %v857 = vrot.slane %v844, %v856
      %v858 = vlaneseq
      %v859 = vshrl.u32 %v858, 7
      %v860 = vsub.s32 3, %v859
      %v861 = vrot.slane %v844, %v860
      %v866 = vmul.f32 %v842, %v849
      %v867 = vmul.f32 %v841, %v853
      %v868 = vmul.f32 %v840, %v857
      %v869 = vmul.f32 %v839, %v861
      %v874 = vcombine.low %v866, %v867
      %v875 = vcombine.low %v868, %v869
      %v877 = vunpack.c.l.s4 1966171168
      %v878 = vunpack.c.0.s8 %v877
      %v879 = vlaneseq
      %v880 = vshrl.u32 %v879, 7
      %v881 = vsub.s32 %v878, %v880
      %v882 = vrot.slane %v874, %v881
      %v884 = vunpack.c.l.s4 1966171168
      %v885 = vunpack.c.0.s8 %v884
      %v886 = vlaneseq
      %v887 = vshrl.u32 %v886, 7
      %v888 = vsub.s32 %v885, %v887
      %v889 = vrot.slane %v875, %v888
      %v890 = vcombine.low %v882, %v889
      %v892 = vunpack.c.l.s4 1966171168
      %v893 = vunpack.c.0.s8 %v892
      %v894 = vlaneseq
      %v895 = vshrl.u32 %v894, 7
      %v896 = vsub.s32 %v893, %v895
      %v897 = vrot.slane %v890, %v896
      %s899 = scalar_lea.vmem [#allocation2], 5
      %900 = vst.msk [vmem:[%s899] ss:$8 sm:$0xf] %vm539, %v897
      %901 = vst.msk [vmem:[%s899] ss:$8 sm:$0x0] %vm539, %v897
      %902 = vrot.lane.b32.xlu0 %v449, 57
      %v903 = vpop.permute.xlu0 %902
      %904 = vrot.lane.b32.xlu0 %v453, 57
      %v905 = vpop.permute.xlu0 %904
      %906 = vrot.lane.b32.xlu0 %v457, 57
      %v907 = vpop.permute.xlu0 %906
      %908 = vrot.lane.b32.xlu0 %v461, 57
      %v909 = vpop.permute.xlu0 %908
      %vm910 = vcmp.lt.s32.totalorder %v475, 57
      %v911 = vsel %vm910, %v907, %v909
      %v912 = vsel %vm910, %v905, %v907
      %v913 = vsel %vm910, %v903, %v905
      %v914 = vsel %vm910, %v909, %v903
      %s915 = scalar_lea.vmem %s9, 6
      %v916 = vld [vmem:[%s915] ss:$8 sm:$0xf]
      %v918 = vlaneseq
      %v919 = vshrl.u32 %v918, 7
      %v920 = vsub.s32 0, %v919
      %v921 = vrot.slane %v916, %v920
      %v922 = vlaneseq
      %v923 = vshrl.u32 %v922, 7
      %v924 = vsub.s32 1, %v923
      %v925 = vrot.slane %v916, %v924
      %v926 = vlaneseq
      %v927 = vshrl.u32 %v926, 7
      %v928 = vsub.s32 2, %v927
      %v929 = vrot.slane %v916, %v928
      %v930 = vlaneseq
      %v931 = vshrl.u32 %v930, 7
      %v932 = vsub.s32 3, %v931
      %v933 = vrot.slane %v916, %v932
      %v938 = vmul.f32 %v914, %v921
      %v939 = vmul.f32 %v913, %v925
      %v940 = vmul.f32 %v912, %v929
      %v941 = vmul.f32 %v911, %v933
      %v946 = vcombine.low %v938, %v939
      %v947 = vcombine.low %v940, %v941
      %v949 = vunpack.c.l.s4 1966171168
      %v950 = vunpack.c.0.s8 %v949
      %v951 = vlaneseq
      %v952 = vshrl.u32 %v951, 7
      %v953 = vsub.s32 %v950, %v952
      %v954 = vrot.slane %v946, %v953
      %v956 = vunpack.c.l.s4 1966171168
      %v957 = vunpack.c.0.s8 %v956
      %v958 = vlaneseq
      %v959 = vshrl.u32 %v958, 7
      %v960 = vsub.s32 %v957, %v959
      %v961 = vrot.slane %v947, %v960
      %v962 = vcombine.low %v954, %v961
      %v964 = vunpack.c.l.s4 1966171168
      %v965 = vunpack.c.0.s8 %v964
      %v966 = vlaneseq
      %v967 = vshrl.u32 %v966, 7
      %v968 = vsub.s32 %v965, %v967
      %v969 = vrot.slane %v962, %v968
      %s971 = scalar_lea.vmem [#allocation2], 6
      %972 = vst.msk [vmem:[%s971] ss:$8 sm:$0xf] %vm539, %v969
      %973 = vst.msk [vmem:[%s971] ss:$8 sm:$0x0] %vm539, %v969
      %974 = vrot.lane.b32.xlu0 %v449, 56
      %v975 = vpop.permute.xlu0 %974
      %976 = vrot.lane.b32.xlu0 %v453, 56
      %v977 = vpop.permute.xlu0 %976
      %978 = vrot.lane.b32.xlu0 %v457, 56
      %v979 = vpop.permute.xlu0 %978
      %980 = vrot.lane.b32.xlu0 %v461, 56
      %v981 = vpop.permute.xlu0 %980
      %vm982 = vcmp.lt.s32.totalorder %v475, 56
      %v983 = vsel %vm982, %v979, %v981
      %v984 = vsel %vm982, %v977, %v979
      %v985 = vsel %vm982, %v975, %v977
      %v986 = vsel %vm982, %v981, %v975
      %s987 = scalar_lea.vmem %s9, 7
      %v988 = vld [vmem:[%s987] ss:$8 sm:$0xf]
      %v990 = vlaneseq
      %v991 = vshrl.u32 %v990, 7
      %v992 = vsub.s32 0, %v991
      %v993 = vrot.slane %v988, %v992
      %v994 = vlaneseq
      %v995 = vshrl.u32 %v994, 7
      %v996 = vsub.s32 1, %v995
      %v997 = vrot.slane %v988, %v996
      %v998 = vlaneseq
      %v999 = vshrl.u32 %v998, 7
      %v1000 = vsub.s32 2, %v999
      %v1001 = vrot.slane %v988, %v1000
      %v1002 = vlaneseq
      %v1003 = vshrl.u32 %v1002, 7
      %v1004 = vsub.s32 3, %v1003
      %v1005 = vrot.slane %v988, %v1004
      %v1010 = vmul.f32 %v986, %v993
      %v1011 = vmul.f32 %v985, %v997
      %v1012 = vmul.f32 %v984, %v1001
      %v1013 = vmul.f32 %v983, %v1005
      %v1018 = vcombine.low %v1010, %v1011
      %v1019 = vcombine.low %v1012, %v1013
      %v1021 = vunpack.c.l.s4 1966171168
      %v1022 = vunpack.c.0.s8 %v1021
      %v1023 = vlaneseq
      %v1024 = vshrl.u32 %v1023, 7
      %v1025 = vsub.s32 %v1022, %v1024
      %v1026 = vrot.slane %v1018, %v1025
      %v1028 = vunpack.c.l.s4 1966171168
      %v1029 = vunpack.c.0.s8 %v1028
      %v1030 = vlaneseq
      %v1031 = vshrl.u32 %v1030, 7
      %v1032 = vsub.s32 %v1029, %v1031
      %v1033 = vrot.slane %v1019, %v1032
      %v1034 = vcombine.low %v1026, %v1033
      %v1036 = vunpack.c.l.s4 1966171168
      %v1037 = vunpack.c.0.s8 %v1036
      %v1038 = vlaneseq
      %v1039 = vshrl.u32 %v1038, 7
      %v1040 = vsub.s32 %v1037, %v1039
      %v1041 = vrot.slane %v1034, %v1040
      %s1043 = scalar_lea.vmem [#allocation2], 7
      %1044 = vst.msk [vmem:[%s1043] ss:$8 sm:$0xf] %vm539, %v1041
      %1045 = vst.msk [vmem:[%s1043] ss:$8 sm:$0x0] %vm539, %v1041
      %1046 = vrot.lane.b32.xlu0 %v449, 55
      %v1047 = vpop.permute.xlu0 %1046
      %1048 = vrot.lane.b32.xlu0 %v453, 55
      %v1049 = vpop.permute.xlu0 %1048
      %1050 = vrot.lane.b32.xlu0 %v457, 55
      %v1051 = vpop.permute.xlu0 %1050
      %1052 = vrot.lane.b32.xlu0 %v461, 55
      %v1053 = vpop.permute.xlu0 %1052
      %vm1054 = vcmp.lt.s32.totalorder %v475, 55
      %v1055 = vsel %vm1054, %v1051, %v1053
      %v1056 = vsel %vm1054, %v1049, %v1051
      %v1057 = vsel %vm1054, %v1047, %v1049
      %v1058 = vsel %vm1054, %v1053, %v1047
      %s1059 = scalar_lea.vmem %s9, 32
      %v1060 = vld [vmem:[%s1059] ss:$8 sm:$0xf]
      %v1062 = vlaneseq
      %v1063 = vshrl.u32 %v1062, 7
      %v1064 = vsub.s32 0, %v1063
      %v1065 = vrot.slane %v1060, %v1064
      %v1066 = vlaneseq
      %v1067 = vshrl.u32 %v1066, 7
      %v1068 = vsub.s32 1, %v1067
      %v1069 = vrot.slane %v1060, %v1068
      %v1070 = vlaneseq
      %v1071 = vshrl.u32 %v1070, 7
      %v1072 = vsub.s32 2, %v1071
      %v1073 = vrot.slane %v1060, %v1072
      %v1074 = vlaneseq
      %v1075 = vshrl.u32 %v1074, 7
      %v1076 = vsub.s32 3, %v1075
      %v1077 = vrot.slane %v1060, %v1076
      %v1082 = vmul.f32 %v1058, %v1065
      %v1083 = vmul.f32 %v1057, %v1069
      %v1084 = vmul.f32 %v1056, %v1073
      %v1085 = vmul.f32 %v1055, %v1077
      %v1090 = vcombine.low %v1082, %v1083
      %v1091 = vcombine.low %v1084, %v1085
      %v1093 = vunpack.c.l.s4 1966171168
      %v1094 = vunpack.c.0.s8 %v1093
      %v1095 = vlaneseq
      %v1096 = vshrl.u32 %v1095, 7
      %v1097 = vsub.s32 %v1094, %v1096
      %v1098 = vrot.slane %v1090, %v1097
      %v1100 = vunpack.c.l.s4 1966171168
      %v1101 = vunpack.c.0.s8 %v1100
      %v1102 = vlaneseq
      %v1103 = vshrl.u32 %v1102, 7
      %v1104 = vsub.s32 %v1101, %v1103
      %v1105 = vrot.slane %v1091, %v1104
      %v1106 = vcombine.low %v1098, %v1105
      %v1108 = vunpack.c.l.s4 1966171168
      %v1109 = vunpack.c.0.s8 %v1108
      %v1110 = vlaneseq
      %v1111 = vshrl.u32 %v1110, 7
      %v1112 = vsub.s32 %v1109, %v1111
      %v1113 = vrot.slane %v1106, %v1112
      %s1115 = scalar_lea.vmem [#allocation2], 32
      %1116 = vst.msk [vmem:[%s1115] ss:$8 sm:$0xf] %vm539, %v1113
      %1117 = vst.msk [vmem:[%s1115] ss:$8 sm:$0x0] %vm539, %v1113
      %1118 = vrot.lane.b32.xlu0 %v449, 9
      %v1119 = vpop.permute.xlu0 %1118
      %1120 = vrot.lane.b32.xlu0 %v453, 9
      %v1121 = vpop.permute.xlu0 %1120
      %1122 = vrot.lane.b32.xlu0 %v457, 9
      %v1123 = vpop.permute.xlu0 %1122
      %1124 = vrot.lane.b32.xlu0 %v461, 9
      %v1125 = vpop.permute.xlu0 %1124
      %vm1126 = vcmp.lt.s32.totalorder %v475, 9
      %v1127 = vsel %vm1126, %v1123, %v1125
      %v1128 = vsel %vm1126, %v1121, %v1123
      %v1129 = vsel %vm1126, %v1119, %v1121
      %v1130 = vsel %vm1126, %v1125, %v1119
      %s1131 = scalar_lea.vmem %s9, 33
      %v1132 = vld [vmem:[%s1131] ss:$8 sm:$0xf]
      %v1134 = vlaneseq
      %v1135 = vshrl.u32 %v1134, 7
      %v1136 = vsub.s32 0, %v1135
      %v1137 = vrot.slane %v1132, %v1136
      %v1138 = vlaneseq
      %v1139 = vshrl.u32 %v1138, 7
      %v1140 = vsub.s32 1, %v1139
      %v1141 = vrot.slane %v1132, %v1140
      %v1142 = vlaneseq
      %v1143 = vshrl.u32 %v1142, 7
      %v1144 = vsub.s32 2, %v1143
      %v1145 = vrot.slane %v1132, %v1144
      %v1146 = vlaneseq
      %v1147 = vshrl.u32 %v1146, 7
      %v1148 = vsub.s32 3, %v1147
      %v1149 = vrot.slane %v1132, %v1148
      %v1154 = vmul.f32 %v1130, %v1137
      %v1155 = vmul.f32 %v1129, %v1141
      %v1156 = vmul.f32 %v1128, %v1145
      %v1157 = vmul.f32 %v1127, %v1149
      %v1162 = vcombine.low %v1154, %v1155
      %v1163 = vcombine.low %v1156, %v1157
      %v1165 = vunpack.c.l.s4 1966171168
      %v1166 = vunpack.c.0.s8 %v1165
      %v1167 = vlaneseq
      %v1168 = vshrl.u32 %v1167, 7
      %v1169 = vsub.s32 %v1166, %v1168
      %v1170 = vrot.slane %v1162, %v1169
      %v1172 = vunpack.c.l.s4 1966171168
      %v1173 = vunpack.c.0.s8 %v1172
      %v1174 = vlaneseq
      %v1175 = vshrl.u32 %v1174, 7
      %v1176 = vsub.s32 %v1173, %v1175
      %v1177 = vrot.slane %v1163, %v1176
      %v1178 = vcombine.low %v1170, %v1177
      %v1180 = vunpack.c.l.s4 1966171168
      %v1181 = vunpack.c.0.s8 %v1180
      %v1182 = vlaneseq
      %v1183 = vshrl.u32 %v1182, 7
      %v1184 = vsub.s32 %v1181, %v1183
      %v1185 = vrot.slane %v1178, %v1184
      %s1187 = scalar_lea.vmem [#allocation2], 33
      %1188 = vst.msk [vmem:[%s1187] ss:$8 sm:$0xf] %vm539, %v1185
      %1189 = vst.msk [vmem:[%s1187] ss:$8 sm:$0x0] %vm539, %v1185
      %1190 = vrot.lane.b32.xlu0 %v449, 8
      %v1191 = vpop.permute.xlu0 %1190
      %1192 = vrot.lane.b32.xlu0 %v453, 8
      %v1193 = vpop.permute.xlu0 %1192
      %1194 = vrot.lane.b32.xlu0 %v457, 8
      %v1195 = vpop.permute.xlu0 %1194
      %1196 = vrot.lane.b32.xlu0 %v461, 8
      %v1197 = vpop.permute.xlu0 %1196
      %vm1198 = vcmp.lt.s32.totalorder %v475, 8
      %v1199 = vsel %vm1198, %v1195, %v1197
      %v1200 = vsel %vm1198, %v1193, %v1195
      %v1201 = vsel %vm1198, %v1191, %v1193
      %v1202 = vsel %vm1198, %v1197, %v1191
      %s1203 = scalar_lea.vmem %s9, 34
      %v1204 = vld [vmem:[%s1203] ss:$8 sm:$0xf]
      %v1206 = vlaneseq
      %v1207 = vshrl.u32 %v1206, 7
      %v1208 = vsub.s32 0, %v1207
      %v1209 = vrot.slane %v1204, %v1208
      %v1210 = vlaneseq
      %v1211 = vshrl.u32 %v1210, 7
      %v1212 = vsub.s32 1, %v1211
      %v1213 = vrot.slane %v1204, %v1212
      %v1214 = vlaneseq
      %v1215 = vshrl.u32 %v1214, 7
      %v1216 = vsub.s32 2, %v1215
      %v1217 = vrot.slane %v1204, %v1216
      %v1218 = vlaneseq
      %v1219 = vshrl.u32 %v1218, 7
      %v1220 = vsub.s32 3, %v1219
      %v1221 = vrot.slane %v1204, %v1220
      %v1226 = vmul.f32 %v1202, %v1209
      %v1227 = vmul.f32 %v1201, %v1213
      %v1228 = vmul.f32 %v1200, %v1217
      %v1229 = vmul.f32 %v1199, %v1221
      %v1234 = vcombine.low %v1226, %v1227
      %v1235 = vcombine.low %v1228, %v1229
      %v1237 = vunpack.c.l.s4 1966171168
      %v1238 = vunpack.c.0.s8 %v1237
      %v1239 = vlaneseq
      %v1240 = vshrl.u32 %v1239, 7
      %v1241 = vsub.s32 %v1238, %v1240
      %v1242 = vrot.slane %v1234, %v1241
      %v1244 = vunpack.c.l.s4 1966171168
      %v1245 = vunpack.c.0.s8 %v1244
      %v1246 = vlaneseq
      %v1247 = vshrl.u32 %v1246, 7
      %v1248 = vsub.s32 %v1245, %v1247
      %v1249 = vrot.slane %v1235, %v1248
      %v1250 = vcombine.low %v1242, %v1249
      %v1252 = vunpack.c.l.s4 1966171168
      %v1253 = vunpack.c.0.s8 %v1252
      %v1254 = vlaneseq
      %v1255 = vshrl.u32 %v1254, 7
      %v1256 = vsub.s32 %v1253, %v1255
      %v1257 = vrot.slane %v1250, %v1256
      %s1259 = scalar_lea.vmem [#allocation2], 34
      %1260 = vst.msk [vmem:[%s1259] ss:$8 sm:$0xf] %vm539, %v1257
      %1261 = vst.msk [vmem:[%s1259] ss:$8 sm:$0x0] %vm539, %v1257
      %1262 = vrot.lane.b32.xlu0 %v449, 7
      %v1263 = vpop.permute.xlu0 %1262
      %1264 = vrot.lane.b32.xlu0 %v453, 7
      %v1265 = vpop.permute.xlu0 %1264
      %1266 = vrot.lane.b32.xlu0 %v457, 7
      %v1267 = vpop.permute.xlu0 %1266
      %1268 = vrot.lane.b32.xlu0 %v461, 7
      %v1269 = vpop.permute.xlu0 %1268
      %vm1270 = vcmp.lt.s32.totalorder %v475, 7
      %v1271 = vsel %vm1270, %v1267, %v1269
      %v1272 = vsel %vm1270, %v1265, %v1267
      %v1273 = vsel %vm1270, %v1263, %v1265
      %v1274 = vsel %vm1270, %v1269, %v1263
      %s1275 = scalar_lea.vmem %s9, 35
      %v1276 = vld [vmem:[%s1275] ss:$8 sm:$0xf]
      %v1278 = vlaneseq
      %v1279 = vshrl.u32 %v1278, 7
      %v1280 = vsub.s32 0, %v1279
      %v1281 = vrot.slane %v1276, %v1280
      %v1282 = vlaneseq
      %v1283 = vshrl.u32 %v1282, 7
      %v1284 = vsub.s32 1, %v1283
      %v1285 = vrot.slane %v1276, %v1284
      %v1286 = vlaneseq
      %v1287 = vshrl.u32 %v1286, 7
      %v1288 = vsub.s32 2, %v1287
      %v1289 = vrot.slane %v1276, %v1288
      %v1290 = vlaneseq
      %v1291 = vshrl.u32 %v1290, 7
      %v1292 = vsub.s32 3, %v1291
      %v1293 = vrot.slane %v1276, %v1292
      %v1298 = vmul.f32 %v1274, %v1281
      %v1299 = vmul.f32 %v1273, %v1285
      %v1300 = vmul.f32 %v1272, %v1289
      %v1301 = vmul.f32 %v1271, %v1293
      %v1306 = vcombine.low %v1298, %v1299
      %v1307 = vcombine.low %v1300, %v1301
      %v1309 = vunpack.c.l.s4 1966171168
      %v1310 = vunpack.c.0.s8 %v1309
      %v1311 = vlaneseq
      %v1312 = vshrl.u32 %v1311, 7
      %v1313 = vsub.s32 %v1310, %v1312
      %v1314 = vrot.slane %v1306, %v1313
      %v1316 = vunpack.c.l.s4 1966171168
      %v1317 = vunpack.c.0.s8 %v1316
      %v1318 = vlaneseq
      %v1319 = vshrl.u32 %v1318, 7
      %v1320 = vsub.s32 %v1317, %v1319
      %v1321 = vrot.slane %v1307, %v1320
      %v1322 = vcombine.low %v1314, %v1321
      %v1324 = vunpack.c.l.s4 1966171168
      %v1325 = vunpack.c.0.s8 %v1324
      %v1326 = vlaneseq
      %v1327 = vshrl.u32 %v1326, 7
      %v1328 = vsub.s32 %v1325, %v1327
      %v1329 = vrot.slane %v1322, %v1328
      %s1331 = scalar_lea.vmem [#allocation2], 35
      %1332 = vst.msk [vmem:[%s1331] ss:$8 sm:$0xf] %vm539, %v1329
      %1333 = vst.msk [vmem:[%s1331] ss:$8 sm:$0x0] %vm539, %v1329
      %1334 = vrot.lane.b32.xlu0 %v449, 1
      %v1335 = vpop.permute.xlu0 %1334
      %1336 = vrot.lane.b32.xlu0 %v453, 1
      %v1337 = vpop.permute.xlu0 %1336
      %1338 = vrot.lane.b32.xlu0 %v457, 1
      %v1339 = vpop.permute.xlu0 %1338
      %1340 = vrot.lane.b32.xlu0 %v461, 1
      %v1341 = vpop.permute.xlu0 %1340
      %vm1342 = vcmp.lt.s32.totalorder %v475, 1
      %v1343 = vsel %vm1342, %v1339, %v1341
      %v1344 = vsel %vm1342, %v1337, %v1339
      %v1345 = vsel %vm1342, %v1335, %v1337
      %v1346 = vsel %vm1342, %v1341, %v1335
      %s1347 = scalar_lea.vmem %s9, 36
      %v1348 = vld [vmem:[%s1347] ss:$8 sm:$0xf]
      %v1350 = vlaneseq
      %v1351 = vshrl.u32 %v1350, 7
      %v1352 = vsub.s32 0, %v1351
      %v1353 = vrot.slane %v1348, %v1352
      %v1354 = vlaneseq
      %v1355 = vshrl.u32 %v1354, 7
      %v1356 = vsub.s32 1, %v1355
      %v1357 = vrot.slane %v1348, %v1356
      %v1358 = vlaneseq
      %v1359 = vshrl.u32 %v1358, 7
      %v1360 = vsub.s32 2, %v1359
      %v1361 = vrot.slane %v1348, %v1360
      %v1362 = vlaneseq
      %v1363 = vshrl.u32 %v1362, 7
      %v1364 = vsub.s32 3, %v1363
      %v1365 = vrot.slane %v1348, %v1364
      %v1370 = vmul.f32 %v1346, %v1353
      %v1371 = vmul.f32 %v1345, %v1357
      %v1372 = vmul.f32 %v1344, %v1361
      %v1373 = vmul.f32 %v1343, %v1365
      %v1378 = vcombine.low %v1370, %v1371
      %v1379 = vcombine.low %v1372, %v1373
      %v1381 = vunpack.c.l.s4 1966171168
      %v1382 = vunpack.c.0.s8 %v1381
      %v1383 = vlaneseq
      %v1384 = vshrl.u32 %v1383, 7
      %v1385 = vsub.s32 %v1382, %v1384
      %v1386 = vrot.slane %v1378, %v1385
      %v1388 = vunpack.c.l.s4 1966171168
      %v1389 = vunpack.c.0.s8 %v1388
      %v1390 = vlaneseq
      %v1391 = vshrl.u32 %v1390, 7
      %v1392 = vsub.s32 %v1389, %v1391
      %v1393 = vrot.slane %v1379, %v1392
      %v1394 = vcombine.low %v1386, %v1393
      %v1396 = vunpack.c.l.s4 1966171168
      %v1397 = vunpack.c.0.s8 %v1396
      %v1398 = vlaneseq
      %v1399 = vshrl.u32 %v1398, 7
      %v1400 = vsub.s32 %v1397, %v1399
      %v1401 = vrot.slane %v1394, %v1400
      %s1403 = scalar_lea.vmem [#allocation2], 36
      %1404 = vst.msk [vmem:[%s1403] ss:$8 sm:$0xf] %vm539, %v1401
      %1405 = vst.msk [vmem:[%s1403] ss:$8 sm:$0x0] %vm539, %v1401
      %s1406 = scalar_lea.vmem %s9, 37
      %v1407 = vld [vmem:[%s1406] ss:$8 sm:$0xf]
      %v1408 = vmul.f32 %v444, %v1407
      %s1409 = scalar_lea.vmem [#allocation2], 37
      %1410 = vst.msk [vmem:[%s1409] ss:$8 sm:$0xf] %vm539, %v1408
      %1411 = vst.msk [vmem:[%s1409] ss:$8 sm:$0x0] %vm539, %v1408
      %1412 = vrot.lane.b32.xlu0 %v449, 127
      %v1413 = vpop.permute.xlu0 %1412
      %1414 = vrot.lane.b32.xlu0 %v453, 127
      %v1415 = vpop.permute.xlu0 %1414
      %1416 = vrot.lane.b32.xlu0 %v457, 127
      %v1417 = vpop.permute.xlu0 %1416
      %1418 = vrot.lane.b32.xlu0 %v461, 127
      %v1419 = vpop.permute.xlu0 %1418
      %vm1420 = vcmp.lt.s32.totalorder %v475, 127
      %v1421 = vsel %vm1420, %v1417, %v1419
      %v1422 = vsel %vm1420, %v1415, %v1417
      %v1423 = vsel %vm1420, %v1413, %v1415
      %v1424 = vsel %vm1420, %v1419, %v1413
      %s1425 = scalar_lea.vmem %s9, 38
      %v1426 = vld [vmem:[%s1425] ss:$8 sm:$0xf]
      %v1428 = vlaneseq
      %v1429 = vshrl.u32 %v1428, 7
      %v1430 = vsub.s32 0, %v1429
      %v1431 = vrot.slane %v1426, %v1430
      %v1432 = vlaneseq
      %v1433 = vshrl.u32 %v1432, 7
      %v1434 = vsub.s32 1, %v1433
      %v1435 = vrot.slane %v1426, %v1434
      %v1436 = vlaneseq
      %v1437 = vshrl.u32 %v1436, 7
      %v1438 = vsub.s32 2, %v1437
      %v1439 = vrot.slane %v1426, %v1438
      %v1440 = vlaneseq
      %v1441 = vshrl.u32 %v1440, 7
      %v1442 = vsub.s32 3, %v1441
      %v1443 = vrot.slane %v1426, %v1442
      %v1448 = vmul.f32 %v1423, %v1431
      %v1449 = vmul.f32 %v1422, %v1435
      %v1450 = vmul.f32 %v1421, %v1439
      %v1451 = vmul.f32 %v1424, %v1443
      %v1456 = vcombine.low %v1448, %v1449
      %v1457 = vcombine.low %v1450, %v1451
      %v1459 = vunpack.c.l.s4 1966171168
      %v1460 = vunpack.c.0.s8 %v1459
      %v1461 = vlaneseq
      %v1462 = vshrl.u32 %v1461, 7
      %v1463 = vsub.s32 %v1460, %v1462
      %v1464 = vrot.slane %v1456, %v1463
      %v1466 = vunpack.c.l.s4 1966171168
      %v1467 = vunpack.c.0.s8 %v1466
      %v1468 = vlaneseq
      %v1469 = vshrl.u32 %v1468, 7
      %v1470 = vsub.s32 %v1467, %v1469
      %v1471 = vrot.slane %v1457, %v1470
      %v1472 = vcombine.low %v1464, %v1471
      %v1474 = vunpack.c.l.s4 1966171168
      %v1475 = vunpack.c.0.s8 %v1474
      %v1476 = vlaneseq
      %v1477 = vshrl.u32 %v1476, 7
      %v1478 = vsub.s32 %v1475, %v1477
      %v1479 = vrot.slane %v1472, %v1478
      %s1481 = scalar_lea.vmem [#allocation2], 38
      %1482 = vst.msk [vmem:[%s1481] ss:$8 sm:$0xf] %vm539, %v1479
      %1483 = vst.msk [vmem:[%s1481] ss:$8 sm:$0x0] %vm539, %v1479
      %1484 = vrot.lane.b32.xlu0 %v449, 121
      %v1485 = vpop.permute.xlu0 %1484
      %1486 = vrot.lane.b32.xlu0 %v453, 121
      %v1487 = vpop.permute.xlu0 %1486
      %1488 = vrot.lane.b32.xlu0 %v457, 121
      %v1489 = vpop.permute.xlu0 %1488
      %1490 = vrot.lane.b32.xlu0 %v461, 121
      %v1491 = vpop.permute.xlu0 %1490
      %vm1492 = vcmp.lt.s32.totalorder %v475, 121
      %v1493 = vsel %vm1492, %v1489, %v1491
      %v1494 = vsel %vm1492, %v1487, %v1489
      %v1495 = vsel %vm1492, %v1485, %v1487
      %v1496 = vsel %vm1492, %v1491, %v1485
      %s1497 = scalar_lea.vmem %s9, 39
      %v1498 = vld [vmem:[%s1497] ss:$8 sm:$0xf]
      %v1500 = vlaneseq
      %v1501 = vshrl.u32 %v1500, 7
      %v1502 = vsub.s32 0, %v1501
      %v1503 = vrot.slane %v1498, %v1502
      %v1504 = vlaneseq
      %v1505 = vshrl.u32 %v1504, 7
      %v1506 = vsub.s32 1, %v1505
      %v1507 = vrot.slane %v1498, %v1506
      %v1508 = vlaneseq
      %v1509 = vshrl.u32 %v1508, 7
      %v1510 = vsub.s32 2, %v1509
      %v1511 = vrot.slane %v1498, %v1510
      %v1512 = vlaneseq
      %v1513 = vshrl.u32 %v1512, 7
      %v1514 = vsub.s32 3, %v1513
      %v1515 = vrot.slane %v1498, %v1514
      %v1520 = vmul.f32 %v1495, %v1503
      %v1521 = vmul.f32 %v1494, %v1507
      %v1522 = vmul.f32 %v1493, %v1511
      %v1523 = vmul.f32 %v1496, %v1515
      %v1528 = vcombine.low %v1520, %v1521
      %v1529 = vcombine.low %v1522, %v1523
      %v1531 = vunpack.c.l.s4 1966171168
      %v1532 = vunpack.c.0.s8 %v1531
      %v1533 = vlaneseq
      %v1534 = vshrl.u32 %v1533, 7
      %v1535 = vsub.s32 %v1532, %v1534
      %v1536 = vrot.slane %v1528, %v1535
      %v1538 = vunpack.c.l.s4 1966171168
      %v1539 = vunpack.c.0.s8 %v1538
      %v1540 = vlaneseq
      %v1541 = vshrl.u32 %v1540, 7
      %v1542 = vsub.s32 %v1539, %v1541
      %v1543 = vrot.slane %v1529, %v1542
      %v1544 = vcombine.low %v1536, %v1543
      %v1546 = vunpack.c.l.s4 1966171168
      %v1547 = vunpack.c.0.s8 %v1546
      %v1548 = vlaneseq
      %v1549 = vshrl.u32 %v1548, 7
      %v1550 = vsub.s32 %v1547, %v1549
      %v1551 = vrot.slane %v1544, %v1550
      %s1553 = scalar_lea.vmem [#allocation2], 39
      %1554 = vst.msk [vmem:[%s1553] ss:$8 sm:$0xf] %vm539, %v1551
      %1555 = vst.msk [vmem:[%s1553] ss:$8 sm:$0x0] %vm539, %v1551
      %1556 = vrot.lane.b32.xlu0 %v449, 120
      %v1557 = vpop.permute.xlu0 %1556
      %1558 = vrot.lane.b32.xlu0 %v453, 120
      %v1559 = vpop.permute.xlu0 %1558
      %1560 = vrot.lane.b32.xlu0 %v457, 120
      %v1561 = vpop.permute.xlu0 %1560
      %1562 = vrot.lane.b32.xlu0 %v461, 120
      %v1563 = vpop.permute.xlu0 %1562
      %vm1564 = vcmp.lt.s32.totalorder %v475, 120
      %v1565 = vsel %vm1564, %v1561, %v1563
      %v1566 = vsel %vm1564, %v1559, %v1561
      %v1567 = vsel %vm1564, %v1557, %v1559
      %v1568 = vsel %vm1564, %v1563, %v1557
      %s1569 = scalar_lea.vmem %s9, 64
      %v1570 = vld [vmem:[%s1569] ss:$8 sm:$0xf]
      %v1572 = vlaneseq
      %v1573 = vshrl.u32 %v1572, 7
      %v1574 = vsub.s32 0, %v1573
      %v1575 = vrot.slane %v1570, %v1574
      %v1576 = vlaneseq
      %v1577 = vshrl.u32 %v1576, 7
      %v1578 = vsub.s32 1, %v1577
      %v1579 = vrot.slane %v1570, %v1578
      %v1580 = vlaneseq
      %v1581 = vshrl.u32 %v1580, 7
      %v1582 = vsub.s32 2, %v1581
      %v1583 = vrot.slane %v1570, %v1582
      %v1584 = vlaneseq
      %v1585 = vshrl.u32 %v1584, 7
      %v1586 = vsub.s32 3, %v1585
      %v1587 = vrot.slane %v1570, %v1586
      %v1592 = vmul.f32 %v1567, %v1575
      %v1593 = vmul.f32 %v1566, %v1579
      %v1594 = vmul.f32 %v1565, %v1583
      %v1595 = vmul.f32 %v1568, %v1587
      %v1600 = vcombine.low %v1592, %v1593
      %v1601 = vcombine.low %v1594, %v1595
      %v1603 = vunpack.c.l.s4 1966171168
      %v1604 = vunpack.c.0.s8 %v1603
      %v1605 = vlaneseq
      %v1606 = vshrl.u32 %v1605, 7
      %v1607 = vsub.s32 %v1604, %v1606
      %v1608 = vrot.slane %v1600, %v1607
      %v1610 = vunpack.c.l.s4 1966171168
      %v1611 = vunpack.c.0.s8 %v1610
      %v1612 = vlaneseq
      %v1613 = vshrl.u32 %v1612, 7
      %v1614 = vsub.s32 %v1611, %v1613
      %v1615 = vrot.slane %v1601, %v1614
      %v1616 = vcombine.low %v1608, %v1615
      %v1618 = vunpack.c.l.s4 1966171168
      %v1619 = vunpack.c.0.s8 %v1618
      %v1620 = vlaneseq
      %v1621 = vshrl.u32 %v1620, 7
      %v1622 = vsub.s32 %v1619, %v1621
      %v1623 = vrot.slane %v1616, %v1622
      %s1625 = scalar_lea.vmem [#allocation2], 64
      %1626 = vst.msk [vmem:[%s1625] ss:$8 sm:$0xf] %vm539, %v1623
      %1627 = vst.msk [vmem:[%s1625] ss:$8 sm:$0x0] %vm539, %v1623
      %1628 = vrot.lane.b32.xlu0 %v449, 119
      %v1629 = vpop.permute.xlu0 %1628
      %1630 = vrot.lane.b32.xlu0 %v453, 119
      %v1631 = vpop.permute.xlu0 %1630
      %1632 = vrot.lane.b32.xlu0 %v457, 119
      %v1633 = vpop.permute.xlu0 %1632
      %1634 = vrot.lane.b32.xlu0 %v461, 119
      %v1635 = vpop.permute.xlu0 %1634
      %vm1636 = vcmp.lt.s32.totalorder %v475, 119
      %v1637 = vsel %vm1636, %v1633, %v1635
      %v1638 = vsel %vm1636, %v1631, %v1633
      %v1639 = vsel %vm1636, %v1629, %v1631
      %v1640 = vsel %vm1636, %v1635, %v1629
      %s1641 = scalar_lea.vmem %s9, 65
      %v1642 = vld [vmem:[%s1641] ss:$8 sm:$0xf]
      %v1644 = vlaneseq
      %v1645 = vshrl.u32 %v1644, 7
      %v1646 = vsub.s32 0, %v1645
      %v1647 = vrot.slane %v1642, %v1646
      %v1648 = vlaneseq
      %v1649 = vshrl.u32 %v1648, 7
      %v1650 = vsub.s32 1, %v1649
      %v1651 = vrot.slane %v1642, %v1650
      %v1652 = vlaneseq
      %v1653 = vshrl.u32 %v1652, 7
      %v1654 = vsub.s32 2, %v1653
      %v1655 = vrot.slane %v1642, %v1654
      %v1656 = vlaneseq
      %v1657 = vshrl.u32 %v1656, 7
      %v1658 = vsub.s32 3, %v1657
      %v1659 = vrot.slane %v1642, %v1658
      %v1664 = vmul.f32 %v1639, %v1647
      %v1665 = vmul.f32 %v1638, %v1651
      %v1666 = vmul.f32 %v1637, %v1655
      %v1667 = vmul.f32 %v1640, %v1659
      %v1672 = vcombine.low %v1664, %v1665
      %v1673 = vcombine.low %v1666, %v1667
      %v1675 = vunpack.c.l.s4 1966171168
      %v1676 = vunpack.c.0.s8 %v1675
      %v1677 = vlaneseq
      %v1678 = vshrl.u32 %v1677, 7
      %v1679 = vsub.s32 %v1676, %v1678
      %v1680 = vrot.slane %v1672, %v1679
      %v1682 = vunpack.c.l.s4 1966171168
      %v1683 = vunpack.c.0.s8 %v1682
      %v1684 = vlaneseq
      %v1685 = vshrl.u32 %v1684, 7
      %v1686 = vsub.s32 %v1683, %v1685
      %v1687 = vrot.slane %v1673, %v1686
      %v1688 = vcombine.low %v1680, %v1687
      %v1690 = vunpack.c.l.s4 1966171168
      %v1691 = vunpack.c.0.s8 %v1690
      %v1692 = vlaneseq
      %v1693 = vshrl.u32 %v1692, 7
      %v1694 = vsub.s32 %v1691, %v1693
      %v1695 = vrot.slane %v1688, %v1694
      %s1697 = scalar_lea.vmem [#allocation2], 65
      %1698 = vst.msk [vmem:[%s1697] ss:$8 sm:$0xf] %vm539, %v1695
      %1699 = vst.msk [vmem:[%s1697] ss:$8 sm:$0x0] %vm539, %v1695
      %s1700 = scalar_lea.vmem %s9, 66
      %v1701 = vld [vmem:[%s1700] ss:$8 sm:$0xf]
      %v1703 = vlaneseq
      %v1704 = vshrl.u32 %v1703, 7
      %v1705 = vsub.s32 0, %v1704
      %v1706 = vrot.slane %v1701, %v1705
      %v1707 = vlaneseq
      %v1708 = vshrl.u32 %v1707, 7
      %v1709 = vsub.s32 1, %v1708
      %v1710 = vrot.slane %v1701, %v1709
      %v1711 = vlaneseq
      %v1712 = vshrl.u32 %v1711, 7
      %v1713 = vsub.s32 2, %v1712
      %v1714 = vrot.slane %v1701, %v1713
      %v1715 = vlaneseq
      %v1716 = vshrl.u32 %v1715, 7
      %v1717 = vsub.s32 3, %v1716
      %v1718 = vrot.slane %v1701, %v1717
      %v1723 = vmul.f32 %v479, %v1706
      %v1724 = vmul.f32 %v478, %v1710
      %v1725 = vmul.f32 %v477, %v1714
      %v1726 = vmul.f32 %v480, %v1718
      %v1731 = vcombine.low %v1723, %v1724
      %v1732 = vcombine.low %v1725, %v1726
      %v1734 = vunpack.c.l.s4 1966171168
      %v1735 = vunpack.c.0.s8 %v1734
      %v1736 = vlaneseq
      %v1737 = vshrl.u32 %v1736, 7
      %v1738 = vsub.s32 %v1735, %v1737
      %v1739 = vrot.slane %v1731, %v1738
      %v1741 = vunpack.c.l.s4 1966171168
      %v1742 = vunpack.c.0.s8 %v1741
      %v1743 = vlaneseq
      %v1744 = vshrl.u32 %v1743, 7
      %v1745 = vsub.s32 %v1742, %v1744
      %v1746 = vrot.slane %v1732, %v1745
      %v1747 = vcombine.low %v1739, %v1746
      %v1749 = vunpack.c.l.s4 1966171168
      %v1750 = vunpack.c.0.s8 %v1749
      %v1751 = vlaneseq
      %v1752 = vshrl.u32 %v1751, 7
      %v1753 = vsub.s32 %v1750, %v1752
      %v1754 = vrot.slane %v1747, %v1753
      %s1756 = scalar_lea.vmem [#allocation2], 66
      %1757 = vst.msk [vmem:[%s1756] ss:$8 sm:$0xf] %vm539, %v1754
      %1758 = vst.msk [vmem:[%s1756] ss:$8 sm:$0x0] %vm539, %v1754
      %s1759 = scalar_lea.vmem %s9, 67
      %v1760 = vld [vmem:[%s1759] ss:$8 sm:$0xf]
      %v1762 = vlaneseq
      %v1763 = vshrl.u32 %v1762, 7
      %v1764 = vsub.s32 0, %v1763
      %v1765 = vrot.slane %v1760, %v1764
      %v1766 = vlaneseq
      %v1767 = vshrl.u32 %v1766, 7
      %v1768 = vsub.s32 1, %v1767
      %v1769 = vrot.slane %v1760, %v1768
      %v1770 = vlaneseq
      %v1771 = vshrl.u32 %v1770, 7
      %v1772 = vsub.s32 2, %v1771
      %v1773 = vrot.slane %v1760, %v1772
      %v1774 = vlaneseq
      %v1775 = vshrl.u32 %v1774, 7
      %v1776 = vsub.s32 3, %v1775
      %v1777 = vrot.slane %v1760, %v1776
      %v1782 = vmul.f32 %v553, %v1765
      %v1783 = vmul.f32 %v552, %v1769
      %v1784 = vmul.f32 %v551, %v1773
      %v1785 = vmul.f32 %v554, %v1777
      %v1790 = vcombine.low %v1782, %v1783
      %v1791 = vcombine.low %v1784, %v1785
      %v1793 = vunpack.c.l.s4 1966171168
      %v1794 = vunpack.c.0.s8 %v1793
      %v1795 = vlaneseq
      %v1796 = vshrl.u32 %v1795, 7
      %v1797 = vsub.s32 %v1794, %v1796
      %v1798 = vrot.slane %v1790, %v1797
      %v1800 = vunpack.c.l.s4 1966171168
      %v1801 = vunpack.c.0.s8 %v1800
      %v1802 = vlaneseq
      %v1803 = vshrl.u32 %v1802, 7
      %v1804 = vsub.s32 %v1801, %v1803
      %v1805 = vrot.slane %v1791, %v1804
      %v1806 = vcombine.low %v1798, %v1805
      %v1808 = vunpack.c.l.s4 1966171168
      %v1809 = vunpack.c.0.s8 %v1808
      %v1810 = vlaneseq
      %v1811 = vshrl.u32 %v1810, 7
      %v1812 = vsub.s32 %v1809, %v1811
      %v1813 = vrot.slane %v1806, %v1812
      %s1815 = scalar_lea.vmem [#allocation2], 67
      %1816 = vst.msk [vmem:[%s1815] ss:$8 sm:$0xf] %vm539, %v1813
      %1817 = vst.msk [vmem:[%s1815] ss:$8 sm:$0x0] %vm539, %v1813
      %s1818 = scalar_lea.vmem %s9, 68
      %v1819 = vld [vmem:[%s1818] ss:$8 sm:$0xf]
      %v1821 = vlaneseq
      %v1822 = vshrl.u32 %v1821, 7
      %v1823 = vsub.s32 0, %v1822
      %v1824 = vrot.slane %v1819, %v1823
      %v1825 = vlaneseq
      %v1826 = vshrl.u32 %v1825, 7
      %v1827 = vsub.s32 1, %v1826
      %v1828 = vrot.slane %v1819, %v1827
      %v1829 = vlaneseq
      %v1830 = vshrl.u32 %v1829, 7
      %v1831 = vsub.s32 2, %v1830
      %v1832 = vrot.slane %v1819, %v1831
      %v1833 = vlaneseq
      %v1834 = vshrl.u32 %v1833, 7
      %v1835 = vsub.s32 3, %v1834
      %v1836 = vrot.slane %v1819, %v1835
      %v1841 = vmul.f32 %v625, %v1824
      %v1842 = vmul.f32 %v624, %v1828
      %v1843 = vmul.f32 %v623, %v1832
      %v1844 = vmul.f32 %v626, %v1836
      %v1849 = vcombine.low %v1841, %v1842
      %v1850 = vcombine.low %v1843, %v1844
      %v1852 = vunpack.c.l.s4 1966171168
      %v1853 = vunpack.c.0.s8 %v1852
      %v1854 = vlaneseq
      %v1855 = vshrl.u32 %v1854, 7
      %v1856 = vsub.s32 %v1853, %v1855
      %v1857 = vrot.slane %v1849, %v1856
      %v1859 = vunpack.c.l.s4 1966171168
      %v1860 = vunpack.c.0.s8 %v1859
      %v1861 = vlaneseq
      %v1862 = vshrl.u32 %v1861, 7
      %v1863 = vsub.s32 %v1860, %v1862
      %v1864 = vrot.slane %v1850, %v1863
      %v1865 = vcombine.low %v1857, %v1864
      %v1867 = vunpack.c.l.s4 1966171168
      %v1868 = vunpack.c.0.s8 %v1867
      %v1869 = vlaneseq
      %v1870 = vshrl.u32 %v1869, 7
      %v1871 = vsub.s32 %v1868, %v1870
      %v1872 = vrot.slane %v1865, %v1871
      %s1874 = scalar_lea.vmem [#allocation2], 68
      %1875 = vst.msk [vmem:[%s1874] ss:$8 sm:$0xf] %vm539, %v1872
      %1876 = vst.msk [vmem:[%s1874] ss:$8 sm:$0x0] %vm539, %v1872
      %s1877 = scalar_lea.vmem %s9, 69
      %v1878 = vld [vmem:[%s1877] ss:$8 sm:$0xf]
      %v1880 = vlaneseq
      %v1881 = vshrl.u32 %v1880, 7
      %v1882 = vsub.s32 0, %v1881
      %v1883 = vrot.slane %v1878, %v1882
      %v1884 = vlaneseq
      %v1885 = vshrl.u32 %v1884, 7
      %v1886 = vsub.s32 1, %v1885
      %v1887 = vrot.slane %v1878, %v1886
      %v1888 = vlaneseq
      %v1889 = vshrl.u32 %v1888, 7
      %v1890 = vsub.s32 2, %v1889
      %v1891 = vrot.slane %v1878, %v1890
      %v1892 = vlaneseq
      %v1893 = vshrl.u32 %v1892, 7
      %v1894 = vsub.s32 3, %v1893
      %v1895 = vrot.slane %v1878, %v1894
      %v1900 = vmul.f32 %v697, %v1883
      %v1901 = vmul.f32 %v696, %v1887
      %v1902 = vmul.f32 %v695, %v1891
      %v1903 = vmul.f32 %v698, %v1895
      %v1908 = vcombine.low %v1900, %v1901
      %v1909 = vcombine.low %v1902, %v1903
      %v1911 = vunpack.c.l.s4 1966171168
      %v1912 = vunpack.c.0.s8 %v1911
      %v1913 = vlaneseq
      %v1914 = vshrl.u32 %v1913, 7
      %v1915 = vsub.s32 %v1912, %v1914
      %v1916 = vrot.slane %v1908, %v1915
      %v1918 = vunpack.c.l.s4 1966171168
      %v1919 = vunpack.c.0.s8 %v1918
      %v1920 = vlaneseq
      %v1921 = vshrl.u32 %v1920, 7
      %v1922 = vsub.s32 %v1919, %v1921
      %v1923 = vrot.slane %v1909, %v1922
      %v1924 = vcombine.low %v1916, %v1923
      %v1926 = vunpack.c.l.s4 1966171168
      %v1927 = vunpack.c.0.s8 %v1926
      %v1928 = vlaneseq
      %v1929 = vshrl.u32 %v1928, 7
      %v1930 = vsub.s32 %v1927, %v1929
      %v1931 = vrot.slane %v1924, %v1930
      %s1933 = scalar_lea.vmem [#allocation2], 69
      %1934 = vst.msk [vmem:[%s1933] ss:$8 sm:$0xf] %vm539, %v1931
      %1935 = vst.msk [vmem:[%s1933] ss:$8 sm:$0x0] %vm539, %v1931
      %s1936 = scalar_lea.vmem %s9, 70
      %v1937 = vld [vmem:[%s1936] ss:$8 sm:$0xf]
      %v1939 = vlaneseq
      %v1940 = vshrl.u32 %v1939, 7
      %v1941 = vsub.s32 0, %v1940
      %v1942 = vrot.slane %v1937, %v1941
      %v1943 = vlaneseq
      %v1944 = vshrl.u32 %v1943, 7
      %v1945 = vsub.s32 1, %v1944
      %v1946 = vrot.slane %v1937, %v1945
      %v1947 = vlaneseq
      %v1948 = vshrl.u32 %v1947, 7
      %v1949 = vsub.s32 2, %v1948
      %v1950 = vrot.slane %v1937, %v1949
      %v1951 = vlaneseq
      %v1952 = vshrl.u32 %v1951, 7
      %v1953 = vsub.s32 3, %v1952
      %v1954 = vrot.slane %v1937, %v1953
      %v1959 = vmul.f32 %v769, %v1942
      %v1960 = vmul.f32 %v768, %v1946
      %v1961 = vmul.f32 %v767, %v1950
      %v1962 = vmul.f32 %v770, %v1954
      %v1967 = vcombine.low %v1959, %v1960
      %v1968 = vcombine.low %v1961, %v1962
      %v1970 = vunpack.c.l.s4 1966171168
      %v1971 = vunpack.c.0.s8 %v1970
      %v1972 = vlaneseq
      %v1973 = vshrl.u32 %v1972, 7
      %v1974 = vsub.s32 %v1971, %v1973
      %v1975 = vrot.slane %v1967, %v1974
      %v1977 = vunpack.c.l.s4 1966171168
      %v1978 = vunpack.c.0.s8 %v1977
      %v1979 = vlaneseq
      %v1980 = vshrl.u32 %v1979, 7
      %v1981 = vsub.s32 %v1978, %v1980
      %v1982 = vrot.slane %v1968, %v1981
      %v1983 = vcombine.low %v1975, %v1982
      %v1985 = vunpack.c.l.s4 1966171168
      %v1986 = vunpack.c.0.s8 %v1985
      %v1987 = vlaneseq
      %v1988 = vshrl.u32 %v1987, 7
      %v1989 = vsub.s32 %v1986, %v1988
      %v1990 = vrot.slane %v1983, %v1989
      %s1992 = scalar_lea.vmem [#allocation2], 70
      %1993 = vst.msk [vmem:[%s1992] ss:$8 sm:$0xf] %vm539, %v1990
      %1994 = vst.msk [vmem:[%s1992] ss:$8 sm:$0x0] %vm539, %v1990
      %s1995 = scalar_lea.vmem %s9, 71
      %v1996 = vld [vmem:[%s1995] ss:$8 sm:$0xf]
      %v1998 = vlaneseq
      %v1999 = vshrl.u32 %v1998, 7
      %v2000 = vsub.s32 0, %v1999
      %v2001 = vrot.slane %v1996, %v2000
      %v2002 = vlaneseq
      %v2003 = vshrl.u32 %v2002, 7
      %v2004 = vsub.s32 1, %v2003
      %v2005 = vrot.slane %v1996, %v2004
      %v2006 = vlaneseq
      %v2007 = vshrl.u32 %v2006, 7
      %v2008 = vsub.s32 2, %v2007
      %v2009 = vrot.slane %v1996, %v2008
      %v2010 = vlaneseq
      %v2011 = vshrl.u32 %v2010, 7
      %v2012 = vsub.s32 3, %v2011
      %v2013 = vrot.slane %v1996, %v2012
      %v2018 = vmul.f32 %v841, %v2001
      %v2019 = vmul.f32 %v840, %v2005
      %v2020 = vmul.f32 %v839, %v2009
      %v2021 = vmul.f32 %v842, %v2013
      %v2026 = vcombine.low %v2018, %v2019
      %v2027 = vcombine.low %v2020, %v2021
      %v2029 = vunpack.c.l.s4 1966171168
      %v2030 = vunpack.c.0.s8 %v2029
      %v2031 = vlaneseq
      %v2032 = vshrl.u32 %v2031, 7
      %v2033 = vsub.s32 %v2030, %v2032
      %v2034 = vrot.slane %v2026, %v2033
      %v2036 = vunpack.c.l.s4 1966171168
      %v2037 = vunpack.c.0.s8 %v2036
      %v2038 = vlaneseq
      %v2039 = vshrl.u32 %v2038, 7
      %v2040 = vsub.s32 %v2037, %v2039
      %v2041 = vrot.slane %v2027, %v2040
      %v2042 = vcombine.low %v2034, %v2041
      %v2044 = vunpack.c.l.s4 1966171168
      %v2045 = vunpack.c.0.s8 %v2044
      %v2046 = vlaneseq
      %v2047 = vshrl.u32 %v2046, 7
      %v2048 = vsub.s32 %v2045, %v2047
      %v2049 = vrot.slane %v2042, %v2048
      %s2051 = scalar_lea.vmem [#allocation2], 71
      %2052 = vst.msk [vmem:[%s2051] ss:$8 sm:$0xf] %vm539, %v2049
      %2053 = vst.msk [vmem:[%s2051] ss:$8 sm:$0x0] %vm539, %v2049
      %s2054 = scalar_lea.vmem %s9, 96
      %v2055 = vld [vmem:[%s2054] ss:$8 sm:$0xf]
      %v2057 = vlaneseq
      %v2058 = vshrl.u32 %v2057, 7
      %v2059 = vsub.s32 0, %v2058
      %v2060 = vrot.slane %v2055, %v2059
      %v2061 = vlaneseq
      %v2062 = vshrl.u32 %v2061, 7
      %v2063 = vsub.s32 1, %v2062
      %v2064 = vrot.slane %v2055, %v2063
      %v2065 = vlaneseq
      %v2066 = vshrl.u32 %v2065, 7
      %v2067 = vsub.s32 2, %v2066
      %v2068 = vrot.slane %v2055, %v2067
      %v2069 = vlaneseq
      %v2070 = vshrl.u32 %v2069, 7
      %v2071 = vsub.s32 3, %v2070
      %v2072 = vrot.slane %v2055, %v2071
      %v2077 = vmul.f32 %v913, %v2060
      %v2078 = vmul.f32 %v912, %v2064
      %v2079 = vmul.f32 %v911, %v2068
      %v2080 = vmul.f32 %v914, %v2072
      %v2085 = vcombine.low %v2077, %v2078
      %v2086 = vcombine.low %v2079, %v2080
      %v2088 = vunpack.c.l.s4 1966171168
      %v2089 = vunpack.c.0.s8 %v2088
      %v2090 = vlaneseq
      %v2091 = vshrl.u32 %v2090, 7
      %v2092 = vsub.s32 %v2089, %v2091
      %v2093 = vrot.slane %v2085, %v2092
      %v2095 = vunpack.c.l.s4 1966171168
      %v2096 = vunpack.c.0.s8 %v2095
      %v2097 = vlaneseq
      %v2098 = vshrl.u32 %v2097, 7
      %v2099 = vsub.s32 %v2096, %v2098
      %v2100 = vrot.slane %v2086, %v2099
      %v2101 = vcombine.low %v2093, %v2100
      %v2103 = vunpack.c.l.s4 1966171168
      %v2104 = vunpack.c.0.s8 %v2103
      %v2105 = vlaneseq
      %v2106 = vshrl.u32 %v2105, 7
      %v2107 = vsub.s32 %v2104, %v2106
      %v2108 = vrot.slane %v2101, %v2107
      %s2110 = scalar_lea.vmem [#allocation2], 96
      %2111 = vst.msk [vmem:[%s2110] ss:$8 sm:$0xf] %vm539, %v2108
      %2112 = vst.msk [vmem:[%s2110] ss:$8 sm:$0x0] %vm539, %v2108
      %s2113 = scalar_lea.vmem %s9, 97
      %v2114 = vld [vmem:[%s2113] ss:$8 sm:$0xf]
      %v2116 = vlaneseq
      %v2117 = vshrl.u32 %v2116, 7
      %v2118 = vsub.s32 0, %v2117
      %v2119 = vrot.slane %v2114, %v2118
      %v2120 = vlaneseq
      %v2121 = vshrl.u32 %v2120, 7
      %v2122 = vsub.s32 1, %v2121
      %v2123 = vrot.slane %v2114, %v2122
      %v2124 = vlaneseq
      %v2125 = vshrl.u32 %v2124, 7
      %v2126 = vsub.s32 2, %v2125
      %v2127 = vrot.slane %v2114, %v2126
      %v2128 = vlaneseq
      %v2129 = vshrl.u32 %v2128, 7
      %v2130 = vsub.s32 3, %v2129
      %v2131 = vrot.slane %v2114, %v2130
      %v2136 = vmul.f32 %v985, %v2119
      %v2137 = vmul.f32 %v984, %v2123
      %v2138 = vmul.f32 %v983, %v2127
      %v2139 = vmul.f32 %v986, %v2131
      %v2144 = vcombine.low %v2136, %v2137
      %v2145 = vcombine.low %v2138, %v2139
      %v2147 = vunpack.c.l.s4 1966171168
      %v2148 = vunpack.c.0.s8 %v2147
      %v2149 = vlaneseq
      %v2150 = vshrl.u32 %v2149, 7
      %v2151 = vsub.s32 %v2148, %v2150
      %v2152 = vrot.slane %v2144, %v2151
      %v2154 = vunpack.c.l.s4 1966171168
      %v2155 = vunpack.c.0.s8 %v2154
      %v2156 = vlaneseq
      %v2157 = vshrl.u32 %v2156, 7
      %v2158 = vsub.s32 %v2155, %v2157
      %v2159 = vrot.slane %v2145, %v2158
      %v2160 = vcombine.low %v2152, %v2159
      %v2162 = vunpack.c.l.s4 1966171168
      %v2163 = vunpack.c.0.s8 %v2162
      %v2164 = vlaneseq
      %v2165 = vshrl.u32 %v2164, 7
      %v2166 = vsub.s32 %v2163, %v2165
      %v2167 = vrot.slane %v2160, %v2166
      %s2169 = scalar_lea.vmem [#allocation2], 97
      %2170 = vst.msk [vmem:[%s2169] ss:$8 sm:$0xf] %vm539, %v2167
      %2171 = vst.msk [vmem:[%s2169] ss:$8 sm:$0x0] %vm539, %v2167
      %s2172 = scalar_lea.vmem %s9, 98
      %v2173 = vld [vmem:[%s2172] ss:$8 sm:$0xf]
      %v2175 = vlaneseq
      %v2176 = vshrl.u32 %v2175, 7
      %v2177 = vsub.s32 0, %v2176
      %v2178 = vrot.slane %v2173, %v2177
      %v2179 = vlaneseq
      %v2180 = vshrl.u32 %v2179, 7
      %v2181 = vsub.s32 1, %v2180
      %v2182 = vrot.slane %v2173, %v2181
      %v2183 = vlaneseq
      %v2184 = vshrl.u32 %v2183, 7
      %v2185 = vsub.s32 2, %v2184
      %v2186 = vrot.slane %v2173, %v2185
      %v2187 = vlaneseq
      %v2188 = vshrl.u32 %v2187, 7
      %v2189 = vsub.s32 3, %v2188
      %v2190 = vrot.slane %v2173, %v2189
      %v2195 = vmul.f32 %v1057, %v2178
      %v2196 = vmul.f32 %v1056, %v2182
      %v2197 = vmul.f32 %v1055, %v2186
      %v2198 = vmul.f32 %v1058, %v2190
      %v2203 = vcombine.low %v2195, %v2196
      %v2204 = vcombine.low %v2197, %v2198
      %v2206 = vunpack.c.l.s4 1966171168
      %v2207 = vunpack.c.0.s8 %v2206
      %v2208 = vlaneseq
      %v2209 = vshrl.u32 %v2208, 7
      %v2210 = vsub.s32 %v2207, %v2209
      %v2211 = vrot.slane %v2203, %v2210
      %v2213 = vunpack.c.l.s4 1966171168
      %v2214 = vunpack.c.0.s8 %v2213
      %v2215 = vlaneseq
      %v2216 = vshrl.u32 %v2215, 7
      %v2217 = vsub.s32 %v2214, %v2216
      %v2218 = vrot.slane %v2204, %v2217
      %v2219 = vcombine.low %v2211, %v2218
      %v2221 = vunpack.c.l.s4 1966171168
      %v2222 = vunpack.c.0.s8 %v2221
      %v2223 = vlaneseq
      %v2224 = vshrl.u32 %v2223, 7
      %v2225 = vsub.s32 %v2222, %v2224
      %v2226 = vrot.slane %v2219, %v2225
      %s2228 = scalar_lea.vmem [#allocation2], 98
      %2229 = vst.msk [vmem:[%s2228] ss:$8 sm:$0xf] %vm539, %v2226
      %2230 = vst.msk [vmem:[%s2228] ss:$8 sm:$0x0] %vm539, %v2226
      %v2231 = vld [vmem:[%s1] sm:$0xff]
      %v2232 = vld [vmem:[#allocation2] sm:$0xff]
      %v2233 = vld [vmem:[#allocation2 + $0x8] sm:$0xff]
      %v2234 = vld [vmem:[#allocation2 + $0x10] sm:$0xff]
      %v2235 = vld [vmem:[#allocation2 + $0x18] sm:$0xff]
      %v2236 = vld [vmem:[#allocation2 + $0x20] sm:$0xff]
      %v2237 = vld [vmem:[#allocation2 + $0x28] sm:$0xff]
      %v2238 = vld [vmem:[#allocation2 + $0x30] sm:$0xff]
      %v2239 = vld [vmem:[#allocation2 + $0x38] sm:$0xff]
      %v2240 = vld [vmem:[#allocation2 + $0x40] sm:$0xff]
      %v2241 = vld [vmem:[#allocation2 + $0x48] sm:$0xff]
      %v2242 = vld [vmem:[#allocation2 + $0x50] sm:$0xff]
      %v2243 = vld [vmem:[#allocation2 + $0x58] sm:$0xff]
      %v2244 = vld [vmem:[#allocation2 + $0x60] sm:$0xff]
      %v2245 = vld [vmem:[#allocation2 + $0x68] sm:$0xff]
      %v2246 = vld [vmem:[#allocation2 + $0x70] sm:$0xff]
      %v2247 = vld [vmem:[#allocation2 + $0x78] sm:$0xff]
      %v2248 = vld [vmem:[%s2] sm:$0xff]
      %2250 = vset.pattern.permute.xlu0 0
      %2251 = vperm.xlu0 %2250, %v2248
      %v2252 = vpop.permute.xlu0 %2251
      %vm2254 = vcmask 261120
      %v2256 = vsel %vm2254, %v2231, 0
      %2258 = vmatprep.subr.mxu0 0.0
      %2259 = vmatpush1.msra.mxu0 0.0
      %2260 = vmatprep.subr.mxu0 0.0
      %2261 = vmatpush1.msra.mxu0 0.0
      %2262 = vmatprep.subr.mxu0 0.0
      %2263 = vmatpush1.msra.mxu0 0.0
      %2264 = vmatprep.subr.mxu0 0.0
      %2265 = vmatpush1.msra.mxu0 0.0
      %2266 = vmatprep.subr.mxu0 0.0
      %2267 = vmatpush1.msra.mxu0 0.0
      %2268 = vmatprep.subr.mxu0 0.0
      %2269 = vmatpush1.msra.mxu0 0.0
      %2270 = vmatprep.subr.mxu0 0.0
      %2271 = vmatpush1.msra.mxu0 0.0
      %2272 = vmatprep.subr.mxu0 0.0
      %2273 = vmatpush1.msra.mxu0 0.0
      %2274 = vmatprep.subr.mxu0 0.0
      %2275 = vmatpush1.msra.mxu0 0.0
      %2276 = vmatprep.subr.mxu0 0.0
      %2277 = vmatpush1.msra.mxu0 0.0
      %2278 = vmatprep.subr.mxu0 0.0
      %2279 = vmatpush1.msra.mxu0 0.0
      %2280 = vmatprep.subr.mxu0 0.0
      %2281 = vmatpush1.msra.mxu0 0.0
      %2282 = vmatprep.subr.mxu0 %v2245
      %2283 = vmatpush1.msra.mxu0 %v2244
      %2284 = vmatprep.subr.mxu0 %v2241
      %2285 = vmatpush1.msra.mxu0 %v2240
      %2286 = vmatprep.subr.mxu0 %v2237
      %2287 = vmatpush1.msra.mxu0 %v2236
      %2288 = vmatprep.subr.mxu0 %v2233
      %2289 = vmatpush1.msra.mxu0 %v2232
      %2290 = vmatprep.subr.mxu0 0.0
      %2291 = vmatpush2.msra.mxu0 0.0
      %2292 = vmatprep.subr.mxu0 0.0
      %2293 = vmatpush2.msra.mxu0 0.0
      %2294 = vmatprep.subr.mxu0 0.0
      %2295 = vmatpush2.msra.mxu0 0.0
      %2296 = vmatprep.subr.mxu0 0.0
      %2297 = vmatpush2.msra.mxu0 0.0
      %2298 = vmatprep.subr.mxu0 0.0
      %2299 = vmatpush2.msra.mxu0 0.0
      %2300 = vmatprep.subr.mxu0 0.0
      %2301 = vmatpush2.msra.mxu0 0.0
      %2302 = vmatprep.subr.mxu0 0.0
      %2303 = vmatpush2.msra.mxu0 0.0
      %2304 = vmatprep.subr.mxu0 0.0
      %2305 = vmatpush2.msra.mxu0 0.0
      %2306 = vmatprep.subr.mxu0 0.0
      %2307 = vmatpush2.msra.mxu0 0.0
      %2308 = vmatprep.subr.mxu0 0.0
      %2309 = vmatpush2.msra.mxu0 0.0
      %2310 = vmatprep.subr.mxu0 0.0
      %2311 = vmatpush2.msra.mxu0 0.0
      %2312 = vmatprep.subr.mxu0 0.0
      %2313 = vmatpush2.msra.mxu0 0.0
      %2314 = vmatprep.subr.mxu0 0.0
      %2315 = vmatpush2.msra.mxu0 0.0
      %2316 = vmatprep.subr.mxu0 0.0
      %2317 = vmatpush2.msra.mxu0 0.0
      %2318 = vmatprep.subr.mxu0 0.0
      %2319 = vmatpush2.msra.mxu0 0.0
      %2320 = vmatprep.subr.mxu0 0.0
      %2321 = vmatpush2.msra.mxu0 0.0
      %2322 = vmatprep.mubr.f32.mxu0 0.0
      %2323 = vmatmul.mubr.f32.gmra.mxu0 %v2256
      %v2324 = vpop.f32.mrf.mxu0
      %v2325 = vadd.f32 %v2252, %v2324
      %v2326 = vpop.f32.mrf.mxu0
      %v2327 = vadd.f32 %v2252, %v2326
      %2328 = vdwg.mxu0
      %2329 = vmatprep.subr.mxu0 0.0
      %2330 = vmatpush1.msra.mxu0 0.0
      %2331 = vmatprep.subr.mxu0 0.0
      %2332 = vmatpush1.msra.mxu0 0.0
      %2333 = vmatprep.subr.mxu0 0.0
      %2334 = vmatpush1.msra.mxu0 0.0
      %2335 = vmatprep.subr.mxu0 0.0
      %2336 = vmatpush1.msra.mxu0 0.0
      %2337 = vmatprep.subr.mxu0 0.0
      %2338 = vmatpush1.msra.mxu0 0.0
      %2339 = vmatprep.subr.mxu0 0.0
      %2340 = vmatpush1.msra.mxu0 0.0
      %2341 = vmatprep.subr.mxu0 0.0
      %2342 = vmatpush1.msra.mxu0 0.0
      %2343 = vmatprep.subr.mxu0 0.0
      %2344 = vmatpush1.msra.mxu0 0.0
      %2345 = vmatprep.subr.mxu0 0.0
      %2346 = vmatpush1.msra.mxu0 0.0
      %2347 = vmatprep.subr.mxu0 0.0
      %2348 = vmatpush1.msra.mxu0 0.0
      %2349 = vmatprep.subr.mxu0 0.0
      %2350 = vmatpush1.msra.mxu0 0.0
      %2351 = vmatprep.subr.mxu0 0.0
      %2352 = vmatpush1.msra.mxu0 0.0
      %2353 = vmatprep.subr.mxu0 %v2247
      %2354 = vmatpush1.msra.mxu0 %v2246
      %2355 = vmatprep.subr.mxu0 %v2243
      %2356 = vmatpush1.msra.mxu0 %v2242
      %2357 = vmatprep.subr.mxu0 %v2239
      %2358 = vmatpush1.msra.mxu0 %v2238
      %2359 = vmatprep.subr.mxu0 %v2235
      %2360 = vmatpush1.msra.mxu0 %v2234
      %2361 = vmatprep.subr.mxu0 0.0
      %2362 = vmatpush2.msra.mxu0 0.0
      %2363 = vmatprep.subr.mxu0 0.0
      %2364 = vmatpush2.msra.mxu0 0.0
      %2365 = vmatprep.subr.mxu0 0.0
      %2366 = vmatpush2.msra.mxu0 0.0
      %2367 = vmatprep.subr.mxu0 0.0
      %2368 = vmatpush2.msra.mxu0 0.0
      %2369 = vmatprep.subr.mxu0 0.0
      %2370 = vmatpush2.msra.mxu0 0.0
      %2371 = vmatprep.subr.mxu0 0.0
      %2372 = vmatpush2.msra.mxu0 0.0
      %2373 = vmatprep.subr.mxu0 0.0
      %2374 = vmatpush2.msra.mxu0 0.0
      %2375 = vmatprep.subr.mxu0 0.0
      %2376 = vmatpush2.msra.mxu0 0.0
      %2377 = vmatprep.subr.mxu0 0.0
      %2378 = vmatpush2.msra.mxu0 0.0
      %2379 = vmatprep.subr.mxu0 0.0
      %2380 = vmatpush2.msra.mxu0 0.0
      %2381 = vmatprep.subr.mxu0 0.0
      %2382 = vmatpush2.msra.mxu0 0.0
      %2383 = vmatprep.subr.mxu0 0.0
      %2384 = vmatpush2.msra.mxu0 0.0
      %2385 = vmatprep.subr.mxu0 0.0
      %2386 = vmatpush2.msra.mxu0 0.0
      %2387 = vmatprep.subr.mxu0 0.0
      %2388 = vmatpush2.msra.mxu0 0.0
      %2389 = vmatprep.subr.mxu0 0.0
      %2390 = vmatpush2.msra.mxu0 0.0
      %2391 = vmatprep.subr.mxu0 0.0
      %2392 = vmatpush2.msra.mxu0 0.0
      %2393 = vmatprep.mubr.f32.mxu0 0.0
      %2394 = vmatmul.mubr.f32.gmra.mxu0 %v2256
      %v2395 = vpop.f32.mrf.mxu0
      %v2396 = vadd.f32 %v2252, %v2395
      %v2397 = vpop.f32.mrf.mxu0
      %v2398 = vadd.f32 %v2252, %v2397
      %2399 = vdwg.mxu0
      %v2400 = vmax.f32 %v2325, 0.0
      %v2401 = vmax.f32 %v2327, 0.0
      %v2402 = vmax.f32 %v2396, 0.0
      %v2403 = vmax.f32 %v2398, 0.0
      %v2404 = vld [vmem:[%s1406] ss:$8 sm:$0xf]
      %v2406 = vlaneseq
      %v2407 = vshrl.u32 %v2406, 7
      %v2408 = vsub.s32 0, %v2407
      %v2409 = vrot.slane %v2404, %v2408
      %v2410 = vlaneseq
      %v2411 = vshrl.u32 %v2410, 7
      %v2412 = vsub.s32 1, %v2411
      %v2413 = vrot.slane %v2404, %v2412
      %v2414 = vlaneseq
      %v2415 = vshrl.u32 %v2414, 7
      %v2416 = vsub.s32 2, %v2415
      %v2417 = vrot.slane %v2404, %v2416
      %v2418 = vlaneseq
      %v2419 = vshrl.u32 %v2418, 7
      %v2420 = vsub.s32 3, %v2419
      %v2421 = vrot.slane %v2404, %v2420
      %v2426 = vmul.f32 %v2400, %v2409
      %v2427 = vmul.f32 %v2401, %v2413
      %v2428 = vmul.f32 %v2402, %v2417
      %v2429 = vmul.f32 %v2403, %v2421
      %2430 = vrot.lane.b32.xlu0 %v2426, 127
      %v2431 = vpop.permute.xlu0 %2430
      %2432 = vrot.lane.b32.xlu0 %v2427, 127
      %v2433 = vpop.permute.xlu0 %2432
      %2434 = vrot.lane.b32.xlu0 %v2428, 127
      %v2435 = vpop.permute.xlu0 %2434
      %2436 = vrot.lane.b32.xlu0 %v2429, 127
      %v2437 = vpop.permute.xlu0 %2436
      %v2438 = vsel %vm1420, %v2435, %v2437
      %v2439 = vsel %vm1420, %v2433, %v2435
      %v2440 = vsel %vm1420, %v2431, %v2433
      %v2441 = vsel %vm1420, %v2437, %v2431
      %vm2442 = vcmp.gt.f32.partialorder %v2440, %v2426
      %vm2443 = vcmp.gt.f32.partialorder %v2439, %v2427
      %vm2444 = vcmp.gt.f32.partialorder %v2438, %v2428
      %vm2445 = vcmp.gt.f32.partialorder %v2441, %v2429
      %v2446 = vsel %vm2442, 1, 0
      %v2447 = vsel %vm2443, 1, 0
      %v2448 = vsel %vm2444, 1, 0
      %v2449 = vsel %vm2445, 1, 0
      %v2450 = vcvt.s32.f32 %v2446
      %v2451 = vcvt.s32.f32 %v2447
      %v2452 = vcvt.s32.f32 %v2448
      %v2453 = vcvt.s32.f32 %v2449
      %v2454 = vmax.f32 %v2426, %v2440
      %v2455 = vmax.f32 %v2427, %v2439
      %v2456 = vmax.f32 %v2428, %v2438
      %v2457 = vmax.f32 %v2429, %v2441
      %2458 = vrot.lane.b32.xlu0 %v2454, 120
      %v2459 = vpop.permute.xlu0 %2458
      %2460 = vrot.lane.b32.xlu0 %v2455, 120
      %v2461 = vpop.permute.xlu0 %2460
      %2462 = vrot.lane.b32.xlu0 %v2456, 120
      %v2463 = vpop.permute.xlu0 %2462
      %2464 = vrot.lane.b32.xlu0 %v2457, 120
      %v2465 = vpop.permute.xlu0 %2464
      %v2466 = vsel %vm1564, %v2463, %v2465
      %v2467 = vsel %vm1564, %v2461, %v2463
      %v2468 = vsel %vm1564, %v2459, %v2461
      %v2469 = vsel %vm1564, %v2465, %v2459
      %2470 = vrot.lane.b32.xlu0 %v2450, 120
      %v2471 = vpop.permute.xlu0 %2470
      %2472 = vrot.lane.b32.xlu0 %v2451, 120
      %v2473 = vpop.permute.xlu0 %2472
      %2474 = vrot.lane.b32.xlu0 %v2452, 120
      %v2475 = vpop.permute.xlu0 %2474
      %2476 = vrot.lane.b32.xlu0 %v2453, 120
      %v2477 = vpop.permute.xlu0 %2476
      %v2478 = vsel %vm1564, %v2475, %v2477
      %v2479 = vsel %vm1564, %v2473, %v2475
      %v2480 = vsel %vm1564, %v2471, %v2473
      %v2481 = vsel %vm1564, %v2477, %v2471
      %vm2482 = vcmp.gt.f32.partialorder %v2468, %v2454
      %vm2483 = vcmp.gt.f32.partialorder %v2467, %v2455
      %vm2484 = vcmp.gt.f32.partialorder %v2466, %v2456
      %vm2485 = vcmp.gt.f32.partialorder %v2469, %v2457
      %v2486 = vsel %vm2482, 1, 0
      %v2487 = vsel %vm2483, 1, 0
      %v2488 = vsel %vm2484, 1, 0
      %v2489 = vsel %vm2485, 1, 0
      %v2490 = vcvt.s32.f32 %v2486
      %v2491 = vcvt.s32.f32 %v2487
      %v2492 = vcvt.s32.f32 %v2488
      %v2493 = vcvt.s32.f32 %v2489
      %v2494 = vsel %vm2482, %v2480, %v2450
      %v2495 = vsel %vm2483, %v2479, %v2451
      %v2496 = vsel %vm2484, %v2478, %v2452
      %v2497 = vsel %vm2485, %v2481, %v2453
      %v2498 = vmax.f32 %v2454, %v2468
      %v2499 = vmax.f32 %v2455, %v2467
      %v2500 = vmax.f32 %v2456, %v2466
      %v2501 = vmax.f32 %v2457, %v2469
      %2502 = vrot.lane.b32.xlu0 %v2498, 64
      %v2503 = vpop.permute.xlu0 %2502
      %2504 = vrot.lane.b32.xlu0 %v2499, 64
      %v2505 = vpop.permute.xlu0 %2504
      %2506 = vrot.lane.b32.xlu0 %v2500, 64
      %v2507 = vpop.permute.xlu0 %2506
      %2508 = vrot.lane.b32.xlu0 %v2501, 64
      %v2509 = vpop.permute.xlu0 %2508
      %v2510 = vsel %vm766, %v2507, %v2509
      %v2511 = vsel %vm766, %v2505, %v2507
      %v2512 = vsel %vm766, %v2503, %v2505
      %v2513 = vsel %vm766, %v2509, %v2503
      %2514 = vrot.lane.b32.xlu0 %v2494, 64
      %v2515 = vpop.permute.xlu0 %2514
      %2516 = vrot.lane.b32.xlu0 %v2495, 64
      %v2517 = vpop.permute.xlu0 %2516
      %2518 = vrot.lane.b32.xlu0 %v2496, 64
      %v2519 = vpop.permute.xlu0 %2518
      %2520 = vrot.lane.b32.xlu0 %v2497, 64
      %v2521 = vpop.permute.xlu0 %2520
      %v2522 = vsel %vm766, %v2519, %v2521
      %v2523 = vsel %vm766, %v2517, %v2519
      %v2524 = vsel %vm766, %v2515, %v2517
      %v2525 = vsel %vm766, %v2521, %v2515
      %2526 = vrot.lane.b32.xlu0 %v2490, 64
      %v2527 = vpop.permute.xlu0 %2526
      %2528 = vrot.lane.b32.xlu0 %v2491, 64
      %v2529 = vpop.permute.xlu0 %2528
      %2530 = vrot.lane.b32.xlu0 %v2492, 64
      %v2531 = vpop.permute.xlu0 %2530
      %2532 = vrot.lane.b32.xlu0 %v2493, 64
      %v2533 = vpop.permute.xlu0 %2532
      %v2534 = vsel %vm766, %v2531, %v2533
      %v2535 = vsel %vm766, %v2529, %v2531
      %v2536 = vsel %vm766, %v2527, %v2529
      %v2537 = vsel %vm766, %v2533, %v2527
      %vm2538 = vcmp.gt.f32.partialorder %v2512, %v2498
      %vm2539 = vcmp.gt.f32.partialorder %v2511, %v2499
      %vm2540 = vcmp.gt.f32.partialorder %v2510, %v2500
      %vm2541 = vcmp.gt.f32.partialorder %v2513, %v2501
      %v2542 = vsel %vm2538, 1, 0
      %v2543 = vsel %vm2539, 1, 0
      %v2544 = vsel %vm2540, 1, 0
      %v2545 = vsel %vm2541, 1, 0
      %v2546 = vcvt.s32.f32 %v2542
      %v2547 = vcvt.s32.f32 %v2543
      %v2548 = vcvt.s32.f32 %v2544
      %v2549 = vcvt.s32.f32 %v2545
      %v2550 = vsel %vm2538, %v2524, %v2494
      %v2551 = vsel %vm2539, %v2523, %v2495
      %v2552 = vsel %vm2540, %v2522, %v2496
      %v2553 = vsel %vm2541, %v2525, %v2497
      %v2554 = vsel %vm2538, %v2536, %v2490
      %v2555 = vsel %vm2539, %v2535, %v2491
      %v2556 = vsel %vm2540, %v2534, %v2492
      %v2557 = vsel %vm2541, %v2537, %v2493
      %v2558 = vmax.f32 %v2498, %v2512
      %v2559 = vmax.f32 %v2499, %v2511
      %v2560 = vmax.f32 %v2500, %v2510
      %v2561 = vmax.f32 %v2501, %v2513
      %v2562 = vmul.f32 %v2546, 4.0
      %v2563 = vmul.f32 %v2547, 4.0
      %v2564 = vmul.f32 %v2548, 4.0
      %v2565 = vmul.f32 %v2549, 4.0
      %v2566 = vmul.f32 %v2554, 2.0
      %v2567 = vmul.f32 %v2555, 2.0
      %v2568 = vmul.f32 %v2556, 2.0
      %v2569 = vmul.f32 %v2557, 2.0
      %v2570 = vadd.f32 %v2562, %v2566
      %v2571 = vadd.f32 %v2563, %v2567
      %v2572 = vadd.f32 %v2564, %v2568
      %v2573 = vadd.f32 %v2565, %v2569
      %v2574 = vadd.f32 %v2570, %v2550
      %v2575 = vadd.f32 %v2571, %v2551
      %v2576 = vadd.f32 %v2572, %v2552
      %v2577 = vadd.f32 %v2573, %v2553
      %2578 = vrot.lane.b32.xlu0 %v2558, 18
      %v2579 = vpop.permute.xlu0 %2578
      %2580 = vrot.lane.b32.xlu0 %v2559, 18
      %v2581 = vpop.permute.xlu0 %2580
      %2582 = vrot.lane.b32.xlu0 %v2560, 18
      %v2583 = vpop.permute.xlu0 %2582
      %2584 = vrot.lane.b32.xlu0 %v2561, 18
      %v2585 = vpop.permute.xlu0 %2584
      %vm2586 = vcmp.lt.s32.totalorder %v475, 18
      %v2587 = vsel %vm2586, %v2583, %v2585
      %v2588 = vsel %vm2586, %v2581, %v2583
      %v2589 = vsel %vm2586, %v2579, %v2581
      %v2590 = vsel %vm2586, %v2585, %v2579
      %v2591 = vld [vmem:[%s10] ss:$8 sm:$0xf]
      %v2593 = vlaneseq
      %v2594 = vshrl.u32 %v2593, 7
      %v2595 = vsub.s32 0, %v2594
      %v2596 = vrot.slane %v2591, %v2595
      %v2597 = vlaneseq
      %v2598 = vshrl.u32 %v2597, 7
      %v2599 = vsub.s32 1, %v2598
      %v2600 = vrot.slane %v2591, %v2599
      %v2601 = vlaneseq
      %v2602 = vshrl.u32 %v2601, 7
      %v2603 = vsub.s32 2, %v2602
      %v2604 = vrot.slane %v2591, %v2603
      %v2605 = vlaneseq
      %v2606 = vshrl.u32 %v2605, 7
      %v2607 = vsub.s32 3, %v2606
      %v2608 = vrot.slane %v2591, %v2607
      %v2613 = vmul.f32 %v2587, %v2596
      %v2614 = vmul.f32 %v2590, %v2600
      %v2615 = vmul.f32 %v2589, %v2604
      %v2616 = vmul.f32 %v2588, %v2608
      %2617 = vst [vmem:[#allocation2] sm:$0xf] %v2613
      %2618 = vst [vmem:[#allocation2 + $0x8] sm:$0xf] %v2614
      %2619 = vst [vmem:[#allocation2 + $0x10] sm:$0xf] %v2615
      %2620 = vst [vmem:[#allocation2 + $0x18] sm:$0xf] %v2616
      %2621 = vrot.lane.b32.xlu0 %v2558, 16
      %v2622 = vpop.permute.xlu0 %2621
      %2623 = vrot.lane.b32.xlu0 %v2559, 16
      %v2624 = vpop.permute.xlu0 %2623
      %2625 = vrot.lane.b32.xlu0 %v2560, 16
      %v2626 = vpop.permute.xlu0 %2625
      %2627 = vrot.lane.b32.xlu0 %v2561, 16
      %v2628 = vpop.permute.xlu0 %2627
      %vm2629 = vcmp.lt.s32.totalorder %v475, 16
      %v2630 = vsel %vm2629, %v2626, %v2628
      %v2631 = vsel %vm2629, %v2624, %v2626
      %v2632 = vsel %vm2629, %v2622, %v2624
      %v2633 = vsel %vm2629, %v2628, %v2622
      %s2634 = scalar_lea.vmem %s10, 1
      %v2635 = vld [vmem:[%s2634] ss:$8 sm:$0xf]
      %v2637 = vlaneseq
      %v2638 = vshrl.u32 %v2637, 7
      %v2639 = vsub.s32 0, %v2638
      %v2640 = vrot.slane %v2635, %v2639
      %v2641 = vlaneseq
      %v2642 = vshrl.u32 %v2641, 7
      %v2643 = vsub.s32 1, %v2642
      %v2644 = vrot.slane %v2635, %v2643
      %v2645 = vlaneseq
      %v2646 = vshrl.u32 %v2645, 7
      %v2647 = vsub.s32 2, %v2646
      %v2648 = vrot.slane %v2635, %v2647
      %v2649 = vlaneseq
      %v2650 = vshrl.u32 %v2649, 7
      %v2651 = vsub.s32 3, %v2650
      %v2652 = vrot.slane %v2635, %v2651
      %v2657 = vmul.f32 %v2630, %v2640
      %v2658 = vmul.f32 %v2633, %v2644
      %v2659 = vmul.f32 %v2632, %v2648
      %v2660 = vmul.f32 %v2631, %v2652
      %v2665 = vrot.slane %v2657, 4
      %v2666 = vrot.slane %v2658, 4
      %v2667 = vrot.slane %v2659, 4
      %v2668 = vrot.slane %v2660, 4
      %2673 = vst [vmem:[#allocation2] sm:$0xf0] %v2665
      %2674 = vst [vmem:[#allocation2 + $0x8] sm:$0xf0] %v2666
      %2675 = vst [vmem:[#allocation2 + $0x10] sm:$0xf0] %v2667
      %2676 = vst [vmem:[#allocation2 + $0x18] sm:$0xf0] %v2668
      %2677 = vrot.lane.b32.xlu0 %v2558, 14
      %v2678 = vpop.permute.xlu0 %2677
      %2679 = vrot.lane.b32.xlu0 %v2559, 14
      %v2680 = vpop.permute.xlu0 %2679
      %2681 = vrot.lane.b32.xlu0 %v2560, 14
      %v2682 = vpop.permute.xlu0 %2681
      %2683 = vrot.lane.b32.xlu0 %v2561, 14
      %v2684 = vpop.permute.xlu0 %2683
      %vm2685 = vcmp.lt.s32.totalorder %v475, 14
      %v2686 = vsel %vm2685, %v2682, %v2684
      %v2687 = vsel %vm2685, %v2680, %v2682
      %v2688 = vsel %vm2685, %v2678, %v2680
      %v2689 = vsel %vm2685, %v2684, %v2678
      %s2690 = scalar_lea.vmem %s10, 2
      %v2691 = vld [vmem:[%s2690] ss:$8 sm:$0xf]
      %v2693 = vlaneseq
      %v2694 = vshrl.u32 %v2693, 7
      %v2695 = vsub.s32 0, %v2694
      %v2696 = vrot.slane %v2691, %v2695
      %v2697 = vlaneseq
      %v2698 = vshrl.u32 %v2697, 7
      %v2699 = vsub.s32 1, %v2698
      %v2700 = vrot.slane %v2691, %v2699
      %v2701 = vlaneseq
      %v2702 = vshrl.u32 %v2701, 7
      %v2703 = vsub.s32 2, %v2702
      %v2704 = vrot.slane %v2691, %v2703
      %v2705 = vlaneseq
      %v2706 = vshrl.u32 %v2705, 7
      %v2707 = vsub.s32 3, %v2706
      %v2708 = vrot.slane %v2691, %v2707
      %v2713 = vmul.f32 %v2686, %v2696
      %v2714 = vmul.f32 %v2689, %v2700
      %v2715 = vmul.f32 %v2688, %v2704
      %v2716 = vmul.f32 %v2687, %v2708
      %2717 = vst [vmem:[#allocation2 + $0x20] sm:$0xf] %v2713
      %2718 = vst [vmem:[#allocation2 + $0x28] sm:$0xf] %v2714
      %2719 = vst [vmem:[#allocation2 + $0x30] sm:$0xf] %v2715
      %2720 = vst [vmem:[#allocation2 + $0x38] sm:$0xf] %v2716
      %2721 = vrot.lane.b32.xlu0 %v2558, 2
      %v2722 = vpop.permute.xlu0 %2721
      %2723 = vrot.lane.b32.xlu0 %v2559, 2
      %v2724 = vpop.permute.xlu0 %2723
      %2725 = vrot.lane.b32.xlu0 %v2560, 2
      %v2726 = vpop.permute.xlu0 %2725
      %2727 = vrot.lane.b32.xlu0 %v2561, 2
      %v2728 = vpop.permute.xlu0 %2727
      %vm2729 = vcmp.lt.s32.totalorder %v475, 2
      %v2730 = vsel %vm2729, %v2726, %v2728
      %v2731 = vsel %vm2729, %v2724, %v2726
      %v2732 = vsel %vm2729, %v2722, %v2724
      %v2733 = vsel %vm2729, %v2728, %v2722
      %s2734 = scalar_lea.vmem %s10, 3
      %v2735 = vld [vmem:[%s2734] ss:$8 sm:$0xf]
      %v2737 = vlaneseq
      %v2738 = vshrl.u32 %v2737, 7
      %v2739 = vsub.s32 0, %v2738
      %v2740 = vrot.slane %v2735, %v2739
      %v2741 = vlaneseq
      %v2742 = vshrl.u32 %v2741, 7
      %v2743 = vsub.s32 1, %v2742
      %v2744 = vrot.slane %v2735, %v2743
      %v2745 = vlaneseq
      %v2746 = vshrl.u32 %v2745, 7
      %v2747 = vsub.s32 2, %v2746
      %v2748 = vrot.slane %v2735, %v2747
      %v2749 = vlaneseq
      %v2750 = vshrl.u32 %v2749, 7
      %v2751 = vsub.s32 3, %v2750
      %v2752 = vrot.slane %v2735, %v2751
      %v2757 = vmul.f32 %v2730, %v2740
      %v2758 = vmul.f32 %v2733, %v2744
      %v2759 = vmul.f32 %v2732, %v2748
      %v2760 = vmul.f32 %v2731, %v2752
      %v2765 = vrot.slane %v2757, 4
      %v2766 = vrot.slane %v2758, 4
      %v2767 = vrot.slane %v2759, 4
      %v2768 = vrot.slane %v2760, 4
      %2773 = vst [vmem:[#allocation2 + $0x20] sm:$0xf0] %v2765
      %2774 = vst [vmem:[#allocation2 + $0x28] sm:$0xf0] %v2766
      %2775 = vst [vmem:[#allocation2 + $0x30] sm:$0xf0] %v2767
      %2776 = vst [vmem:[#allocation2 + $0x38] sm:$0xf0] %v2768
      %s2777 = scalar_lea.vmem %s10, 4
      %v2778 = vld [vmem:[%s2777] ss:$8 sm:$0xf]
      %v2780 = vlaneseq
      %v2781 = vshrl.u32 %v2780, 7
      %v2782 = vsub.s32 0, %v2781
      %v2783 = vrot.slane %v2778, %v2782
      %v2784 = vlaneseq
      %v2785 = vshrl.u32 %v2784, 7
      %v2786 = vsub.s32 1, %v2785
      %v2787 = vrot.slane %v2778, %v2786
      %v2788 = vlaneseq
      %v2789 = vshrl.u32 %v2788, 7
      %v2790 = vsub.s32 2, %v2789
      %v2791 = vrot.slane %v2778, %v2790
      %v2792 = vlaneseq
      %v2793 = vshrl.u32 %v2792, 7
      %v2794 = vsub.s32 3, %v2793
      %v2795 = vrot.slane %v2778, %v2794
      %v2800 = vmul.f32 %v2561, %v2783
      %v2801 = vmul.f32 %v2558, %v2787
      %v2802 = vmul.f32 %v2559, %v2791
      %v2803 = vmul.f32 %v2560, %v2795
      %2804 = vst [vmem:[#allocation2 + $0x40] sm:$0xf] %v2800
      %2805 = vst [vmem:[#allocation2 + $0x48] sm:$0xf] %v2801
      %2806 = vst [vmem:[#allocation2 + $0x50] sm:$0xf] %v2802
      %2807 = vst [vmem:[#allocation2 + $0x58] sm:$0xf] %v2803
      %2808 = vrot.lane.b32.xlu0 %v2558, 126
      %v2809 = vpop.permute.xlu0 %2808
      %2810 = vrot.lane.b32.xlu0 %v2559, 126
      %v2811 = vpop.permute.xlu0 %2810
      %2812 = vrot.lane.b32.xlu0 %v2560, 126
      %v2813 = vpop.permute.xlu0 %2812
      %2814 = vrot.lane.b32.xlu0 %v2561, 126
      %v2815 = vpop.permute.xlu0 %2814
      %vm2816 = vcmp.lt.s32.totalorder %v475, 126
      %v2817 = vsel %vm2816, %v2813, %v2815
      %v2818 = vsel %vm2816, %v2811, %v2813
      %v2819 = vsel %vm2816, %v2809, %v2811
      %v2820 = vsel %vm2816, %v2815, %v2809
      %s2821 = scalar_lea.vmem %s10, 5
      %v2822 = vld [vmem:[%s2821] ss:$8 sm:$0xf]
      %v2824 = vlaneseq
      %v2825 = vshrl.u32 %v2824, 7
      %v2826 = vsub.s32 0, %v2825
      %v2827 = vrot.slane %v2822, %v2826
      %v2828 = vlaneseq
      %v2829 = vshrl.u32 %v2828, 7
      %v2830 = vsub.s32 1, %v2829
      %v2831 = vrot.slane %v2822, %v2830
      %v2832 = vlaneseq
      %v2833 = vshrl.u32 %v2832, 7
      %v2834 = vsub.s32 2, %v2833
      %v2835 = vrot.slane %v2822, %v2834
      %v2836 = vlaneseq
      %v2837 = vshrl.u32 %v2836, 7
      %v2838 = vsub.s32 3, %v2837
      %v2839 = vrot.slane %v2822, %v2838
      %v2844 = vmul.f32 %v2820, %v2827
      %v2845 = vmul.f32 %v2819, %v2831
      %v2846 = vmul.f32 %v2818, %v2835
      %v2847 = vmul.f32 %v2817, %v2839
      %v2852 = vrot.slane %v2844, 4
      %v2853 = vrot.slane %v2845, 4
      %v2854 = vrot.slane %v2846, 4
      %v2855 = vrot.slane %v2847, 4
      %2860 = vst [vmem:[#allocation2 + $0x40] sm:$0xf0] %v2852
      %2861 = vst [vmem:[#allocation2 + $0x48] sm:$0xf0] %v2853
      %2862 = vst [vmem:[#allocation2 + $0x50] sm:$0xf0] %v2854
      %2863 = vst [vmem:[#allocation2 + $0x58] sm:$0xf0] %v2855
      %2864 = vrot.lane.b32.xlu0 %v2558, 114
      %v2865 = vpop.permute.xlu0 %2864
      %2866 = vrot.lane.b32.xlu0 %v2559, 114
      %v2867 = vpop.permute.xlu0 %2866
      %2868 = vrot.lane.b32.xlu0 %v2560, 114
      %v2869 = vpop.permute.xlu0 %2868
      %2870 = vrot.lane.b32.xlu0 %v2561, 114
      %v2871 = vpop.permute.xlu0 %2870
      %vm2872 = vcmp.lt.s32.totalorder %v475, 114
      %v2873 = vsel %vm2872, %v2869, %v2871
      %v2874 = vsel %vm2872, %v2867, %v2869
      %v2875 = vsel %vm2872, %v2865, %v2867
      %v2876 = vsel %vm2872, %v2871, %v2865
      %s2877 = scalar_lea.vmem %s10, 6
      %v2878 = vld [vmem:[%s2877] ss:$8 sm:$0xf]
      %v2880 = vlaneseq
      %v2881 = vshrl.u32 %v2880, 7
      %v2882 = vsub.s32 0, %v2881
      %v2883 = vrot.slane %v2878, %v2882
      %v2884 = vlaneseq
      %v2885 = vshrl.u32 %v2884, 7
      %v2886 = vsub.s32 1, %v2885
      %v2887 = vrot.slane %v2878, %v2886
      %v2888 = vlaneseq
      %v2889 = vshrl.u32 %v2888, 7
      %v2890 = vsub.s32 2, %v2889
      %v2891 = vrot.slane %v2878, %v2890
      %v2892 = vlaneseq
      %v2893 = vshrl.u32 %v2892, 7
      %v2894 = vsub.s32 3, %v2893
      %v2895 = vrot.slane %v2878, %v2894
      %v2900 = vmul.f32 %v2876, %v2883
      %v2901 = vmul.f32 %v2875, %v2887
      %v2902 = vmul.f32 %v2874, %v2891
      %v2903 = vmul.f32 %v2873, %v2895
      %2904 = vst [vmem:[#allocation2 + $0x60] sm:$0xf] %v2900
      %2905 = vst [vmem:[#allocation2 + $0x68] sm:$0xf] %v2901
      %2906 = vst [vmem:[#allocation2 + $0x70] sm:$0xf] %v2902
      %2907 = vst [vmem:[#allocation2 + $0x78] sm:$0xf] %v2903
      %2908 = vrot.lane.b32.xlu0 %v2558, 112
      %v2909 = vpop.permute.xlu0 %2908
      %2910 = vrot.lane.b32.xlu0 %v2559, 112
      %v2911 = vpop.permute.xlu0 %2910
      %2912 = vrot.lane.b32.xlu0 %v2560, 112
      %v2913 = vpop.permute.xlu0 %2912
      %2914 = vrot.lane.b32.xlu0 %v2561, 112
      %v2915 = vpop.permute.xlu0 %2914
      %vm2916 = vcmp.lt.s32.totalorder %v475, 112
      %v2917 = vsel %vm2916, %v2913, %v2915
      %v2918 = vsel %vm2916, %v2911, %v2913
      %v2919 = vsel %vm2916, %v2909, %v2911
      %v2920 = vsel %vm2916, %v2915, %v2909
      %s2921 = scalar_lea.vmem %s10, 7
      %v2922 = vld [vmem:[%s2921] ss:$8 sm:$0xf]
      %v2924 = vlaneseq
      %v2925 = vshrl.u32 %v2924, 7
      %v2926 = vsub.s32 0, %v2925
      %v2927 = vrot.slane %v2922, %v2926
      %v2928 = vlaneseq
      %v2929 = vshrl.u32 %v2928, 7
      %v2930 = vsub.s32 1, %v2929
      %v2931 = vrot.slane %v2922, %v2930
      %v2932 = vlaneseq
      %v2933 = vshrl.u32 %v2932, 7
      %v2934 = vsub.s32 2, %v2933
      %v2935 = vrot.slane %v2922, %v2934
      %v2936 = vlaneseq
      %v2937 = vshrl.u32 %v2936, 7
      %v2938 = vsub.s32 3, %v2937
      %v2939 = vrot.slane %v2922, %v2938
      %v2944 = vmul.f32 %v2920, %v2927
      %v2945 = vmul.f32 %v2919, %v2931
      %v2946 = vmul.f32 %v2918, %v2935
      %v2947 = vmul.f32 %v2917, %v2939
      %v2952 = vrot.slane %v2944, 4
      %v2953 = vrot.slane %v2945, 4
      %v2954 = vrot.slane %v2946, 4
      %v2955 = vrot.slane %v2947, 4
      %2960 = vst [vmem:[#allocation2 + $0x60] sm:$0xf0] %v2952
      %2961 = vst [vmem:[#allocation2 + $0x68] sm:$0xf0] %v2953
      %2962 = vst [vmem:[#allocation2 + $0x70] sm:$0xf0] %v2954
      %2963 = vst [vmem:[#allocation2 + $0x78] sm:$0xf0] %v2955
      %2964 = vrot.lane.b32.xlu0 %v2558, 110
      %v2965 = vpop.permute.xlu0 %2964
      %2966 = vrot.lane.b32.xlu0 %v2559, 110
      %v2967 = vpop.permute.xlu0 %2966
      %2968 = vrot.lane.b32.xlu0 %v2560, 110
      %v2969 = vpop.permute.xlu0 %2968
      %2970 = vrot.lane.b32.xlu0 %v2561, 110
      %v2971 = vpop.permute.xlu0 %2970
      %vm2972 = vcmp.lt.s32.totalorder %v475, 110
      %v2973 = vsel %vm2972, %v2969, %v2971
      %v2974 = vsel %vm2972, %v2967, %v2969
      %v2975 = vsel %vm2972, %v2965, %v2967
      %v2976 = vsel %vm2972, %v2971, %v2965
      %s2977 = scalar_lea.vmem %s10, 32
      %v2978 = vld [vmem:[%s2977] ss:$8 sm:$0xf]
      %v2980 = vlaneseq
      %v2981 = vshrl.u32 %v2980, 7
      %v2982 = vsub.s32 0, %v2981
      %v2983 = vrot.slane %v2978, %v2982
      %v2984 = vlaneseq
      %v2985 = vshrl.u32 %v2984, 7
      %v2986 = vsub.s32 1, %v2985
      %v2987 = vrot.slane %v2978, %v2986
      %v2988 = vlaneseq
      %v2989 = vshrl.u32 %v2988, 7
      %v2990 = vsub.s32 2, %v2989
      %v2991 = vrot.slane %v2978, %v2990
      %v2992 = vlaneseq
      %v2993 = vshrl.u32 %v2992, 7
      %v2994 = vsub.s32 3, %v2993
      %v2995 = vrot.slane %v2978, %v2994
      %v3000 = vmul.f32 %v2976, %v2983
      %v3001 = vmul.f32 %v2975, %v2987
      %v3002 = vmul.f32 %v2974, %v2991
      %v3003 = vmul.f32 %v2973, %v2995
      %3004 = vst [vmem:[#allocation2 + $0x80] sm:$0xf] %v3000
      %3005 = vst [vmem:[#allocation2 + $0x88] sm:$0xf] %v3001
      %3006 = vst [vmem:[#allocation2 + $0x90] sm:$0xf] %v3002
      %3007 = vst [vmem:[#allocation2 + $0x98] sm:$0xf] %v3003
      %s3008 = scalar_lea.vmem %s10, 33
      %v3009 = vld [vmem:[%s3008] ss:$8 sm:$0xf]
      %v3011 = vlaneseq
      %v3012 = vshrl.u32 %v3011, 7
      %v3013 = vsub.s32 0, %v3012
      %v3014 = vrot.slane %v3009, %v3013
      %v3015 = vlaneseq
      %v3016 = vshrl.u32 %v3015, 7
      %v3017 = vsub.s32 1, %v3016
      %v3018 = vrot.slane %v3009, %v3017
      %v3019 = vlaneseq
      %v3020 = vshrl.u32 %v3019, 7
      %v3021 = vsub.s32 2, %v3020
      %v3022 = vrot.slane %v3009, %v3021
      %v3023 = vlaneseq
      %v3024 = vshrl.u32 %v3023, 7
      %v3025 = vsub.s32 3, %v3024
      %v3026 = vrot.slane %v3009, %v3025
      %v3031 = vmul.f32 %v2590, %v3014
      %v3032 = vmul.f32 %v2589, %v3018
      %v3033 = vmul.f32 %v2588, %v3022
      %v3034 = vmul.f32 %v2587, %v3026
      %v3039 = vrot.slane %v3031, 4
      %v3040 = vrot.slane %v3032, 4
      %v3041 = vrot.slane %v3033, 4
      %v3042 = vrot.slane %v3034, 4
      %3047 = vst [vmem:[#allocation2 + $0x80] sm:$0xf0] %v3039
      %3048 = vst [vmem:[#allocation2 + $0x88] sm:$0xf0] %v3040
      %3049 = vst [vmem:[#allocation2 + $0x90] sm:$0xf0] %v3041
      %3050 = vst [vmem:[#allocation2 + $0x98] sm:$0xf0] %v3042
      %s3051 = scalar_lea.vmem %s10, 34
      %v3052 = vld [vmem:[%s3051] ss:$8 sm:$0xf]
      %v3054 = vlaneseq
      %v3055 = vshrl.u32 %v3054, 7
      %v3056 = vsub.s32 0, %v3055
      %v3057 = vrot.slane %v3052, %v3056
      %v3058 = vlaneseq
      %v3059 = vshrl.u32 %v3058, 7
      %v3060 = vsub.s32 1, %v3059
      %v3061 = vrot.slane %v3052, %v3060
      %v3062 = vlaneseq
      %v3063 = vshrl.u32 %v3062, 7
      %v3064 = vsub.s32 2, %v3063
      %v3065 = vrot.slane %v3052, %v3064
      %v3066 = vlaneseq
      %v3067 = vshrl.u32 %v3066, 7
      %v3068 = vsub.s32 3, %v3067
      %v3069 = vrot.slane %v3052, %v3068
      %v3074 = vmul.f32 %v2633, %v3057
      %v3075 = vmul.f32 %v2632, %v3061
      %v3076 = vmul.f32 %v2631, %v3065
      %v3077 = vmul.f32 %v2630, %v3069
      %3078 = vst [vmem:[#allocation2 + $0xa0] sm:$0xf] %v3074
      %3079 = vst [vmem:[#allocation2 + $0xa8] sm:$0xf] %v3075
      %3080 = vst [vmem:[#allocation2 + $0xb0] sm:$0xf] %v3076
      %3081 = vst [vmem:[#allocation2 + $0xb8] sm:$0xf] %v3077
      %s3082 = scalar_lea.vmem %s10, 35
      %v3083 = vld [vmem:[%s3082] ss:$8 sm:$0xf]
      %v3085 = vlaneseq
      %v3086 = vshrl.u32 %v3085, 7
      %v3087 = vsub.s32 0, %v3086
      %v3088 = vrot.slane %v3083, %v3087
      %v3089 = vlaneseq
      %v3090 = vshrl.u32 %v3089, 7
      %v3091 = vsub.s32 1, %v3090
      %v3092 = vrot.slane %v3083, %v3091
      %v3093 = vlaneseq
      %v3094 = vshrl.u32 %v3093, 7
      %v3095 = vsub.s32 2, %v3094
      %v3096 = vrot.slane %v3083, %v3095
      %v3097 = vlaneseq
      %v3098 = vshrl.u32 %v3097, 7
      %v3099 = vsub.s32 3, %v3098
      %v3100 = vrot.slane %v3083, %v3099
      %v3105 = vmul.f32 %v2689, %v3088
      %v3106 = vmul.f32 %v2688, %v3092
      %v3107 = vmul.f32 %v2687, %v3096
      %v3108 = vmul.f32 %v2686, %v3100
      %v3113 = vrot.slane %v3105, 4
      %v3114 = vrot.slane %v3106, 4
      %v3115 = vrot.slane %v3107, 4
      %v3116 = vrot.slane %v3108, 4
      %3121 = vst [vmem:[#allocation2 + $0xa0] sm:$0xf0] %v3113
      %3122 = vst [vmem:[#allocation2 + $0xa8] sm:$0xf0] %v3114
      %3123 = vst [vmem:[#allocation2 + $0xb0] sm:$0xf0] %v3115
      %3124 = vst [vmem:[#allocation2 + $0xb8] sm:$0xf0] %v3116
      %s3125 = scalar_lea.vmem %s10, 36
      %v3126 = vld [vmem:[%s3125] ss:$8 sm:$0xf]
      %v3128 = vlaneseq
      %v3129 = vshrl.u32 %v3128, 7
      %v3130 = vsub.s32 0, %v3129
      %v3131 = vrot.slane %v3126, %v3130
      %v3132 = vlaneseq
      %v3133 = vshrl.u32 %v3132, 7
      %v3134 = vsub.s32 1, %v3133
      %v3135 = vrot.slane %v3126, %v3134
      %v3136 = vlaneseq
      %v3137 = vshrl.u32 %v3136, 7
      %v3138 = vsub.s32 2, %v3137
      %v3139 = vrot.slane %v3126, %v3138
      %v3140 = vlaneseq
      %v3141 = vshrl.u32 %v3140, 7
      %v3142 = vsub.s32 3, %v3141
      %v3143 = vrot.slane %v3126, %v3142
      %v3148 = vmul.f32 %v2733, %v3131
      %v3149 = vmul.f32 %v2732, %v3135
      %v3150 = vmul.f32 %v2731, %v3139
      %v3151 = vmul.f32 %v2730, %v3143
      %3152 = vst [vmem:[#allocation2 + $0xc0] sm:$0xf] %v3148
      %3153 = vst [vmem:[#allocation2 + $0xc8] sm:$0xf] %v3149
      %3154 = vst [vmem:[#allocation2 + $0xd0] sm:$0xf] %v3150
      %3155 = vst [vmem:[#allocation2 + $0xd8] sm:$0xf] %v3151
      %s3156 = scalar_lea.vmem %s10, 37
      %v3157 = vld [vmem:[%s3156] ss:$8 sm:$0xf]
      %v3159 = vlaneseq
      %v3160 = vshrl.u32 %v3159, 7
      %v3161 = vsub.s32 0, %v3160
      %v3162 = vrot.slane %v3157, %v3161
      %v3163 = vlaneseq
      %v3164 = vshrl.u32 %v3163, 7
      %v3165 = vsub.s32 1, %v3164
      %v3166 = vrot.slane %v3157, %v3165
      %v3167 = vlaneseq
      %v3168 = vshrl.u32 %v3167, 7
      %v3169 = vsub.s32 2, %v3168
      %v3170 = vrot.slane %v3157, %v3169
      %v3171 = vlaneseq
      %v3172 = vshrl.u32 %v3171, 7
      %v3173 = vsub.s32 3, %v3172
      %v3174 = vrot.slane %v3157, %v3173
      %v3179 = vmul.f32 %v2558, %v3162
      %v3180 = vmul.f32 %v2559, %v3166
      %v3181 = vmul.f32 %v2560, %v3170
      %v3182 = vmul.f32 %v2561, %v3174
      %v3187 = vrot.slane %v3179, 4
      %v3188 = vrot.slane %v3180, 4
      %v3189 = vrot.slane %v3181, 4
      %v3190 = vrot.slane %v3182, 4
      %3195 = vst [vmem:[#allocation2 + $0xc0] sm:$0xf0] %v3187
      %3196 = vst [vmem:[#allocation2 + $0xc8] sm:$0xf0] %v3188
      %3197 = vst [vmem:[#allocation2 + $0xd0] sm:$0xf0] %v3189
      %3198 = vst [vmem:[#allocation2 + $0xd8] sm:$0xf0] %v3190
      %s3199 = scalar_lea.vmem %s10, 38
      %v3200 = vld [vmem:[%s3199] ss:$8 sm:$0xf]
      %v3202 = vlaneseq
      %v3203 = vshrl.u32 %v3202, 7
      %v3204 = vsub.s32 0, %v3203
      %v3205 = vrot.slane %v3200, %v3204
      %v3206 = vlaneseq
      %v3207 = vshrl.u32 %v3206, 7
      %v3208 = vsub.s32 1, %v3207
      %v3209 = vrot.slane %v3200, %v3208
      %v3210 = vlaneseq
      %v3211 = vshrl.u32 %v3210, 7
      %v3212 = vsub.s32 2, %v3211
      %v3213 = vrot.slane %v3200, %v3212
      %v3214 = vlaneseq
      %v3215 = vshrl.u32 %v3214, 7
      %v3216 = vsub.s32 3, %v3215
      %v3217 = vrot.slane %v3200, %v3216
      %v3222 = vmul.f32 %v2819, %v3205
      %v3223 = vmul.f32 %v2818, %v3209
      %v3224 = vmul.f32 %v2817, %v3213
      %v3225 = vmul.f32 %v2820, %v3217
      %3226 = vst [vmem:[#allocation2 + $0xe0] sm:$0xf] %v3222
      %3227 = vst [vmem:[#allocation2 + $0xe8] sm:$0xf] %v3223
      %3228 = vst [vmem:[#allocation2 + $0xf0] sm:$0xf] %v3224
      %3229 = vst [vmem:[#allocation2 + $0xf8] sm:$0xf] %v3225
      %s3230 = scalar_lea.vmem %s10, 39
      %v3231 = vld [vmem:[%s3230] ss:$8 sm:$0xf]
      %v3233 = vlaneseq
      %v3234 = vshrl.u32 %v3233, 7
      %v3235 = vsub.s32 0, %v3234
      %v3236 = vrot.slane %v3231, %v3235
      %v3237 = vlaneseq
      %v3238 = vshrl.u32 %v3237, 7
      %v3239 = vsub.s32 1, %v3238
      %v3240 = vrot.slane %v3231, %v3239
      %v3241 = vlaneseq
      %v3242 = vshrl.u32 %v3241, 7
      %v3243 = vsub.s32 2, %v3242
      %v3244 = vrot.slane %v3231, %v3243
      %v3245 = vlaneseq
      %v3246 = vshrl.u32 %v3245, 7
      %v3247 = vsub.s32 3, %v3246
      %v3248 = vrot.slane %v3231, %v3247
      %v3253 = vmul.f32 %v2875, %v3236
      %v3254 = vmul.f32 %v2874, %v3240
      %v3255 = vmul.f32 %v2873, %v3244
      %v3256 = vmul.f32 %v2876, %v3248
      %v3261 = vrot.slane %v3253, 4
      %v3262 = vrot.slane %v3254, 4
      %v3263 = vrot.slane %v3255, 4
      %v3264 = vrot.slane %v3256, 4
      %3269 = vst [vmem:[#allocation2 + $0xe0] sm:$0xf0] %v3261
      %3270 = vst [vmem:[#allocation2 + $0xe8] sm:$0xf0] %v3262
      %3271 = vst [vmem:[#allocation2 + $0xf0] sm:$0xf0] %v3263
      %3272 = vst [vmem:[#allocation2 + $0xf8] sm:$0xf0] %v3264
      %s3273 = scalar_lea.vmem %s10, 64
      %v3274 = vld [vmem:[%s3273] ss:$8 sm:$0xf]
      %v3276 = vlaneseq
      %v3277 = vshrl.u32 %v3276, 7
      %v3278 = vsub.s32 0, %v3277
      %v3279 = vrot.slane %v3274, %v3278
      %v3280 = vlaneseq
      %v3281 = vshrl.u32 %v3280, 7
      %v3282 = vsub.s32 1, %v3281
      %v3283 = vrot.slane %v3274, %v3282
      %v3284 = vlaneseq
      %v3285 = vshrl.u32 %v3284, 7
      %v3286 = vsub.s32 2, %v3285
      %v3287 = vrot.slane %v3274, %v3286
      %v3288 = vlaneseq
      %v3289 = vshrl.u32 %v3288, 7
      %v3290 = vsub.s32 3, %v3289
      %v3291 = vrot.slane %v3274, %v3290
      %v3296 = vmul.f32 %v2919, %v3279
      %v3297 = vmul.f32 %v2918, %v3283
      %v3298 = vmul.f32 %v2917, %v3287
      %v3299 = vmul.f32 %v2920, %v3291
      %3300 = vst [vmem:[#allocation2 + $0x100] sm:$0xf] %v3296
      %3301 = vst [vmem:[#allocation2 + $0x108] sm:$0xf] %v3297
      %3302 = vst [vmem:[#allocation2 + $0x110] sm:$0xf] %v3298
      %3303 = vst [vmem:[#allocation2 + $0x118] sm:$0xf] %v3299
      %s3304 = scalar_lea.vmem %s10, 65
      %v3305 = vld [vmem:[%s3304] ss:$8 sm:$0xf]
      %v3307 = vlaneseq
      %v3308 = vshrl.u32 %v3307, 7
      %v3309 = vsub.s32 0, %v3308
      %v3310 = vrot.slane %v3305, %v3309
      %v3311 = vlaneseq
      %v3312 = vshrl.u32 %v3311, 7
      %v3313 = vsub.s32 1, %v3312
      %v3314 = vrot.slane %v3305, %v3313
      %v3315 = vlaneseq
      %v3316 = vshrl.u32 %v3315, 7
      %v3317 = vsub.s32 2, %v3316
      %v3318 = vrot.slane %v3305, %v3317
      %v3319 = vlaneseq
      %v3320 = vshrl.u32 %v3319, 7
      %v3321 = vsub.s32 3, %v3320
      %v3322 = vrot.slane %v3305, %v3321
      %v3327 = vmul.f32 %v2975, %v3310
      %v3328 = vmul.f32 %v2974, %v3314
      %v3329 = vmul.f32 %v2973, %v3318
      %v3330 = vmul.f32 %v2976, %v3322
      %v3335 = vrot.slane %v3327, 4
      %v3336 = vrot.slane %v3328, 4
      %v3337 = vrot.slane %v3329, 4
      %v3338 = vrot.slane %v3330, 4
      %3343 = vst [vmem:[#allocation2 + $0x100] sm:$0xf0] %v3335
      %3344 = vst [vmem:[#allocation2 + $0x108] sm:$0xf0] %v3336
      %3345 = vst [vmem:[#allocation2 + $0x110] sm:$0xf0] %v3337
      %3346 = vst [vmem:[#allocation2 + $0x118] sm:$0xf0] %v3338
      %s3347 = scalar_lea.vmem %s10, 66
      %v3348 = vld [vmem:[%s3347] ss:$8 sm:$0xf]
      %v3350 = vlaneseq
      %v3351 = vshrl.u32 %v3350, 7
      %v3352 = vsub.s32 0, %v3351
      %v3353 = vrot.slane %v3348, %v3352
      %v3354 = vlaneseq
      %v3355 = vshrl.u32 %v3354, 7
      %v3356 = vsub.s32 1, %v3355
      %v3357 = vrot.slane %v3348, %v3356
      %v3358 = vlaneseq
      %v3359 = vshrl.u32 %v3358, 7
      %v3360 = vsub.s32 2, %v3359
      %v3361 = vrot.slane %v3348, %v3360
      %v3362 = vlaneseq
      %v3363 = vshrl.u32 %v3362, 7
      %v3364 = vsub.s32 3, %v3363
      %v3365 = vrot.slane %v3348, %v3364
      %v3370 = vmul.f32 %v2589, %v3353
      %v3371 = vmul.f32 %v2588, %v3357
      %v3372 = vmul.f32 %v2587, %v3361
      %v3373 = vmul.f32 %v2590, %v3365
      %3374 = vst [vmem:[#allocation2 + $0x120] sm:$0xf] %v3370
      %3375 = vst [vmem:[#allocation2 + $0x128] sm:$0xf] %v3371
      %3376 = vst [vmem:[#allocation2 + $0x130] sm:$0xf] %v3372
      %3377 = vst [vmem:[#allocation2 + $0x138] sm:$0xf] %v3373
      %s3378 = scalar_lea.vmem %s10, 67
      %v3379 = vld [vmem:[%s3378] ss:$8 sm:$0xf]
      %v3381 = vlaneseq
      %v3382 = vshrl.u32 %v3381, 7
      %v3383 = vsub.s32 0, %v3382
      %v3384 = vrot.slane %v3379, %v3383
      %v3385 = vlaneseq
      %v3386 = vshrl.u32 %v3385, 7
      %v3387 = vsub.s32 1, %v3386
      %v3388 = vrot.slane %v3379, %v3387
      %v3389 = vlaneseq
      %v3390 = vshrl.u32 %v3389, 7
      %v3391 = vsub.s32 2, %v3390
      %v3392 = vrot.slane %v3379, %v3391
      %v3393 = vlaneseq
      %v3394 = vshrl.u32 %v3393, 7
      %v3395 = vsub.s32 3, %v3394
      %v3396 = vrot.slane %v3379, %v3395
      %v3401 = vmul.f32 %v2632, %v3384
      %v3402 = vmul.f32 %v2631, %v3388
      %v3403 = vmul.f32 %v2630, %v3392
      %v3404 = vmul.f32 %v2633, %v3396
      %v3409 = vrot.slane %v3401, 4
      %v3410 = vrot.slane %v3402, 4
      %v3411 = vrot.slane %v3403, 4
      %v3412 = vrot.slane %v3404, 4
      %3417 = vst [vmem:[#allocation2 + $0x120] sm:$0xf0] %v3409
      %3418 = vst [vmem:[#allocation2 + $0x128] sm:$0xf0] %v3410
      %3419 = vst [vmem:[#allocation2 + $0x130] sm:$0xf0] %v3411
      %3420 = vst [vmem:[#allocation2 + $0x138] sm:$0xf0] %v3412
      %s3421 = scalar_lea.vmem %s10, 68
      %v3422 = vld [vmem:[%s3421] ss:$8 sm:$0xf]
      %v3424 = vlaneseq
      %v3425 = vshrl.u32 %v3424, 7
      %v3426 = vsub.s32 0, %v3425
      %v3427 = vrot.slane %v3422, %v3426
      %v3428 = vlaneseq
      %v3429 = vshrl.u32 %v3428, 7
      %v3430 = vsub.s32 1, %v3429
      %v3431 = vrot.slane %v3422, %v3430
      %v3432 = vlaneseq
      %v3433 = vshrl.u32 %v3432, 7
      %v3434 = vsub.s32 2, %v3433
      %v3435 = vrot.slane %v3422, %v3434
      %v3436 = vlaneseq
      %v3437 = vshrl.u32 %v3436, 7
      %v3438 = vsub.s32 3, %v3437
      %v3439 = vrot.slane %v3422, %v3438
      %v3444 = vmul.f32 %v2688, %v3427
      %v3445 = vmul.f32 %v2687, %v3431
      %v3446 = vmul.f32 %v2686, %v3435
      %v3447 = vmul.f32 %v2689, %v3439
      %3448 = vst [vmem:[#allocation2 + $0x140] sm:$0xf] %v3444
      %3449 = vst [vmem:[#allocation2 + $0x148] sm:$0xf] %v3445
      %3450 = vst [vmem:[#allocation2 + $0x150] sm:$0xf] %v3446
      %3451 = vst [vmem:[#allocation2 + $0x158] sm:$0xf] %v3447
      %s3452 = scalar_lea.vmem %s10, 69
      %v3453 = vld [vmem:[%s3452] ss:$8 sm:$0xf]
      %v3455 = vlaneseq
      %v3456 = vshrl.u32 %v3455, 7
      %v3457 = vsub.s32 0, %v3456
      %v3458 = vrot.slane %v3453, %v3457
      %v3459 = vlaneseq
      %v3460 = vshrl.u32 %v3459, 7
      %v3461 = vsub.s32 1, %v3460
      %v3462 = vrot.slane %v3453, %v3461
      %v3463 = vlaneseq
      %v3464 = vshrl.u32 %v3463, 7
      %v3465 = vsub.s32 2, %v3464
      %v3466 = vrot.slane %v3453, %v3465
      %v3467 = vlaneseq
      %v3468 = vshrl.u32 %v3467, 7
      %v3469 = vsub.s32 3, %v3468
      %v3470 = vrot.slane %v3453, %v3469
      %v3475 = vmul.f32 %v2732, %v3458
      %v3476 = vmul.f32 %v2731, %v3462
      %v3477 = vmul.f32 %v2730, %v3466
      %v3478 = vmul.f32 %v2733, %v3470
      %v3483 = vrot.slane %v3475, 4
      %v3484 = vrot.slane %v3476, 4
      %v3485 = vrot.slane %v3477, 4
      %v3486 = vrot.slane %v3478, 4
      %3491 = vst [vmem:[#allocation2 + $0x140] sm:$0xf0] %v3483
      %3492 = vst [vmem:[#allocation2 + $0x148] sm:$0xf0] %v3484
      %3493 = vst [vmem:[#allocation2 + $0x150] sm:$0xf0] %v3485
      %3494 = vst [vmem:[#allocation2 + $0x158] sm:$0xf0] %v3486
      %s3495 = scalar_lea.vmem %s10, 70
      %v3496 = vld [vmem:[%s3495] ss:$8 sm:$0xf]
      %v3498 = vlaneseq
      %v3499 = vshrl.u32 %v3498, 7
      %v3500 = vsub.s32 0, %v3499
      %v3501 = vrot.slane %v3496, %v3500
      %v3502 = vlaneseq
      %v3503 = vshrl.u32 %v3502, 7
      %v3504 = vsub.s32 1, %v3503
      %v3505 = vrot.slane %v3496, %v3504
      %v3506 = vlaneseq
      %v3507 = vshrl.u32 %v3506, 7
      %v3508 = vsub.s32 2, %v3507
      %v3509 = vrot.slane %v3496, %v3508
      %v3510 = vlaneseq
      %v3511 = vshrl.u32 %v3510, 7
      %v3512 = vsub.s32 3, %v3511
      %v3513 = vrot.slane %v3496, %v3512
      %v3518 = vmul.f32 %v2559, %v3501
      %v3519 = vmul.f32 %v2560, %v3505
      %v3520 = vmul.f32 %v2561, %v3509
      %v3521 = vmul.f32 %v2558, %v3513
      %3522 = vst [vmem:[#allocation2 + $0x160] sm:$0xf] %v3518
      %3523 = vst [vmem:[#allocation2 + $0x168] sm:$0xf] %v3519
      %3524 = vst [vmem:[#allocation2 + $0x170] sm:$0xf] %v3520
      %3525 = vst [vmem:[#allocation2 + $0x178] sm:$0xf] %v3521
      %s3526 = scalar_lea.vmem %s10, 71
      %v3527 = vld [vmem:[%s3526] ss:$8 sm:$0xf]
      %v3529 = vlaneseq
      %v3530 = vshrl.u32 %v3529, 7
      %v3531 = vsub.s32 0, %v3530
      %v3532 = vrot.slane %v3527, %v3531
      %v3533 = vlaneseq
      %v3534 = vshrl.u32 %v3533, 7
      %v3535 = vsub.s32 1, %v3534
      %v3536 = vrot.slane %v3527, %v3535
      %v3537 = vlaneseq
      %v3538 = vshrl.u32 %v3537, 7
      %v3539 = vsub.s32 2, %v3538
      %v3540 = vrot.slane %v3527, %v3539
      %v3541 = vlaneseq
      %v3542 = vshrl.u32 %v3541, 7
      %v3543 = vsub.s32 3, %v3542
      %v3544 = vrot.slane %v3527, %v3543
      %v3549 = vmul.f32 %v2818, %v3532
      %v3550 = vmul.f32 %v2817, %v3536
      %v3551 = vmul.f32 %v2820, %v3540
      %v3552 = vmul.f32 %v2819, %v3544
      %v3557 = vrot.slane %v3549, 4
      %v3558 = vrot.slane %v3550, 4
      %v3559 = vrot.slane %v3551, 4
      %v3560 = vrot.slane %v3552, 4
      %3565 = vst [vmem:[#allocation2 + $0x160] sm:$0xf0] %v3557
      %3566 = vst [vmem:[#allocation2 + $0x168] sm:$0xf0] %v3558
      %3567 = vst [vmem:[#allocation2 + $0x170] sm:$0xf0] %v3559
      %3568 = vst [vmem:[#allocation2 + $0x178] sm:$0xf0] %v3560
      %s3569 = scalar_lea.vmem %s10, 96
      %v3570 = vld [vmem:[%s3569] ss:$8 sm:$0xf]
      %v3572 = vlaneseq
      %v3573 = vshrl.u32 %v3572, 7
      %v3574 = vsub.s32 0, %v3573
      %v3575 = vrot.slane %v3570, %v3574
      %v3576 = vlaneseq
      %v3577 = vshrl.u32 %v3576, 7
      %v3578 = vsub.s32 1, %v3577
      %v3579 = vrot.slane %v3570, %v3578
      %v3580 = vlaneseq
      %v3581 = vshrl.u32 %v3580, 7
      %v3582 = vsub.s32 2, %v3581
      %v3583 = vrot.slane %v3570, %v3582
      %v3584 = vlaneseq
      %v3585 = vshrl.u32 %v3584, 7
      %v3586 = vsub.s32 3, %v3585
      %v3587 = vrot.slane %v3570, %v3586
      %v3592 = vmul.f32 %v2874, %v3575
      %v3593 = vmul.f32 %v2873, %v3579
      %v3594 = vmul.f32 %v2876, %v3583
      %v3595 = vmul.f32 %v2875, %v3587
      %3596 = vst [vmem:[#allocation2 + $0x180] sm:$0xf] %v3592
      %3597 = vst [vmem:[#allocation2 + $0x188] sm:$0xf] %v3593
      %3598 = vst [vmem:[#allocation2 + $0x190] sm:$0xf] %v3594
      %3599 = vst [vmem:[#allocation2 + $0x198] sm:$0xf] %v3595
      %s3600 = scalar_lea.vmem %s10, 97
      %v3601 = vld [vmem:[%s3600] ss:$8 sm:$0xf]
      %v3603 = vlaneseq
      %v3604 = vshrl.u32 %v3603, 7
      %v3605 = vsub.s32 0, %v3604
      %v3606 = vrot.slane %v3601, %v3605
      %v3607 = vlaneseq
      %v3608 = vshrl.u32 %v3607, 7
      %v3609 = vsub.s32 1, %v3608
      %v3610 = vrot.slane %v3601, %v3609
      %v3611 = vlaneseq
      %v3612 = vshrl.u32 %v3611, 7
      %v3613 = vsub.s32 2, %v3612
      %v3614 = vrot.slane %v3601, %v3613
      %v3615 = vlaneseq
      %v3616 = vshrl.u32 %v3615, 7
      %v3617 = vsub.s32 3, %v3616
      %v3618 = vrot.slane %v3601, %v3617
      %v3623 = vmul.f32 %v2918, %v3606
      %v3624 = vmul.f32 %v2917, %v3610
      %v3625 = vmul.f32 %v2920, %v3614
      %v3626 = vmul.f32 %v2919, %v3618
      %v3631 = vrot.slane %v3623, 4
      %v3632 = vrot.slane %v3624, 4
      %v3633 = vrot.slane %v3625, 4
      %v3634 = vrot.slane %v3626, 4
      %3639 = vst [vmem:[#allocation2 + $0x180] sm:$0xf0] %v3631
      %3640 = vst [vmem:[#allocation2 + $0x188] sm:$0xf0] %v3632
      %3641 = vst [vmem:[#allocation2 + $0x190] sm:$0xf0] %v3633
      %3642 = vst [vmem:[#allocation2 + $0x198] sm:$0xf0] %v3634
      %s3643 = scalar_lea.vmem %s10, 98
      %v3644 = vld [vmem:[%s3643] ss:$8 sm:$0xf]
      %v3646 = vlaneseq
      %v3647 = vshrl.u32 %v3646, 7
      %v3648 = vsub.s32 0, %v3647
      %v3649 = vrot.slane %v3644, %v3648
      %v3650 = vlaneseq
      %v3651 = vshrl.u32 %v3650, 7
      %v3652 = vsub.s32 1, %v3651
      %v3653 = vrot.slane %v3644, %v3652
      %v3654 = vlaneseq
      %v3655 = vshrl.u32 %v3654, 7
      %v3656 = vsub.s32 2, %v3655
      %v3657 = vrot.slane %v3644, %v3656
      %v3658 = vlaneseq
      %v3659 = vshrl.u32 %v3658, 7
      %v3660 = vsub.s32 3, %v3659
      %v3661 = vrot.slane %v3644, %v3660
      %v3666 = vmul.f32 %v2974, %v3649
      %v3667 = vmul.f32 %v2973, %v3653
      %v3668 = vmul.f32 %v2976, %v3657
      %v3669 = vmul.f32 %v2975, %v3661
      %3670 = vst [vmem:[#allocation2 + $0x1a0] sm:$0xf] %v3666
      %3671 = vst [vmem:[#allocation2 + $0x1a8] sm:$0xf] %v3667
      %3672 = vst [vmem:[#allocation2 + $0x1b0] sm:$0xf] %v3668
      %3673 = vst [vmem:[#allocation2 + $0x1b8] sm:$0xf] %v3669
      %v3674 = vld [vmem:[%s3] sm:$0xff]
      %v3675 = vld [vmem:[#allocation2] sm:$0xff]
      %v3676 = vld [vmem:[#allocation2 + $0x8] sm:$0xff]
      %v3677 = vld [vmem:[#allocation2 + $0x10] sm:$0xff]
      %v3678 = vld [vmem:[#allocation2 + $0x18] sm:$0xff]
      %v3679 = vld [vmem:[#allocation2 + $0x20] sm:$0xff]
      %v3680 = vld [vmem:[#allocation2 + $0x28] sm:$0xff]
      %v3681 = vld [vmem:[#allocation2 + $0x30] sm:$0xff]
      %v3682 = vld [vmem:[#allocation2 + $0x38] sm:$0xff]
      %v3683 = vld [vmem:[#allocation2 + $0x40] sm:$0xff]
      %v3684 = vld [vmem:[#allocation2 + $0x48] sm:$0xff]
      %v3685 = vld [vmem:[#allocation2 + $0x50] sm:$0xff]
      %v3686 = vld [vmem:[#allocation2 + $0x58] sm:$0xff]
      %v3687 = vld [vmem:[#allocation2 + $0x60] sm:$0xff]
      %v3688 = vld [vmem:[#allocation2 + $0x68] sm:$0xff]
      %v3689 = vld [vmem:[#allocation2 + $0x70] sm:$0xff]
      %v3690 = vld [vmem:[#allocation2 + $0x78] sm:$0xff]
      %v3691 = vld [vmem:[#allocation2 + $0x80] sm:$0xff]
      %v3692 = vld [vmem:[#allocation2 + $0x88] sm:$0xff]
      %v3693 = vld [vmem:[#allocation2 + $0x90] sm:$0xff]
      %v3694 = vld [vmem:[#allocation2 + $0x98] sm:$0xff]
      %v3695 = vld [vmem:[#allocation2 + $0xa0] sm:$0xff]
      %v3696 = vld [vmem:[#allocation2 + $0xa8] sm:$0xff]
      %v3697 = vld [vmem:[#allocation2 + $0xb0] sm:$0xff]
      %v3698 = vld [vmem:[#allocation2 + $0xb8] sm:$0xff]
      %v3699 = vld [vmem:[#allocation2 + $0xc0] sm:$0xff]
      %v3700 = vld [vmem:[#allocation2 + $0xc8] sm:$0xff]
      %v3701 = vld [vmem:[#allocation2 + $0xd0] sm:$0xff]
      %v3702 = vld [vmem:[#allocation2 + $0xd8] sm:$0xff]
      %v3703 = vld [vmem:[#allocation2 + $0xe0] sm:$0xff]
      %v3704 = vld [vmem:[#allocation2 + $0xe8] sm:$0xff]
      %v3705 = vld [vmem:[#allocation2 + $0xf0] sm:$0xff]
      %v3706 = vld [vmem:[#allocation2 + $0xf8] sm:$0xff]
      %v3707 = vld [vmem:[#allocation2 + $0x100] sm:$0xff]
      %v3708 = vld [vmem:[#allocation2 + $0x108] sm:$0xff]
      %v3709 = vld [vmem:[#allocation2 + $0x110] sm:$0xff]
      %v3710 = vld [vmem:[#allocation2 + $0x118] sm:$0xff]
      %v3711 = vld [vmem:[#allocation2 + $0x120] sm:$0xff]
      %v3712 = vld [vmem:[#allocation2 + $0x128] sm:$0xff]
      %v3713 = vld [vmem:[#allocation2 + $0x130] sm:$0xff]
      %v3714 = vld [vmem:[#allocation2 + $0x138] sm:$0xff]
      %v3715 = vld [vmem:[#allocation2 + $0x140] sm:$0xff]
      %v3716 = vld [vmem:[#allocation2 + $0x148] sm:$0xff]
      %v3717 = vld [vmem:[#allocation2 + $0x150] sm:$0xff]
      %v3718 = vld [vmem:[#allocation2 + $0x158] sm:$0xff]
      %v3719 = vld [vmem:[#allocation2 + $0x160] sm:$0xff]
      %v3720 = vld [vmem:[#allocation2 + $0x168] sm:$0xff]
      %v3721 = vld [vmem:[#allocation2 + $0x170] sm:$0xff]
      %v3722 = vld [vmem:[#allocation2 + $0x178] sm:$0xff]
      %v3723 = vld [vmem:[#allocation2 + $0x180] sm:$0xff]
      %v3724 = vld [vmem:[#allocation2 + $0x188] sm:$0xff]
      %v3725 = vld [vmem:[#allocation2 + $0x190] sm:$0xff]
      %v3726 = vld [vmem:[#allocation2 + $0x198] sm:$0xff]
      %v3727 = vld [vmem:[#allocation2 + $0x1a0] sm:$0xff]
      %v3728 = vld [vmem:[#allocation2 + $0x1a8] sm:$0xff]
      %v3729 = vld [vmem:[#allocation2 + $0x1b0] sm:$0xff]
      %v3730 = vld [vmem:[#allocation2 + $0x1b8] sm:$0xff]
      %v3731 = vld [vmem:[%s4] sm:$0xff]
      %3733 = vset.pattern.permute.xlu0 0
      %3734 = vperm.xlu0 %3733, %v3731
      %v3735 = vpop.permute.xlu0 %3734
      %vm3737 = vcmask 916480
      %v3739 = vsel %vm3737, %v3674, 0
      %3741 = vmatprep.subr.mxu0 0.0
      %3742 = vmatpush1.msra.mxu0 0.0
      %3743 = vmatprep.subr.mxu0 0.0
      %3744 = vmatpush1.msra.mxu0 0.0
      %3745 = vmatprep.subr.mxu0 %v3728
      %3746 = vmatpush1.msra.mxu0 %v3727
      %3747 = vmatprep.subr.mxu0 %v3724
      %3748 = vmatpush1.msra.mxu0 %v3723
      %3749 = vmatprep.subr.mxu0 %v3720
      %3750 = vmatpush1.msra.mxu0 %v3719
      %3751 = vmatprep.subr.mxu0 %v3716
      %3752 = vmatpush1.msra.mxu0 %v3715
      %3753 = vmatprep.subr.mxu0 %v3712
      %3754 = vmatpush1.msra.mxu0 %v3711
      %3755 = vmatprep.subr.mxu0 %v3708
      %3756 = vmatpush1.msra.mxu0 %v3707
      %3757 = vmatprep.subr.mxu0 %v3704
      %3758 = vmatpush1.msra.mxu0 %v3703
      %3759 = vmatprep.subr.mxu0 %v3700
      %3760 = vmatpush1.msra.mxu0 %v3699
      %3761 = vmatprep.subr.mxu0 %v3696
      %3762 = vmatpush1.msra.mxu0 %v3695
      %3763 = vmatprep.subr.mxu0 %v3692
      %3764 = vmatpush1.msra.mxu0 %v3691
      %3765 = vmatprep.subr.mxu0 %v3688
      %3766 = vmatpush1.msra.mxu0 %v3687
      %3767 = vmatprep.subr.mxu0 %v3684
      %3768 = vmatpush1.msra.mxu0 %v3683
      %3769 = vmatprep.subr.mxu0 %v3680
      %3770 = vmatpush1.msra.mxu0 %v3679
      %3771 = vmatprep.subr.mxu0 %v3676
      %3772 = vmatpush1.msra.mxu0 %v3675
      %3773 = vmatprep.subr.mxu0 0.0
      %3774 = vmatpush2.msra.mxu0 0.0
      %3775 = vmatprep.subr.mxu0 0.0
      %3776 = vmatpush2.msra.mxu0 0.0
      %3777 = vmatprep.subr.mxu0 0.0
      %3778 = vmatpush2.msra.mxu0 0.0
      %3779 = vmatprep.subr.mxu0 0.0
      %3780 = vmatpush2.msra.mxu0 0.0
      %3781 = vmatprep.subr.mxu0 0.0
      %3782 = vmatpush2.msra.mxu0 0.0
      %3783 = vmatprep.subr.mxu0 0.0
      %3784 = vmatpush2.msra.mxu0 0.0
      %3785 = vmatprep.subr.mxu0 0.0
      %3786 = vmatpush2.msra.mxu0 0.0
      %3787 = vmatprep.subr.mxu0 0.0
      %3788 = vmatpush2.msra.mxu0 0.0
      %3789 = vmatprep.subr.mxu0 0.0
      %3790 = vmatpush2.msra.mxu0 0.0
      %3791 = vmatprep.subr.mxu0 0.0
      %3792 = vmatpush2.msra.mxu0 0.0
      %3793 = vmatprep.subr.mxu0 0.0
      %3794 = vmatpush2.msra.mxu0 0.0
      %3795 = vmatprep.subr.mxu0 0.0
      %3796 = vmatpush2.msra.mxu0 0.0
      %3797 = vmatprep.subr.mxu0 0.0
      %3798 = vmatpush2.msra.mxu0 0.0
      %3799 = vmatprep.subr.mxu0 0.0
      %3800 = vmatpush2.msra.mxu0 0.0
      %3801 = vmatprep.subr.mxu0 0.0
      %3802 = vmatpush2.msra.mxu0 0.0
      %3803 = vmatprep.subr.mxu0 0.0
      %3804 = vmatpush2.msra.mxu0 0.0
      %3805 = vmatprep.mubr.f32.mxu0 0.0
      %3806 = vmatmul.mubr.f32.gmra.mxu0 %v3739
      %v3807 = vpop.f32.mrf.mxu0
      %v3808 = vadd.f32 %v3735, %v3807
      %v3809 = vpop.f32.mrf.mxu0
      %v3810 = vadd.f32 %v3735, %v3809
      %3811 = vdwg.mxu0
      %3812 = vmatprep.subr.mxu0 0.0
      %3813 = vmatpush1.msra.mxu0 0.0
      %3814 = vmatprep.subr.mxu0 0.0
      %3815 = vmatpush1.msra.mxu0 0.0
      %3816 = vmatprep.subr.mxu0 %v3730
      %3817 = vmatpush1.msra.mxu0 %v3729
      %3818 = vmatprep.subr.mxu0 %v3726
      %3819 = vmatpush1.msra.mxu0 %v3725
      %3820 = vmatprep.subr.mxu0 %v3722
      %3821 = vmatpush1.msra.mxu0 %v3721
      %3822 = vmatprep.subr.mxu0 %v3718
      %3823 = vmatpush1.msra.mxu0 %v3717
      %3824 = vmatprep.subr.mxu0 %v3714
      %3825 = vmatpush1.msra.mxu0 %v3713
      %3826 = vmatprep.subr.mxu0 %v3710
      %3827 = vmatpush1.msra.mxu0 %v3709
      %3828 = vmatprep.subr.mxu0 %v3706
      %3829 = vmatpush1.msra.mxu0 %v3705
      %3830 = vmatprep.subr.mxu0 %v3702
      %3831 = vmatpush1.msra.mxu0 %v3701
      %3832 = vmatprep.subr.mxu0 %v3698
      %3833 = vmatpush1.msra.mxu0 %v3697
      %3834 = vmatprep.subr.mxu0 %v3694
      %3835 = vmatpush1.msra.mxu0 %v3693
      %3836 = vmatprep.subr.mxu0 %v3690
      %3837 = vmatpush1.msra.mxu0 %v3689
      %3838 = vmatprep.subr.mxu0 %v3686
      %3839 = vmatpush1.msra.mxu0 %v3685
      %3840 = vmatprep.subr.mxu0 %v3682
      %3841 = vmatpush1.msra.mxu0 %v3681
      %3842 = vmatprep.subr.mxu0 %v3678
      %3843 = vmatpush1.msra.mxu0 %v3677
      %3844 = vmatprep.subr.mxu0 0.0
      %3845 = vmatpush2.msra.mxu0 0.0
      %3846 = vmatprep.subr.mxu0 0.0
      %3847 = vmatpush2.msra.mxu0 0.0
      %3848 = vmatprep.subr.mxu0 0.0
      %3849 = vmatpush2.msra.mxu0 0.0
      %3850 = vmatprep.subr.mxu0 0.0
      %3851 = vmatpush2.msra.mxu0 0.0
      %3852 = vmatprep.subr.mxu0 0.0
      %3853 = vmatpush2.msra.mxu0 0.0
      %3854 = vmatprep.subr.mxu0 0.0
      %3855 = vmatpush2.msra.mxu0 0.0
      %3856 = vmatprep.subr.mxu0 0.0
      %3857 = vmatpush2.msra.mxu0 0.0
      %3858 = vmatprep.subr.mxu0 0.0
      %3859 = vmatpush2.msra.mxu0 0.0
      %3860 = vmatprep.subr.mxu0 0.0
      %3861 = vmatpush2.msra.mxu0 0.0
      %3862 = vmatprep.subr.mxu0 0.0
      %3863 = vmatpush2.msra.mxu0 0.0
      %3864 = vmatprep.subr.mxu0 0.0
      %3865 = vmatpush2.msra.mxu0 0.0
      %3866 = vmatprep.subr.mxu0 0.0
      %3867 = vmatpush2.msra.mxu0 0.0
      %3868 = vmatprep.subr.mxu0 0.0
      %3869 = vmatpush2.msra.mxu0 0.0
      %3870 = vmatprep.subr.mxu0 0.0
      %3871 = vmatpush2.msra.mxu0 0.0
      %3872 = vmatprep.subr.mxu0 0.0
      %3873 = vmatpush2.msra.mxu0 0.0
      %3874 = vmatprep.subr.mxu0 0.0
      %3875 = vmatpush2.msra.mxu0 0.0
      %3876 = vmatprep.mubr.f32.mxu0 0.0
      %3877 = vmatmul.mubr.f32.gmra.mxu0 %v3739
      %v3878 = vpop.f32.mrf.mxu0
      %v3879 = vadd.f32 %v3735, %v3878
      %v3880 = vpop.f32.mrf.mxu0
      %v3881 = vadd.f32 %v3735, %v3880
      %3882 = vdwg.mxu0
      %v3883 = vmax.f32 %v3808, 0.0
      %v3884 = vmax.f32 %v3810, 0.0
      %v3885 = vmax.f32 %v3879, 0.0
      %v3886 = vmax.f32 %v3881, 0.0
      %v3887 = vld [vmem:[%s3156] ss:$8 sm:$0xf]
      %v3889 = vlaneseq
      %v3890 = vshrl.u32 %v3889, 7
      %v3891 = vsub.s32 0, %v3890
      %v3892 = vrot.slane %v3887, %v3891
      %v3893 = vlaneseq
      %v3894 = vshrl.u32 %v3893, 7
      %v3895 = vsub.s32 1, %v3894
      %v3896 = vrot.slane %v3887, %v3895
      %v3897 = vlaneseq
      %v3898 = vshrl.u32 %v3897, 7
      %v3899 = vsub.s32 2, %v3898
      %v3900 = vrot.slane %v3887, %v3899
      %v3901 = vlaneseq
      %v3902 = vshrl.u32 %v3901, 7
      %v3903 = vsub.s32 3, %v3902
      %v3904 = vrot.slane %v3887, %v3903
      %v3909 = vmul.f32 %v3883, %v3892
      %v3910 = vmul.f32 %v3884, %v3896
      %v3911 = vmul.f32 %v3885, %v3900
      %v3912 = vmul.f32 %v3886, %v3904
      %3913 = vrot.lane.b32.xlu0 %v3909, 126
      %v3914 = vpop.permute.xlu0 %3913
      %3915 = vrot.lane.b32.xlu0 %v3910, 126
      %v3916 = vpop.permute.xlu0 %3915
      %3917 = vrot.lane.b32.xlu0 %v3911, 126
      %v3918 = vpop.permute.xlu0 %3917
      %3919 = vrot.lane.b32.xlu0 %v3912, 126
      %v3920 = vpop.permute.xlu0 %3919
      %v3921 = vsel %vm2816, %v3918, %v3920
      %v3922 = vsel %vm2816, %v3916, %v3918
      %v3923 = vsel %vm2816, %v3914, %v3916
      %v3924 = vsel %vm2816, %v3920, %v3914
      %vm3925 = vcmp.gt.f32.partialorder %v3923, %v3909
      %vm3926 = vcmp.gt.f32.partialorder %v3922, %v3910
      %vm3927 = vcmp.gt.f32.partialorder %v3921, %v3911
      %vm3928 = vcmp.gt.f32.partialorder %v3924, %v3912
      %v3929 = vsel %vm3925, 1, 0
      %v3930 = vsel %vm3926, 1, 0
      %v3931 = vsel %vm3927, 1, 0
      %v3932 = vsel %vm3928, 1, 0
      %v3933 = vcvt.s32.f32 %v3929
      %v3934 = vcvt.s32.f32 %v3930
      %v3935 = vcvt.s32.f32 %v3931
      %v3936 = vcvt.s32.f32 %v3932
      %v3937 = vmax.f32 %v3909, %v3923
      %v3938 = vmax.f32 %v3910, %v3922
      %v3939 = vmax.f32 %v3911, %v3921
      %v3940 = vmax.f32 %v3912, %v3924
      %3941 = vrot.lane.b32.xlu0 %v3937, 112
      %v3942 = vpop.permute.xlu0 %3941
      %3943 = vrot.lane.b32.xlu0 %v3938, 112
      %v3944 = vpop.permute.xlu0 %3943
      %3945 = vrot.lane.b32.xlu0 %v3939, 112
      %v3946 = vpop.permute.xlu0 %3945
      %3947 = vrot.lane.b32.xlu0 %v3940, 112
      %v3948 = vpop.permute.xlu0 %3947
      %v3949 = vsel %vm2916, %v3946, %v3948
      %v3950 = vsel %vm2916, %v3944, %v3946
      %v3951 = vsel %vm2916, %v3942, %v3944
      %v3952 = vsel %vm2916, %v3948, %v3942
      %3953 = vrot.lane.b32.xlu0 %v3933, 112
      %v3954 = vpop.permute.xlu0 %3953
      %3955 = vrot.lane.b32.xlu0 %v3934, 112
      %v3956 = vpop.permute.xlu0 %3955
      %3957 = vrot.lane.b32.xlu0 %v3935, 112
      %v3958 = vpop.permute.xlu0 %3957
      %3959 = vrot.lane.b32.xlu0 %v3936, 112
      %v3960 = vpop.permute.xlu0 %3959
      %v3961 = vsel %vm2916, %v3958, %v3960
      %v3962 = vsel %vm2916, %v3956, %v3958
      %v3963 = vsel %vm2916, %v3954, %v3956
      %v3964 = vsel %vm2916, %v3960, %v3954
      %vm3965 = vcmp.gt.f32.partialorder %v3951, %v3937
      %vm3966 = vcmp.gt.f32.partialorder %v3950, %v3938
      %vm3967 = vcmp.gt.f32.partialorder %v3949, %v3939
      %vm3968 = vcmp.gt.f32.partialorder %v3952, %v3940
      %v3969 = vsel %vm3965, 1, 0
      %v3970 = vsel %vm3966, 1, 0
      %v3971 = vsel %vm3967, 1, 0
      %v3972 = vsel %vm3968, 1, 0
      %v3973 = vcvt.s32.f32 %v3969
      %v3974 = vcvt.s32.f32 %v3970
      %v3975 = vcvt.s32.f32 %v3971
      %v3976 = vcvt.s32.f32 %v3972
      %v3977 = vsel %vm3965, %v3963, %v3933
      %v3978 = vsel %vm3966, %v3962, %v3934
      %v3979 = vsel %vm3967, %v3961, %v3935
      %v3980 = vsel %vm3968, %v3964, %v3936
      %v3981 = vmax.f32 %v3937, %v3951
      %v3982 = vmax.f32 %v3938, %v3950
      %v3983 = vmax.f32 %v3939, %v3949
      %v3984 = vmax.f32 %v3940, %v3952
      %vm3985 = vcmp.gt.f32.partialorder %v3982, %v3981
      %vm3986 = vcmp.gt.f32.partialorder %v3983, %v3982
      %vm3987 = vcmp.gt.f32.partialorder %v3984, %v3983
      %vm3988 = vcmp.gt.f32.partialorder %v3981, %v3984
      %v3989 = vsel %vm3985, 1, 0
      %v3990 = vsel %vm3986, 1, 0
      %v3991 = vsel %vm3987, 1, 0
      %v3992 = vsel %vm3988, 1, 0
      %v3993 = vcvt.s32.f32 %v3989
      %v3994 = vcvt.s32.f32 %v3990
      %v3995 = vcvt.s32.f32 %v3991
      %v3996 = vcvt.s32.f32 %v3992
      %v3997 = vsel %vm3985, %v3978, %v3977
      %v3998 = vsel %vm3986, %v3979, %v3978
      %v3999 = vsel %vm3987, %v3980, %v3979
      %v4000 = vsel %vm3988, %v3977, %v3980
      %v4001 = vsel %vm3985, %v3974, %v3973
      %v4002 = vsel %vm3986, %v3975, %v3974
      %v4003 = vsel %vm3987, %v3976, %v3975
      %v4004 = vsel %vm3988, %v3973, %v3976
      %v4005 = vmax.f32 %v3981, %v3982
      %v4006 = vmax.f32 %v3982, %v3983
      %v4007 = vmax.f32 %v3983, %v3984
      %v4008 = vmax.f32 %v3984, %v3981
      %v4009 = vmul.f32 %v3993, 4.0
      %v4010 = vmul.f32 %v3994, 4.0
      %v4011 = vmul.f32 %v3995, 4.0
      %v4012 = vmul.f32 %v3996, 4.0
      %v4013 = vmul.f32 %v4001, 2.0
      %v4014 = vmul.f32 %v4002, 2.0
      %v4015 = vmul.f32 %v4003, 2.0
      %v4016 = vmul.f32 %v4004, 2.0
      %v4017 = vadd.f32 %v4009, %v4013
      %v4018 = vadd.f32 %v4010, %v4014
      %v4019 = vadd.f32 %v4011, %v4015
      %v4020 = vadd.f32 %v4012, %v4016
      %v4021 = vadd.f32 %v4017, %v3997
      %v4022 = vadd.f32 %v4018, %v3998
      %v4023 = vadd.f32 %v4019, %v3999
      %v4024 = vadd.f32 %v4020, %v4000
      %v4025 = vld [vmem:[%s12] sm:$0xf]
      %vm4026 = vcmp.eq.f32.partialorder %v4025, 0.0
      %vm4027 = vcmp.eq.f32.partialorder %v4021, 0.0
      %vm4028 = vcmp.eq.f32.partialorder %v4022, 0.0
      %vm4029 = vcmp.eq.f32.partialorder %v4023, 0.0
      %vm4030 = vcmp.eq.f32.partialorder %v4024, 0.0
      %v4031 = vsel %vm4026, 1, 0
      %v4032 = vlaneseq
      %v4033 = vshrl.u32 %v4032, 7
      %v4034 = vsub.s32 0, %v4033
      %v4035 = vrot.slane %v4031, %v4034
      %v4036 = vlaneseq
      %v4037 = vshrl.u32 %v4036, 7
      %v4038 = vsub.s32 1, %v4037
      %v4039 = vrot.slane %v4031, %v4038
      %v4040 = vlaneseq
      %v4041 = vshrl.u32 %v4040, 7
      %v4042 = vsub.s32 2, %v4041
      %v4043 = vrot.slane %v4031, %v4042
      %v4044 = vlaneseq
      %v4045 = vshrl.u32 %v4044, 7
      %v4046 = vsub.s32 3, %v4045
      %v4047 = vrot.slane %v4031, %v4046
      %vm4048 = vcmp.eq.s32.totalorder %v4035, 1
      %vm4049 = vcmp.eq.s32.totalorder %v4039, 1
      %vm4050 = vcmp.eq.s32.totalorder %v4043, 1
      %vm4051 = vcmp.eq.s32.totalorder %v4047, 1
      %vm4052 = vmand %vm4048, %vm4027
      %vm4053 = vmand %vm4049, %vm4028
      %vm4054 = vmand %vm4050, %vm4029
      %vm4055 = vmand %vm4051, %vm4030
      %v4056 = vsel %vm4052, %v4005, 0.0
      %v4057 = vsel %vm4053, %v4006, 0.0
      %v4058 = vsel %vm4054, %v4007, 0.0
      %v4059 = vsel %vm4055, %v4008, 0.0
      %v4060 = vadd.f32 %v4056, 0.0
      %v4061 = vadd.f32 %v4057, 0.0
      %v4062 = vadd.f32 %v4058, 0.0
      %v4063 = vadd.f32 %v4059, 0.0
      %vm4064 = vcmp.eq.f32.partialorder %v4025, 1.0
      %4065 = vrot.lane.b32.xlu0 %v4021, 2
      %v4066 = vpop.permute.xlu0 %4065
      %4067 = vrot.lane.b32.xlu0 %v4022, 2
      %v4068 = vpop.permute.xlu0 %4067
      %4069 = vrot.lane.b32.xlu0 %v4023, 2
      %v4070 = vpop.permute.xlu0 %4069
      %4071 = vrot.lane.b32.xlu0 %v4024, 2
      %v4072 = vpop.permute.xlu0 %4071
      %v4073 = vsel %vm2729, %v4070, %v4072
      %v4074 = vsel %vm2729, %v4068, %v4070
      %v4075 = vsel %vm2729, %v4066, %v4068
      %v4076 = vsel %vm2729, %v4072, %v4066
      %vm4077 = vcmp.eq.f32.partialorder %v4076, 1.0
      %vm4078 = vcmp.eq.f32.partialorder %v4075, 1.0
      %vm4079 = vcmp.eq.f32.partialorder %v4074, 1.0
      %vm4080 = vcmp.eq.f32.partialorder %v4073, 1.0
      %v4081 = vsel %vm4064, 1, 0
      %v4082 = vlaneseq
      %v4083 = vshrl.u32 %v4082, 7
      %v4084 = vsub.s32 0, %v4083
      %v4085 = vrot.slane %v4081, %v4084
      %v4086 = vlaneseq
      %v4087 = vshrl.u32 %v4086, 7
      %v4088 = vsub.s32 1, %v4087
      %v4089 = vrot.slane %v4081, %v4088
      %v4090 = vlaneseq
      %v4091 = vshrl.u32 %v4090, 7
      %v4092 = vsub.s32 2, %v4091
      %v4093 = vrot.slane %v4081, %v4092
      %v4094 = vlaneseq
      %v4095 = vshrl.u32 %v4094, 7
      %v4096 = vsub.s32 3, %v4095
      %v4097 = vrot.slane %v4081, %v4096
      %vm4098 = vcmp.eq.s32.totalorder %v4085, 1
      %vm4099 = vcmp.eq.s32.totalorder %v4089, 1
      %vm4100 = vcmp.eq.s32.totalorder %v4093, 1
      %vm4101 = vcmp.eq.s32.totalorder %v4097, 1
      %vm4102 = vmand %vm4098, %vm4077
      %vm4103 = vmand %vm4099, %vm4078
      %vm4104 = vmand %vm4100, %vm4079
      %vm4105 = vmand %vm4101, %vm4080
      %4106 = vrot.lane.b32.xlu0 %v4005, 2
      %v4107 = vpop.permute.xlu0 %4106
      %4108 = vrot.lane.b32.xlu0 %v4006, 2
      %v4109 = vpop.permute.xlu0 %4108
      %4110 = vrot.lane.b32.xlu0 %v4007, 2
      %v4111 = vpop.permute.xlu0 %4110
      %4112 = vrot.lane.b32.xlu0 %v4008, 2
      %v4113 = vpop.permute.xlu0 %4112
      %v4114 = vsel %vm2729, %v4111, %v4113
      %v4115 = vsel %vm2729, %v4109, %v4111
      %v4116 = vsel %vm2729, %v4107, %v4109
      %v4117 = vsel %vm2729, %v4113, %v4107
      %v4118 = vsel %vm4102, %v4117, 0.0
      %v4119 = vsel %vm4103, %v4116, 0.0
      %v4120 = vsel %vm4104, %v4115, 0.0
      %v4121 = vsel %vm4105, %v4114, 0.0
      %v4122 = vadd.f32 %v4060, %v4118
      %v4123 = vadd.f32 %v4061, %v4119
      %v4124 = vadd.f32 %v4062, %v4120
      %v4125 = vadd.f32 %v4063, %v4121
      %vm4126 = vcmp.eq.f32.partialorder %v4025, 2.0
      %4127 = vrot.lane.b32.xlu0 %v4021, 16
      %v4128 = vpop.permute.xlu0 %4127
      %4129 = vrot.lane.b32.xlu0 %v4022, 16
      %v4130 = vpop.permute.xlu0 %4129
      %4131 = vrot.lane.b32.xlu0 %v4023, 16
      %v4132 = vpop.permute.xlu0 %4131
      %4133 = vrot.lane.b32.xlu0 %v4024, 16
      %v4134 = vpop.permute.xlu0 %4133
      %v4135 = vsel %vm2629, %v4132, %v4134
      %v4136 = vsel %vm2629, %v4130, %v4132
      %v4137 = vsel %vm2629, %v4128, %v4130
      %v4138 = vsel %vm2629, %v4134, %v4128
      %vm4139 = vcmp.eq.f32.partialorder %v4138, 2.0
      %vm4140 = vcmp.eq.f32.partialorder %v4137, 2.0
      %vm4141 = vcmp.eq.f32.partialorder %v4136, 2.0
      %vm4142 = vcmp.eq.f32.partialorder %v4135, 2.0
      %v4143 = vsel %vm4126, 1, 0
      %v4144 = vlaneseq
      %v4145 = vshrl.u32 %v4144, 7
      %v4146 = vsub.s32 0, %v4145
      %v4147 = vrot.slane %v4143, %v4146
      %v4148 = vlaneseq
      %v4149 = vshrl.u32 %v4148, 7
      %v4150 = vsub.s32 1, %v4149
      %v4151 = vrot.slane %v4143, %v4150
      %v4152 = vlaneseq
      %v4153 = vshrl.u32 %v4152, 7
      %v4154 = vsub.s32 2, %v4153
      %v4155 = vrot.slane %v4143, %v4154
      %v4156 = vlaneseq
      %v4157 = vshrl.u32 %v4156, 7
      %v4158 = vsub.s32 3, %v4157
      %v4159 = vrot.slane %v4143, %v4158
      %vm4160 = vcmp.eq.s32.totalorder %v4147, 1
      %vm4161 = vcmp.eq.s32.totalorder %v4151, 1
      %vm4162 = vcmp.eq.s32.totalorder %v4155, 1
      %vm4163 = vcmp.eq.s32.totalorder %v4159, 1
      %vm4164 = vmand %vm4160, %vm4139
      %vm4165 = vmand %vm4161, %vm4140
      %vm4166 = vmand %vm4162, %vm4141
      %vm4167 = vmand %vm4163, %vm4142
      %4168 = vrot.lane.b32.xlu0 %v4005, 16
      %v4169 = vpop.permute.xlu0 %4168
      %4170 = vrot.lane.b32.xlu0 %v4006, 16
      %v4171 = vpop.permute.xlu0 %4170
      %4172 = vrot.lane.b32.xlu0 %v4007, 16
      %v4173 = vpop.permute.xlu0 %4172
      %4174 = vrot.lane.b32.xlu0 %v4008, 16
      %v4175 = vpop.permute.xlu0 %4174
      %v4176 = vsel %vm2629, %v4173, %v4175
      %v4177 = vsel %vm2629, %v4171, %v4173
      %v4178 = vsel %vm2629, %v4169, %v4171
      %v4179 = vsel %vm2629, %v4175, %v4169
      %v4180 = vsel %vm4164, %v4179, 0.0
      %v4181 = vsel %vm4165, %v4178, 0.0
      %v4182 = vsel %vm4166, %v4177, 0.0
      %v4183 = vsel %vm4167, %v4176, 0.0
      %v4184 = vadd.f32 %v4122, %v4180
      %v4185 = vadd.f32 %v4123, %v4181
      %v4186 = vadd.f32 %v4124, %v4182
      %v4187 = vadd.f32 %v4125, %v4183
      %vm4188 = vcmp.eq.f32.partialorder %v4025, 3.0
      %4189 = vrot.lane.b32.xlu0 %v4021, 18
      %v4190 = vpop.permute.xlu0 %4189
      %4191 = vrot.lane.b32.xlu0 %v4022, 18
      %v4192 = vpop.permute.xlu0 %4191
      %4193 = vrot.lane.b32.xlu0 %v4023, 18
      %v4194 = vpop.permute.xlu0 %4193
      %4195 = vrot.lane.b32.xlu0 %v4024, 18
      %v4196 = vpop.permute.xlu0 %4195
      %v4197 = vsel %vm2586, %v4194, %v4196
      %v4198 = vsel %vm2586, %v4192, %v4194
      %v4199 = vsel %vm2586, %v4190, %v4192
      %v4200 = vsel %vm2586, %v4196, %v4190
      %vm4201 = vcmp.eq.f32.partialorder %v4200, 3.0
      %vm4202 = vcmp.eq.f32.partialorder %v4199, 3.0
      %vm4203 = vcmp.eq.f32.partialorder %v4198, 3.0
      %vm4204 = vcmp.eq.f32.partialorder %v4197, 3.0
      %v4205 = vsel %vm4188, 1, 0
      %v4206 = vlaneseq
      %v4207 = vshrl.u32 %v4206, 7
      %v4208 = vsub.s32 0, %v4207
      %v4209 = vrot.slane %v4205, %v4208
      %v4210 = vlaneseq
      %v4211 = vshrl.u32 %v4210, 7
      %v4212 = vsub.s32 1, %v4211
      %v4213 = vrot.slane %v4205, %v4212
      %v4214 = vlaneseq
      %v4215 = vshrl.u32 %v4214, 7
      %v4216 = vsub.s32 2, %v4215
      %v4217 = vrot.slane %v4205, %v4216
      %v4218 = vlaneseq
      %v4219 = vshrl.u32 %v4218, 7
      %v4220 = vsub.s32 3, %v4219
      %v4221 = vrot.slane %v4205, %v4220
      %vm4222 = vcmp.eq.s32.totalorder %v4209, 1
      %vm4223 = vcmp.eq.s32.totalorder %v4213, 1
      %vm4224 = vcmp.eq.s32.totalorder %v4217, 1
      %vm4225 = vcmp.eq.s32.totalorder %v4221, 1
      %vm4226 = vmand %vm4222, %vm4201
      %vm4227 = vmand %vm4223, %vm4202
      %vm4228 = vmand %vm4224, %vm4203
      %vm4229 = vmand %vm4225, %vm4204
      %4230 = vrot.lane.b32.xlu0 %v4005, 18
      %v4231 = vpop.permute.xlu0 %4230
      %4232 = vrot.lane.b32.xlu0 %v4006, 18
      %v4233 = vpop.permute.xlu0 %4232
      %4234 = vrot.lane.b32.xlu0 %v4007, 18
      %v4235 = vpop.permute.xlu0 %4234
      %4236 = vrot.lane.b32.xlu0 %v4008, 18
      %v4237 = vpop.permute.xlu0 %4236
      %v4238 = vsel %vm2586, %v4235, %v4237
      %v4239 = vsel %vm2586, %v4233, %v4235
      %v4240 = vsel %vm2586, %v4231, %v4233
      %v4241 = vsel %vm2586, %v4237, %v4231
      %v4242 = vsel %vm4226, %v4241, 0.0
      %v4243 = vsel %vm4227, %v4240, 0.0
      %v4244 = vsel %vm4228, %v4239, 0.0
      %v4245 = vsel %vm4229, %v4238, 0.0
      %v4246 = vadd.f32 %v4184, %v4242
      %v4247 = vadd.f32 %v4185, %v4243
      %v4248 = vadd.f32 %v4186, %v4244
      %v4249 = vadd.f32 %v4187, %v4245
      %vm4250 = vcmp.eq.f32.partialorder %v4025, 4.0
      %vm4251 = vcmp.eq.f32.partialorder %v4024, 4.0
      %vm4252 = vcmp.eq.f32.partialorder %v4021, 4.0
      %vm4253 = vcmp.eq.f32.partialorder %v4022, 4.0
      %vm4254 = vcmp.eq.f32.partialorder %v4023, 4.0
      %v4255 = vsel %vm4250, 1, 0
      %v4256 = vlaneseq
      %v4257 = vshrl.u32 %v4256, 7
      %v4258 = vsub.s32 0, %v4257
      %v4259 = vrot.slane %v4255, %v4258
      %v4260 = vlaneseq
      %v4261 = vshrl.u32 %v4260, 7
      %v4262 = vsub.s32 1, %v4261
      %v4263 = vrot.slane %v4255, %v4262
      %v4264 = vlaneseq
      %v4265 = vshrl.u32 %v4264, 7
      %v4266 = vsub.s32 2, %v4265
      %v4267 = vrot.slane %v4255, %v4266
      %v4268 = vlaneseq
      %v4269 = vshrl.u32 %v4268, 7
      %v4270 = vsub.s32 3, %v4269
      %v4271 = vrot.slane %v4255, %v4270
      %vm4272 = vcmp.eq.s32.totalorder %v4259, 1
      %vm4273 = vcmp.eq.s32.totalorder %v4263, 1
      %vm4274 = vcmp.eq.s32.totalorder %v4267, 1
      %vm4275 = vcmp.eq.s32.totalorder %v4271, 1
      %vm4276 = vmand %vm4272, %vm4251
      %vm4277 = vmand %vm4273, %vm4252
      %vm4278 = vmand %vm4274, %vm4253
      %vm4279 = vmand %vm4275, %vm4254
      %v4280 = vsel %vm4276, %v4008, 0.0
      %v4281 = vsel %vm4277, %v4005, 0.0
      %v4282 = vsel %vm4278, %v4006, 0.0
      %v4283 = vsel %vm4279, %v4007, 0.0
      %v4284 = vadd.f32 %v4246, %v4280
      %v4285 = vadd.f32 %v4247, %v4281
      %v4286 = vadd.f32 %v4248, %v4282
      %v4287 = vadd.f32 %v4249, %v4283
      %vm4288 = vcmp.eq.f32.partialorder %v4025, 5.0
      %vm4289 = vcmp.eq.f32.partialorder %v4073, 5.0
      %vm4290 = vcmp.eq.f32.partialorder %v4076, 5.0
      %vm4291 = vcmp.eq.f32.partialorder %v4075, 5.0
      %vm4292 = vcmp.eq.f32.partialorder %v4074, 5.0
      %v4293 = vsel %vm4288, 1, 0
      %v4294 = vlaneseq
      %v4295 = vshrl.u32 %v4294, 7
      %v4296 = vsub.s32 0, %v4295
      %v4297 = vrot.slane %v4293, %v4296
      %v4298 = vlaneseq
      %v4299 = vshrl.u32 %v4298, 7
      %v4300 = vsub.s32 1, %v4299
      %v4301 = vrot.slane %v4293, %v4300
      %v4302 = vlaneseq
      %v4303 = vshrl.u32 %v4302, 7
      %v4304 = vsub.s32 2, %v4303
      %v4305 = vrot.slane %v4293, %v4304
      %v4306 = vlaneseq
      %v4307 = vshrl.u32 %v4306, 7
      %v4308 = vsub.s32 3, %v4307
      %v4309 = vrot.slane %v4293, %v4308
      %vm4310 = vcmp.eq.s32.totalorder %v4297, 1
      %vm4311 = vcmp.eq.s32.totalorder %v4301, 1
      %vm4312 = vcmp.eq.s32.totalorder %v4305, 1
      %vm4313 = vcmp.eq.s32.totalorder %v4309, 1
      %vm4314 = vmand %vm4310, %vm4289
      %vm4315 = vmand %vm4311, %vm4290
      %vm4316 = vmand %vm4312, %vm4291
      %vm4317 = vmand %vm4313, %vm4292
      %v4318 = vsel %vm4314, %v4114, 0.0
      %v4319 = vsel %vm4315, %v4117, 0.0
      %v4320 = vsel %vm4316, %v4116, 0.0
      %v4321 = vsel %vm4317, %v4115, 0.0
      %v4322 = vadd.f32 %v4284, %v4318
      %v4323 = vadd.f32 %v4285, %v4319
      %v4324 = vadd.f32 %v4286, %v4320
      %v4325 = vadd.f32 %v4287, %v4321
      %vm4326 = vcmp.eq.f32.partialorder %v4025, 6.0
      %vm4327 = vcmp.eq.f32.partialorder %v4135, 6.0
      %vm4328 = vcmp.eq.f32.partialorder %v4138, 6.0
      %vm4329 = vcmp.eq.f32.partialorder %v4137, 6.0
      %vm4330 = vcmp.eq.f32.partialorder %v4136, 6.0
      %v4331 = vsel %vm4326, 1, 0
      %v4332 = vlaneseq
      %v4333 = vshrl.u32 %v4332, 7
      %v4334 = vsub.s32 0, %v4333
      %v4335 = vrot.slane %v4331, %v4334
      %v4336 = vlaneseq
      %v4337 = vshrl.u32 %v4336, 7
      %v4338 = vsub.s32 1, %v4337
      %v4339 = vrot.slane %v4331, %v4338
      %v4340 = vlaneseq
      %v4341 = vshrl.u32 %v4340, 7
      %v4342 = vsub.s32 2, %v4341
      %v4343 = vrot.slane %v4331, %v4342
      %v4344 = vlaneseq
      %v4345 = vshrl.u32 %v4344, 7
      %v4346 = vsub.s32 3, %v4345
      %v4347 = vrot.slane %v4331, %v4346
      %vm4348 = vcmp.eq.s32.totalorder %v4335, 1
      %vm4349 = vcmp.eq.s32.totalorder %v4339, 1
      %vm4350 = vcmp.eq.s32.totalorder %v4343, 1
      %vm4351 = vcmp.eq.s32.totalorder %v4347, 1
      %vm4352 = vmand %vm4348, %vm4327
      %vm4353 = vmand %vm4349, %vm4328
      %vm4354 = vmand %vm4350, %vm4329
      %vm4355 = vmand %vm4351, %vm4330
      %v4356 = vsel %vm4352, %v4176, 0.0
      %v4357 = vsel %vm4353, %v4179, 0.0
      %v4358 = vsel %vm4354, %v4178, 0.0
      %v4359 = vsel %vm4355, %v4177, 0.0
      %v4360 = vadd.f32 %v4322, %v4356
      %v4361 = vadd.f32 %v4323, %v4357
      %v4362 = vadd.f32 %v4324, %v4358
      %v4363 = vadd.f32 %v4325, %v4359
      %vm4364 = vcmp.eq.f32.partialorder %v4025, 7.0
      %vm4365 = vcmp.eq.f32.partialorder %v4197, 7.0
      %vm4366 = vcmp.eq.f32.partialorder %v4200, 7.0
      %vm4367 = vcmp.eq.f32.partialorder %v4199, 7.0
      %vm4368 = vcmp.eq.f32.partialorder %v4198, 7.0
      %v4369 = vsel %vm4364, 1, 0
      %v4370 = vlaneseq
      %v4371 = vshrl.u32 %v4370, 7
      %v4372 = vsub.s32 0, %v4371
      %v4373 = vrot.slane %v4369, %v4372
      %v4374 = vlaneseq
      %v4375 = vshrl.u32 %v4374, 7
      %v4376 = vsub.s32 1, %v4375
      %v4377 = vrot.slane %v4369, %v4376
      %v4378 = vlaneseq
      %v4379 = vshrl.u32 %v4378, 7
      %v4380 = vsub.s32 2, %v4379
      %v4381 = vrot.slane %v4369, %v4380
      %v4382 = vlaneseq
      %v4383 = vshrl.u32 %v4382, 7
      %v4384 = vsub.s32 3, %v4383
      %v4385 = vrot.slane %v4369, %v4384
      %vm4386 = vcmp.eq.s32.totalorder %v4373, 1
      %vm4387 = vcmp.eq.s32.totalorder %v4377, 1
      %vm4388 = vcmp.eq.s32.totalorder %v4381, 1
      %vm4389 = vcmp.eq.s32.totalorder %v4385, 1
      %vm4390 = vmand %vm4386, %vm4365
      %vm4391 = vmand %vm4387, %vm4366
      %vm4392 = vmand %vm4388, %vm4367
      %vm4393 = vmand %vm4389, %vm4368
      %v4394 = vsel %vm4390, %v4238, 0.0
      %v4395 = vsel %vm4391, %v4241, 0.0
      %v4396 = vsel %vm4392, %v4240, 0.0
      %v4397 = vsel %vm4393, %v4239, 0.0
      %v4398 = vadd.f32 %v4360, %v4394
      %v4399 = vadd.f32 %v4361, %v4395
      %v4400 = vadd.f32 %v4362, %v4396
      %v4401 = vadd.f32 %v4363, %v4397
      %4402 = vrot.lane.b32.xlu0 %v4398, 18
      %v4403 = vpop.permute.xlu0 %4402
      %4404 = vrot.lane.b32.xlu0 %v4399, 18
      %v4405 = vpop.permute.xlu0 %4404
      %4406 = vrot.lane.b32.xlu0 %v4400, 18
      %v4407 = vpop.permute.xlu0 %4406
      %4408 = vrot.lane.b32.xlu0 %v4401, 18
      %v4409 = vpop.permute.xlu0 %4408
      %v4410 = vsel %vm2586, %v4407, %v4409
      %v4411 = vsel %vm2586, %v4405, %v4407
      %v4412 = vsel %vm2586, %v4403, %v4405
      %v4413 = vsel %vm2586, %v4409, %v4403
      %v4414 = vld [vmem:[%s10] ss:$8 sm:$0xf]
      %v4416 = vlaneseq
      %v4417 = vshrl.u32 %v4416, 7
      %v4418 = vsub.s32 0, %v4417
      %v4419 = vrot.slane %v4414, %v4418
      %v4420 = vlaneseq
      %v4421 = vshrl.u32 %v4420, 7
      %v4422 = vsub.s32 1, %v4421
      %v4423 = vrot.slane %v4414, %v4422
      %v4424 = vlaneseq
      %v4425 = vshrl.u32 %v4424, 7
      %v4426 = vsub.s32 2, %v4425
      %v4427 = vrot.slane %v4414, %v4426
      %v4428 = vlaneseq
      %v4429 = vshrl.u32 %v4428, 7
      %v4430 = vsub.s32 3, %v4429
      %v4431 = vrot.slane %v4414, %v4430
      %v4436 = vmul.f32 %v4410, %v4419
      %v4437 = vmul.f32 %v4413, %v4423
      %v4438 = vmul.f32 %v4412, %v4427
      %v4439 = vmul.f32 %v4411, %v4431
      %4440 = vst [vmem:[#allocation2] sm:$0xff] %v4436
      %4441 = vst [vmem:[#allocation2 + $0x8] sm:$0xff] %v4437
      %4442 = vst [vmem:[#allocation2 + $0x10] sm:$0xff] %v4438
      %4443 = vst [vmem:[#allocation2 + $0x18] sm:$0xff] %v4439
      %4444 = vrot.lane.b32.xlu0 %v4398, 16
      %v4445 = vpop.permute.xlu0 %4444
      %4446 = vrot.lane.b32.xlu0 %v4399, 16
      %v4447 = vpop.permute.xlu0 %4446
      %4448 = vrot.lane.b32.xlu0 %v4400, 16
      %v4449 = vpop.permute.xlu0 %4448
      %4450 = vrot.lane.b32.xlu0 %v4401, 16
      %v4451 = vpop.permute.xlu0 %4450
      %v4452 = vsel %vm2629, %v4449, %v4451
      %v4453 = vsel %vm2629, %v4447, %v4449
      %v4454 = vsel %vm2629, %v4445, %v4447
      %v4455 = vsel %vm2629, %v4451, %v4445
      %v4456 = vld [vmem:[%s2634] ss:$8 sm:$0xf]
      %v4458 = vlaneseq
      %v4459 = vshrl.u32 %v4458, 7
      %v4460 = vsub.s32 0, %v4459
      %v4461 = vrot.slane %v4456, %v4460
      %v4462 = vlaneseq
      %v4463 = vshrl.u32 %v4462, 7
      %v4464 = vsub.s32 1, %v4463
      %v4465 = vrot.slane %v4456, %v4464
      %v4466 = vlaneseq
      %v4467 = vshrl.u32 %v4466, 7
      %v4468 = vsub.s32 2, %v4467
      %v4469 = vrot.slane %v4456, %v4468
      %v4470 = vlaneseq
      %v4471 = vshrl.u32 %v4470, 7
      %v4472 = vsub.s32 3, %v4471
      %v4473 = vrot.slane %v4456, %v4472
      %v4478 = vmul.f32 %v4452, %v4461
      %v4479 = vmul.f32 %v4455, %v4465
      %v4480 = vmul.f32 %v4454, %v4469
      %v4481 = vmul.f32 %v4453, %v4473
      %4482 = vst [vmem:[#allocation2 + $0x20] sm:$0xff] %v4478
      %4483 = vst [vmem:[#allocation2 + $0x28] sm:$0xff] %v4479
      %4484 = vst [vmem:[#allocation2 + $0x30] sm:$0xff] %v4480
      %4485 = vst [vmem:[#allocation2 + $0x38] sm:$0xff] %v4481
      %4486 = vrot.lane.b32.xlu0 %v4398, 14
      %v4487 = vpop.permute.xlu0 %4486
      %4488 = vrot.lane.b32.xlu0 %v4399, 14
      %v4489 = vpop.permute.xlu0 %4488
      %4490 = vrot.lane.b32.xlu0 %v4400, 14
      %v4491 = vpop.permute.xlu0 %4490
      %4492 = vrot.lane.b32.xlu0 %v4401, 14
      %v4493 = vpop.permute.xlu0 %4492
      %v4494 = vsel %vm2685, %v4491, %v4493
      %v4495 = vsel %vm2685, %v4489, %v4491
      %v4496 = vsel %vm2685, %v4487, %v4489
      %v4497 = vsel %vm2685, %v4493, %v4487
      %v4498 = vld [vmem:[%s2690] ss:$8 sm:$0xf]
      %v4500 = vlaneseq
      %v4501 = vshrl.u32 %v4500, 7
      %v4502 = vsub.s32 0, %v4501
      %v4503 = vrot.slane %v4498, %v4502
      %v4504 = vlaneseq
      %v4505 = vshrl.u32 %v4504, 7
      %v4506 = vsub.s32 1, %v4505
      %v4507 = vrot.slane %v4498, %v4506
      %v4508 = vlaneseq
      %v4509 = vshrl.u32 %v4508, 7
      %v4510 = vsub.s32 2, %v4509
      %v4511 = vrot.slane %v4498, %v4510
      %v4512 = vlaneseq
      %v4513 = vshrl.u32 %v4512, 7
      %v4514 = vsub.s32 3, %v4513
      %v4515 = vrot.slane %v4498, %v4514
      %v4520 = vmul.f32 %v4494, %v4503
      %v4521 = vmul.f32 %v4497, %v4507
      %v4522 = vmul.f32 %v4496, %v4511
      %v4523 = vmul.f32 %v4495, %v4515
      %4524 = vst [vmem:[#allocation2 + $0x40] sm:$0xff] %v4520
      %4525 = vst [vmem:[#allocation2 + $0x48] sm:$0xff] %v4521
      %4526 = vst [vmem:[#allocation2 + $0x50] sm:$0xff] %v4522
      %4527 = vst [vmem:[#allocation2 + $0x58] sm:$0xff] %v4523
      %4528 = vrot.lane.b32.xlu0 %v4398, 2
      %v4529 = vpop.permute.xlu0 %4528
      %4530 = vrot.lane.b32.xlu0 %v4399, 2
      %v4531 = vpop.permute.xlu0 %4530
      %4532 = vrot.lane.b32.xlu0 %v4400, 2
      %v4533 = vpop.permute.xlu0 %4532
      %4534 = vrot.lane.b32.xlu0 %v4401, 2
      %v4535 = vpop.permute.xlu0 %4534
      %v4536 = vsel %vm2729, %v4533, %v4535
      %v4537 = vsel %vm2729, %v4531, %v4533
      %v4538 = vsel %vm2729, %v4529, %v4531
      %v4539 = vsel %vm2729, %v4535, %v4529
      %v4540 = vld [vmem:[%s2734] ss:$8 sm:$0xf]
      %v4542 = vlaneseq
      %v4543 = vshrl.u32 %v4542, 7
      %v4544 = vsub.s32 0, %v4543
      %v4545 = vrot.slane %v4540, %v4544
      %v4546 = vlaneseq
      %v4547 = vshrl.u32 %v4546, 7
      %v4548 = vsub.s32 1, %v4547
      %v4549 = vrot.slane %v4540, %v4548
      %v4550 = vlaneseq
      %v4551 = vshrl.u32 %v4550, 7
      %v4552 = vsub.s32 2, %v4551
      %v4553 = vrot.slane %v4540, %v4552
      %v4554 = vlaneseq
      %v4555 = vshrl.u32 %v4554, 7
      %v4556 = vsub.s32 3, %v4555
      %v4557 = vrot.slane %v4540, %v4556
      %v4562 = vmul.f32 %v4536, %v4545
      %v4563 = vmul.f32 %v4539, %v4549
      %v4564 = vmul.f32 %v4538, %v4553
      %v4565 = vmul.f32 %v4537, %v4557
      %4566 = vst [vmem:[#allocation2 + $0x60] sm:$0xff] %v4562
      %4567 = vst [vmem:[#allocation2 + $0x68] sm:$0xff] %v4563
      %4568 = vst [vmem:[#allocation2 + $0x70] sm:$0xff] %v4564
      %4569 = vst [vmem:[#allocation2 + $0x78] sm:$0xff] %v4565
      %v4570 = vld [vmem:[%s2777] ss:$8 sm:$0xf]
      %v4572 = vlaneseq
      %v4573 = vshrl.u32 %v4572, 7
      %v4574 = vsub.s32 0, %v4573
      %v4575 = vrot.slane %v4570, %v4574
      %v4576 = vlaneseq
      %v4577 = vshrl.u32 %v4576, 7
      %v4578 = vsub.s32 1, %v4577
      %v4579 = vrot.slane %v4570, %v4578
      %v4580 = vlaneseq
      %v4581 = vshrl.u32 %v4580, 7
      %v4582 = vsub.s32 2, %v4581
      %v4583 = vrot.slane %v4570, %v4582
      %v4584 = vlaneseq
      %v4585 = vshrl.u32 %v4584, 7
      %v4586 = vsub.s32 3, %v4585
      %v4587 = vrot.slane %v4570, %v4586
      %v4592 = vmul.f32 %v4401, %v4575
      %v4593 = vmul.f32 %v4398, %v4579
      %v4594 = vmul.f32 %v4399, %v4583
      %v4595 = vmul.f32 %v4400, %v4587
      %4596 = vst [vmem:[#allocation2 + $0x80] sm:$0xff] %v4592
      %4597 = vst [vmem:[#allocation2 + $0x88] sm:$0xff] %v4593
      %4598 = vst [vmem:[#allocation2 + $0x90] sm:$0xff] %v4594
      %4599 = vst [vmem:[#allocation2 + $0x98] sm:$0xff] %v4595
      %4600 = vrot.lane.b32.xlu0 %v4398, 126
      %v4601 = vpop.permute.xlu0 %4600
      %4602 = vrot.lane.b32.xlu0 %v4399, 126
      %v4603 = vpop.permute.xlu0 %4602
      %4604 = vrot.lane.b32.xlu0 %v4400, 126
      %v4605 = vpop.permute.xlu0 %4604
      %4606 = vrot.lane.b32.xlu0 %v4401, 126
      %v4607 = vpop.permute.xlu0 %4606
      %v4608 = vsel %vm2816, %v4605, %v4607
      %v4609 = vsel %vm2816, %v4603, %v4605
      %v4610 = vsel %vm2816, %v4601, %v4603
      %v4611 = vsel %vm2816, %v4607, %v4601
      %v4612 = vld [vmem:[%s2821] ss:$8 sm:$0xf]
      %v4614 = vlaneseq
      %v4615 = vshrl.u32 %v4614, 7
      %v4616 = vsub.s32 0, %v4615
      %v4617 = vrot.slane %v4612, %v4616
      %v4618 = vlaneseq
      %v4619 = vshrl.u32 %v4618, 7
      %v4620 = vsub.s32 1, %v4619
      %v4621 = vrot.slane %v4612, %v4620
      %v4622 = vlaneseq
      %v4623 = vshrl.u32 %v4622, 7
      %v4624 = vsub.s32 2, %v4623
      %v4625 = vrot.slane %v4612, %v4624
      %v4626 = vlaneseq
      %v4627 = vshrl.u32 %v4626, 7
      %v4628 = vsub.s32 3, %v4627
      %v4629 = vrot.slane %v4612, %v4628
      %v4634 = vmul.f32 %v4611, %v4617
      %v4635 = vmul.f32 %v4610, %v4621
      %v4636 = vmul.f32 %v4609, %v4625
      %v4637 = vmul.f32 %v4608, %v4629
      %4638 = vst [vmem:[#allocation2 + $0xa0] sm:$0xff] %v4634
      %4639 = vst [vmem:[#allocation2 + $0xa8] sm:$0xff] %v4635
      %4640 = vst [vmem:[#allocation2 + $0xb0] sm:$0xff] %v4636
      %4641 = vst [vmem:[#allocation2 + $0xb8] sm:$0xff] %v4637
      %4642 = vrot.lane.b32.xlu0 %v4398, 114
      %v4643 = vpop.permute.xlu0 %4642
      %4644 = vrot.lane.b32.xlu0 %v4399, 114
      %v4645 = vpop.permute.xlu0 %4644
      %4646 = vrot.lane.b32.xlu0 %v4400, 114
      %v4647 = vpop.permute.xlu0 %4646
      %4648 = vrot.lane.b32.xlu0 %v4401, 114
      %v4649 = vpop.permute.xlu0 %4648
      %v4650 = vsel %vm2872, %v4647, %v4649
      %v4651 = vsel %vm2872, %v4645, %v4647
      %v4652 = vsel %vm2872, %v4643, %v4645
      %v4653 = vsel %vm2872, %v4649, %v4643
      %v4654 = vld [vmem:[%s2877] ss:$8 sm:$0xf]
      %v4656 = vlaneseq
      %v4657 = vshrl.u32 %v4656, 7
      %v4658 = vsub.s32 0, %v4657
      %v4659 = vrot.slane %v4654, %v4658
      %v4660 = vlaneseq
      %v4661 = vshrl.u32 %v4660, 7
      %v4662 = vsub.s32 1, %v4661
      %v4663 = vrot.slane %v4654, %v4662
      %v4664 = vlaneseq
      %v4665 = vshrl.u32 %v4664, 7
      %v4666 = vsub.s32 2, %v4665
      %v4667 = vrot.slane %v4654, %v4666
      %v4668 = vlaneseq
      %v4669 = vshrl.u32 %v4668, 7
      %v4670 = vsub.s32 3, %v4669
      %v4671 = vrot.slane %v4654, %v4670
      %v4676 = vmul.f32 %v4653, %v4659
      %v4677 = vmul.f32 %v4652, %v4663
      %v4678 = vmul.f32 %v4651, %v4667
      %v4679 = vmul.f32 %v4650, %v4671
      %4680 = vst [vmem:[#allocation2 + $0xc0] sm:$0xff] %v4676
      %4681 = vst [vmem:[#allocation2 + $0xc8] sm:$0xff] %v4677
      %4682 = vst [vmem:[#allocation2 + $0xd0] sm:$0xff] %v4678
      %4683 = vst [vmem:[#allocation2 + $0xd8] sm:$0xff] %v4679
      %4684 = vrot.lane.b32.xlu0 %v4398, 112
      %v4685 = vpop.permute.xlu0 %4684
      %4686 = vrot.lane.b32.xlu0 %v4399, 112
      %v4687 = vpop.permute.xlu0 %4686
      %4688 = vrot.lane.b32.xlu0 %v4400, 112
      %v4689 = vpop.permute.xlu0 %4688
      %4690 = vrot.lane.b32.xlu0 %v4401, 112
      %v4691 = vpop.permute.xlu0 %4690
      %v4692 = vsel %vm2916, %v4689, %v4691
      %v4693 = vsel %vm2916, %v4687, %v4689
      %v4694 = vsel %vm2916, %v4685, %v4687
      %v4695 = vsel %vm2916, %v4691, %v4685
      %v4696 = vld [vmem:[%s2921] ss:$8 sm:$0xf]
      %v4698 = vlaneseq
      %v4699 = vshrl.u32 %v4698, 7
      %v4700 = vsub.s32 0, %v4699
      %v4701 = vrot.slane %v4696, %v4700
      %v4702 = vlaneseq
      %v4703 = vshrl.u32 %v4702, 7
      %v4704 = vsub.s32 1, %v4703
      %v4705 = vrot.slane %v4696, %v4704
      %v4706 = vlaneseq
      %v4707 = vshrl.u32 %v4706, 7
      %v4708 = vsub.s32 2, %v4707
      %v4709 = vrot.slane %v4696, %v4708
      %v4710 = vlaneseq
      %v4711 = vshrl.u32 %v4710, 7
      %v4712 = vsub.s32 3, %v4711
      %v4713 = vrot.slane %v4696, %v4712
      %v4718 = vmul.f32 %v4695, %v4701
      %v4719 = vmul.f32 %v4694, %v4705
      %v4720 = vmul.f32 %v4693, %v4709
      %v4721 = vmul.f32 %v4692, %v4713
      %4722 = vst [vmem:[#allocation2 + $0xe0] sm:$0xff] %v4718
      %4723 = vst [vmem:[#allocation2 + $0xe8] sm:$0xff] %v4719
      %4724 = vst [vmem:[#allocation2 + $0xf0] sm:$0xff] %v4720
      %4725 = vst [vmem:[#allocation2 + $0xf8] sm:$0xff] %v4721
      %4726 = vrot.lane.b32.xlu0 %v4398, 110
      %v4727 = vpop.permute.xlu0 %4726
      %4728 = vrot.lane.b32.xlu0 %v4399, 110
      %v4729 = vpop.permute.xlu0 %4728
      %4730 = vrot.lane.b32.xlu0 %v4400, 110
      %v4731 = vpop.permute.xlu0 %4730
      %4732 = vrot.lane.b32.xlu0 %v4401, 110
      %v4733 = vpop.permute.xlu0 %4732
      %v4734 = vsel %vm2972, %v4731, %v4733
      %v4735 = vsel %vm2972, %v4729, %v4731
      %v4736 = vsel %vm2972, %v4727, %v4729
      %v4737 = vsel %vm2972, %v4733, %v4727
      %v4738 = vld [vmem:[%s2977] ss:$8 sm:$0xf]
      %v4740 = vlaneseq
      %v4741 = vshrl.u32 %v4740, 7
      %v4742 = vsub.s32 0, %v4741
      %v4743 = vrot.slane %v4738, %v4742
      %v4744 = vlaneseq
      %v4745 = vshrl.u32 %v4744, 7
      %v4746 = vsub.s32 1, %v4745
      %v4747 = vrot.slane %v4738, %v4746
      %v4748 = vlaneseq
      %v4749 = vshrl.u32 %v4748, 7
      %v4750 = vsub.s32 2, %v4749
      %v4751 = vrot.slane %v4738, %v4750
      %v4752 = vlaneseq
      %v4753 = vshrl.u32 %v4752, 7
      %v4754 = vsub.s32 3, %v4753
      %v4755 = vrot.slane %v4738, %v4754
      %v4760 = vmul.f32 %v4737, %v4743
      %v4761 = vmul.f32 %v4736, %v4747
      %v4762 = vmul.f32 %v4735, %v4751
      %v4763 = vmul.f32 %v4734, %v4755
      %4764 = vst [vmem:[#allocation2 + $0x100] sm:$0xff] %v4760
      %4765 = vst [vmem:[#allocation2 + $0x108] sm:$0xff] %v4761
      %4766 = vst [vmem:[#allocation2 + $0x110] sm:$0xff] %v4762
      %4767 = vst [vmem:[#allocation2 + $0x118] sm:$0xff] %v4763
      %v4768 = vld [vmem:[%s3008] ss:$8 sm:$0xf]
      %v4770 = vlaneseq
      %v4771 = vshrl.u32 %v4770, 7
      %v4772 = vsub.s32 0, %v4771
      %v4773 = vrot.slane %v4768, %v4772
      %v4774 = vlaneseq
      %v4775 = vshrl.u32 %v4774, 7
      %v4776 = vsub.s32 1, %v4775
      %v4777 = vrot.slane %v4768, %v4776
      %v4778 = vlaneseq
      %v4779 = vshrl.u32 %v4778, 7
      %v4780 = vsub.s32 2, %v4779
      %v4781 = vrot.slane %v4768, %v4780
      %v4782 = vlaneseq
      %v4783 = vshrl.u32 %v4782, 7
      %v4784 = vsub.s32 3, %v4783
      %v4785 = vrot.slane %v4768, %v4784
      %v4790 = vmul.f32 %v4413, %v4773
      %v4791 = vmul.f32 %v4412, %v4777
      %v4792 = vmul.f32 %v4411, %v4781
      %v4793 = vmul.f32 %v4410, %v4785
      %4794 = vst [vmem:[#allocation2 + $0x120] sm:$0xff] %v4790
      %4795 = vst [vmem:[#allocation2 + $0x128] sm:$0xff] %v4791
      %4796 = vst [vmem:[#allocation2 + $0x130] sm:$0xff] %v4792
      %4797 = vst [vmem:[#allocation2 + $0x138] sm:$0xff] %v4793
      %v4798 = vld [vmem:[%s3051] ss:$8 sm:$0xf]
      %v4800 = vlaneseq
      %v4801 = vshrl.u32 %v4800, 7
      %v4802 = vsub.s32 0, %v4801
      %v4803 = vrot.slane %v4798, %v4802
      %v4804 = vlaneseq
      %v4805 = vshrl.u32 %v4804, 7
      %v4806 = vsub.s32 1, %v4805
      %v4807 = vrot.slane %v4798, %v4806
      %v4808 = vlaneseq
      %v4809 = vshrl.u32 %v4808, 7
      %v4810 = vsub.s32 2, %v4809
      %v4811 = vrot.slane %v4798, %v4810
      %v4812 = vlaneseq
      %v4813 = vshrl.u32 %v4812, 7
      %v4814 = vsub.s32 3, %v4813
      %v4815 = vrot.slane %v4798, %v4814
      %v4820 = vmul.f32 %v4455, %v4803
      %v4821 = vmul.f32 %v4454, %v4807
      %v4822 = vmul.f32 %v4453, %v4811
      %v4823 = vmul.f32 %v4452, %v4815
      %4824 = vst [vmem:[#allocation2 + $0x140] sm:$0xff] %v4820
      %4825 = vst [vmem:[#allocation2 + $0x148] sm:$0xff] %v4821
      %4826 = vst [vmem:[#allocation2 + $0x150] sm:$0xff] %v4822
      %4827 = vst [vmem:[#allocation2 + $0x158] sm:$0xff] %v4823
      %v4828 = vld [vmem:[%s3082] ss:$8 sm:$0xf]
      %v4830 = vlaneseq
      %v4831 = vshrl.u32 %v4830, 7
      %v4832 = vsub.s32 0, %v4831
      %v4833 = vrot.slane %v4828, %v4832
      %v4834 = vlaneseq
      %v4835 = vshrl.u32 %v4834, 7
      %v4836 = vsub.s32 1, %v4835
      %v4837 = vrot.slane %v4828, %v4836
      %v4838 = vlaneseq
      %v4839 = vshrl.u32 %v4838, 7
      %v4840 = vsub.s32 2, %v4839
      %v4841 = vrot.slane %v4828, %v4840
      %v4842 = vlaneseq
      %v4843 = vshrl.u32 %v4842, 7
      %v4844 = vsub.s32 3, %v4843
      %v4845 = vrot.slane %v4828, %v4844
      %v4850 = vmul.f32 %v4497, %v4833
      %v4851 = vmul.f32 %v4496, %v4837
      %v4852 = vmul.f32 %v4495, %v4841
      %v4853 = vmul.f32 %v4494, %v4845
      %4854 = vst [vmem:[#allocation2 + $0x160] sm:$0xff] %v4850
      %4855 = vst [vmem:[#allocation2 + $0x168] sm:$0xff] %v4851
      %4856 = vst [vmem:[#allocation2 + $0x170] sm:$0xff] %v4852
      %4857 = vst [vmem:[#allocation2 + $0x178] sm:$0xff] %v4853
      %v4858 = vld [vmem:[%s3125] ss:$8 sm:$0xf]
      %v4860 = vlaneseq
      %v4861 = vshrl.u32 %v4860, 7
      %v4862 = vsub.s32 0, %v4861
      %v4863 = vrot.slane %v4858, %v4862
      %v4864 = vlaneseq
      %v4865 = vshrl.u32 %v4864, 7
      %v4866 = vsub.s32 1, %v4865
      %v4867 = vrot.slane %v4858, %v4866
      %v4868 = vlaneseq
      %v4869 = vshrl.u32 %v4868, 7
      %v4870 = vsub.s32 2, %v4869
      %v4871 = vrot.slane %v4858, %v4870
      %v4872 = vlaneseq
      %v4873 = vshrl.u32 %v4872, 7
      %v4874 = vsub.s32 3, %v4873
      %v4875 = vrot.slane %v4858, %v4874
      %v4880 = vmul.f32 %v4539, %v4863
      %v4881 = vmul.f32 %v4538, %v4867
      %v4882 = vmul.f32 %v4537, %v4871
      %v4883 = vmul.f32 %v4536, %v4875
      %4884 = vst [vmem:[#allocation2 + $0x180] sm:$0xff] %v4880
      %4885 = vst [vmem:[#allocation2 + $0x188] sm:$0xff] %v4881
      %4886 = vst [vmem:[#allocation2 + $0x190] sm:$0xff] %v4882
      %4887 = vst [vmem:[#allocation2 + $0x198] sm:$0xff] %v4883
      %v4888 = vld [vmem:[%s3156] ss:$8 sm:$0xf]
      %v4890 = vlaneseq
      %v4891 = vshrl.u32 %v4890, 7
      %v4892 = vsub.s32 0, %v4891
      %v4893 = vrot.slane %v4888, %v4892
      %v4894 = vlaneseq
      %v4895 = vshrl.u32 %v4894, 7
      %v4896 = vsub.s32 1, %v4895
      %v4897 = vrot.slane %v4888, %v4896
      %v4898 = vlaneseq
      %v4899 = vshrl.u32 %v4898, 7
      %v4900 = vsub.s32 2, %v4899
      %v4901 = vrot.slane %v4888, %v4900
      %v4902 = vlaneseq
      %v4903 = vshrl.u32 %v4902, 7
      %v4904 = vsub.s32 3, %v4903
      %v4905 = vrot.slane %v4888, %v4904
      %v4910 = vmul.f32 %v4398, %v4893
      %v4911 = vmul.f32 %v4399, %v4897
      %v4912 = vmul.f32 %v4400, %v4901
      %v4913 = vmul.f32 %v4401, %v4905
      %4914 = vst [vmem:[#allocation2 + $0x1a0] sm:$0xff] %v4910
      %4915 = vst [vmem:[#allocation2 + $0x1a8] sm:$0xff] %v4911
      %4916 = vst [vmem:[#allocation2 + $0x1b0] sm:$0xff] %v4912
      %4917 = vst [vmem:[#allocation2 + $0x1b8] sm:$0xff] %v4913
      %v4918 = vld [vmem:[%s3199] ss:$8 sm:$0xf]
      %v4920 = vlaneseq
      %v4921 = vshrl.u32 %v4920, 7
      %v4922 = vsub.s32 0, %v4921
      %v4923 = vrot.slane %v4918, %v4922
      %v4924 = vlaneseq
      %v4925 = vshrl.u32 %v4924, 7
      %v4926 = vsub.s32 1, %v4925
      %v4927 = vrot.slane %v4918, %v4926
      %v4928 = vlaneseq
      %v4929 = vshrl.u32 %v4928, 7
      %v4930 = vsub.s32 2, %v4929
      %v4931 = vrot.slane %v4918, %v4930
      %v4932 = vlaneseq
      %v4933 = vshrl.u32 %v4932, 7
      %v4934 = vsub.s32 3, %v4933
      %v4935 = vrot.slane %v4918, %v4934
      %v4940 = vmul.f32 %v4610, %v4923
      %v4941 = vmul.f32 %v4609, %v4927
      %v4942 = vmul.f32 %v4608, %v4931
      %v4943 = vmul.f32 %v4611, %v4935
      %4944 = vst [vmem:[#allocation2 + $0x1c0] sm:$0xff] %v4940
      %4945 = vst [vmem:[#allocation2 + $0x1c8] sm:$0xff] %v4941
      %4946 = vst [vmem:[#allocation2 + $0x1d0] sm:$0xff] %v4942
      %4947 = vst [vmem:[#allocation2 + $0x1d8] sm:$0xff] %v4943
      %v4948 = vld [vmem:[%s3230] ss:$8 sm:$0xf]
      %v4950 = vlaneseq
      %v4951 = vshrl.u32 %v4950, 7
      %v4952 = vsub.s32 0, %v4951
      %v4953 = vrot.slane %v4948, %v4952
      %v4954 = vlaneseq
      %v4955 = vshrl.u32 %v4954, 7
      %v4956 = vsub.s32 1, %v4955
      %v4957 = vrot.slane %v4948, %v4956
      %v4958 = vlaneseq
      %v4959 = vshrl.u32 %v4958, 7
      %v4960 = vsub.s32 2, %v4959
      %v4961 = vrot.slane %v4948, %v4960
      %v4962 = vlaneseq
      %v4963 = vshrl.u32 %v4962, 7
      %v4964 = vsub.s32 3, %v4963
      %v4965 = vrot.slane %v4948, %v4964
      %v4970 = vmul.f32 %v4652, %v4953
      %v4971 = vmul.f32 %v4651, %v4957
      %v4972 = vmul.f32 %v4650, %v4961
      %v4973 = vmul.f32 %v4653, %v4965
      %4974 = vst [vmem:[#allocation2 + $0x1e0] sm:$0xff] %v4970
      %4975 = vst [vmem:[#allocation2 + $0x1e8] sm:$0xff] %v4971
      %4976 = vst [vmem:[#allocation2 + $0x1f0] sm:$0xff] %v4972
      %4977 = vst [vmem:[#allocation2 + $0x1f8] sm:$0xff] %v4973
      %v4978 = vld [vmem:[%s3273] ss:$8 sm:$0xf]
      %v4980 = vlaneseq
      %v4981 = vshrl.u32 %v4980, 7
      %v4982 = vsub.s32 0, %v4981
      %v4983 = vrot.slane %v4978, %v4982
      %v4984 = vlaneseq
      %v4985 = vshrl.u32 %v4984, 7
      %v4986 = vsub.s32 1, %v4985
      %v4987 = vrot.slane %v4978, %v4986
      %v4988 = vlaneseq
      %v4989 = vshrl.u32 %v4988, 7
      %v4990 = vsub.s32 2, %v4989
      %v4991 = vrot.slane %v4978, %v4990
      %v4992 = vlaneseq
      %v4993 = vshrl.u32 %v4992, 7
      %v4994 = vsub.s32 3, %v4993
      %v4995 = vrot.slane %v4978, %v4994
      %v5000 = vmul.f32 %v4694, %v4983
      %v5001 = vmul.f32 %v4693, %v4987
      %v5002 = vmul.f32 %v4692, %v4991
      %v5003 = vmul.f32 %v4695, %v4995
      %5004 = vst [vmem:[#allocation2 + $0x200] sm:$0xff] %v5000
      %5005 = vst [vmem:[#allocation2 + $0x208] sm:$0xff] %v5001
      %5006 = vst [vmem:[#allocation2 + $0x210] sm:$0xff] %v5002
      %5007 = vst [vmem:[#allocation2 + $0x218] sm:$0xff] %v5003
      %v5008 = vld [vmem:[%s3304] ss:$8 sm:$0xf]
      %v5010 = vlaneseq
      %v5011 = vshrl.u32 %v5010, 7
      %v5012 = vsub.s32 0, %v5011
      %v5013 = vrot.slane %v5008, %v5012
      %v5014 = vlaneseq
      %v5015 = vshrl.u32 %v5014, 7
      %v5016 = vsub.s32 1, %v5015
      %v5017 = vrot.slane %v5008, %v5016
      %v5018 = vlaneseq
      %v5019 = vshrl.u32 %v5018, 7
      %v5020 = vsub.s32 2, %v5019
      %v5021 = vrot.slane %v5008, %v5020
      %v5022 = vlaneseq
      %v5023 = vshrl.u32 %v5022, 7
      %v5024 = vsub.s32 3, %v5023
      %v5025 = vrot.slane %v5008, %v5024
      %v5030 = vmul.f32 %v4736, %v5013
      %v5031 = vmul.f32 %v4735, %v5017
      %v5032 = vmul.f32 %v4734, %v5021
      %v5033 = vmul.f32 %v4737, %v5025
      %5034 = vst [vmem:[#allocation2 + $0x220] sm:$0xff] %v5030
      %5035 = vst [vmem:[#allocation2 + $0x228] sm:$0xff] %v5031
      %5036 = vst [vmem:[#allocation2 + $0x230] sm:$0xff] %v5032
      %5037 = vst [vmem:[#allocation2 + $0x238] sm:$0xff] %v5033
      %v5038 = vld [vmem:[%s3347] ss:$8 sm:$0xf]
      %v5040 = vlaneseq
      %v5041 = vshrl.u32 %v5040, 7
      %v5042 = vsub.s32 0, %v5041
      %v5043 = vrot.slane %v5038, %v5042
      %v5044 = vlaneseq
      %v5045 = vshrl.u32 %v5044, 7
      %v5046 = vsub.s32 1, %v5045
      %v5047 = vrot.slane %v5038, %v5046
      %v5048 = vlaneseq
      %v5049 = vshrl.u32 %v5048, 7
      %v5050 = vsub.s32 2, %v5049
      %v5051 = vrot.slane %v5038, %v5050
      %v5052 = vlaneseq
      %v5053 = vshrl.u32 %v5052, 7
      %v5054 = vsub.s32 3, %v5053
      %v5055 = vrot.slane %v5038, %v5054
      %v5060 = vmul.f32 %v4412, %v5043
      %v5061 = vmul.f32 %v4411, %v5047
      %v5062 = vmul.f32 %v4410, %v5051
      %v5063 = vmul.f32 %v4413, %v5055
      %5064 = vst [vmem:[#allocation2 + $0x240] sm:$0xff] %v5060
      %5065 = vst [vmem:[#allocation2 + $0x248] sm:$0xff] %v5061
      %5066 = vst [vmem:[#allocation2 + $0x250] sm:$0xff] %v5062
      %5067 = vst [vmem:[#allocation2 + $0x258] sm:$0xff] %v5063
      %v5068 = vld [vmem:[%s3378] ss:$8 sm:$0xf]
      %v5070 = vlaneseq
      %v5071 = vshrl.u32 %v5070, 7
      %v5072 = vsub.s32 0, %v5071
      %v5073 = vrot.slane %v5068, %v5072
      %v5074 = vlaneseq
      %v5075 = vshrl.u32 %v5074, 7
      %v5076 = vsub.s32 1, %v5075
      %v5077 = vrot.slane %v5068, %v5076
      %v5078 = vlaneseq
      %v5079 = vshrl.u32 %v5078, 7
      %v5080 = vsub.s32 2, %v5079
      %v5081 = vrot.slane %v5068, %v5080
      %v5082 = vlaneseq
      %v5083 = vshrl.u32 %v5082, 7
      %v5084 = vsub.s32 3, %v5083
      %v5085 = vrot.slane %v5068, %v5084
      %v5090 = vmul.f32 %v4454, %v5073
      %v5091 = vmul.f32 %v4453, %v5077
      %v5092 = vmul.f32 %v4452, %v5081
      %v5093 = vmul.f32 %v4455, %v5085
      %5094 = vst [vmem:[#allocation2 + $0x260] sm:$0xff] %v5090
      %5095 = vst [vmem:[#allocation2 + $0x268] sm:$0xff] %v5091
      %5096 = vst [vmem:[#allocation2 + $0x270] sm:$0xff] %v5092
      %5097 = vst [vmem:[#allocation2 + $0x278] sm:$0xff] %v5093
      %v5098 = vld [vmem:[%s3421] ss:$8 sm:$0xf]
      %v5100 = vlaneseq
      %v5101 = vshrl.u32 %v5100, 7
      %v5102 = vsub.s32 0, %v5101
      %v5103 = vrot.slane %v5098, %v5102
      %v5104 = vlaneseq
      %v5105 = vshrl.u32 %v5104, 7
      %v5106 = vsub.s32 1, %v5105
      %v5107 = vrot.slane %v5098, %v5106
      %v5108 = vlaneseq
      %v5109 = vshrl.u32 %v5108, 7
      %v5110 = vsub.s32 2, %v5109
      %v5111 = vrot.slane %v5098, %v5110
      %v5112 = vlaneseq
      %v5113 = vshrl.u32 %v5112, 7
      %v5114 = vsub.s32 3, %v5113
      %v5115 = vrot.slane %v5098, %v5114
      %v5120 = vmul.f32 %v4496, %v5103
      %v5121 = vmul.f32 %v4495, %v5107
      %v5122 = vmul.f32 %v4494, %v5111
      %v5123 = vmul.f32 %v4497, %v5115
      %5124 = vst [vmem:[#allocation2 + $0x280] sm:$0xff] %v5120
      %5125 = vst [vmem:[#allocation2 + $0x288] sm:$0xff] %v5121
      %5126 = vst [vmem:[#allocation2 + $0x290] sm:$0xff] %v5122
      %5127 = vst [vmem:[#allocation2 + $0x298] sm:$0xff] %v5123
      %v5128 = vld [vmem:[%s3452] ss:$8 sm:$0xf]
      %v5130 = vlaneseq
      %v5131 = vshrl.u32 %v5130, 7
      %v5132 = vsub.s32 0, %v5131
      %v5133 = vrot.slane %v5128, %v5132
      %v5134 = vlaneseq
      %v5135 = vshrl.u32 %v5134, 7
      %v5136 = vsub.s32 1, %v5135
      %v5137 = vrot.slane %v5128, %v5136
      %v5138 = vlaneseq
      %v5139 = vshrl.u32 %v5138, 7
      %v5140 = vsub.s32 2, %v5139
      %v5141 = vrot.slane %v5128, %v5140
      %v5142 = vlaneseq
      %v5143 = vshrl.u32 %v5142, 7
      %v5144 = vsub.s32 3, %v5143
      %v5145 = vrot.slane %v5128, %v5144
      %v5150 = vmul.f32 %v4538, %v5133
      %v5151 = vmul.f32 %v4537, %v5137
      %v5152 = vmul.f32 %v4536, %v5141
      %v5153 = vmul.f32 %v4539, %v5145
      %5154 = vst [vmem:[#allocation2 + $0x2a0] sm:$0xff] %v5150
      %5155 = vst [vmem:[#allocation2 + $0x2a8] sm:$0xff] %v5151
      %5156 = vst [vmem:[#allocation2 + $0x2b0] sm:$0xff] %v5152
      %5157 = vst [vmem:[#allocation2 + $0x2b8] sm:$0xff] %v5153
      %v5158 = vld [vmem:[%s3495] ss:$8 sm:$0xf]
      %v5160 = vlaneseq
      %v5161 = vshrl.u32 %v5160, 7
      %v5162 = vsub.s32 0, %v5161
      %v5163 = vrot.slane %v5158, %v5162
      %v5164 = vlaneseq
      %v5165 = vshrl.u32 %v5164, 7
      %v5166 = vsub.s32 1, %v5165
      %v5167 = vrot.slane %v5158, %v5166
      %v5168 = vlaneseq
      %v5169 = vshrl.u32 %v5168, 7
      %v5170 = vsub.s32 2, %v5169
      %v5171 = vrot.slane %v5158, %v5170
      %v5172 = vlaneseq
      %v5173 = vshrl.u32 %v5172, 7
      %v5174 = vsub.s32 3, %v5173
      %v5175 = vrot.slane %v5158, %v5174
      %v5180 = vmul.f32 %v4399, %v5163
      %v5181 = vmul.f32 %v4400, %v5167
      %v5182 = vmul.f32 %v4401, %v5171
      %v5183 = vmul.f32 %v4398, %v5175
      %5184 = vst [vmem:[#allocation2 + $0x2c0] sm:$0xff] %v5180
      %5185 = vst [vmem:[#allocation2 + $0x2c8] sm:$0xff] %v5181
      %5186 = vst [vmem:[#allocation2 + $0x2d0] sm:$0xff] %v5182
      %5187 = vst [vmem:[#allocation2 + $0x2d8] sm:$0xff] %v5183
      %v5188 = vld [vmem:[%s3526] ss:$8 sm:$0xf]
      %v5190 = vlaneseq
      %v5191 = vshrl.u32 %v5190, 7
      %v5192 = vsub.s32 0, %v5191
      %v5193 = vrot.slane %v5188, %v5192
      %v5194 = vlaneseq
      %v5195 = vshrl.u32 %v5194, 7
      %v5196 = vsub.s32 1, %v5195
      %v5197 = vrot.slane %v5188, %v5196
      %v5198 = vlaneseq
      %v5199 = vshrl.u32 %v5198, 7
      %v5200 = vsub.s32 2, %v5199
      %v5201 = vrot.slane %v5188, %v5200
      %v5202 = vlaneseq
      %v5203 = vshrl.u32 %v5202, 7
      %v5204 = vsub.s32 3, %v5203
      %v5205 = vrot.slane %v5188, %v5204
      %v5210 = vmul.f32 %v4609, %v5193
      %v5211 = vmul.f32 %v4608, %v5197
      %v5212 = vmul.f32 %v4611, %v5201
      %v5213 = vmul.f32 %v4610, %v5205
      %5214 = vst [vmem:[#allocation2 + $0x2e0] sm:$0xff] %v5210
      %5215 = vst [vmem:[#allocation2 + $0x2e8] sm:$0xff] %v5211
      %5216 = vst [vmem:[#allocation2 + $0x2f0] sm:$0xff] %v5212
      %5217 = vst [vmem:[#allocation2 + $0x2f8] sm:$0xff] %v5213
      %v5218 = vld [vmem:[%s3569] ss:$8 sm:$0xf]
      %v5220 = vlaneseq
      %v5221 = vshrl.u32 %v5220, 7
      %v5222 = vsub.s32 0, %v5221
      %v5223 = vrot.slane %v5218, %v5222
      %v5224 = vlaneseq
      %v5225 = vshrl.u32 %v5224, 7
      %v5226 = vsub.s32 1, %v5225
      %v5227 = vrot.slane %v5218, %v5226
      %v5228 = vlaneseq
      %v5229 = vshrl.u32 %v5228, 7
      %v5230 = vsub.s32 2, %v5229
      %v5231 = vrot.slane %v5218, %v5230
      %v5232 = vlaneseq
      %v5233 = vshrl.u32 %v5232, 7
      %v5234 = vsub.s32 3, %v5233
      %v5235 = vrot.slane %v5218, %v5234
      %v5240 = vmul.f32 %v4651, %v5223
      %v5241 = vmul.f32 %v4650, %v5227
      %v5242 = vmul.f32 %v4653, %v5231
      %v5243 = vmul.f32 %v4652, %v5235
      %5244 = vst [vmem:[#allocation2 + $0x300] sm:$0xff] %v5240
      %5245 = vst [vmem:[#allocation2 + $0x308] sm:$0xff] %v5241
      %5246 = vst [vmem:[#allocation2 + $0x310] sm:$0xff] %v5242
      %5247 = vst [vmem:[#allocation2 + $0x318] sm:$0xff] %v5243
      %v5248 = vld [vmem:[%s3600] ss:$8 sm:$0xf]
      %v5250 = vlaneseq
      %v5251 = vshrl.u32 %v5250, 7
      %v5252 = vsub.s32 0, %v5251
      %v5253 = vrot.slane %v5248, %v5252
      %v5254 = vlaneseq
      %v5255 = vshrl.u32 %v5254, 7
      %v5256 = vsub.s32 1, %v5255
      %v5257 = vrot.slane %v5248, %v5256
      %v5258 = vlaneseq
      %v5259 = vshrl.u32 %v5258, 7
      %v5260 = vsub.s32 2, %v5259
      %v5261 = vrot.slane %v5248, %v5260
      %v5262 = vlaneseq
      %v5263 = vshrl.u32 %v5262, 7
      %v5264 = vsub.s32 3, %v5263
      %v5265 = vrot.slane %v5248, %v5264
      %v5270 = vmul.f32 %v4693, %v5253
      %v5271 = vmul.f32 %v4692, %v5257
      %v5272 = vmul.f32 %v4695, %v5261
      %v5273 = vmul.f32 %v4694, %v5265
      %5274 = vst [vmem:[#allocation2 + $0x320] sm:$0xff] %v5270
      %5275 = vst [vmem:[#allocation2 + $0x328] sm:$0xff] %v5271
      %5276 = vst [vmem:[#allocation2 + $0x330] sm:$0xff] %v5272
      %5277 = vst [vmem:[#allocation2 + $0x338] sm:$0xff] %v5273
      %v5278 = vld [vmem:[%s3643] ss:$8 sm:$0xf]
      %v5280 = vlaneseq
      %v5281 = vshrl.u32 %v5280, 7
      %v5282 = vsub.s32 0, %v5281
      %v5283 = vrot.slane %v5278, %v5282
      %v5284 = vlaneseq
      %v5285 = vshrl.u32 %v5284, 7
      %v5286 = vsub.s32 1, %v5285
      %v5287 = vrot.slane %v5278, %v5286
      %v5288 = vlaneseq
      %v5289 = vshrl.u32 %v5288, 7
      %v5290 = vsub.s32 2, %v5289
      %v5291 = vrot.slane %v5278, %v5290
      %v5292 = vlaneseq
      %v5293 = vshrl.u32 %v5292, 7
      %v5294 = vsub.s32 3, %v5293
      %v5295 = vrot.slane %v5278, %v5294
      %v5300 = vmul.f32 %v4735, %v5283
      %v5301 = vmul.f32 %v4734, %v5287
      %v5302 = vmul.f32 %v4737, %v5291
      %v5303 = vmul.f32 %v4736, %v5295
      %5304 = vst [vmem:[#allocation2 + $0x340] sm:$0xff] %v5300
      %5305 = vst [vmem:[#allocation2 + $0x348] sm:$0xff] %v5301
      %5306 = vst [vmem:[#allocation2 + $0x350] sm:$0xff] %v5302
      %5307 = vst [vmem:[#allocation2 + $0x358] sm:$0xff] %v5303
      %v5308 = vld [vmem:[%s5] sm:$0xff]
      %v5309 = vld [vmem:[%s5 + $0x8] sm:$0xff]
      %v5310 = vld [vmem:[#allocation2] sm:$0xff]
      %v5311 = vld [vmem:[#allocation2 + $0x8] sm:$0xff]
      %v5312 = vld [vmem:[#allocation2 + $0x10] sm:$0xff]
      %v5313 = vld [vmem:[#allocation2 + $0x18] sm:$0xff]
      %v5314 = vld [vmem:[#allocation2 + $0x20] sm:$0xff]
      %v5315 = vld [vmem:[#allocation2 + $0x28] sm:$0xff]
      %v5316 = vld [vmem:[#allocation2 + $0x30] sm:$0xff]
      %v5317 = vld [vmem:[#allocation2 + $0x38] sm:$0xff]
      %v5318 = vld [vmem:[#allocation2 + $0x40] sm:$0xff]
      %v5319 = vld [vmem:[#allocation2 + $0x48] sm:$0xff]
      %v5320 = vld [vmem:[#allocation2 + $0x50] sm:$0xff]
      %v5321 = vld [vmem:[#allocation2 + $0x58] sm:$0xff]
      %v5322 = vld [vmem:[#allocation2 + $0x60] sm:$0xff]
      %v5323 = vld [vmem:[#allocation2 + $0x68] sm:$0xff]
      %v5324 = vld [vmem:[#allocation2 + $0x70] sm:$0xff]
      %v5325 = vld [vmem:[#allocation2 + $0x78] sm:$0xff]
      %v5326 = vld [vmem:[#allocation2 + $0x80] sm:$0xff]
      %v5327 = vld [vmem:[#allocation2 + $0x88] sm:$0xff]
      %v5328 = vld [vmem:[#allocation2 + $0x90] sm:$0xff]
      %v5329 = vld [vmem:[#allocation2 + $0x98] sm:$0xff]
      %v5330 = vld [vmem:[#allocation2 + $0xa0] sm:$0xff]
      %v5331 = vld [vmem:[#allocation2 + $0xa8] sm:$0xff]
      %v5332 = vld [vmem:[#allocation2 + $0xb0] sm:$0xff]
      %v5333 = vld [vmem:[#allocation2 + $0xb8] sm:$0xff]
      %v5334 = vld [vmem:[#allocation2 + $0xc0] sm:$0xff]
      %v5335 = vld [vmem:[#allocation2 + $0xc8] sm:$0xff]
      %v5336 = vld [vmem:[#allocation2 + $0xd0] sm:$0xff]
      %v5337 = vld [vmem:[#allocation2 + $0xd8] sm:$0xff]
      %v5338 = vld [vmem:[#allocation2 + $0xe0] sm:$0xff]
      %v5339 = vld [vmem:[#allocation2 + $0xe8] sm:$0xff]
      %v5340 = vld [vmem:[#allocation2 + $0xf0] sm:$0xff]
      %v5341 = vld [vmem:[#allocation2 + $0xf8] sm:$0xff]
      %v5342 = vld [vmem:[#allocation2 + $0x100] sm:$0xff]
      %v5343 = vld [vmem:[#allocation2 + $0x108] sm:$0xff]
      %v5344 = vld [vmem:[#allocation2 + $0x110] sm:$0xff]
      %v5345 = vld [vmem:[#allocation2 + $0x118] sm:$0xff]
      %v5346 = vld [vmem:[#allocation2 + $0x120] sm:$0xff]
      %v5347 = vld [vmem:[#allocation2 + $0x128] sm:$0xff]
      %v5348 = vld [vmem:[#allocation2 + $0x130] sm:$0xff]
      %v5349 = vld [vmem:[#allocation2 + $0x138] sm:$0xff]
      %v5350 = vld [vmem:[#allocation2 + $0x140] sm:$0xff]
      %v5351 = vld [vmem:[#allocation2 + $0x148] sm:$0xff]
      %v5352 = vld [vmem:[#allocation2 + $0x150] sm:$0xff]
      %v5353 = vld [vmem:[#allocation2 + $0x158] sm:$0xff]
      %v5354 = vld [vmem:[#allocation2 + $0x160] sm:$0xff]
      %v5355 = vld [vmem:[#allocation2 + $0x168] sm:$0xff]
      %v5356 = vld [vmem:[#allocation2 + $0x170] sm:$0xff]
      %v5357 = vld [vmem:[#allocation2 + $0x178] sm:$0xff]
      %v5358 = vld [vmem:[#allocation2 + $0x180] sm:$0xff]
      %v5359 = vld [vmem:[#allocation2 + $0x188] sm:$0xff]
      %v5360 = vld [vmem:[#allocation2 + $0x190] sm:$0xff]
      %v5361 = vld [vmem:[#allocation2 + $0x198] sm:$0xff]
      %v5362 = vld [vmem:[#allocation2 + $0x1a0] sm:$0xff]
      %v5363 = vld [vmem:[#allocation2 + $0x1a8] sm:$0xff]
      %v5364 = vld [vmem:[#allocation2 + $0x1b0] sm:$0xff]
      %v5365 = vld [vmem:[#allocation2 + $0x1b8] sm:$0xff]
      %v5366 = vld [vmem:[#allocation2 + $0x1c0] sm:$0xff]
      %v5367 = vld [vmem:[#allocation2 + $0x1c8] sm:$0xff]
      %v5368 = vld [vmem:[#allocation2 + $0x1d0] sm:$0xff]
      %v5369 = vld [vmem:[#allocation2 + $0x1d8] sm:$0xff]
      %v5370 = vld [vmem:[#allocation2 + $0x1e0] sm:$0xff]
      %v5371 = vld [vmem:[#allocation2 + $0x1e8] sm:$0xff]
      %v5372 = vld [vmem:[#allocation2 + $0x1f0] sm:$0xff]
      %v5373 = vld [vmem:[#allocation2 + $0x1f8] sm:$0xff]
      %v5374 = vld [vmem:[#allocation2 + $0x200] sm:$0xff]
      %v5375 = vld [vmem:[#allocation2 + $0x208] sm:$0xff]
      %v5376 = vld [vmem:[#allocation2 + $0x210] sm:$0xff]
      %v5377 = vld [vmem:[#allocation2 + $0x218] sm:$0xff]
      %v5378 = vld [vmem:[#allocation2 + $0x220] sm:$0xff]
      %v5379 = vld [vmem:[#allocation2 + $0x228] sm:$0xff]
      %v5380 = vld [vmem:[#allocation2 + $0x230] sm:$0xff]
      %v5381 = vld [vmem:[#allocation2 + $0x238] sm:$0xff]
      %v5382 = vld [vmem:[#allocation2 + $0x240] sm:$0xff]
      %v5383 = vld [vmem:[#allocation2 + $0x248] sm:$0xff]
      %v5384 = vld [vmem:[#allocation2 + $0x250] sm:$0xff]
      %v5385 = vld [vmem:[#allocation2 + $0x258] sm:$0xff]
      %v5386 = vld [vmem:[#allocation2 + $0x260] sm:$0xff]
      %v5387 = vld [vmem:[#allocation2 + $0x268] sm:$0xff]
      %v5388 = vld [vmem:[#allocation2 + $0x270] sm:$0xff]
      %v5389 = vld [vmem:[#allocation2 + $0x278] sm:$0xff]
      %v5390 = vld [vmem:[#allocation2 + $0x280] sm:$0xff]
      %v5391 = vld [vmem:[#allocation2 + $0x288] sm:$0xff]
      %v5392 = vld [vmem:[#allocation2 + $0x290] sm:$0xff]
      %v5393 = vld [vmem:[#allocation2 + $0x298] sm:$0xff]
      %v5394 = vld [vmem:[#allocation2 + $0x2a0] sm:$0xff]
      %v5395 = vld [vmem:[#allocation2 + $0x2a8] sm:$0xff]
      %v5396 = vld [vmem:[#allocation2 + $0x2b0] sm:$0xff]
      %v5397 = vld [vmem:[#allocation2 + $0x2b8] sm:$0xff]
      %v5398 = vld [vmem:[#allocation2 + $0x2c0] sm:$0xff]
      %v5399 = vld [vmem:[#allocation2 + $0x2c8] sm:$0xff]
      %v5400 = vld [vmem:[#allocation2 + $0x2d0] sm:$0xff]
      %v5401 = vld [vmem:[#allocation2 + $0x2d8] sm:$0xff]
      %v5402 = vld [vmem:[#allocation2 + $0x2e0] sm:$0xff]
      %v5403 = vld [vmem:[#allocation2 + $0x2e8] sm:$0xff]
      %v5404 = vld [vmem:[#allocation2 + $0x2f0] sm:$0xff]
      %v5405 = vld [vmem:[#allocation2 + $0x2f8] sm:$0xff]
      %v5406 = vld [vmem:[#allocation2 + $0x300] sm:$0xff]
      %v5407 = vld [vmem:[#allocation2 + $0x308] sm:$0xff]
      %v5408 = vld [vmem:[#allocation2 + $0x310] sm:$0xff]
      %v5409 = vld [vmem:[#allocation2 + $0x318] sm:$0xff]
      %v5410 = vld [vmem:[#allocation2 + $0x320] sm:$0xff]
      %v5411 = vld [vmem:[#allocation2 + $0x328] sm:$0xff]
      %v5412 = vld [vmem:[#allocation2 + $0x330] sm:$0xff]
      %v5413 = vld [vmem:[#allocation2 + $0x338] sm:$0xff]
      %v5414 = vld [vmem:[#allocation2 + $0x340] sm:$0xff]
      %v5415 = vld [vmem:[#allocation2 + $0x348] sm:$0xff]
      %v5416 = vld [vmem:[#allocation2 + $0x350] sm:$0xff]
      %v5417 = vld [vmem:[#allocation2 + $0x358] sm:$0xff]
      %v5418 = vld [vmem:[%s6] sm:$0xff]
      %5420 = vset.pattern.permute.xlu0 0
      %5421 = vperm.xlu0 %5420, %v5418
      %v5422 = vpop.permute.xlu0 %5421
      %vm5424 = vcmask 719872
      %v5426 = vsel %vm5424, %v5309, 0
      %5428 = vmatprep.subr.mxu0 %v5371
      %5429 = vmatpush1.msra.mxu0 %v5370
      %5430 = vmatprep.subr.mxu0 %v5367
      %5431 = vmatpush1.msra.mxu0 %v5366
      %5432 = vmatprep.subr.mxu0 %v5363
      %5433 = vmatpush1.msra.mxu0 %v5362
      %5434 = vmatprep.subr.mxu0 %v5359
      %5435 = vmatpush1.msra.mxu0 %v5358
      %5436 = vmatprep.subr.mxu0 %v5355
      %5437 = vmatpush1.msra.mxu0 %v5354
      %5438 = vmatprep.subr.mxu0 %v5351
      %5439 = vmatpush1.msra.mxu0 %v5350
      %5440 = vmatprep.subr.mxu0 %v5347
      %5441 = vmatpush1.msra.mxu0 %v5346
      %5442 = vmatprep.subr.mxu0 %v5343
      %5443 = vmatpush1.msra.mxu0 %v5342
      %5444 = vmatprep.subr.mxu0 %v5339
      %5445 = vmatpush1.msra.mxu0 %v5338
      %5446 = vmatprep.subr.mxu0 %v5335
      %5447 = vmatpush1.msra.mxu0 %v5334
      %5448 = vmatprep.subr.mxu0 %v5331
      %5449 = vmatpush1.msra.mxu0 %v5330
      %5450 = vmatprep.subr.mxu0 %v5327
      %5451 = vmatpush1.msra.mxu0 %v5326
      %5452 = vmatprep.subr.mxu0 %v5323
      %5453 = vmatpush1.msra.mxu0 %v5322
      %5454 = vmatprep.subr.mxu0 %v5319
      %5455 = vmatpush1.msra.mxu0 %v5318
      %5456 = vmatprep.subr.mxu0 %v5315
      %5457 = vmatpush1.msra.mxu0 %v5314
      %5458 = vmatprep.subr.mxu0 %v5311
      %5459 = vmatpush1.msra.mxu0 %v5310
      %5460 = vmatprep.subr.mxu0 0.0
      %5461 = vmatpush2.msra.mxu0 0.0
      %5462 = vmatprep.subr.mxu0 0.0
      %5463 = vmatpush2.msra.mxu0 0.0
      %5464 = vmatprep.subr.mxu0 0.0
      %5465 = vmatpush2.msra.mxu0 0.0
      %5466 = vmatprep.subr.mxu0 0.0
      %5467 = vmatpush2.msra.mxu0 0.0
      %5468 = vmatprep.subr.mxu0 0.0
      %5469 = vmatpush2.msra.mxu0 0.0
      %5470 = vmatprep.subr.mxu0 %v5415
      %5471 = vmatpush2.msra.mxu0 %v5414
      %5472 = vmatprep.subr.mxu0 %v5411
      %5473 = vmatpush2.msra.mxu0 %v5410
      %5474 = vmatprep.subr.mxu0 %v5407
      %5475 = vmatpush2.msra.mxu0 %v5406
      %5476 = vmatprep.subr.mxu0 %v5403
      %5477 = vmatpush2.msra.mxu0 %v5402
      %5478 = vmatprep.subr.mxu0 %v5399
      %5479 = vmatpush2.msra.mxu0 %v5398
      %5480 = vmatprep.subr.mxu0 %v5395
      %5481 = vmatpush2.msra.mxu0 %v5394
      %5482 = vmatprep.subr.mxu0 %v5391
      %5483 = vmatpush2.msra.mxu0 %v5390
      %5484 = vmatprep.subr.mxu0 %v5387
      %5485 = vmatpush2.msra.mxu0 %v5386
      %5486 = vmatprep.subr.mxu0 %v5383
      %5487 = vmatpush2.msra.mxu0 %v5382
      %5488 = vmatprep.subr.mxu0 %v5379
      %5489 = vmatpush2.msra.mxu0 %v5378
      %5490 = vmatprep.subr.mxu0 %v5375
      %5491 = vmatpush2.msra.mxu0 %v5374
      %5492 = vmatprep.mubr.f32.mxu0 %v5426
      %5493 = vmatmul.mubr.f32.gmra.mxu0 %v5308
      %v5494 = vpop.f32.mrf.mxu0
      %v5495 = vadd.f32 %v5422, %v5494
      %v5496 = vpop.f32.mrf.mxu0
      %v5497 = vadd.f32 %v5422, %v5496
      %5498 = vdwg.mxu0
      %5499 = vmatprep.subr.mxu0 %v5373
      %5500 = vmatpush1.msra.mxu0 %v5372
      %5501 = vmatprep.subr.mxu0 %v5369
      %5502 = vmatpush1.msra.mxu0 %v5368
      %5503 = vmatprep.subr.mxu0 %v5365
      %5504 = vmatpush1.msra.mxu0 %v5364
      %5505 = vmatprep.subr.mxu0 %v5361
      %5506 = vmatpush1.msra.mxu0 %v5360
      %5507 = vmatprep.subr.mxu0 %v5357
      %5508 = vmatpush1.msra.mxu0 %v5356
      %5509 = vmatprep.subr.mxu0 %v5353
      %5510 = vmatpush1.msra.mxu0 %v5352
      %5511 = vmatprep.subr.mxu0 %v5349
      %5512 = vmatpush1.msra.mxu0 %v5348
      %5513 = vmatprep.subr.mxu0 %v5345
      %5514 = vmatpush1.msra.mxu0 %v5344
      %5515 = vmatprep.subr.mxu0 %v5341
      %5516 = vmatpush1.msra.mxu0 %v5340
      %5517 = vmatprep.subr.mxu0 %v5337
      %5518 = vmatpush1.msra.mxu0 %v5336
      %5519 = vmatprep.subr.mxu0 %v5333
      %5520 = vmatpush1.msra.mxu0 %v5332
      %5521 = vmatprep.subr.mxu0 %v5329
      %5522 = vmatpush1.msra.mxu0 %v5328
      %5523 = vmatprep.subr.mxu0 %v5325
      %5524 = vmatpush1.msra.mxu0 %v5324
      %5525 = vmatprep.subr.mxu0 %v5321
      %5526 = vmatpush1.msra.mxu0 %v5320
      %5527 = vmatprep.subr.mxu0 %v5317
      %5528 = vmatpush1.msra.mxu0 %v5316
      %5529 = vmatprep.subr.mxu0 %v5313
      %5530 = vmatpush1.msra.mxu0 %v5312
      %5531 = vmatprep.subr.mxu0 0.0
      %5532 = vmatpush2.msra.mxu0 0.0
      %5533 = vmatprep.subr.mxu0 0.0
      %5534 = vmatpush2.msra.mxu0 0.0
      %5535 = vmatprep.subr.mxu0 0.0
      %5536 = vmatpush2.msra.mxu0 0.0
      %5537 = vmatprep.subr.mxu0 0.0
      %5538 = vmatpush2.msra.mxu0 0.0
      %5539 = vmatprep.subr.mxu0 0.0
      %5540 = vmatpush2.msra.mxu0 0.0
      %5541 = vmatprep.subr.mxu0 %v5417
      %5542 = vmatpush2.msra.mxu0 %v5416
      %5543 = vmatprep.subr.mxu0 %v5413
      %5544 = vmatpush2.msra.mxu0 %v5412
      %5545 = vmatprep.subr.mxu0 %v5409
      %5546 = vmatpush2.msra.mxu0 %v5408
      %5547 = vmatprep.subr.mxu0 %v5405
      %5548 = vmatpush2.msra.mxu0 %v5404
      %5549 = vmatprep.subr.mxu0 %v5401
      %5550 = vmatpush2.msra.mxu0 %v5400
      %5551 = vmatprep.subr.mxu0 %v5397
      %5552 = vmatpush2.msra.mxu0 %v5396
      %5553 = vmatprep.subr.mxu0 %v5393
      %5554 = vmatpush2.msra.mxu0 %v5392
      %5555 = vmatprep.subr.mxu0 %v5389
      %5556 = vmatpush2.msra.mxu0 %v5388
      %5557 = vmatprep.subr.mxu0 %v5385
      %5558 = vmatpush2.msra.mxu0 %v5384
      %5559 = vmatprep.subr.mxu0 %v5381
      %5560 = vmatpush2.msra.mxu0 %v5380
      %5561 = vmatprep.subr.mxu0 %v5377
      %5562 = vmatpush2.msra.mxu0 %v5376
      %5563 = vmatprep.mubr.f32.mxu0 %v5426
      %5564 = vmatmul.mubr.f32.gmra.mxu0 %v5308
      %v5565 = vpop.f32.mrf.mxu0
      %v5566 = vadd.f32 %v5422, %v5565
      %v5567 = vpop.f32.mrf.mxu0
      %v5568 = vadd.f32 %v5422, %v5567
      %5569 = vdwg.mxu0
      %v5570 = vmax.f32 %v5495, 0.0
      %v5571 = vmax.f32 %v5497, 0.0
      %v5572 = vmax.f32 %v5566, 0.0
      %v5573 = vmax.f32 %v5568, 0.0
      %v5574 = vld [vmem:[%s3156] ss:$8 sm:$0xf]
      %v5576 = vlaneseq
      %v5577 = vshrl.u32 %v5576, 7
      %v5578 = vsub.s32 0, %v5577
      %v5579 = vrot.slane %v5574, %v5578
      %v5580 = vlaneseq
      %v5581 = vshrl.u32 %v5580, 7
      %v5582 = vsub.s32 1, %v5581
      %v5583 = vrot.slane %v5574, %v5582
      %v5584 = vlaneseq
      %v5585 = vshrl.u32 %v5584, 7
      %v5586 = vsub.s32 2, %v5585
      %v5587 = vrot.slane %v5574, %v5586
      %v5588 = vlaneseq
      %v5589 = vshrl.u32 %v5588, 7
      %v5590 = vsub.s32 3, %v5589
      %v5591 = vrot.slane %v5574, %v5590
      %v5596 = vmul.f32 %v5570, %v5579
      %v5597 = vmul.f32 %v5571, %v5583
      %v5598 = vmul.f32 %v5572, %v5587
      %v5599 = vmul.f32 %v5573, %v5591
      %v5600 = vld [vmem:[%s11] sm:$0xf]
      %vm5601 = vcmp.eq.f32.partialorder %v5600, 0.0
      %vm5602 = vcmp.eq.f32.partialorder %v2574, 0.0
      %vm5603 = vcmp.eq.f32.partialorder %v2575, 0.0
      %vm5604 = vcmp.eq.f32.partialorder %v2576, 0.0
      %vm5605 = vcmp.eq.f32.partialorder %v2577, 0.0
      %v5606 = vsel %vm5601, 1, 0
      %v5607 = vlaneseq
      %v5608 = vshrl.u32 %v5607, 7
      %v5609 = vsub.s32 0, %v5608
      %v5610 = vrot.slane %v5606, %v5609
      %v5611 = vlaneseq
      %v5612 = vshrl.u32 %v5611, 7
      %v5613 = vsub.s32 1, %v5612
      %v5614 = vrot.slane %v5606, %v5613
      %v5615 = vlaneseq
      %v5616 = vshrl.u32 %v5615, 7
      %v5617 = vsub.s32 2, %v5616
      %v5618 = vrot.slane %v5606, %v5617
      %v5619 = vlaneseq
      %v5620 = vshrl.u32 %v5619, 7
      %v5621 = vsub.s32 3, %v5620
      %v5622 = vrot.slane %v5606, %v5621
      %vm5623 = vcmp.eq.s32.totalorder %v5610, 1
      %vm5624 = vcmp.eq.s32.totalorder %v5614, 1
      %vm5625 = vcmp.eq.s32.totalorder %v5618, 1
      %vm5626 = vcmp.eq.s32.totalorder %v5622, 1
      %vm5627 = vmand %vm5623, %vm5602
      %vm5628 = vmand %vm5624, %vm5603
      %vm5629 = vmand %vm5625, %vm5604
      %vm5630 = vmand %vm5626, %vm5605
      %v5631 = vsel %vm5627, %v5596, 0.0
      %v5632 = vsel %vm5628, %v5597, 0.0
      %v5633 = vsel %vm5629, %v5598, 0.0
      %v5634 = vsel %vm5630, %v5599, 0.0
      %v5635 = vadd.f32 %v5631, 0.0
      %v5636 = vadd.f32 %v5632, 0.0
      %v5637 = vadd.f32 %v5633, 0.0
      %v5638 = vadd.f32 %v5634, 0.0
      %vm5639 = vcmp.eq.f32.partialorder %v5600, 1.0
      %5640 = vrot.lane.b32.xlu0 %v2574, 1
      %v5641 = vpop.permute.xlu0 %5640
      %5642 = vrot.lane.b32.xlu0 %v2575, 1
      %v5643 = vpop.permute.xlu0 %5642
      %5644 = vrot.lane.b32.xlu0 %v2576, 1
      %v5645 = vpop.permute.xlu0 %5644
      %5646 = vrot.lane.b32.xlu0 %v2577, 1
      %v5647 = vpop.permute.xlu0 %5646
      %v5648 = vsel %vm1342, %v5645, %v5647
      %v5649 = vsel %vm1342, %v5643, %v5645
      %v5650 = vsel %vm1342, %v5641, %v5643
      %v5651 = vsel %vm1342, %v5647, %v5641
      %vm5652 = vcmp.eq.f32.partialorder %v5651, 1.0
      %vm5653 = vcmp.eq.f32.partialorder %v5650, 1.0
      %vm5654 = vcmp.eq.f32.partialorder %v5649, 1.0
      %vm5655 = vcmp.eq.f32.partialorder %v5648, 1.0
      %v5656 = vsel %vm5639, 1, 0
      %v5657 = vlaneseq
      %v5658 = vshrl.u32 %v5657, 7
      %v5659 = vsub.s32 0, %v5658
      %v5660 = vrot.slane %v5656, %v5659
      %v5661 = vlaneseq
      %v5662 = vshrl.u32 %v5661, 7
      %v5663 = vsub.s32 1, %v5662
      %v5664 = vrot.slane %v5656, %v5663
      %v5665 = vlaneseq
      %v5666 = vshrl.u32 %v5665, 7
      %v5667 = vsub.s32 2, %v5666
      %v5668 = vrot.slane %v5656, %v5667
      %v5669 = vlaneseq
      %v5670 = vshrl.u32 %v5669, 7
      %v5671 = vsub.s32 3, %v5670
      %v5672 = vrot.slane %v5656, %v5671
      %vm5673 = vcmp.eq.s32.totalorder %v5660, 1
      %vm5674 = vcmp.eq.s32.totalorder %v5664, 1
      %vm5675 = vcmp.eq.s32.totalorder %v5668, 1
      %vm5676 = vcmp.eq.s32.totalorder %v5672, 1
      %vm5677 = vmand %vm5673, %vm5652
      %vm5678 = vmand %vm5674, %vm5653
      %vm5679 = vmand %vm5675, %vm5654
      %vm5680 = vmand %vm5676, %vm5655
      %5681 = vrot.lane.b32.xlu0 %v5596, 1
      %v5682 = vpop.permute.xlu0 %5681
      %5683 = vrot.lane.b32.xlu0 %v5597, 1
      %v5684 = vpop.permute.xlu0 %5683
      %5685 = vrot.lane.b32.xlu0 %v5598, 1
      %v5686 = vpop.permute.xlu0 %5685
      %5687 = vrot.lane.b32.xlu0 %v5599, 1
      %v5688 = vpop.permute.xlu0 %5687
      %v5689 = vsel %vm1342, %v5686, %v5688
      %v5690 = vsel %vm1342, %v5684, %v5686
      %v5691 = vsel %vm1342, %v5682, %v5684
      %v5692 = vsel %vm1342, %v5688, %v5682
      %v5693 = vsel %vm5677, %v5692, 0.0
      %v5694 = vsel %vm5678, %v5691, 0.0
      %v5695 = vsel %vm5679, %v5690, 0.0
      %v5696 = vsel %vm5680, %v5689, 0.0
      %v5697 = vadd.f32 %v5635, %v5693
      %v5698 = vadd.f32 %v5636, %v5694
      %v5699 = vadd.f32 %v5637, %v5695
      %v5700 = vadd.f32 %v5638, %v5696
      %vm5701 = vcmp.eq.f32.partialorder %v5600, 2.0
      %5702 = vrot.lane.b32.xlu0 %v2574, 8
      %v5703 = vpop.permute.xlu0 %5702
      %5704 = vrot.lane.b32.xlu0 %v2575, 8
      %v5705 = vpop.permute.xlu0 %5704
      %5706 = vrot.lane.b32.xlu0 %v2576, 8
      %v5707 = vpop.permute.xlu0 %5706
      %5708 = vrot.lane.b32.xlu0 %v2577, 8
      %v5709 = vpop.permute.xlu0 %5708
      %v5710 = vsel %vm1198, %v5707, %v5709
      %v5711 = vsel %vm1198, %v5705, %v5707
      %v5712 = vsel %vm1198, %v5703, %v5705
      %v5713 = vsel %vm1198, %v5709, %v5703
      %vm5714 = vcmp.eq.f32.partialorder %v5713, 2.0
      %vm5715 = vcmp.eq.f32.partialorder %v5712, 2.0
      %vm5716 = vcmp.eq.f32.partialorder %v5711, 2.0
      %vm5717 = vcmp.eq.f32.partialorder %v5710, 2.0
      %v5718 = vsel %vm5701, 1, 0
      %v5719 = vlaneseq
      %v5720 = vshrl.u32 %v5719, 7
      %v5721 = vsub.s32 0, %v5720
      %v5722 = vrot.slane %v5718, %v5721
      %v5723 = vlaneseq
      %v5724 = vshrl.u32 %v5723, 7
      %v5725 = vsub.s32 1, %v5724
      %v5726 = vrot.slane %v5718, %v5725
      %v5727 = vlaneseq
      %v5728 = vshrl.u32 %v5727, 7
      %v5729 = vsub.s32 2, %v5728
      %v5730 = vrot.slane %v5718, %v5729
      %v5731 = vlaneseq
      %v5732 = vshrl.u32 %v5731, 7
      %v5733 = vsub.s32 3, %v5732
      %v5734 = vrot.slane %v5718, %v5733
      %vm5735 = vcmp.eq.s32.totalorder %v5722, 1
      %vm5736 = vcmp.eq.s32.totalorder %v5726, 1
      %vm5737 = vcmp.eq.s32.totalorder %v5730, 1
      %vm5738 = vcmp.eq.s32.totalorder %v5734, 1
      %vm5739 = vmand %vm5735, %vm5714
      %vm5740 = vmand %vm5736, %vm5715
      %vm5741 = vmand %vm5737, %vm5716
      %vm5742 = vmand %vm5738, %vm5717
      %5743 = vrot.lane.b32.xlu0 %v5596, 8
      %v5744 = vpop.permute.xlu0 %5743
      %5745 = vrot.lane.b32.xlu0 %v5597, 8
      %v5746 = vpop.permute.xlu0 %5745
      %5747 = vrot.lane.b32.xlu0 %v5598, 8
      %v5748 = vpop.permute.xlu0 %5747
      %5749 = vrot.lane.b32.xlu0 %v5599, 8
      %v5750 = vpop.permute.xlu0 %5749
      %v5751 = vsel %vm1198, %v5748, %v5750
      %v5752 = vsel %vm1198, %v5746, %v5748
      %v5753 = vsel %vm1198, %v5744, %v5746
      %v5754 = vsel %vm1198, %v5750, %v5744
      %v5755 = vsel %vm5739, %v5754, 0.0
      %v5756 = vsel %vm5740, %v5753, 0.0
      %v5757 = vsel %vm5741, %v5752, 0.0
      %v5758 = vsel %vm5742, %v5751, 0.0
      %v5759 = vadd.f32 %v5697, %v5755
      %v5760 = vadd.f32 %v5698, %v5756
      %v5761 = vadd.f32 %v5699, %v5757
      %v5762 = vadd.f32 %v5700, %v5758
      %vm5763 = vcmp.eq.f32.partialorder %v5600, 3.0
      %5764 = vrot.lane.b32.xlu0 %v2574, 9
      %v5765 = vpop.permute.xlu0 %5764
      %5766 = vrot.lane.b32.xlu0 %v2575, 9
      %v5767 = vpop.permute.xlu0 %5766
      %5768 = vrot.lane.b32.xlu0 %v2576, 9
      %v5769 = vpop.permute.xlu0 %5768
      %5770 = vrot.lane.b32.xlu0 %v2577, 9
      %v5771 = vpop.permute.xlu0 %5770
      %v5772 = vsel %vm1126, %v5769, %v5771
      %v5773 = vsel %vm1126, %v5767, %v5769
      %v5774 = vsel %vm1126, %v5765, %v5767
      %v5775 = vsel %vm1126, %v5771, %v5765
      %vm5776 = vcmp.eq.f32.partialorder %v5775, 3.0
      %vm5777 = vcmp.eq.f32.partialorder %v5774, 3.0
      %vm5778 = vcmp.eq.f32.partialorder %v5773, 3.0
      %vm5779 = vcmp.eq.f32.partialorder %v5772, 3.0
      %v5780 = vsel %vm5763, 1, 0
      %v5781 = vlaneseq
      %v5782 = vshrl.u32 %v5781, 7
      %v5783 = vsub.s32 0, %v5782
      %v5784 = vrot.slane %v5780, %v5783
      %v5785 = vlaneseq
      %v5786 = vshrl.u32 %v5785, 7
      %v5787 = vsub.s32 1, %v5786
      %v5788 = vrot.slane %v5780, %v5787
      %v5789 = vlaneseq
      %v5790 = vshrl.u32 %v5789, 7
      %v5791 = vsub.s32 2, %v5790
      %v5792 = vrot.slane %v5780, %v5791
      %v5793 = vlaneseq
      %v5794 = vshrl.u32 %v5793, 7
      %v5795 = vsub.s32 3, %v5794
      %v5796 = vrot.slane %v5780, %v5795
      %vm5797 = vcmp.eq.s32.totalorder %v5784, 1
      %vm5798 = vcmp.eq.s32.totalorder %v5788, 1
      %vm5799 = vcmp.eq.s32.totalorder %v5792, 1
      %vm5800 = vcmp.eq.s32.totalorder %v5796, 1
      %vm5801 = vmand %vm5797, %vm5776
      %vm5802 = vmand %vm5798, %vm5777
      %vm5803 = vmand %vm5799, %vm5778
      %vm5804 = vmand %vm5800, %vm5779
      %5805 = vrot.lane.b32.xlu0 %v5596, 9
      %v5806 = vpop.permute.xlu0 %5805
      %5807 = vrot.lane.b32.xlu0 %v5597, 9
      %v5808 = vpop.permute.xlu0 %5807
      %5809 = vrot.lane.b32.xlu0 %v5598, 9
      %v5810 = vpop.permute.xlu0 %5809
      %5811 = vrot.lane.b32.xlu0 %v5599, 9
      %v5812 = vpop.permute.xlu0 %5811
      %v5813 = vsel %vm1126, %v5810, %v5812
      %v5814 = vsel %vm1126, %v5808, %v5810
      %v5815 = vsel %vm1126, %v5806, %v5808
      %v5816 = vsel %vm1126, %v5812, %v5806
      %v5817 = vsel %vm5801, %v5816, 0.0
      %v5818 = vsel %vm5802, %v5815, 0.0
      %v5819 = vsel %vm5803, %v5814, 0.0
      %v5820 = vsel %vm5804, %v5813, 0.0
      %v5821 = vadd.f32 %v5759, %v5817
      %v5822 = vadd.f32 %v5760, %v5818
      %v5823 = vadd.f32 %v5761, %v5819
      %v5824 = vadd.f32 %v5762, %v5820
      %vm5825 = vcmp.eq.f32.partialorder %v5600, 4.0
      %5826 = vrot.lane.b32.xlu0 %v2574, 64
      %v5827 = vpop.permute.xlu0 %5826
      %5828 = vrot.lane.b32.xlu0 %v2575, 64
      %v5829 = vpop.permute.xlu0 %5828
      %5830 = vrot.lane.b32.xlu0 %v2576, 64
      %v5831 = vpop.permute.xlu0 %5830
      %5832 = vrot.lane.b32.xlu0 %v2577, 64
      %v5833 = vpop.permute.xlu0 %5832
      %v5834 = vsel %vm766, %v5831, %v5833
      %v5835 = vsel %vm766, %v5829, %v5831
      %v5836 = vsel %vm766, %v5827, %v5829
      %v5837 = vsel %vm766, %v5833, %v5827
      %vm5838 = vcmp.eq.f32.partialorder %v5837, 4.0
      %vm5839 = vcmp.eq.f32.partialorder %v5836, 4.0
      %vm5840 = vcmp.eq.f32.partialorder %v5835, 4.0
      %vm5841 = vcmp.eq.f32.partialorder %v5834, 4.0
      %v5842 = vsel %vm5825, 1, 0
      %v5843 = vlaneseq
      %v5844 = vshrl.u32 %v5843, 7
      %v5845 = vsub.s32 0, %v5844
      %v5846 = vrot.slane %v5842, %v5845
      %v5847 = vlaneseq
      %v5848 = vshrl.u32 %v5847, 7
      %v5849 = vsub.s32 1, %v5848
      %v5850 = vrot.slane %v5842, %v5849
      %v5851 = vlaneseq
      %v5852 = vshrl.u32 %v5851, 7
      %v5853 = vsub.s32 2, %v5852
      %v5854 = vrot.slane %v5842, %v5853
      %v5855 = vlaneseq
      %v5856 = vshrl.u32 %v5855, 7
      %v5857 = vsub.s32 3, %v5856
      %v5858 = vrot.slane %v5842, %v5857
      %vm5859 = vcmp.eq.s32.totalorder %v5846, 1
      %vm5860 = vcmp.eq.s32.totalorder %v5850, 1
      %vm5861 = vcmp.eq.s32.totalorder %v5854, 1
      %vm5862 = vcmp.eq.s32.totalorder %v5858, 1
      %vm5863 = vmand %vm5859, %vm5838
      %vm5864 = vmand %vm5860, %vm5839
      %vm5865 = vmand %vm5861, %vm5840
      %vm5866 = vmand %vm5862, %vm5841
      %5867 = vrot.lane.b32.xlu0 %v5596, 64
      %v5868 = vpop.permute.xlu0 %5867
      %5869 = vrot.lane.b32.xlu0 %v5597, 64
      %v5870 = vpop.permute.xlu0 %5869
      %5871 = vrot.lane.b32.xlu0 %v5598, 64
      %v5872 = vpop.permute.xlu0 %5871
      %5873 = vrot.lane.b32.xlu0 %v5599, 64
      %v5874 = vpop.permute.xlu0 %5873
      %v5875 = vsel %vm766, %v5872, %v5874
      %v5876 = vsel %vm766, %v5870, %v5872
      %v5877 = vsel %vm766, %v5868, %v5870
      %v5878 = vsel %vm766, %v5874, %v5868
      %v5879 = vsel %vm5863, %v5878, 0.0
      %v5880 = vsel %vm5864, %v5877, 0.0
      %v5881 = vsel %vm5865, %v5876, 0.0
      %v5882 = vsel %vm5866, %v5875, 0.0
      %v5883 = vadd.f32 %v5821, %v5879
      %v5884 = vadd.f32 %v5822, %v5880
      %v5885 = vadd.f32 %v5823, %v5881
      %v5886 = vadd.f32 %v5824, %v5882
      %vm5887 = vcmp.eq.f32.partialorder %v5600, 5.0
      %5888 = vrot.lane.b32.xlu0 %v2574, 65
      %v5889 = vpop.permute.xlu0 %5888
      %5890 = vrot.lane.b32.xlu0 %v2575, 65
      %v5891 = vpop.permute.xlu0 %5890
      %5892 = vrot.lane.b32.xlu0 %v2576, 65
      %v5893 = vpop.permute.xlu0 %5892
      %5894 = vrot.lane.b32.xlu0 %v2577, 65
      %v5895 = vpop.permute.xlu0 %5894
      %v5896 = vsel %vm694, %v5893, %v5895
      %v5897 = vsel %vm694, %v5891, %v5893
      %v5898 = vsel %vm694, %v5889, %v5891
      %v5899 = vsel %vm694, %v5895, %v5889
      %vm5900 = vcmp.eq.f32.partialorder %v5899, 5.0
      %vm5901 = vcmp.eq.f32.partialorder %v5898, 5.0
      %vm5902 = vcmp.eq.f32.partialorder %v5897, 5.0
      %vm5903 = vcmp.eq.f32.partialorder %v5896, 5.0
      %v5904 = vsel %vm5887, 1, 0
      %v5905 = vlaneseq
      %v5906 = vshrl.u32 %v5905, 7
      %v5907 = vsub.s32 0, %v5906
      %v5908 = vrot.slane %v5904, %v5907
      %v5909 = vlaneseq
      %v5910 = vshrl.u32 %v5909, 7
      %v5911 = vsub.s32 1, %v5910
      %v5912 = vrot.slane %v5904, %v5911
      %v5913 = vlaneseq
      %v5914 = vshrl.u32 %v5913, 7
      %v5915 = vsub.s32 2, %v5914
      %v5916 = vrot.slane %v5904, %v5915
      %v5917 = vlaneseq
      %v5918 = vshrl.u32 %v5917, 7
      %v5919 = vsub.s32 3, %v5918
      %v5920 = vrot.slane %v5904, %v5919
      %vm5921 = vcmp.eq.s32.totalorder %v5908, 1
      %vm5922 = vcmp.eq.s32.totalorder %v5912, 1
      %vm5923 = vcmp.eq.s32.totalorder %v5916, 1
      %vm5924 = vcmp.eq.s32.totalorder %v5920, 1
      %vm5925 = vmand %vm5921, %vm5900
      %vm5926 = vmand %vm5922, %vm5901
      %vm5927 = vmand %vm5923, %vm5902
      %vm5928 = vmand %vm5924, %vm5903
      %5929 = vrot.lane.b32.xlu0 %v5596, 65
      %v5930 = vpop.permute.xlu0 %5929
      %5931 = vrot.lane.b32.xlu0 %v5597, 65
      %v5932 = vpop.permute.xlu0 %5931
      %5933 = vrot.lane.b32.xlu0 %v5598, 65
      %v5934 = vpop.permute.xlu0 %5933
      %5935 = vrot.lane.b32.xlu0 %v5599, 65
      %v5936 = vpop.permute.xlu0 %5935
      %v5937 = vsel %vm694, %v5934, %v5936
      %v5938 = vsel %vm694, %v5932, %v5934
      %v5939 = vsel %vm694, %v5930, %v5932
      %v5940 = vsel %vm694, %v5936, %v5930
      %v5941 = vsel %vm5925, %v5940, 0.0
      %v5942 = vsel %vm5926, %v5939, 0.0
      %v5943 = vsel %vm5927, %v5938, 0.0
      %v5944 = vsel %vm5928, %v5937, 0.0
      %v5945 = vadd.f32 %v5883, %v5941
      %v5946 = vadd.f32 %v5884, %v5942
      %v5947 = vadd.f32 %v5885, %v5943
      %v5948 = vadd.f32 %v5886, %v5944
      %vm5949 = vcmp.eq.f32.partialorder %v5600, 6.0
      %5950 = vrot.lane.b32.xlu0 %v2574, 72
      %v5951 = vpop.permute.xlu0 %5950
      %5952 = vrot.lane.b32.xlu0 %v2575, 72
      %v5953 = vpop.permute.xlu0 %5952
      %5954 = vrot.lane.b32.xlu0 %v2576, 72
      %v5955 = vpop.permute.xlu0 %5954
      %5956 = vrot.lane.b32.xlu0 %v2577, 72
      %v5957 = vpop.permute.xlu0 %5956
      %v5958 = vsel %vm550, %v5955, %v5957
      %v5959 = vsel %vm550, %v5953, %v5955
      %v5960 = vsel %vm550, %v5951, %v5953
      %v5961 = vsel %vm550, %v5957, %v5951
      %vm5962 = vcmp.eq.f32.partialorder %v5961, 6.0
      %vm5963 = vcmp.eq.f32.partialorder %v5960, 6.0
      %vm5964 = vcmp.eq.f32.partialorder %v5959, 6.0
      %vm5965 = vcmp.eq.f32.partialorder %v5958, 6.0
      %v5966 = vsel %vm5949, 1, 0
      %v5967 = vlaneseq
      %v5968 = vshrl.u32 %v5967, 7
      %v5969 = vsub.s32 0, %v5968
      %v5970 = vrot.slane %v5966, %v5969
      %v5971 = vlaneseq
      %v5972 = vshrl.u32 %v5971, 7
      %v5973 = vsub.s32 1, %v5972
      %v5974 = vrot.slane %v5966, %v5973
      %v5975 = vlaneseq
      %v5976 = vshrl.u32 %v5975, 7
      %v5977 = vsub.s32 2, %v5976
      %v5978 = vrot.slane %v5966, %v5977
      %v5979 = vlaneseq
      %v5980 = vshrl.u32 %v5979, 7
      %v5981 = vsub.s32 3, %v5980
      %v5982 = vrot.slane %v5966, %v5981
      %vm5983 = vcmp.eq.s32.totalorder %v5970, 1
      %vm5984 = vcmp.eq.s32.totalorder %v5974, 1
      %vm5985 = vcmp.eq.s32.totalorder %v5978, 1
      %vm5986 = vcmp.eq.s32.totalorder %v5982, 1
      %vm5987 = vmand %vm5983, %vm5962
      %vm5988 = vmand %vm5984, %vm5963
      %vm5989 = vmand %vm5985, %vm5964
      %vm5990 = vmand %vm5986, %vm5965
      %5991 = vrot.lane.b32.xlu0 %v5596, 72
      %v5992 = vpop.permute.xlu0 %5991
      %5993 = vrot.lane.b32.xlu0 %v5597, 72
      %v5994 = vpop.permute.xlu0 %5993
      %5995 = vrot.lane.b32.xlu0 %v5598, 72
      %v5996 = vpop.permute.xlu0 %5995
      %5997 = vrot.lane.b32.xlu0 %v5599, 72
      %v5998 = vpop.permute.xlu0 %5997
      %v5999 = vsel %vm550, %v5996, %v5998
      %v6000 = vsel %vm550, %v5994, %v5996
      %v6001 = vsel %vm550, %v5992, %v5994
      %v6002 = vsel %vm550, %v5998, %v5992
      %v6003 = vsel %vm5987, %v6002, 0.0
      %v6004 = vsel %vm5988, %v6001, 0.0
      %v6005 = vsel %vm5989, %v6000, 0.0
      %v6006 = vsel %vm5990, %v5999, 0.0
      %v6007 = vadd.f32 %v5945, %v6003
      %v6008 = vadd.f32 %v5946, %v6004
      %v6009 = vadd.f32 %v5947, %v6005
      %v6010 = vadd.f32 %v5948, %v6006
      %vm6011 = vcmp.eq.f32.partialorder %v5600, 7.0
      %6012 = vrot.lane.b32.xlu0 %v2574, 73
      %v6013 = vpop.permute.xlu0 %6012
      %6014 = vrot.lane.b32.xlu0 %v2575, 73
      %v6015 = vpop.permute.xlu0 %6014
      %6016 = vrot.lane.b32.xlu0 %v2576, 73
      %v6017 = vpop.permute.xlu0 %6016
      %6018 = vrot.lane.b32.xlu0 %v2577, 73
      %v6019 = vpop.permute.xlu0 %6018
      %v6020 = vsel %vm476, %v6017, %v6019
      %v6021 = vsel %vm476, %v6015, %v6017
      %v6022 = vsel %vm476, %v6013, %v6015
      %v6023 = vsel %vm476, %v6019, %v6013
      %vm6024 = vcmp.eq.f32.partialorder %v6023, 7.0
      %vm6025 = vcmp.eq.f32.partialorder %v6022, 7.0
      %vm6026 = vcmp.eq.f32.partialorder %v6021, 7.0
      %vm6027 = vcmp.eq.f32.partialorder %v6020, 7.0
      %v6028 = vsel %vm6011, 1, 0
      %v6029 = vlaneseq
      %v6030 = vshrl.u32 %v6029, 7
      %v6031 = vsub.s32 0, %v6030
      %v6032 = vrot.slane %v6028, %v6031
      %v6033 = vlaneseq
      %v6034 = vshrl.u32 %v6033, 7
      %v6035 = vsub.s32 1, %v6034
      %v6036 = vrot.slane %v6028, %v6035
      %v6037 = vlaneseq
      %v6038 = vshrl.u32 %v6037, 7
      %v6039 = vsub.s32 2, %v6038
      %v6040 = vrot.slane %v6028, %v6039
      %v6041 = vlaneseq
      %v6042 = vshrl.u32 %v6041, 7
      %v6043 = vsub.s32 3, %v6042
      %v6044 = vrot.slane %v6028, %v6043
      %vm6045 = vcmp.eq.s32.totalorder %v6032, 1
      %vm6046 = vcmp.eq.s32.totalorder %v6036, 1
      %vm6047 = vcmp.eq.s32.totalorder %v6040, 1
      %vm6048 = vcmp.eq.s32.totalorder %v6044, 1
      %vm6049 = vmand %vm6045, %vm6024
      %vm6050 = vmand %vm6046, %vm6025
      %vm6051 = vmand %vm6047, %vm6026
      %vm6052 = vmand %vm6048, %vm6027
      %6053 = vrot.lane.b32.xlu0 %v5596, 73
      %v6054 = vpop.permute.xlu0 %6053
      %6055 = vrot.lane.b32.xlu0 %v5597, 73
      %v6056 = vpop.permute.xlu0 %6055
      %6057 = vrot.lane.b32.xlu0 %v5598, 73
      %v6058 = vpop.permute.xlu0 %6057
      %6059 = vrot.lane.b32.xlu0 %v5599, 73
      %v6060 = vpop.permute.xlu0 %6059
      %v6061 = vsel %vm476, %v6058, %v6060
      %v6062 = vsel %vm476, %v6056, %v6058
      %v6063 = vsel %vm476, %v6054, %v6056
      %v6064 = vsel %vm476, %v6060, %v6054
      %v6065 = vsel %vm6049, %v6064, 0.0
      %v6066 = vsel %vm6050, %v6063, 0.0
      %v6067 = vsel %vm6051, %v6062, 0.0
      %v6068 = vsel %vm6052, %v6061, 0.0
      %v6069 = vadd.f32 %v6007, %v6065
      %v6070 = vadd.f32 %v6008, %v6066
      %v6071 = vadd.f32 %v6009, %v6067
      %v6072 = vadd.f32 %v6010, %v6068
      %6073 = vrot.lane.b32.xlu0 %v6069, 73
      %v6074 = vpop.permute.xlu0 %6073
      %6075 = vrot.lane.b32.xlu0 %v6070, 73
      %v6076 = vpop.permute.xlu0 %6075
      %6077 = vrot.lane.b32.xlu0 %v6071, 73
      %v6078 = vpop.permute.xlu0 %6077
      %6079 = vrot.lane.b32.xlu0 %v6072, 73
      %v6080 = vpop.permute.xlu0 %6079
      %v6081 = vsel %vm476, %v6078, %v6080
      %v6082 = vsel %vm476, %v6076, %v6078
      %v6083 = vsel %vm476, %v6074, %v6076
      %v6084 = vsel %vm476, %v6080, %v6074
      %v6085 = vld [vmem:[%s9] ss:$8 sm:$0xf]
      %v6087 = vlaneseq
      %v6088 = vshrl.u32 %v6087, 7
      %v6089 = vsub.s32 0, %v6088
      %v6090 = vrot.slane %v6085, %v6089
      %v6091 = vlaneseq
      %v6092 = vshrl.u32 %v6091, 7
      %v6093 = vsub.s32 1, %v6092
      %v6094 = vrot.slane %v6085, %v6093
      %v6095 = vlaneseq
      %v6096 = vshrl.u32 %v6095, 7
      %v6097 = vsub.s32 2, %v6096
      %v6098 = vrot.slane %v6085, %v6097
      %v6099 = vlaneseq
      %v6100 = vshrl.u32 %v6099, 7
      %v6101 = vsub.s32 3, %v6100
      %v6102 = vrot.slane %v6085, %v6101
      %v6107 = vmul.f32 %v6084, %v6090
      %v6108 = vmul.f32 %v6083, %v6094
      %v6109 = vmul.f32 %v6082, %v6098
      %v6110 = vmul.f32 %v6081, %v6102
      %6111 = vst [vmem:[#allocation2] sm:$0xf] %v6107
      %6112 = vst [vmem:[#allocation2 + $0x8] sm:$0xf] %v6108
      %6113 = vst [vmem:[#allocation2 + $0x10] sm:$0xf] %v6109
      %6114 = vst [vmem:[#allocation2 + $0x18] sm:$0xf] %v6110
      %6115 = vrot.lane.b32.xlu0 %v6069, 72
      %v6116 = vpop.permute.xlu0 %6115
      %6117 = vrot.lane.b32.xlu0 %v6070, 72
      %v6118 = vpop.permute.xlu0 %6117
      %6119 = vrot.lane.b32.xlu0 %v6071, 72
      %v6120 = vpop.permute.xlu0 %6119
      %6121 = vrot.lane.b32.xlu0 %v6072, 72
      %v6122 = vpop.permute.xlu0 %6121
      %v6123 = vsel %vm550, %v6120, %v6122
      %v6124 = vsel %vm550, %v6118, %v6120
      %v6125 = vsel %vm550, %v6116, %v6118
      %v6126 = vsel %vm550, %v6122, %v6116
      %v6127 = vld [vmem:[%s555] ss:$8 sm:$0xf]
      %v6129 = vlaneseq
      %v6130 = vshrl.u32 %v6129, 7
      %v6131 = vsub.s32 0, %v6130
      %v6132 = vrot.slane %v6127, %v6131
      %v6133 = vlaneseq
      %v6134 = vshrl.u32 %v6133, 7
      %v6135 = vsub.s32 1, %v6134
      %v6136 = vrot.slane %v6127, %v6135
      %v6137 = vlaneseq
      %v6138 = vshrl.u32 %v6137, 7
      %v6139 = vsub.s32 2, %v6138
      %v6140 = vrot.slane %v6127, %v6139
      %v6141 = vlaneseq
      %v6142 = vshrl.u32 %v6141, 7
      %v6143 = vsub.s32 3, %v6142
      %v6144 = vrot.slane %v6127, %v6143
      %v6149 = vmul.f32 %v6126, %v6132
      %v6150 = vmul.f32 %v6125, %v6136
      %v6151 = vmul.f32 %v6124, %v6140
      %v6152 = vmul.f32 %v6123, %v6144
      %v6157 = vrot.slane %v6149, 4
      %v6158 = vrot.slane %v6150, 4
      %v6159 = vrot.slane %v6151, 4
      %v6160 = vrot.slane %v6152, 4
      %6165 = vst [vmem:[#allocation2] sm:$0xf0] %v6157
      %6166 = vst [vmem:[#allocation2 + $0x8] sm:$0xf0] %v6158
      %6167 = vst [vmem:[#allocation2 + $0x10] sm:$0xf0] %v6159
      %6168 = vst [vmem:[#allocation2 + $0x18] sm:$0xf0] %v6160
      %6169 = vrot.lane.b32.xlu0 %v6069, 71
      %v6170 = vpop.permute.xlu0 %6169
      %6171 = vrot.lane.b32.xlu0 %v6070, 71
      %v6172 = vpop.permute.xlu0 %6171
      %6173 = vrot.lane.b32.xlu0 %v6071, 71
      %v6174 = vpop.permute.xlu0 %6173
      %6175 = vrot.lane.b32.xlu0 %v6072, 71
      %v6176 = vpop.permute.xlu0 %6175
      %v6177 = vsel %vm622, %v6174, %v6176
      %v6178 = vsel %vm622, %v6172, %v6174
      %v6179 = vsel %vm622, %v6170, %v6172
      %v6180 = vsel %vm622, %v6176, %v6170
      %v6181 = vld [vmem:[%s627] ss:$8 sm:$0xf]
      %v6183 = vlaneseq
      %v6184 = vshrl.u32 %v6183, 7
      %v6185 = vsub.s32 0, %v6184
      %v6186 = vrot.slane %v6181, %v6185
      %v6187 = vlaneseq
      %v6188 = vshrl.u32 %v6187, 7
      %v6189 = vsub.s32 1, %v6188
      %v6190 = vrot.slane %v6181, %v6189
      %v6191 = vlaneseq
      %v6192 = vshrl.u32 %v6191, 7
      %v6193 = vsub.s32 2, %v6192
      %v6194 = vrot.slane %v6181, %v6193
      %v6195 = vlaneseq
      %v6196 = vshrl.u32 %v6195, 7
      %v6197 = vsub.s32 3, %v6196
      %v6198 = vrot.slane %v6181, %v6197
      %v6203 = vmul.f32 %v6180, %v6186
      %v6204 = vmul.f32 %v6179, %v6190
      %v6205 = vmul.f32 %v6178, %v6194
      %v6206 = vmul.f32 %v6177, %v6198
      %6207 = vst [vmem:[#allocation2 + $0x20] sm:$0xf] %v6203
      %6208 = vst [vmem:[#allocation2 + $0x28] sm:$0xf] %v6204
      %6209 = vst [vmem:[#allocation2 + $0x30] sm:$0xf] %v6205
      %6210 = vst [vmem:[#allocation2 + $0x38] sm:$0xf] %v6206
      %6211 = vrot.lane.b32.xlu0 %v6069, 65
      %v6212 = vpop.permute.xlu0 %6211
      %6213 = vrot.lane.b32.xlu0 %v6070, 65
      %v6214 = vpop.permute.xlu0 %6213
      %6215 = vrot.lane.b32.xlu0 %v6071, 65
      %v6216 = vpop.permute.xlu0 %6215
      %6217 = vrot.lane.b32.xlu0 %v6072, 65
      %v6218 = vpop.permute.xlu0 %6217
      %v6219 = vsel %vm694, %v6216, %v6218
      %v6220 = vsel %vm694, %v6214, %v6216
      %v6221 = vsel %vm694, %v6212, %v6214
      %v6222 = vsel %vm694, %v6218, %v6212
      %v6223 = vld [vmem:[%s699] ss:$8 sm:$0xf]
      %v6225 = vlaneseq
      %v6226 = vshrl.u32 %v6225, 7
      %v6227 = vsub.s32 0, %v6226
      %v6228 = vrot.slane %v6223, %v6227
      %v6229 = vlaneseq
      %v6230 = vshrl.u32 %v6229, 7
      %v6231 = vsub.s32 1, %v6230
      %v6232 = vrot.slane %v6223, %v6231
      %v6233 = vlaneseq
      %v6234 = vshrl.u32 %v6233, 7
      %v6235 = vsub.s32 2, %v6234
      %v6236 = vrot.slane %v6223, %v6235
      %v6237 = vlaneseq
      %v6238 = vshrl.u32 %v6237, 7
      %v6239 = vsub.s32 3, %v6238
      %v6240 = vrot.slane %v6223, %v6239
      %v6245 = vmul.f32 %v6222, %v6228
      %v6246 = vmul.f32 %v6221, %v6232
      %v6247 = vmul.f32 %v6220, %v6236
      %v6248 = vmul.f32 %v6219, %v6240
      %v6253 = vrot.slane %v6245, 4
      %v6254 = vrot.slane %v6246, 4
      %v6255 = vrot.slane %v6247, 4
      %v6256 = vrot.slane %v6248, 4
      %6261 = vst [vmem:[#allocation2 + $0x20] sm:$0xf0] %v6253
      %6262 = vst [vmem:[#allocation2 + $0x28] sm:$0xf0] %v6254
      %6263 = vst [vmem:[#allocation2 + $0x30] sm:$0xf0] %v6255
      %6264 = vst [vmem:[#allocation2 + $0x38] sm:$0xf0] %v6256
      %6265 = vrot.lane.b32.xlu0 %v6069, 64
      %v6266 = vpop.permute.xlu0 %6265
      %6267 = vrot.lane.b32.xlu0 %v6070, 64
      %v6268 = vpop.permute.xlu0 %6267
      %6269 = vrot.lane.b32.xlu0 %v6071, 64
      %v6270 = vpop.permute.xlu0 %6269
      %6271 = vrot.lane.b32.xlu0 %v6072, 64
      %v6272 = vpop.permute.xlu0 %6271
      %v6273 = vsel %vm766, %v6270, %v6272
      %v6274 = vsel %vm766, %v6268, %v6270
      %v6275 = vsel %vm766, %v6266, %v6268
      %v6276 = vsel %vm766, %v6272, %v6266
      %v6277 = vld [vmem:[%s771] ss:$8 sm:$0xf]
      %v6279 = vlaneseq
      %v6280 = vshrl.u32 %v6279, 7
      %v6281 = vsub.s32 0, %v6280
      %v6282 = vrot.slane %v6277, %v6281
      %v6283 = vlaneseq
      %v6284 = vshrl.u32 %v6283, 7
      %v6285 = vsub.s32 1, %v6284
      %v6286 = vrot.slane %v6277, %v6285
      %v6287 = vlaneseq
      %v6288 = vshrl.u32 %v6287, 7
      %v6289 = vsub.s32 2, %v6288
      %v6290 = vrot.slane %v6277, %v6289
      %v6291 = vlaneseq
      %v6292 = vshrl.u32 %v6291, 7
      %v6293 = vsub.s32 3, %v6292
      %v6294 = vrot.slane %v6277, %v6293
      %v6299 = vmul.f32 %v6276, %v6282
      %v6300 = vmul.f32 %v6275, %v6286
      %v6301 = vmul.f32 %v6274, %v6290
      %v6302 = vmul.f32 %v6273, %v6294
      %6303 = vst [vmem:[#allocation2 + $0x40] sm:$0xf] %v6299
      %6304 = vst [vmem:[#allocation2 + $0x48] sm:$0xf] %v6300
      %6305 = vst [vmem:[#allocation2 + $0x50] sm:$0xf] %v6301
      %6306 = vst [vmem:[#allocation2 + $0x58] sm:$0xf] %v6302
      %6307 = vrot.lane.b32.xlu0 %v6069, 63
      %v6308 = vpop.permute.xlu0 %6307
      %6309 = vrot.lane.b32.xlu0 %v6070, 63
      %v6310 = vpop.permute.xlu0 %6309
      %6311 = vrot.lane.b32.xlu0 %v6071, 63
      %v6312 = vpop.permute.xlu0 %6311
      %6313 = vrot.lane.b32.xlu0 %v6072, 63
      %v6314 = vpop.permute.xlu0 %6313
      %v6315 = vsel %vm838, %v6312, %v6314
      %v6316 = vsel %vm838, %v6310, %v6312
      %v6317 = vsel %vm838, %v6308, %v6310
      %v6318 = vsel %vm838, %v6314, %v6308
      %v6319 = vld [vmem:[%s843] ss:$8 sm:$0xf]
      %v6321 = vlaneseq
      %v6322 = vshrl.u32 %v6321, 7
      %v6323 = vsub.s32 0, %v6322
      %v6324 = vrot.slane %v6319, %v6323
      %v6325 = vlaneseq
      %v6326 = vshrl.u32 %v6325, 7
      %v6327 = vsub.s32 1, %v6326
      %v6328 = vrot.slane %v6319, %v6327
      %v6329 = vlaneseq
      %v6330 = vshrl.u32 %v6329, 7
      %v6331 = vsub.s32 2, %v6330
      %v6332 = vrot.slane %v6319, %v6331
      %v6333 = vlaneseq
      %v6334 = vshrl.u32 %v6333, 7
      %v6335 = vsub.s32 3, %v6334
      %v6336 = vrot.slane %v6319, %v6335
      %v6341 = vmul.f32 %v6318, %v6324
      %v6342 = vmul.f32 %v6317, %v6328
      %v6343 = vmul.f32 %v6316, %v6332
      %v6344 = vmul.f32 %v6315, %v6336
      %v6349 = vrot.slane %v6341, 4
      %v6350 = vrot.slane %v6342, 4
      %v6351 = vrot.slane %v6343, 4
      %v6352 = vrot.slane %v6344, 4
      %6357 = vst [vmem:[#allocation2 + $0x40] sm:$0xf0] %v6349
      %6358 = vst [vmem:[#allocation2 + $0x48] sm:$0xf0] %v6350
      %6359 = vst [vmem:[#allocation2 + $0x50] sm:$0xf0] %v6351
      %6360 = vst [vmem:[#allocation2 + $0x58] sm:$0xf0] %v6352
      %6361 = vrot.lane.b32.xlu0 %v6069, 57
      %v6362 = vpop.permute.xlu0 %6361
      %6363 = vrot.lane.b32.xlu0 %v6070, 57
      %v6364 = vpop.permute.xlu0 %6363
      %6365 = vrot.lane.b32.xlu0 %v6071, 57
      %v6366 = vpop.permute.xlu0 %6365
      %6367 = vrot.lane.b32.xlu0 %v6072, 57
      %v6368 = vpop.permute.xlu0 %6367
      %v6369 = vsel %vm910, %v6366, %v6368
      %v6370 = vsel %vm910, %v6364, %v6366
      %v6371 = vsel %vm910, %v6362, %v6364
      %v6372 = vsel %vm910, %v6368, %v6362
      %v6373 = vld [vmem:[%s915] ss:$8 sm:$0xf]
      %v6375 = vlaneseq
      %v6376 = vshrl.u32 %v6375, 7
      %v6377 = vsub.s32 0, %v6376
      %v6378 = vrot.slane %v6373, %v6377
      %v6379 = vlaneseq
      %v6380 = vshrl.u32 %v6379, 7
      %v6381 = vsub.s32 1, %v6380
      %v6382 = vrot.slane %v6373, %v6381
      %v6383 = vlaneseq
      %v6384 = vshrl.u32 %v6383, 7
      %v6385 = vsub.s32 2, %v6384
      %v6386 = vrot.slane %v6373, %v6385
      %v6387 = vlaneseq
      %v6388 = vshrl.u32 %v6387, 7
      %v6389 = vsub.s32 3, %v6388
      %v6390 = vrot.slane %v6373, %v6389
      %v6395 = vmul.f32 %v6372, %v6378
      %v6396 = vmul.f32 %v6371, %v6382
      %v6397 = vmul.f32 %v6370, %v6386
      %v6398 = vmul.f32 %v6369, %v6390
      %6399 = vst [vmem:[#allocation2 + $0x60] sm:$0xf] %v6395
      %6400 = vst [vmem:[#allocation2 + $0x68] sm:$0xf] %v6396
      %6401 = vst [vmem:[#allocation2 + $0x70] sm:$0xf] %v6397
      %6402 = vst [vmem:[#allocation2 + $0x78] sm:$0xf] %v6398
      %6403 = vrot.lane.b32.xlu0 %v6069, 56
      %v6404 = vpop.permute.xlu0 %6403
      %6405 = vrot.lane.b32.xlu0 %v6070, 56
      %v6406 = vpop.permute.xlu0 %6405
      %6407 = vrot.lane.b32.xlu0 %v6071, 56
      %v6408 = vpop.permute.xlu0 %6407
      %6409 = vrot.lane.b32.xlu0 %v6072, 56
      %v6410 = vpop.permute.xlu0 %6409
      %v6411 = vsel %vm982, %v6408, %v6410
      %v6412 = vsel %vm982, %v6406, %v6408
      %v6413 = vsel %vm982, %v6404, %v6406
      %v6414 = vsel %vm982, %v6410, %v6404
      %v6415 = vld [vmem:[%s987] ss:$8 sm:$0xf]
      %v6417 = vlaneseq
      %v6418 = vshrl.u32 %v6417, 7
      %v6419 = vsub.s32 0, %v6418
      %v6420 = vrot.slane %v6415, %v6419
      %v6421 = vlaneseq
      %v6422 = vshrl.u32 %v6421, 7
      %v6423 = vsub.s32 1, %v6422
      %v6424 = vrot.slane %v6415, %v6423
      %v6425 = vlaneseq
      %v6426 = vshrl.u32 %v6425, 7
      %v6427 = vsub.s32 2, %v6426
      %v6428 = vrot.slane %v6415, %v6427
      %v6429 = vlaneseq
      %v6430 = vshrl.u32 %v6429, 7
      %v6431 = vsub.s32 3, %v6430
      %v6432 = vrot.slane %v6415, %v6431
      %v6437 = vmul.f32 %v6414, %v6420
      %v6438 = vmul.f32 %v6413, %v6424
      %v6439 = vmul.f32 %v6412, %v6428
      %v6440 = vmul.f32 %v6411, %v6432
      %v6445 = vrot.slane %v6437, 4
      %v6446 = vrot.slane %v6438, 4
      %v6447 = vrot.slane %v6439, 4
      %v6448 = vrot.slane %v6440, 4
      %6453 = vst [vmem:[#allocation2 + $0x60] sm:$0xf0] %v6445
      %6454 = vst [vmem:[#allocation2 + $0x68] sm:$0xf0] %v6446
      %6455 = vst [vmem:[#allocation2 + $0x70] sm:$0xf0] %v6447
      %6456 = vst [vmem:[#allocation2 + $0x78] sm:$0xf0] %v6448
      %6457 = vrot.lane.b32.xlu0 %v6069, 55
      %v6458 = vpop.permute.xlu0 %6457
      %6459 = vrot.lane.b32.xlu0 %v6070, 55
      %v6460 = vpop.permute.xlu0 %6459
      %6461 = vrot.lane.b32.xlu0 %v6071, 55
      %v6462 = vpop.permute.xlu0 %6461
      %6463 = vrot.lane.b32.xlu0 %v6072, 55
      %v6464 = vpop.permute.xlu0 %6463
      %v6465 = vsel %vm1054, %v6462, %v6464
      %v6466 = vsel %vm1054, %v6460, %v6462
      %v6467 = vsel %vm1054, %v6458, %v6460
      %v6468 = vsel %vm1054, %v6464, %v6458
      %v6469 = vld [vmem:[%s1059] ss:$8 sm:$0xf]
      %v6471 = vlaneseq
      %v6472 = vshrl.u32 %v6471, 7
      %v6473 = vsub.s32 0, %v6472
      %v6474 = vrot.slane %v6469, %v6473
      %v6475 = vlaneseq
      %v6476 = vshrl.u32 %v6475, 7
      %v6477 = vsub.s32 1, %v6476
      %v6478 = vrot.slane %v6469, %v6477
      %v6479 = vlaneseq
      %v6480 = vshrl.u32 %v6479, 7
      %v6481 = vsub.s32 2, %v6480
      %v6482 = vrot.slane %v6469, %v6481
      %v6483 = vlaneseq
      %v6484 = vshrl.u32 %v6483, 7
      %v6485 = vsub.s32 3, %v6484
      %v6486 = vrot.slane %v6469, %v6485
      %v6491 = vmul.f32 %v6468, %v6474
      %v6492 = vmul.f32 %v6467, %v6478
      %v6493 = vmul.f32 %v6466, %v6482
      %v6494 = vmul.f32 %v6465, %v6486
      %6495 = vst [vmem:[#allocation2 + $0x80] sm:$0xf] %v6491
      %6496 = vst [vmem:[#allocation2 + $0x88] sm:$0xf] %v6492
      %6497 = vst [vmem:[#allocation2 + $0x90] sm:$0xf] %v6493
      %6498 = vst [vmem:[#allocation2 + $0x98] sm:$0xf] %v6494
      %6499 = vrot.lane.b32.xlu0 %v6069, 9
      %v6500 = vpop.permute.xlu0 %6499
      %6501 = vrot.lane.b32.xlu0 %v6070, 9
      %v6502 = vpop.permute.xlu0 %6501
      %6503 = vrot.lane.b32.xlu0 %v6071, 9
      %v6504 = vpop.permute.xlu0 %6503
      %6505 = vrot.lane.b32.xlu0 %v6072, 9
      %v6506 = vpop.permute.xlu0 %6505
      %v6507 = vsel %vm1126, %v6504, %v6506
      %v6508 = vsel %vm1126, %v6502, %v6504
      %v6509 = vsel %vm1126, %v6500, %v6502
      %v6510 = vsel %vm1126, %v6506, %v6500
      %v6511 = vld [vmem:[%s1131] ss:$8 sm:$0xf]
      %v6513 = vlaneseq
      %v6514 = vshrl.u32 %v6513, 7
      %v6515 = vsub.s32 0, %v6514
      %v6516 = vrot.slane %v6511, %v6515
      %v6517 = vlaneseq
      %v6518 = vshrl.u32 %v6517, 7
      %v6519 = vsub.s32 1, %v6518
      %v6520 = vrot.slane %v6511, %v6519
      %v6521 = vlaneseq
      %v6522 = vshrl.u32 %v6521, 7
      %v6523 = vsub.s32 2, %v6522
      %v6524 = vrot.slane %v6511, %v6523
      %v6525 = vlaneseq
      %v6526 = vshrl.u32 %v6525, 7
      %v6527 = vsub.s32 3, %v6526
      %v6528 = vrot.slane %v6511, %v6527
      %v6533 = vmul.f32 %v6510, %v6516
      %v6534 = vmul.f32 %v6509, %v6520
      %v6535 = vmul.f32 %v6508, %v6524
      %v6536 = vmul.f32 %v6507, %v6528
      %v6541 = vrot.slane %v6533, 4
      %v6542 = vrot.slane %v6534, 4
      %v6543 = vrot.slane %v6535, 4
      %v6544 = vrot.slane %v6536, 4
      %6549 = vst [vmem:[#allocation2 + $0x80] sm:$0xf0] %v6541
      %6550 = vst [vmem:[#allocation2 + $0x88] sm:$0xf0] %v6542
      %6551 = vst [vmem:[#allocation2 + $0x90] sm:$0xf0] %v6543
      %6552 = vst [vmem:[#allocation2 + $0x98] sm:$0xf0] %v6544
      %6553 = vrot.lane.b32.xlu0 %v6069, 8
      %v6554 = vpop.permute.xlu0 %6553
      %6555 = vrot.lane.b32.xlu0 %v6070, 8
      %v6556 = vpop.permute.xlu0 %6555
      %6557 = vrot.lane.b32.xlu0 %v6071, 8
      %v6558 = vpop.permute.xlu0 %6557
      %6559 = vrot.lane.b32.xlu0 %v6072, 8
      %v6560 = vpop.permute.xlu0 %6559
      %v6561 = vsel %vm1198, %v6558, %v6560
      %v6562 = vsel %vm1198, %v6556, %v6558
      %v6563 = vsel %vm1198, %v6554, %v6556
      %v6564 = vsel %vm1198, %v6560, %v6554
      %v6565 = vld [vmem:[%s1203] ss:$8 sm:$0xf]
      %v6567 = vlaneseq
      %v6568 = vshrl.u32 %v6567, 7
      %v6569 = vsub.s32 0, %v6568
      %v6570 = vrot.slane %v6565, %v6569
      %v6571 = vlaneseq
      %v6572 = vshrl.u32 %v6571, 7
      %v6573 = vsub.s32 1, %v6572
      %v6574 = vrot.slane %v6565, %v6573
      %v6575 = vlaneseq
      %v6576 = vshrl.u32 %v6575, 7
      %v6577 = vsub.s32 2, %v6576
      %v6578 = vrot.slane %v6565, %v6577
      %v6579 = vlaneseq
      %v6580 = vshrl.u32 %v6579, 7
      %v6581 = vsub.s32 3, %v6580
      %v6582 = vrot.slane %v6565, %v6581
      %v6587 = vmul.f32 %v6564, %v6570
      %v6588 = vmul.f32 %v6563, %v6574
      %v6589 = vmul.f32 %v6562, %v6578
      %v6590 = vmul.f32 %v6561, %v6582
      %6591 = vst [vmem:[#allocation2 + $0xa0] sm:$0xf] %v6587
      %6592 = vst [vmem:[#allocation2 + $0xa8] sm:$0xf] %v6588
      %6593 = vst [vmem:[#allocation2 + $0xb0] sm:$0xf] %v6589
      %6594 = vst [vmem:[#allocation2 + $0xb8] sm:$0xf] %v6590
      %6595 = vrot.lane.b32.xlu0 %v6069, 7
      %v6596 = vpop.permute.xlu0 %6595
      %6597 = vrot.lane.b32.xlu0 %v6070, 7
      %v6598 = vpop.permute.xlu0 %6597
      %6599 = vrot.lane.b32.xlu0 %v6071, 7
      %v6600 = vpop.permute.xlu0 %6599
      %6601 = vrot.lane.b32.xlu0 %v6072, 7
      %v6602 = vpop.permute.xlu0 %6601
      %v6603 = vsel %vm1270, %v6600, %v6602
      %v6604 = vsel %vm1270, %v6598, %v6600
      %v6605 = vsel %vm1270, %v6596, %v6598
      %v6606 = vsel %vm1270, %v6602, %v6596
      %v6607 = vld [vmem:[%s1275] ss:$8 sm:$0xf]
      %v6609 = vlaneseq
      %v6610 = vshrl.u32 %v6609, 7
      %v6611 = vsub.s32 0, %v6610
      %v6612 = vrot.slane %v6607, %v6611
      %v6613 = vlaneseq
      %v6614 = vshrl.u32 %v6613, 7
      %v6615 = vsub.s32 1, %v6614
      %v6616 = vrot.slane %v6607, %v6615
      %v6617 = vlaneseq
      %v6618 = vshrl.u32 %v6617, 7
      %v6619 = vsub.s32 2, %v6618
      %v6620 = vrot.slane %v6607, %v6619
      %v6621 = vlaneseq
      %v6622 = vshrl.u32 %v6621, 7
      %v6623 = vsub.s32 3, %v6622
      %v6624 = vrot.slane %v6607, %v6623
      %v6629 = vmul.f32 %v6606, %v6612
      %v6630 = vmul.f32 %v6605, %v6616
      %v6631 = vmul.f32 %v6604, %v6620
      %v6632 = vmul.f32 %v6603, %v6624
      %v6637 = vrot.slane %v6629, 4
      %v6638 = vrot.slane %v6630, 4
      %v6639 = vrot.slane %v6631, 4
      %v6640 = vrot.slane %v6632, 4
      %6645 = vst [vmem:[#allocation2 + $0xa0] sm:$0xf0] %v6637
      %6646 = vst [vmem:[#allocation2 + $0xa8] sm:$0xf0] %v6638
      %6647 = vst [vmem:[#allocation2 + $0xb0] sm:$0xf0] %v6639
      %6648 = vst [vmem:[#allocation2 + $0xb8] sm:$0xf0] %v6640
      %6649 = vrot.lane.b32.xlu0 %v6069, 1
      %v6650 = vpop.permute.xlu0 %6649
      %6651 = vrot.lane.b32.xlu0 %v6070, 1
      %v6652 = vpop.permute.xlu0 %6651
      %6653 = vrot.lane.b32.xlu0 %v6071, 1
      %v6654 = vpop.permute.xlu0 %6653
      %6655 = vrot.lane.b32.xlu0 %v6072, 1
      %v6656 = vpop.permute.xlu0 %6655
      %v6657 = vsel %vm1342, %v6654, %v6656
      %v6658 = vsel %vm1342, %v6652, %v6654
      %v6659 = vsel %vm1342, %v6650, %v6652
      %v6660 = vsel %vm1342, %v6656, %v6650
      %v6661 = vld [vmem:[%s1347] ss:$8 sm:$0xf]
      %v6663 = vlaneseq
      %v6664 = vshrl.u32 %v6663, 7
      %v6665 = vsub.s32 0, %v6664
      %v6666 = vrot.slane %v6661, %v6665
      %v6667 = vlaneseq
      %v6668 = vshrl.u32 %v6667, 7
      %v6669 = vsub.s32 1, %v6668
      %v6670 = vrot.slane %v6661, %v6669
      %v6671 = vlaneseq
      %v6672 = vshrl.u32 %v6671, 7
      %v6673 = vsub.s32 2, %v6672
      %v6674 = vrot.slane %v6661, %v6673
      %v6675 = vlaneseq
      %v6676 = vshrl.u32 %v6675, 7
      %v6677 = vsub.s32 3, %v6676
      %v6678 = vrot.slane %v6661, %v6677
      %v6683 = vmul.f32 %v6660, %v6666
      %v6684 = vmul.f32 %v6659, %v6670
      %v6685 = vmul.f32 %v6658, %v6674
      %v6686 = vmul.f32 %v6657, %v6678
      %6687 = vst [vmem:[#allocation2 + $0xc0] sm:$0xf] %v6683
      %6688 = vst [vmem:[#allocation2 + $0xc8] sm:$0xf] %v6684
      %6689 = vst [vmem:[#allocation2 + $0xd0] sm:$0xf] %v6685
      %6690 = vst [vmem:[#allocation2 + $0xd8] sm:$0xf] %v6686
      %v6691 = vld [vmem:[%s1406] ss:$8 sm:$0xf]
      %v6693 = vlaneseq
      %v6694 = vshrl.u32 %v6693, 7
      %v6695 = vsub.s32 0, %v6694
      %v6696 = vrot.slane %v6691, %v6695
      %v6697 = vlaneseq
      %v6698 = vshrl.u32 %v6697, 7
      %v6699 = vsub.s32 1, %v6698
      %v6700 = vrot.slane %v6691, %v6699
      %v6701 = vlaneseq
      %v6702 = vshrl.u32 %v6701, 7
      %v6703 = vsub.s32 2, %v6702
      %v6704 = vrot.slane %v6691, %v6703
      %v6705 = vlaneseq
      %v6706 = vshrl.u32 %v6705, 7
      %v6707 = vsub.s32 3, %v6706
      %v6708 = vrot.slane %v6691, %v6707
      %v6713 = vmul.f32 %v6069, %v6696
      %v6714 = vmul.f32 %v6070, %v6700
      %v6715 = vmul.f32 %v6071, %v6704
      %v6716 = vmul.f32 %v6072, %v6708
      %v6721 = vrot.slane %v6713, 4
      %v6722 = vrot.slane %v6714, 4
      %v6723 = vrot.slane %v6715, 4
      %v6724 = vrot.slane %v6716, 4
      %6729 = vst [vmem:[#allocation2 + $0xc0] sm:$0xf0] %v6721
      %6730 = vst [vmem:[#allocation2 + $0xc8] sm:$0xf0] %v6722
      %6731 = vst [vmem:[#allocation2 + $0xd0] sm:$0xf0] %v6723
      %6732 = vst [vmem:[#allocation2 + $0xd8] sm:$0xf0] %v6724
      %6733 = vrot.lane.b32.xlu0 %v6069, 127
      %v6734 = vpop.permute.xlu0 %6733
      %6735 = vrot.lane.b32.xlu0 %v6070, 127
      %v6736 = vpop.permute.xlu0 %6735
      %6737 = vrot.lane.b32.xlu0 %v6071, 127
      %v6738 = vpop.permute.xlu0 %6737
      %6739 = vrot.lane.b32.xlu0 %v6072, 127
      %v6740 = vpop.permute.xlu0 %6739
      %v6741 = vsel %vm1420, %v6738, %v6740
      %v6742 = vsel %vm1420, %v6736, %v6738
      %v6743 = vsel %vm1420, %v6734, %v6736
      %v6744 = vsel %vm1420, %v6740, %v6734
      %v6745 = vld [vmem:[%s1425] ss:$8 sm:$0xf]
      %v6747 = vlaneseq
      %v6748 = vshrl.u32 %v6747, 7
      %v6749 = vsub.s32 0, %v6748
      %v6750 = vrot.slane %v6745, %v6749
      %v6751 = vlaneseq
      %v6752 = vshrl.u32 %v6751, 7
      %v6753 = vsub.s32 1, %v6752
      %v6754 = vrot.slane %v6745, %v6753
      %v6755 = vlaneseq
      %v6756 = vshrl.u32 %v6755, 7
      %v6757 = vsub.s32 2, %v6756
      %v6758 = vrot.slane %v6745, %v6757
      %v6759 = vlaneseq
      %v6760 = vshrl.u32 %v6759, 7
      %v6761 = vsub.s32 3, %v6760
      %v6762 = vrot.slane %v6745, %v6761
      %v6767 = vmul.f32 %v6743, %v6750
      %v6768 = vmul.f32 %v6742, %v6754
      %v6769 = vmul.f32 %v6741, %v6758
      %v6770 = vmul.f32 %v6744, %v6762
      %6771 = vst [vmem:[#allocation2 + $0xe0] sm:$0xf] %v6767
      %6772 = vst [vmem:[#allocation2 + $0xe8] sm:$0xf] %v6768
      %6773 = vst [vmem:[#allocation2 + $0xf0] sm:$0xf] %v6769
      %6774 = vst [vmem:[#allocation2 + $0xf8] sm:$0xf] %v6770
      %6775 = vrot.lane.b32.xlu0 %v6069, 121
      %v6776 = vpop.permute.xlu0 %6775
      %6777 = vrot.lane.b32.xlu0 %v6070, 121
      %v6778 = vpop.permute.xlu0 %6777
      %6779 = vrot.lane.b32.xlu0 %v6071, 121
      %v6780 = vpop.permute.xlu0 %6779
      %6781 = vrot.lane.b32.xlu0 %v6072, 121
      %v6782 = vpop.permute.xlu0 %6781
      %v6783 = vsel %vm1492, %v6780, %v6782
      %v6784 = vsel %vm1492, %v6778, %v6780
      %v6785 = vsel %vm1492, %v6776, %v6778
      %v6786 = vsel %vm1492, %v6782, %v6776
      %v6787 = vld [vmem:[%s1497] ss:$8 sm:$0xf]
      %v6789 = vlaneseq
      %v6790 = vshrl.u32 %v6789, 7
      %v6791 = vsub.s32 0, %v6790
      %v6792 = vrot.slane %v6787, %v6791
      %v6793 = vlaneseq
      %v6794 = vshrl.u32 %v6793, 7
      %v6795 = vsub.s32 1, %v6794
      %v6796 = vrot.slane %v6787, %v6795
      %v6797 = vlaneseq
      %v6798 = vshrl.u32 %v6797, 7
      %v6799 = vsub.s32 2, %v6798
      %v6800 = vrot.slane %v6787, %v6799
      %v6801 = vlaneseq
      %v6802 = vshrl.u32 %v6801, 7
      %v6803 = vsub.s32 3, %v6802
      %v6804 = vrot.slane %v6787, %v6803
      %v6809 = vmul.f32 %v6785, %v6792
      %v6810 = vmul.f32 %v6784, %v6796
      %v6811 = vmul.f32 %v6783, %v6800
      %v6812 = vmul.f32 %v6786, %v6804
      %v6817 = vrot.slane %v6809, 4
      %v6818 = vrot.slane %v6810, 4
      %v6819 = vrot.slane %v6811, 4
      %v6820 = vrot.slane %v6812, 4
      %6825 = vst [vmem:[#allocation2 + $0xe0] sm:$0xf0] %v6817
      %6826 = vst [vmem:[#allocation2 + $0xe8] sm:$0xf0] %v6818
      %6827 = vst [vmem:[#allocation2 + $0xf0] sm:$0xf0] %v6819
      %6828 = vst [vmem:[#allocation2 + $0xf8] sm:$0xf0] %v6820
      %6829 = vrot.lane.b32.xlu0 %v6069, 120
      %v6830 = vpop.permute.xlu0 %6829
      %6831 = vrot.lane.b32.xlu0 %v6070, 120
      %v6832 = vpop.permute.xlu0 %6831
      %6833 = vrot.lane.b32.xlu0 %v6071, 120
      %v6834 = vpop.permute.xlu0 %6833
      %6835 = vrot.lane.b32.xlu0 %v6072, 120
      %v6836 = vpop.permute.xlu0 %6835
      %v6837 = vsel %vm1564, %v6834, %v6836
      %v6838 = vsel %vm1564, %v6832, %v6834
      %v6839 = vsel %vm1564, %v6830, %v6832
      %v6840 = vsel %vm1564, %v6836, %v6830
      %v6841 = vld [vmem:[%s1569] ss:$8 sm:$0xf]
      %v6843 = vlaneseq
      %v6844 = vshrl.u32 %v6843, 7
      %v6845 = vsub.s32 0, %v6844
      %v6846 = vrot.slane %v6841, %v6845
      %v6847 = vlaneseq
      %v6848 = vshrl.u32 %v6847, 7
      %v6849 = vsub.s32 1, %v6848
      %v6850 = vrot.slane %v6841, %v6849
      %v6851 = vlaneseq
      %v6852 = vshrl.u32 %v6851, 7
      %v6853 = vsub.s32 2, %v6852
      %v6854 = vrot.slane %v6841, %v6853
      %v6855 = vlaneseq
      %v6856 = vshrl.u32 %v6855, 7
      %v6857 = vsub.s32 3, %v6856
      %v6858 = vrot.slane %v6841, %v6857
      %v6863 = vmul.f32 %v6839, %v6846
      %v6864 = vmul.f32 %v6838, %v6850
      %v6865 = vmul.f32 %v6837, %v6854
      %v6866 = vmul.f32 %v6840, %v6858
      %6867 = vst [vmem:[#allocation2 + $0x100] sm:$0xf] %v6863
      %6868 = vst [vmem:[#allocation2 + $0x108] sm:$0xf] %v6864
      %6869 = vst [vmem:[#allocation2 + $0x110] sm:$0xf] %v6865
      %6870 = vst [vmem:[#allocation2 + $0x118] sm:$0xf] %v6866
      %6871 = vrot.lane.b32.xlu0 %v6069, 119
      %v6872 = vpop.permute.xlu0 %6871
      %6873 = vrot.lane.b32.xlu0 %v6070, 119
      %v6874 = vpop.permute.xlu0 %6873
      %6875 = vrot.lane.b32.xlu0 %v6071, 119
      %v6876 = vpop.permute.xlu0 %6875
      %6877 = vrot.lane.b32.xlu0 %v6072, 119
      %v6878 = vpop.permute.xlu0 %6877
      %v6879 = vsel %vm1636, %v6876, %v6878
      %v6880 = vsel %vm1636, %v6874, %v6876
      %v6881 = vsel %vm1636, %v6872, %v6874
      %v6882 = vsel %vm1636, %v6878, %v6872
      %v6883 = vld [vmem:[%s1641] ss:$8 sm:$0xf]
      %v6885 = vlaneseq
      %v6886 = vshrl.u32 %v6885, 7
      %v6887 = vsub.s32 0, %v6886
      %v6888 = vrot.slane %v6883, %v6887
      %v6889 = vlaneseq
      %v6890 = vshrl.u32 %v6889, 7
      %v6891 = vsub.s32 1, %v6890
      %v6892 = vrot.slane %v6883, %v6891
      %v6893 = vlaneseq
      %v6894 = vshrl.u32 %v6893, 7
      %v6895 = vsub.s32 2, %v6894
      %v6896 = vrot.slane %v6883, %v6895
      %v6897 = vlaneseq
      %v6898 = vshrl.u32 %v6897, 7
      %v6899 = vsub.s32 3, %v6898
      %v6900 = vrot.slane %v6883, %v6899
      %v6905 = vmul.f32 %v6881, %v6888
      %v6906 = vmul.f32 %v6880, %v6892
      %v6907 = vmul.f32 %v6879, %v6896
      %v6908 = vmul.f32 %v6882, %v6900
      %v6913 = vrot.slane %v6905, 4
      %v6914 = vrot.slane %v6906, 4
      %v6915 = vrot.slane %v6907, 4
      %v6916 = vrot.slane %v6908, 4
      %6921 = vst [vmem:[#allocation2 + $0x100] sm:$0xf0] %v6913
      %6922 = vst [vmem:[#allocation2 + $0x108] sm:$0xf0] %v6914
      %6923 = vst [vmem:[#allocation2 + $0x110] sm:$0xf0] %v6915
      %6924 = vst [vmem:[#allocation2 + $0x118] sm:$0xf0] %v6916
      %v6925 = vld [vmem:[%s1700] ss:$8 sm:$0xf]
      %v6927 = vlaneseq
      %v6928 = vshrl.u32 %v6927, 7
      %v6929 = vsub.s32 0, %v6928
      %v6930 = vrot.slane %v6925, %v6929
      %v6931 = vlaneseq
      %v6932 = vshrl.u32 %v6931, 7
      %v6933 = vsub.s32 1, %v6932
      %v6934 = vrot.slane %v6925, %v6933
      %v6935 = vlaneseq
      %v6936 = vshrl.u32 %v6935, 7
      %v6937 = vsub.s32 2, %v6936
      %v6938 = vrot.slane %v6925, %v6937
      %v6939 = vlaneseq
      %v6940 = vshrl.u32 %v6939, 7
      %v6941 = vsub.s32 3, %v6940
      %v6942 = vrot.slane %v6925, %v6941
      %v6947 = vmul.f32 %v6083, %v6930
      %v6948 = vmul.f32 %v6082, %v6934
      %v6949 = vmul.f32 %v6081, %v6938
      %v6950 = vmul.f32 %v6084, %v6942
      %6951 = vst [vmem:[#allocation2 + $0x120] sm:$0xf] %v6947
      %6952 = vst [vmem:[#allocation2 + $0x128] sm:$0xf] %v6948
      %6953 = vst [vmem:[#allocation2 + $0x130] sm:$0xf] %v6949
      %6954 = vst [vmem:[#allocation2 + $0x138] sm:$0xf] %v6950
      %v6955 = vld [vmem:[%s1759] ss:$8 sm:$0xf]
      %v6957 = vlaneseq
      %v6958 = vshrl.u32 %v6957, 7
      %v6959 = vsub.s32 0, %v6958
      %v6960 = vrot.slane %v6955, %v6959
      %v6961 = vlaneseq
      %v6962 = vshrl.u32 %v6961, 7
      %v6963 = vsub.s32 1, %v6962
      %v6964 = vrot.slane %v6955, %v6963
      %v6965 = vlaneseq
      %v6966 = vshrl.u32 %v6965, 7
      %v6967 = vsub.s32 2, %v6966
      %v6968 = vrot.slane %v6955, %v6967
      %v6969 = vlaneseq
      %v6970 = vshrl.u32 %v6969, 7
      %v6971 = vsub.s32 3, %v6970
      %v6972 = vrot.slane %v6955, %v6971
      %v6977 = vmul.f32 %v6125, %v6960
      %v6978 = vmul.f32 %v6124, %v6964
      %v6979 = vmul.f32 %v6123, %v6968
      %v6980 = vmul.f32 %v6126, %v6972
      %v6985 = vrot.slane %v6977, 4
      %v6986 = vrot.slane %v6978, 4
      %v6987 = vrot.slane %v6979, 4
      %v6988 = vrot.slane %v6980, 4
      %6993 = vst [vmem:[#allocation2 + $0x120] sm:$0xf0] %v6985
      %6994 = vst [vmem:[#allocation2 + $0x128] sm:$0xf0] %v6986
      %6995 = vst [vmem:[#allocation2 + $0x130] sm:$0xf0] %v6987
      %6996 = vst [vmem:[#allocation2 + $0x138] sm:$0xf0] %v6988
      %v6997 = vld [vmem:[%s1818] ss:$8 sm:$0xf]
      %v6999 = vlaneseq
      %v7000 = vshrl.u32 %v6999, 7
      %v7001 = vsub.s32 0, %v7000
      %v7002 = vrot.slane %v6997, %v7001
      %v7003 = vlaneseq
      %v7004 = vshrl.u32 %v7003, 7
      %v7005 = vsub.s32 1, %v7004
      %v7006 = vrot.slane %v6997, %v7005
      %v7007 = vlaneseq
      %v7008 = vshrl.u32 %v7007, 7
      %v7009 = vsub.s32 2, %v7008
      %v7010 = vrot.slane %v6997, %v7009
      %v7011 = vlaneseq
      %v7012 = vshrl.u32 %v7011, 7
      %v7013 = vsub.s32 3, %v7012
      %v7014 = vrot.slane %v6997, %v7013
      %v7019 = vmul.f32 %v6179, %v7002
      %v7020 = vmul.f32 %v6178, %v7006
      %v7021 = vmul.f32 %v6177, %v7010
      %v7022 = vmul.f32 %v6180, %v7014
      %7023 = vst [vmem:[#allocation2 + $0x140] sm:$0xf] %v7019
      %7024 = vst [vmem:[#allocation2 + $0x148] sm:$0xf] %v7020
      %7025 = vst [vmem:[#allocation2 + $0x150] sm:$0xf] %v7021
      %7026 = vst [vmem:[#allocation2 + $0x158] sm:$0xf] %v7022
      %v7027 = vld [vmem:[%s1877] ss:$8 sm:$0xf]
      %v7029 = vlaneseq
      %v7030 = vshrl.u32 %v7029, 7
      %v7031 = vsub.s32 0, %v7030
      %v7032 = vrot.slane %v7027, %v7031
      %v7033 = vlaneseq
      %v7034 = vshrl.u32 %v7033, 7
      %v7035 = vsub.s32 1, %v7034
      %v7036 = vrot.slane %v7027, %v7035
      %v7037 = vlaneseq
      %v7038 = vshrl.u32 %v7037, 7
      %v7039 = vsub.s32 2, %v7038
      %v7040 = vrot.slane %v7027, %v7039
      %v7041 = vlaneseq
      %v7042 = vshrl.u32 %v7041, 7
      %v7043 = vsub.s32 3, %v7042
      %v7044 = vrot.slane %v7027, %v7043
      %v7049 = vmul.f32 %v6221, %v7032
      %v7050 = vmul.f32 %v6220, %v7036
      %v7051 = vmul.f32 %v6219, %v7040
      %v7052 = vmul.f32 %v6222, %v7044
      %v7057 = vrot.slane %v7049, 4
      %v7058 = vrot.slane %v7050, 4
      %v7059 = vrot.slane %v7051, 4
      %v7060 = vrot.slane %v7052, 4
      %7065 = vst [vmem:[#allocation2 + $0x140] sm:$0xf0] %v7057
      %7066 = vst [vmem:[#allocation2 + $0x148] sm:$0xf0] %v7058
      %7067 = vst [vmem:[#allocation2 + $0x150] sm:$0xf0] %v7059
      %7068 = vst [vmem:[#allocation2 + $0x158] sm:$0xf0] %v7060
      %v7069 = vld [vmem:[%s1936] ss:$8 sm:$0xf]
      %v7071 = vlaneseq
      %v7072 = vshrl.u32 %v7071, 7
      %v7073 = vsub.s32 0, %v7072
      %v7074 = vrot.slane %v7069, %v7073
      %v7075 = vlaneseq
      %v7076 = vshrl.u32 %v7075, 7
      %v7077 = vsub.s32 1, %v7076
      %v7078 = vrot.slane %v7069, %v7077
      %v7079 = vlaneseq
      %v7080 = vshrl.u32 %v7079, 7
      %v7081 = vsub.s32 2, %v7080
      %v7082 = vrot.slane %v7069, %v7081
      %v7083 = vlaneseq
      %v7084 = vshrl.u32 %v7083, 7
      %v7085 = vsub.s32 3, %v7084
      %v7086 = vrot.slane %v7069, %v7085
      %v7091 = vmul.f32 %v6275, %v7074
      %v7092 = vmul.f32 %v6274, %v7078
      %v7093 = vmul.f32 %v6273, %v7082
      %v7094 = vmul.f32 %v6276, %v7086
      %7095 = vst [vmem:[#allocation2 + $0x160] sm:$0xf] %v7091
      %7096 = vst [vmem:[#allocation2 + $0x168] sm:$0xf] %v7092
      %7097 = vst [vmem:[#allocation2 + $0x170] sm:$0xf] %v7093
      %7098 = vst [vmem:[#allocation2 + $0x178] sm:$0xf] %v7094
      %v7099 = vld [vmem:[%s1995] ss:$8 sm:$0xf]
      %v7101 = vlaneseq
      %v7102 = vshrl.u32 %v7101, 7
      %v7103 = vsub.s32 0, %v7102
      %v7104 = vrot.slane %v7099, %v7103
      %v7105 = vlaneseq
      %v7106 = vshrl.u32 %v7105, 7
      %v7107 = vsub.s32 1, %v7106
      %v7108 = vrot.slane %v7099, %v7107
      %v7109 = vlaneseq
      %v7110 = vshrl.u32 %v7109, 7
      %v7111 = vsub.s32 2, %v7110
      %v7112 = vrot.slane %v7099, %v7111
      %v7113 = vlaneseq
      %v7114 = vshrl.u32 %v7113, 7
      %v7115 = vsub.s32 3, %v7114
      %v7116 = vrot.slane %v7099, %v7115
      %v7121 = vmul.f32 %v6317, %v7104
      %v7122 = vmul.f32 %v6316, %v7108
      %v7123 = vmul.f32 %v6315, %v7112
      %v7124 = vmul.f32 %v6318, %v7116
      %v7129 = vrot.slane %v7121, 4
      %v7130 = vrot.slane %v7122, 4
      %v7131 = vrot.slane %v7123, 4
      %v7132 = vrot.slane %v7124, 4
      %7137 = vst [vmem:[#allocation2 + $0x160] sm:$0xf0] %v7129
      %7138 = vst [vmem:[#allocation2 + $0x168] sm:$0xf0] %v7130
      %7139 = vst [vmem:[#allocation2 + $0x170] sm:$0xf0] %v7131
      %7140 = vst [vmem:[#allocation2 + $0x178] sm:$0xf0] %v7132
      %v7141 = vld [vmem:[%s2054] ss:$8 sm:$0xf]
      %v7143 = vlaneseq
      %v7144 = vshrl.u32 %v7143, 7
      %v7145 = vsub.s32 0, %v7144
      %v7146 = vrot.slane %v7141, %v7145
      %v7147 = vlaneseq
      %v7148 = vshrl.u32 %v7147, 7
      %v7149 = vsub.s32 1, %v7148
      %v7150 = vrot.slane %v7141, %v7149
      %v7151 = vlaneseq
      %v7152 = vshrl.u32 %v7151, 7
      %v7153 = vsub.s32 2, %v7152
      %v7154 = vrot.slane %v7141, %v7153
      %v7155 = vlaneseq
      %v7156 = vshrl.u32 %v7155, 7
      %v7157 = vsub.s32 3, %v7156
      %v7158 = vrot.slane %v7141, %v7157
      %v7163 = vmul.f32 %v6371, %v7146
      %v7164 = vmul.f32 %v6370, %v7150
      %v7165 = vmul.f32 %v6369, %v7154
      %v7166 = vmul.f32 %v6372, %v7158
      %7167 = vst [vmem:[#allocation2 + $0x180] sm:$0xf] %v7163
      %7168 = vst [vmem:[#allocation2 + $0x188] sm:$0xf] %v7164
      %7169 = vst [vmem:[#allocation2 + $0x190] sm:$0xf] %v7165
      %7170 = vst [vmem:[#allocation2 + $0x198] sm:$0xf] %v7166
      %v7171 = vld [vmem:[%s2113] ss:$8 sm:$0xf]
      %v7173 = vlaneseq
      %v7174 = vshrl.u32 %v7173, 7
      %v7175 = vsub.s32 0, %v7174
      %v7176 = vrot.slane %v7171, %v7175
      %v7177 = vlaneseq
      %v7178 = vshrl.u32 %v7177, 7
      %v7179 = vsub.s32 1, %v7178
      %v7180 = vrot.slane %v7171, %v7179
      %v7181 = vlaneseq
      %v7182 = vshrl.u32 %v7181, 7
      %v7183 = vsub.s32 2, %v7182
      %v7184 = vrot.slane %v7171, %v7183
      %v7185 = vlaneseq
      %v7186 = vshrl.u32 %v7185, 7
      %v7187 = vsub.s32 3, %v7186
      %v7188 = vrot.slane %v7171, %v7187
      %v7193 = vmul.f32 %v6413, %v7176
      %v7194 = vmul.f32 %v6412, %v7180
      %v7195 = vmul.f32 %v6411, %v7184
      %v7196 = vmul.f32 %v6414, %v7188
      %v7201 = vrot.slane %v7193, 4
      %v7202 = vrot.slane %v7194, 4
      %v7203 = vrot.slane %v7195, 4
      %v7204 = vrot.slane %v7196, 4
      %7209 = vst [vmem:[#allocation2 + $0x180] sm:$0xf0] %v7201
      %7210 = vst [vmem:[#allocation2 + $0x188] sm:$0xf0] %v7202
      %7211 = vst [vmem:[#allocation2 + $0x190] sm:$0xf0] %v7203
      %7212 = vst [vmem:[#allocation2 + $0x198] sm:$0xf0] %v7204
      %v7213 = vld [vmem:[%s2172] ss:$8 sm:$0xf]
      %v7215 = vlaneseq
      %v7216 = vshrl.u32 %v7215, 7
      %v7217 = vsub.s32 0, %v7216
      %v7218 = vrot.slane %v7213, %v7217
      %v7219 = vlaneseq
      %v7220 = vshrl.u32 %v7219, 7
      %v7221 = vsub.s32 1, %v7220
      %v7222 = vrot.slane %v7213, %v7221
      %v7223 = vlaneseq
      %v7224 = vshrl.u32 %v7223, 7
      %v7225 = vsub.s32 2, %v7224
      %v7226 = vrot.slane %v7213, %v7225
      %v7227 = vlaneseq
      %v7228 = vshrl.u32 %v7227, 7
      %v7229 = vsub.s32 3, %v7228
      %v7230 = vrot.slane %v7213, %v7229
      %v7235 = vmul.f32 %v6467, %v7218
      %v7236 = vmul.f32 %v6466, %v7222
      %v7237 = vmul.f32 %v6465, %v7226
      %v7238 = vmul.f32 %v6468, %v7230
      %7239 = vst [vmem:[#allocation2 + $0x1a0] sm:$0xf] %v7235
      %7240 = vst [vmem:[#allocation2 + $0x1a8] sm:$0xf] %v7236
      %7241 = vst [vmem:[#allocation2 + $0x1b0] sm:$0xf] %v7237
      %7242 = vst [vmem:[#allocation2 + $0x1b8] sm:$0xf] %v7238
      %v7243 = vld [vmem:[%s7] sm:$0xff]
      %v7244 = vld [vmem:[#allocation2] sm:$0xff]
      %v7245 = vld [vmem:[#allocation2 + $0x8] sm:$0xff]
      %v7246 = vld [vmem:[#allocation2 + $0x10] sm:$0xff]
      %v7247 = vld [vmem:[#allocation2 + $0x18] sm:$0xff]
      %v7248 = vld [vmem:[#allocation2 + $0x20] sm:$0xff]
      %v7249 = vld [vmem:[#allocation2 + $0x28] sm:$0xff]
      %v7250 = vld [vmem:[#allocation2 + $0x30] sm:$0xff]
      %v7251 = vld [vmem:[#allocation2 + $0x38] sm:$0xff]
      %v7252 = vld [vmem:[#allocation2 + $0x40] sm:$0xff]
      %v7253 = vld [vmem:[#allocation2 + $0x48] sm:$0xff]
      %v7254 = vld [vmem:[#allocation2 + $0x50] sm:$0xff]
      %v7255 = vld [vmem:[#allocation2 + $0x58] sm:$0xff]
      %v7256 = vld [vmem:[#allocation2 + $0x60] sm:$0xff]
      %v7257 = vld [vmem:[#allocation2 + $0x68] sm:$0xff]
      %v7258 = vld [vmem:[#allocation2 + $0x70] sm:$0xff]
      %v7259 = vld [vmem:[#allocation2 + $0x78] sm:$0xff]
      %v7260 = vld [vmem:[#allocation2 + $0x80] sm:$0xff]
      %v7261 = vld [vmem:[#allocation2 + $0x88] sm:$0xff]
      %v7262 = vld [vmem:[#allocation2 + $0x90] sm:$0xff]
      %v7263 = vld [vmem:[#allocation2 + $0x98] sm:$0xff]
      %v7264 = vld [vmem:[#allocation2 + $0xa0] sm:$0xff]
      %v7265 = vld [vmem:[#allocation2 + $0xa8] sm:$0xff]
      %v7266 = vld [vmem:[#allocation2 + $0xb0] sm:$0xff]
      %v7267 = vld [vmem:[#allocation2 + $0xb8] sm:$0xff]
      %v7268 = vld [vmem:[#allocation2 + $0xc0] sm:$0xff]
      %v7269 = vld [vmem:[#allocation2 + $0xc8] sm:$0xff]
      %v7270 = vld [vmem:[#allocation2 + $0xd0] sm:$0xff]
      %v7271 = vld [vmem:[#allocation2 + $0xd8] sm:$0xff]
      %v7272 = vld [vmem:[#allocation2 + $0xe0] sm:$0xff]
      %v7273 = vld [vmem:[#allocation2 + $0xe8] sm:$0xff]
      %v7274 = vld [vmem:[#allocation2 + $0xf0] sm:$0xff]
      %v7275 = vld [vmem:[#allocation2 + $0xf8] sm:$0xff]
      %v7276 = vld [vmem:[#allocation2 + $0x100] sm:$0xff]
      %v7277 = vld [vmem:[#allocation2 + $0x108] sm:$0xff]
      %v7278 = vld [vmem:[#allocation2 + $0x110] sm:$0xff]
      %v7279 = vld [vmem:[#allocation2 + $0x118] sm:$0xff]
      %v7280 = vld [vmem:[#allocation2 + $0x120] sm:$0xff]
      %v7281 = vld [vmem:[#allocation2 + $0x128] sm:$0xff]
      %v7282 = vld [vmem:[#allocation2 + $0x130] sm:$0xff]
      %v7283 = vld [vmem:[#allocation2 + $0x138] sm:$0xff]
      %v7284 = vld [vmem:[#allocation2 + $0x140] sm:$0xff]
      %v7285 = vld [vmem:[#allocation2 + $0x148] sm:$0xff]
      %v7286 = vld [vmem:[#allocation2 + $0x150] sm:$0xff]
      %v7287 = vld [vmem:[#allocation2 + $0x158] sm:$0xff]
      %v7288 = vld [vmem:[#allocation2 + $0x160] sm:$0xff]
      %v7289 = vld [vmem:[#allocation2 + $0x168] sm:$0xff]
      %v7290 = vld [vmem:[#allocation2 + $0x170] sm:$0xff]
      %v7291 = vld [vmem:[#allocation2 + $0x178] sm:$0xff]
      %v7292 = vld [vmem:[#allocation2 + $0x180] sm:$0xff]
      %v7293 = vld [vmem:[#allocation2 + $0x188] sm:$0xff]
      %v7294 = vld [vmem:[#allocation2 + $0x190] sm:$0xff]
      %v7295 = vld [vmem:[#allocation2 + $0x198] sm:$0xff]
      %v7296 = vld [vmem:[#allocation2 + $0x1a0] sm:$0xff]
      %v7297 = vld [vmem:[#allocation2 + $0x1a8] sm:$0xff]
      %v7298 = vld [vmem:[#allocation2 + $0x1b0] sm:$0xff]
      %v7299 = vld [vmem:[#allocation2 + $0x1b8] sm:$0xff]
      %v7300 = vld [vmem:[%s8] sm:$0xff]
      %7302 = vset.pattern.permute.xlu0 0
      %7303 = vperm.xlu0 %7302, %v7300
      %v7304 = vpop.permute.xlu0 %7303
      %v7307 = vsel %vm3737, %v7243, 0
      %7309 = vmatprep.subr.mxu0 0.0
      %7310 = vmatpush1.msra.mxu0 0.0
      %7311 = vmatprep.subr.mxu0 0.0
      %7312 = vmatpush1.msra.mxu0 0.0
      %7313 = vmatprep.subr.mxu0 %v7297
      %7314 = vmatpush1.msra.mxu0 %v7296
      %7315 = vmatprep.subr.mxu0 %v7293
      %7316 = vmatpush1.msra.mxu0 %v7292
      %7317 = vmatprep.subr.mxu0 %v7289
      %7318 = vmatpush1.msra.mxu0 %v7288
      %7319 = vmatprep.subr.mxu0 %v7285
      %7320 = vmatpush1.msra.mxu0 %v7284
      %7321 = vmatprep.subr.mxu0 %v7281
      %7322 = vmatpush1.msra.mxu0 %v7280
      %7323 = vmatprep.subr.mxu0 %v7277
      %7324 = vmatpush1.msra.mxu0 %v7276
      %7325 = vmatprep.subr.mxu0 %v7273
      %7326 = vmatpush1.msra.mxu0 %v7272
      %7327 = vmatprep.subr.mxu0 %v7269
      %7328 = vmatpush1.msra.mxu0 %v7268
      %7329 = vmatprep.subr.mxu0 %v7265
      %7330 = vmatpush1.msra.mxu0 %v7264
      %7331 = vmatprep.subr.mxu0 %v7261
      %7332 = vmatpush1.msra.mxu0 %v7260
      %7333 = vmatprep.subr.mxu0 %v7257
      %7334 = vmatpush1.msra.mxu0 %v7256
      %7335 = vmatprep.subr.mxu0 %v7253
      %7336 = vmatpush1.msra.mxu0 %v7252
      %7337 = vmatprep.subr.mxu0 %v7249
      %7338 = vmatpush1.msra.mxu0 %v7248
      %7339 = vmatprep.subr.mxu0 %v7245
      %7340 = vmatpush1.msra.mxu0 %v7244
      %7341 = vmatprep.subr.mxu0 0.0
      %7342 = vmatpush2.msra.mxu0 0.0
      %7343 = vmatprep.subr.mxu0 0.0
      %7344 = vmatpush2.msra.mxu0 0.0
      %7345 = vmatprep.subr.mxu0 0.0
      %7346 = vmatpush2.msra.mxu0 0.0
      %7347 = vmatprep.subr.mxu0 0.0
      %7348 = vmatpush2.msra.mxu0 0.0
      %7349 = vmatprep.subr.mxu0 0.0
      %7350 = vmatpush2.msra.mxu0 0.0
      %7351 = vmatprep.subr.mxu0 0.0
      %7352 = vmatpush2.msra.mxu0 0.0
      %7353 = vmatprep.subr.mxu0 0.0
      %7354 = vmatpush2.msra.mxu0 0.0
      %7355 = vmatprep.subr.mxu0 0.0
      %7356 = vmatpush2.msra.mxu0 0.0
      %7357 = vmatprep.subr.mxu0 0.0
      %7358 = vmatpush2.msra.mxu0 0.0
      %7359 = vmatprep.subr.mxu0 0.0
      %7360 = vmatpush2.msra.mxu0 0.0
      %7361 = vmatprep.subr.mxu0 0.0
      %7362 = vmatpush2.msra.mxu0 0.0
      %7363 = vmatprep.subr.mxu0 0.0
      %7364 = vmatpush2.msra.mxu0 0.0
      %7365 = vmatprep.subr.mxu0 0.0
      %7366 = vmatpush2.msra.mxu0 0.0
      %7367 = vmatprep.subr.mxu0 0.0
      %7368 = vmatpush2.msra.mxu0 0.0
      %7369 = vmatprep.subr.mxu0 0.0
      %7370 = vmatpush2.msra.mxu0 0.0
      %7371 = vmatprep.subr.mxu0 0.0
      %7372 = vmatpush2.msra.mxu0 0.0
      %7373 = vmatprep.mubr.f32.mxu0 0.0
      %7374 = vmatmul.mubr.f32.gmra.mxu0 %v7307
      %v7375 = vpop.f32.mrf.mxu0
      %v7376 = vadd.f32 %v7304, %v7375
      %v7377 = vpop.f32.mrf.mxu0
      %v7378 = vadd.f32 %v7304, %v7377
      %7379 = vdwg.mxu0
      %7380 = vmatprep.subr.mxu0 0.0
      %7381 = vmatpush1.msra.mxu0 0.0
      %7382 = vmatprep.subr.mxu0 0.0
      %7383 = vmatpush1.msra.mxu0 0.0
      %7384 = vmatprep.subr.mxu0 %v7299
      %7385 = vmatpush1.msra.mxu0 %v7298
      %7386 = vmatprep.subr.mxu0 %v7295
      %7387 = vmatpush1.msra.mxu0 %v7294
      %7388 = vmatprep.subr.mxu0 %v7291
      %7389 = vmatpush1.msra.mxu0 %v7290
      %7390 = vmatprep.subr.mxu0 %v7287
      %7391 = vmatpush1.msra.mxu0 %v7286
      %7392 = vmatprep.subr.mxu0 %v7283
      %7393 = vmatpush1.msra.mxu0 %v7282
      %7394 = vmatprep.subr.mxu0 %v7279
      %7395 = vmatpush1.msra.mxu0 %v7278
      %7396 = vmatprep.subr.mxu0 %v7275
      %7397 = vmatpush1.msra.mxu0 %v7274
      %7398 = vmatprep.subr.mxu0 %v7271
      %7399 = vmatpush1.msra.mxu0 %v7270
      %7400 = vmatprep.subr.mxu0 %v7267
      %7401 = vmatpush1.msra.mxu0 %v7266
      %7402 = vmatprep.subr.mxu0 %v7263
      %7403 = vmatpush1.msra.mxu0 %v7262
      %7404 = vmatprep.subr.mxu0 %v7259
      %7405 = vmatpush1.msra.mxu0 %v7258
      %7406 = vmatprep.subr.mxu0 %v7255
      %7407 = vmatpush1.msra.mxu0 %v7254
      %7408 = vmatprep.subr.mxu0 %v7251
      %7409 = vmatpush1.msra.mxu0 %v7250
      %7410 = vmatprep.subr.mxu0 %v7247
      %7411 = vmatpush1.msra.mxu0 %v7246
      %7412 = vmatprep.subr.mxu0 0.0
      %7413 = vmatpush2.msra.mxu0 0.0
      %7414 = vmatprep.subr.mxu0 0.0
      %7415 = vmatpush2.msra.mxu0 0.0
      %7416 = vmatprep.subr.mxu0 0.0
      %7417 = vmatpush2.msra.mxu0 0.0
      %7418 = vmatprep.subr.mxu0 0.0
      %7419 = vmatpush2.msra.mxu0 0.0
      %7420 = vmatprep.subr.mxu0 0.0
      %7421 = vmatpush2.msra.mxu0 0.0
      %7422 = vmatprep.subr.mxu0 0.0
      %7423 = vmatpush2.msra.mxu0 0.0
      %7424 = vmatprep.subr.mxu0 0.0
      %7425 = vmatpush2.msra.mxu0 0.0
      %7426 = vmatprep.subr.mxu0 0.0
      %7427 = vmatpush2.msra.mxu0 0.0
      %7428 = vmatprep.subr.mxu0 0.0
      %7429 = vmatpush2.msra.mxu0 0.0
      %7430 = vmatprep.subr.mxu0 0.0
      %7431 = vmatpush2.msra.mxu0 0.0
      %7432 = vmatprep.subr.mxu0 0.0
      %7433 = vmatpush2.msra.mxu0 0.0
      %7434 = vmatprep.subr.mxu0 0.0
      %7435 = vmatpush2.msra.mxu0 0.0
      %7436 = vmatprep.subr.mxu0 0.0
      %7437 = vmatpush2.msra.mxu0 0.0
      %7438 = vmatprep.subr.mxu0 0.0
      %7439 = vmatpush2.msra.mxu0 0.0
      %7440 = vmatprep.subr.mxu0 0.0
      %7441 = vmatpush2.msra.mxu0 0.0
      %7442 = vmatprep.subr.mxu0 0.0
      %7443 = vmatpush2.msra.mxu0 0.0
      %7444 = vmatprep.mubr.f32.mxu0 0.0
      %7445 = vmatmul.mubr.f32.gmra.mxu0 %v7307
      %v7446 = vpop.f32.mrf.mxu0
      %v7447 = vadd.f32 %v7304, %v7446
      %v7448 = vpop.f32.mrf.mxu0
      %v7449 = vadd.f32 %v7304, %v7448
      %7450 = vdwg.mxu0
      %v7451 = vmax.f32 %v7376, 0.0
      %v7452 = vmax.f32 %v7378, 0.0
      %v7453 = vmax.f32 %v7447, 0.0
      %v7454 = vmax.f32 %v7449, 0.0
      %v7455 = vld [vmem:[%s1406] ss:$8 sm:$0xf]
      %v7457 = vlaneseq
      %v7458 = vshrl.u32 %v7457, 7
      %v7459 = vsub.s32 0, %v7458
      %v7460 = vrot.slane %v7455, %v7459
      %v7461 = vlaneseq
      %v7462 = vshrl.u32 %v7461, 7
      %v7463 = vsub.s32 1, %v7462
      %v7464 = vrot.slane %v7455, %v7463
      %v7465 = vlaneseq
      %v7466 = vshrl.u32 %v7465, 7
      %v7467 = vsub.s32 2, %v7466
      %v7468 = vrot.slane %v7455, %v7467
      %v7469 = vlaneseq
      %v7470 = vshrl.u32 %v7469, 7
      %v7471 = vsub.s32 3, %v7470
      %v7472 = vrot.slane %v7455, %v7471
      %v7477 = vmul.f32 %v7451, %v7460
      %v7478 = vmul.f32 %v7452, %v7464
      %v7479 = vmul.f32 %v7453, %v7468
      %v7480 = vmul.f32 %v7454, %v7472
      %v7485 = vcombine.low %v7477, %v7478
      %v7486 = vcombine.low %v7479, %v7480
      %v7488 = vunpack.c.l.s4 1966171168
      %v7489 = vunpack.c.0.s8 %v7488
      %v7490 = vlaneseq
      %v7491 = vshrl.u32 %v7490, 7
      %v7492 = vsub.s32 %v7489, %v7491
      %v7493 = vrot.slane %v7485, %v7492
      %v7495 = vunpack.c.l.s4 1966171168
      %v7496 = vunpack.c.0.s8 %v7495
      %v7497 = vlaneseq
      %v7498 = vshrl.u32 %v7497, 7
      %v7499 = vsub.s32 %v7496, %v7498
      %v7500 = vrot.slane %v7486, %v7499
      %v7501 = vcombine.low %v7493, %v7500
      %v7503 = vunpack.c.l.s4 1966171168
      %v7504 = vunpack.c.0.s8 %v7503
      %v7505 = vlaneseq
      %v7506 = vshrl.u32 %v7505, 7
      %v7507 = vsub.s32 %v7504, %v7506
      %v7508 = vrot.slane %v7501, %v7507
      %7510 = vst.msk [vmem:[%s435] sm:$0xf] %vm539, %v7508
      %p7511 = scmp.lt.s32.totalorder %s24, 1
      %s7512 = scalar_select %p7511, %s24, 1
      %s7513 = smul.addr %s7512, 4
      %s7514 = scalar_lea.vmem %s13, %s7513
      // Predicated region
      $region73: #{cae3d_forward.1} parent=71 // pred_check
        %p7515 = pneg %p320
      $region74: #{cae3d_forward.1} parent=71 // pred_check_branch
        %7517 = sbr.rel (%p7515) target = $region76
      $region75: #{cae3d_forward.1} parent=71 // pred_region
        _
      $region76: #{cae3d_forward.1} parent=71 // pred_fallthru
        _
    $region72: #{cae3d_forward.1} parent=5 // pred_fallthru
      _
    %p7518 = scmp.le.s32.totalorder 2, %s19
    // Predicated region
    $region77: #{cae3d_forward.1} parent=5 // pred_check
      %p7519 = pneg %p7518
    $region78: #{cae3d_forward.1} parent=5 // pred_check_branch
      %7521 = sbr.rel (%p7519) target = $region80
    $region79: #{cae3d_forward.1} parent=5 // pred_region
      %s7522 = ssub.s32 %s19, 2
      // Predicated region
      $region81: #{cae3d_forward.1} parent=79 // pred_check
        %p7523 = pneg %p326
      $region82: #{cae3d_forward.1} parent=79 // pred_check_branch
        %7525 = sbr.rel (%p7523) target = $region84
      $region83: #{cae3d_forward.1} parent=79 // pred_region
        %p7526 = scmp.lt.s32.totalorder %s25, 1
        %s7527 = scalar_select %p7526, %s25, 1
        %s7528 = smul.addr %s7527, 4
        %s7529 = scalar_lea.vmem %s13, %s7528
      $region84: #{cae3d_forward.1} parent=79 // pred_fallthru
        _
    $region80: #{cae3d_forward.1} parent=5 // pred_fallthru
      _
  $region6: #{cae3d_forward.1} parent=0 // loop_footer
    %s23 = sadd.s32 1, %s19
  $region7: #{cae3d_forward.1} parent=0 // loop_footer_branch
    %18 = sbr.rel target = $region3
  $region8: #{cae3d_forward.1} parent=0 // loop_exit
    _

</llo_original>
